<compile_context>
chip_gen: v5e
topology: v5e:2x2
jax: 0.10.0
libtpu: 0.0.40
codegen_flags: <defaults>
</compile_context>

<pallas_src>
import functools

import jax
import jax.numpy as jnp
from jax.experimental import pallas as pl
from jax.experimental.pallas import tpu as pltpu


# --------------------------------------------------------------------------- #
# Spec helpers
# --------------------------------------------------------------------------- #
def _resident_spec(block_shape, single_buffer):
    """BlockSpec for a grid-invariant (constant index_map) input.

    When supported, single-buffer it (pipeline_mode=pl.Buffered(1)): the block
    never changes, so the default double buffer only wastes VMEM.
    """
    if single_buffer:
        try:
            return pl.BlockSpec(block_shape, lambda i: (0, 0),
                                pipeline_mode=pl.Buffered(1))
        except Exception:  # older jax without pipeline_mode on BlockSpec
            pass
    return pl.BlockSpec(block_shape, lambda i: (0, 0))


def _stage2_vmem_bytes(tm, N, P, K, F):
    """Rough per-step VMEM estimate for the attention kernel."""
    per_block = tm * (F * 4 + K * 4 + N * 1 + P * 4)      # h, s_dst, mask, out
    resident = N * P * 2 + K * N * 4 + F * P * 2          # zf, s_src_t, W_self
    temps = 6 * tm * N * 4                                 # softmax temporaries
    return 2 * per_block + resident + temps


def _pick_block_rows(N, P, K, F, budget=40 * 1024 * 1024):
    """Largest dst-row tile that fits `budget`, keeping >= 2 grid blocks."""
    best = None
    for tm in (32, 64, 128, 256):
        if N % tm or N // tm < 2:
            continue
        if best is None or _stage2_vmem_bytes(tm, N, P, K, F) <= budget:
            best = tm
    return best if best is not None else N    # tiny graphs: single full block


def _default_exp_dtype():
    """bf16 exp on chips with a bf16 EUP (v6e/v7x); f32 on v5e and older."""
    try:
        kind = jax.devices()[0].device_kind.lower()
    except Exception:
        return jnp.bfloat16
    if any(tag in kind for tag in ("v2", "v3", "v4", "v5")):
        return jnp.float32
    return jnp.bfloat16


# --------------------------------------------------------------------------- #
# Kernel 1: fused projection  zf = h @ [Wf_0^T | ... | Wf_{K-1}^T]   (bf16)
# --------------------------------------------------------------------------- #
def _gat_project_kernel(h_ref, w_ref, zf_ref):
    zf = jnp.dot(h_ref[...], w_ref[...], preferred_element_type=jnp.float32)
    zf_ref[...] = zf.astype(zf_ref.dtype)


# --------------------------------------------------------------------------- #
# Kernel 2: per-dst-block masked softmax + aggregation + relu + residual
# --------------------------------------------------------------------------- #
def _gat_attention_kernel(h_in_ref, w_self_ref, zf_ref, s_src_t_ref, s_dst_ref,
                          inv_mask_ref, out_ref, *, num_heads, out_feats,
                          exp_dtype):
    K, H = num_heads, out_feats

    h_in = h_in_ref[...]                                  # (TM, F) f32 residual
    # linear_self recomputed on the MXU from the already-resident h tile
    # (removes the bf16 h_s HBM round trip of the previous version).
    hs = jnp.dot(h_in.astype(jnp.bfloat16), w_self_ref[...],
                 preferred_element_type=jnp.float32)      # (TM, P)
    zf = zf_ref[...]                                      # (N, P)  bf16 sources
    s_src_t = s_src_t_ref[...]                            # (K, N)  f32 src logits
    s_dst = s_dst_ref[...]                                # (TM, K) f32 dst logits
    # Additive mask bias, built once per block and reused by every head.
    bias = inv_mask_ref[...].astype(jnp.float32) * jnp.float32(-1e9)  # (TM, N)

    head_outs = []
    for k in range(K):                                    # K is small and static
        e = s_src_t[k:k + 1, :] + s_dst[:, k:k + 1]                   # (TM, N)
        e = jnp.maximum(e, jnp.float32(0.01) * e)                     # leaky_relu
        e = e + bias                                      # -1e9 on non-edges
        m = jnp.max(e, axis=-1, keepdims=True)
        p = jnp.exp((e - m).astype(exp_dtype))            # bf16 EUP on v6e/v7x
        denom = jnp.sum(p.astype(jnp.float32), axis=-1, keepdims=True)
        inv = pl.reciprocal(denom, approx=True)           # EUP slot, not VPU div
        alpha = (p * inv.astype(p.dtype)).astype(jnp.bfloat16)
        agg = jnp.dot(alpha, zf[:, k * H:(k + 1) * H],
                      preferred_element_type=jnp.float32)             # (TM, H)
        hk = jnp.maximum(hs[:, k * H:(k + 1) * H] + agg, 0.0)         # relu=True
        head_outs.append(h_in + hk)                       # residual connection
    # merge='cat': one lane-dense (TM, K*H = 128) store per block.
    out_ref[...] = jnp.concatenate(head_outs, axis=-1).astype(out_ref.dtype)


# --------------------------------------------------------------------------- #
# Wrapper: mirrors MultiHeadGATLayer.forward(g, h, snorm_n)
# --------------------------------------------------------------------------- #
def multi_head_gat_forward(params, adj, h, snorm_n=None, *, merge="cat",
                           block_rows=None, exp_dtype=None,
                           single_buffer_resident=True):
    del snorm_n  # unused by the PyTorch forward
    w_self, w_func, w_att = params["w_self"], params["w_func"], params["w_att"]
    K, H, F = w_self.shape                  # (heads, out_feats, in_feats)
    assert F == H, "residual connection requires in_feats == out_feats"
    N = h.shape[0]
    P = K * H

    if exp_dtype is None:
        exp_dtype = _default_exp_dtype()

    # ---- parameter preprocessing (tiny, done once by XLA) --------------------
    w_self_cat = jnp.transpose(w_self, (2, 0, 1)).reshape(F, P).astype(jnp.bfloat16)
    w_func_cat = jnp.transpose(w_func, (2, 0, 1)).reshape(F, P).astype(jnp.bfloat16)

    # Attention-vector matmuls hoisted out of the per-block kernel: fold a_src /
    # a_dst into Wf (s_* = h @ (Wf^T a_*)) and compute the (N, K) logits once.
    a_src = w_att[:, 0, :H]                                  # (K, H)
    a_dst = w_att[:, 0, H:]                                  # (K, H)
    w_score_src = jnp.einsum("khf,kh->fk", w_func, a_src)    # (F, K)
    w_score_dst = jnp.einsum("khf,kh->fk", w_func, a_dst)    # (F, K)

    h32 = h.astype(jnp.float32)
    h_bf = h32.astype(jnp.bfloat16)                          # bf16 stage-1 stream
    s_src_t = (h32 @ w_score_src).T                          # (K, N) f32, per source
    s_dst = h32 @ w_score_dst                                # (N, K) f32, per dest
    inv_mask = (adj <= 0).astype(jnp.int8)                   # 1 = "no edge" (int8)

    # ---- tiling / VMEM budget -------------------------------------------------
    if block_rows is None:
        block_rows = _pick_block_rows(N, P, K, F)
    num_blocks = max(N // block_rows, 1)
    vmem_need = _stage2_vmem_bytes(block_rows, N, P, K, F)
    vmem_limit = int(min(64 << 20, max(32 << 20, 2 * vmem_need)))

    # ------------------------- stage 1: linear_func slab -----------------------
    zf = pl.pallas_call(
        _gat_project_kernel,
        out_shape=jax.ShapeDtypeStruct((N, P), jnp.bfloat16),
        grid=(num_blocks,),
        in_specs=[pl.BlockSpec((block_rows, F), lambda i: (i, 0)),
                  _resident_spec((F, P), single_buffer_resident)],
        out_specs=pl.BlockSpec((block_rows, P), lambda i: (i, 0)),
        compiler_params=pltpu.CompilerParams(dimension_semantics=("parallel",)),
        cost_estimate=pl.CostEstimate(
            flops=2 * N * F * P,
            transcendentals=0,
            bytes_accessed=N * F * 2 + F * P * 2 + N * P * 2),
    )(h_bf, w_func_cat)

    # ---------------- stage 2: attention + aggregate + relu + residual --------
    kernel = functools.partial(_gat_attention_kernel, num_heads=K, out_feats=H,
                               exp_dtype=exp_dtype)
    out = pl.pallas_call(
        kernel,
        out_shape=jax.ShapeDtypeStruct((N, P), jnp.float32),
        grid=(num_blocks,),
        in_specs=[
            pl.BlockSpec((block_rows, F), lambda i: (i, 0)),       # h (residual + self proj)
            _resident_spec((F, P), single_buffer_resident),        # fused W_self (bf16)
            _resident_spec((N, P), single_buffer_resident),        # z_func, all sources
            _resident_spec((K, N), single_buffer_resident),        # src logits (rows)
            pl.BlockSpec((block_rows, K), lambda i: (i, 0)),       # dst logits (cols)
            pl.BlockSpec((block_rows, N), lambda i: (i, 0)),       # int8 "no edge" mask
        ],
        out_specs=pl.BlockSpec((block_rows, P), lambda i: (i, 0)),
        compiler_params=pltpu.CompilerParams(
            dimension_semantics=("parallel",),
            vmem_limit_bytes=vmem_limit),
        cost_estimate=pl.CostEstimate(
            flops=2 * N * N * P + 2 * N * F * P + 8 * N * N * K,
            transcendentals=N * N * K,
            bytes_accessed=(N * F * 4 + F * P * 2 + N * P * 2 + K * N * 4
                            + N * K * 4 + N * N * 1 + N * P * 4)),
    )(h32, w_self_cat, zf, s_src_t, s_dst, inv_mask)

    if merge == "cat":
        return out                                       # (N, K*H)
    # torch.mean(torch.stack(head_outs)) reduces over ALL elements -> scalar.
    return jnp.mean(out)


# --------------------------------------------------------------------------- #
# Pure-JAX f32 reference (mirrors the PyTorch module in eval mode)
# --------------------------------------------------------------------------- #
def multi_head_gat_reference(params, adj, h):
    w_self, w_func, w_att = params["w_self"], params["w_func"], params["w_att"]
    K, H, _ = w_self.shape
    adj = adj.astype(jnp.float32)
    heads = []
    for k in range(K):
        h_s = h @ w_self[k].T
        z = h @ w_func[k].T
        s_src = z @ w_att[k, 0, :H]
        s_dst = z @ w_att[k, 0, H:]
        e = s_src[None, :] + s_dst[:, None]
        e = jnp.where(e >= 0, e, 0.01 * e)
        e = jnp.where(adj > 0, e, -jnp.inf)
        alpha = jax.nn.softmax(e, axis=-1)
        hk = jnp.maximum(h_s + alpha @ z, 0.0)
        heads.append(h + hk)
    return jnp.concatenate(heads, axis=1)


if __name__ == "__main__":
    key = jax.random.PRNGKey(0)
    k_h, k_adj, k_ws, k_wf, k_wa = jax.random.split(key, 5)

    N = 256          # nodes
    F_IN = 32        # in_feats (== out_feats, required by the residual)
    F_OUT = 32
    HEADS = 4        # concat width = 4 * 32 = 128 lanes (lane-dense output)

    # node features
    h = jax.random.normal(k_h, (N, F_IN), dtype=jnp.float32)

    # random sparse digraph + self-loops; dense {0,1} adjacency adj[dst, src]
    adj = (jax.random.uniform(k_adj, (N, N)) < 0.1).astype(jnp.float32)
    adj = jnp.maximum(adj, jnp.eye(N, dtype=jnp.float32))

    snorm_n = jnp.ones((N, 1), dtype=jnp.float32)   # unused by the forward

    # kaiming_normal_-style init, PyTorch weight layouts:
    #   linear_self/linear_func weight: (out_feats, in_feats), no bias
    #   attention_func weight: (1, 2*out_feats), no bias
    params = {
        "w_self": (jnp.sqrt(2.0 / F_IN)
                   * jax.random.normal(k_ws, (HEADS, F_OUT, F_IN))).astype(jnp.float32),
        "w_func": (jnp.sqrt(2.0 / F_IN)
                   * jax.random.normal(k_wf, (HEADS, F_OUT, F_IN))).astype(jnp.float32),
        "w_att": (jnp.sqrt(1.0 / F_OUT)
                  * jax.random.normal(k_wa, (HEADS, 1, 2 * F_OUT))).astype(jnp.float32),
    }

    fwd = jax.jit(functools.partial(multi_head_gat_forward, params))
    try:
        out = jax.block_until_ready(fwd(adj, h, snorm_n))
    except Exception:
        # Fallback for jax/Mosaic builds that reject single-buffered
        # (pipeline_mode=Buffered(1)) resident inputs: retry double-buffered.
        fwd = jax.jit(functools.partial(multi_head_gat_forward, params,
                                        single_buffer_resident=False))
        out = jax.block_until_ready(fwd(adj, h, snorm_n))

    assert out.shape == (N, HEADS * F_OUT)
    assert bool(jnp.all(jnp.isfinite(out)))

    ref = multi_head_gat_reference(params, adj, h)
    max_err = float(jnp.max(jnp.abs(out - ref)))
    # bf16 MXU operands, bf16 exp (on v6e/v7x) + approx reciprocal -> loose
    # tolerance vs the f32 reference.
    assert bool(jnp.allclose(out, ref, atol=5e-2, rtol=5e-2)), max_err

    print("KERNEL_OK")
</pallas_src>

<mosaic_0001>
module attributes {stable_mosaic.version = 11 : i64} {
  func.func @_gat_project_kernel(%arg0: i32, %arg1: memref<128x32xbf16, #tpu.memory_space<vmem>>, %arg2: memref<32x128xbf16, #tpu.memory_space<vmem>>, %arg3: memref<128x128xbf16, #tpu.memory_space<vmem>>) attributes {dimension_semantics = [#tpu.dimension_semantics<parallel>], iteration_bounds = array<i64: 2>, scalar_prefetch = 0 : i64, scratch_operands = 0 : i64, tpu.core_type = #tpu.core_type<tc>, window_params = [{transform_indices = @transform_0, window_bounds = array<i64: 128, 32>}, {pipeline_mode = #tpu.pipeline_mode<synchronous>, transform_indices = @transform_1, window_bounds = array<i64: 32, 128>}, {transform_indices = @transform_2, window_bounds = array<i64: 128, 128>}]} {
    %c0 = arith.constant 0 : index
    %c0_0 = arith.constant 0 : index
    %0 = vector.load %arg1[%c0, %c0_0] : memref<128x32xbf16, #tpu.memory_space<vmem>>, vector<128x32xbf16>
    %c0_1 = arith.constant 0 : index
    %c0_2 = arith.constant 0 : index
    %1 = vector.load %arg2[%c0_1, %c0_2] : memref<32x128xbf16, #tpu.memory_space<vmem>>, vector<32x128xbf16>
    %cst = arith.constant dense<0.000000e+00> : vector<128x128xf32>
    %2 = tpu.matmul %0, %1, %cst {dimension_numbers = #tpu.dot_dimension_numbers<[1], [0], [0], [1], [0, 0, 1, 1], [], []>} : vector<128x32xbf16>, vector<32x128xbf16>, vector<128x128xf32> -> vector<128x128xf32>
    %3 = arith.truncf %2 : vector<128x128xf32> to vector<128x128xbf16>
    %c0_3 = arith.constant 0 : index
    %c0_4 = arith.constant 0 : index
    %4 = vector.load %arg3[%c0_3, %c0_4] : memref<128x128xbf16, #tpu.memory_space<vmem>>, vector<128x128xbf16>
    tpu.vector_store %arg3[%c0_3, %c0_4], %3 {strides = array<i32>} : memref<128x128xbf16, #tpu.memory_space<vmem>>, vector<128x128xbf16>,
    return
  }
  func.func @transform_0(%arg0: i32) -> (i32, i32) {
    %c0_i32 = arith.constant 0 : i32
    %c0_i32_0 = arith.constant 0 : i32
    return %arg0, %c0_i32 : i32, i32
  }
  func.func @transform_1(%arg0: i32) -> (i32, i32) {
    %c0_i32 = arith.constant 0 : i32
    %c0_i32_0 = arith.constant 0 : i32
    %c0_i32_1 = arith.constant 0 : i32
    return %c0_i32, %c0_i32_0 : i32, i32
  }
  func.func @transform_2(%arg0: i32) -> (i32, i32) {
    %c0_i32 = arith.constant 0 : i32
    %c0_i32_0 = arith.constant 0 : i32
    return %arg0, %c0_i32 : i32, i32
  }
}

module attributes {stable_mosaic.version = 11 : i64} {
  func.func @_gat_attention_kernel(%arg0: i32, %arg1: memref<128x32xf32, #tpu.memory_space<vmem>>, %arg2: memref<32x128xbf16, #tpu.memory_space<vmem>>, %arg3: memref<256x128xbf16, #tpu.memory_space<vmem>>, %arg4: memref<4x256xf32, #tpu.memory_space<vmem>>, %arg5: memref<128x4xf32, #tpu.memory_space<vmem>>, %arg6: memref<128x256xi8, #tpu.memory_space<vmem>>, %arg7: memref<128x128xf32, #tpu.memory_space<vmem>>) attributes {dimension_semantics = [#tpu.dimension_semantics<parallel>], iteration_bounds = array<i64: 2>, scalar_prefetch = 0 : i64, scratch_operands = 0 : i64, tpu.core_type = #tpu.core_type<tc>, window_params = [{transform_indices = @transform_0, window_bounds = array<i64: 128, 32>}, {pipeline_mode = #tpu.pipeline_mode<synchronous>, transform_indices = @transform_1, window_bounds = array<i64: 32, 128>}, {pipeline_mode = #tpu.pipeline_mode<synchronous>, transform_indices = @transform_2, window_bounds = array<i64: 256, 128>}, {pipeline_mode = #tpu.pipeline_mode<synchronous>, transform_indices = @transform_3, window_bounds = array<i64: 4, 256>}, {transform_indices = @transform_4, window_bounds = array<i64: 128, 4>}, {transform_indices = @transform_5, window_bounds = array<i64: 128, 256>}, {transform_indices = @transform_6, window_bounds = array<i64: 128, 128>}]} {
    %c0 = arith.constant 0 : index
    %c0_0 = arith.constant 0 : index
    %0 = vector.load %arg1[%c0, %c0_0] : memref<128x32xf32, #tpu.memory_space<vmem>>, vector<128x32xf32>
    %1 = arith.truncf %0 : vector<128x32xf32> to vector<128x32xbf16>
    %c0_1 = arith.constant 0 : index
    %c0_2 = arith.constant 0 : index
    %2 = vector.load %arg2[%c0_1, %c0_2] : memref<32x128xbf16, #tpu.memory_space<vmem>>, vector<32x128xbf16>
    %cst = arith.constant dense<0.000000e+00> : vector<128x128xf32>
    %3 = tpu.matmul %1, %2, %cst {dimension_numbers = #tpu.dot_dimension_numbers<[1], [0], [0], [1], [0, 0, 1, 1], [], []>} : vector<128x32xbf16>, vector<32x128xbf16>, vector<128x128xf32> -> vector<128x128xf32>
    %c0_3 = arith.constant 0 : index
    %c0_4 = arith.constant 0 : index
    %4 = vector.load %arg3[%c0_3, %c0_4] : memref<256x128xbf16, #tpu.memory_space<vmem>>, vector<256x128xbf16>
    %c0_5 = arith.constant 0 : index
    %c0_6 = arith.constant 0 : index
    %5 = vector.load %arg4[%c0_5, %c0_6] : memref<4x256xf32, #tpu.memory_space<vmem>>, vector<4x256xf32>
    %c0_7 = arith.constant 0 : index
    %c0_8 = arith.constant 0 : index
    %6 = vector.load %arg5[%c0_7, %c0_8] : memref<128x4xf32, #tpu.memory_space<vmem>>, vector<128x4xf32>
    %c0_9 = arith.constant 0 : index
    %c0_10 = arith.constant 0 : index
    %7 = vector.load %arg6[%c0_9, %c0_10] : memref<128x256xi8, #tpu.memory_space<vmem>>, vector<128x256xi8>
    %8 = arith.sitofp %7 : vector<128x256xi8> to vector<128x256xf32>
    %cst_11 = arith.constant -1.000000e+09 : f32
    %9 = vector.broadcast %cst_11 : f32 to vector<128x256xf32>
    %10 = arith.mulf %8, %9 : vector<128x256xf32>
    %11 = vector.extract_strided_slice %5 {offsets = [0, 0], sizes = [1, 256], strides = [1, 1]} : vector<4x256xf32> to vector<1x256xf32>
    %12 = vector.extract_strided_slice %6 {offsets = [0, 0], sizes = [128, 1], strides = [1, 1]} : vector<128x4xf32> to vector<128x1xf32>
    %13 = vector.broadcast %11 : vector<1x256xf32> to vector<128x256xf32>
    %14 = vector.broadcast %12 : vector<128x1xf32> to vector<128x256xf32>
    %15 = arith.addf %13, %14 : vector<128x256xf32>
    %cst_12 = arith.constant 0.00999999977 : f32
    %16 = vector.broadcast %cst_12 : f32 to vector<128x256xf32>
    %17 = arith.mulf %16, %15 : vector<128x256xf32>
    %18 = arith.maximumf %15, %17 : vector<128x256xf32>
    %19 = arith.addf %18, %10 : vector<128x256xf32>
    %cst_13 = arith.constant dense<0xFF800000> : vector<128xf32>
    %20 = vector.multi_reduction <maximumf>, %19, %cst_13 [1] : vector<128x256xf32> to vector<128xf32>
    %21 = vector.shape_cast %20 : vector<128xf32> to vector<128x1xf32>
    %22 = vector.broadcast %21 : vector<128x1xf32> to vector<128x256xf32>
    %23 = arith.subf %19, %22 : vector<128x256xf32>
    %24 = arith.truncf %23 : vector<128x256xf32> to vector<128x256xbf16>
    %25 = math.exp %24 : vector<128x256xbf16>
    %26 = arith.extf %25 : vector<128x256xbf16> to vector<128x256xf32>
    %cst_14 = arith.constant dense<0.000000e+00> : vector<128xf32>
    %27 = vector.multi_reduction <add>, %26, %cst_14 [1] : vector<128x256xf32> to vector<128xf32>
    %28 = vector.shape_cast %27 : vector<128xf32> to vector<128x1xf32>
    %29 = tpu.reciprocal %28 {approx = true} : vector<128x1xf32> -> vector<128x1xf32>
    %30 = arith.truncf %29 : vector<128x1xf32> to vector<128x1xbf16>
    %31 = vector.broadcast %30 : vector<128x1xbf16> to vector<128x256xbf16>
    %32 = arith.mulf %25, %31 : vector<128x256xbf16>
    %33 = vector.extract_strided_slice %4 {offsets = [0, 0], sizes = [256, 32], strides = [1, 1]} : vector<256x128xbf16> to vector<256x32xbf16>
    %cst_15 = arith.constant dense<0.000000e+00> : vector<128x32xf32>
    %34 = tpu.matmul %32, %33, %cst_15 {dimension_numbers = #tpu.dot_dimension_numbers<[1], [0], [0], [1], [0, 0, 1, 1], [], []>} : vector<128x256xbf16>, vector<256x32xbf16>, vector<128x32xf32> -> vector<128x32xf32>
    %35 = vector.extract_strided_slice %3 {offsets = [0, 0], sizes = [128, 32], strides = [1, 1]} : vector<128x128xf32> to vector<128x32xf32>
    %36 = arith.addf %35, %34 : vector<128x32xf32>
    %cst_16 = arith.constant 0.000000e+00 : f32
    %37 = vector.broadcast %cst_16 : f32 to vector<128x32xf32>
    %38 = arith.maximumf %36, %37 : vector<128x32xf32>
    %39 = arith.addf %0, %38 : vector<128x32xf32>
    %40 = vector.extract_strided_slice %5 {offsets = [1, 0], sizes = [1, 256], strides = [1, 1]} : vector<4x256xf32> to vector<1x256xf32>
    %41 = vector.extract_strided_slice %6 {offsets = [0, 1], sizes = [128, 1], strides = [1, 1]} : vector<128x4xf32> to vector<128x1xf32>
    %42 = vector.broadcast %40 : vector<1x256xf32> to vector<128x256xf32>
    %43 = vector.broadcast %41 : vector<128x1xf32> to vector<128x256xf32>
    %44 = arith.addf %42, %43 : vector<128x256xf32>
    %cst_17 = arith.constant 0.00999999977 : f32
    %45 = vector.broadcast %cst_17 : f32 to vector<128x256xf32>
    %46 = arith.mulf %45, %44 : vector<128x256xf32>
    %47 = arith.maximumf %44, %46 : vector<128x256xf32>
    %48 = arith.addf %47, %10 : vector<128x256xf32>
    %cst_18 = arith.constant dense<0xFF800000> : vector<128xf32>
    %49 = vector.multi_reduction <maximumf>, %48, %cst_18 [1] : vector<128x256xf32> to vector<128xf32>
    %50 = vector.shape_cast %49 : vector<128xf32> to vector<128x1xf32>
    %51 = vector.broadcast %50 : vector<128x1xf32> to vector<128x256xf32>
    %52 = arith.subf %48, %51 : vector<128x256xf32>
    %53 = arith.truncf %52 : vector<128x256xf32> to vector<128x256xbf16>
    %54 = math.exp %53 : vector<128x256xbf16>
    %55 = arith.extf %54 : vector<128x256xbf16> to vector<128x256xf32>
    %cst_19 = arith.constant dense<0.000000e+00> : vector<128xf32>
    %56 = vector.multi_reduction <add>, %55, %cst_19 [1] : vector<128x256xf32> to vector<128xf32>
    %57 = vector.shape_cast %56 : vector<128xf32> to vector<128x1xf32>
    %58 = tpu.reciprocal %57 {approx = true} : vector<128x1xf32> -> vector<128x1xf32>
    %59 = arith.truncf %58 : vector<128x1xf32> to vector<128x1xbf16>
    %60 = vector.broadcast %59 : vector<128x1xbf16> to vector<128x256xbf16>
    %61 = arith.mulf %54, %60 : vector<128x256xbf16>
    %62 = vector.extract_strided_slice %4 {offsets = [0, 32], sizes = [256, 32], strides = [1, 1]} : vector<256x128xbf16> to vector<256x32xbf16>
    %cst_20 = arith.constant dense<0.000000e+00> : vector<128x32xf32>
    %63 = tpu.matmul %61, %62, %cst_20 {dimension_numbers = #tpu.dot_dimension_numbers<[1], [0], [0], [1], [0, 0, 1, 1], [], []>} : vector<128x256xbf16>, vector<256x32xbf16>, vector<128x32xf32> -> vector<128x32xf32>
    %64 = vector.extract_strided_slice %3 {offsets = [0, 32], sizes = [128, 32], strides = [1, 1]} : vector<128x128xf32> to vector<128x32xf32>
    %65 = arith.addf %64, %63 : vector<128x32xf32>
    %cst_21 = arith.constant 0.000000e+00 : f32
    %66 = vector.broadcast %cst_21 : f32 to vector<128x32xf32>
    %67 = arith.maximumf %65, %66 : vector<128x32xf32>
    %68 = arith.addf %0, %67 : vector<128x32xf32>
    %69 = vector.extract_strided_slice %5 {offsets = [2, 0], sizes = [1, 256], strides = [1, 1]} : vector<4x256xf32> to vector<1x256xf32>
    %70 = vector.extract_strided_slice %6 {offsets = [0, 2], sizes = [128, 1], strides = [1, 1]} : vector<128x4xf32> to vector<128x1xf32>
    %71 = vector.broadcast %69 : vector<1x256xf32> to vector<128x256xf32>
    %72 = vector.broadcast %70 : vector<128x1xf32> to vector<128x256xf32>
    %73 = arith.addf %71, %72 : vector<128x256xf32>
    %cst_22 = arith.constant 0.00999999977 : f32
    %74 = vector.broadcast %cst_22 : f32 to vector<128x256xf32>
    %75 = arith.mulf %74, %73 : vector<128x256xf32>
    %76 = arith.maximumf %73, %75 : vector<128x256xf32>
    %77 = arith.addf %76, %10 : vector<128x256xf32>
    %cst_23 = arith.constant dense<0xFF800000> : vector<128xf32>
    %78 = vector.multi_reduction <maximumf>, %77, %cst_23 [1] : vector<128x256xf32> to vector<128xf32>
    %79 = vector.shape_cast %78 : vector<128xf32> to vector<128x1xf32>
    %80 = vector.broadcast %79 : vector<128x1xf32> to vector<128x256xf32>
    %81 = arith.subf %77, %80 : vector<128x256xf32>
    %82 = arith.truncf %81 : vector<128x256xf32> to vector<128x256xbf16>
    %83 = math.exp %82 : vector<128x256xbf16>
    %84 = arith.extf %83 : vector<128x256xbf16> to vector<128x256xf32>
    %cst_24 = arith.constant dense<0.000000e+00> : vector<128xf32>
    %85 = vector.multi_reduction <add>, %84, %cst_24 [1] : vector<128x256xf32> to vector<128xf32>
    %86 = vector.shape_cast %85 : vector<128xf32> to vector<128x1xf32>
    %87 = tpu.reciprocal %86 {approx = true} : vector<128x1xf32> -> vector<128x1xf32>
    %88 = arith.truncf %87 : vector<128x1xf32> to vector<128x1xbf16>
    %89 = vector.broadcast %88 : vector<128x1xbf16> to vector<128x256xbf16>
    %90 = arith.mulf %83, %89 : vector<128x256xbf16>
    %91 = vector.extract_strided_slice %4 {offsets = [0, 64], sizes = [256, 32], strides = [1, 1]} : vector<256x128xbf16> to vector<256x32xbf16>
    %cst_25 = arith.constant dense<0.000000e+00> : vector<128x32xf32>
    %92 = tpu.matmul %90, %91, %cst_25 {dimension_numbers = #tpu.dot_dimension_numbers<[1], [0], [0], [1], [0, 0, 1, 1], [], []>} : vector<128x256xbf16>, vector<256x32xbf16>, vector<128x32xf32> -> vector<128x32xf32>
    %93 = vector.extract_strided_slice %3 {offsets = [0, 64], sizes = [128, 32], strides = [1, 1]} : vector<128x128xf32> to vector<128x32xf32>
    %94 = arith.addf %93, %92 : vector<128x32xf32>
    %cst_26 = arith.constant 0.000000e+00 : f32
    %95 = vector.broadcast %cst_26 : f32 to vector<128x32xf32>
    %96 = arith.maximumf %94, %95 : vector<128x32xf32>
    %97 = arith.addf %0, %96 : vector<128x32xf32>
    %98 = vector.extract_strided_slice %5 {offsets = [3, 0], sizes = [1, 256], strides = [1, 1]} : vector<4x256xf32> to vector<1x256xf32>
    %99 = vector.extract_strided_slice %6 {offsets = [0, 3], sizes = [128, 1], strides = [1, 1]} : vector<128x4xf32> to vector<128x1xf32>
    %100 = vector.broadcast %98 : vector<1x256xf32> to vector<128x256xf32>
    %101 = vector.broadcast %99 : vector<128x1xf32> to vector<128x256xf32>
    %102 = arith.addf %100, %101 : vector<128x256xf32>
    %cst_27 = arith.constant 0.00999999977 : f32
    %103 = vector.broadcast %cst_27 : f32 to vector<128x256xf32>
    %104 = arith.mulf %103, %102 : vector<128x256xf32>
    %105 = arith.maximumf %102, %104 : vector<128x256xf32>
    %106 = arith.addf %105, %10 : vector<128x256xf32>
    %cst_28 = arith.constant dense<0xFF800000> : vector<128xf32>
    %107 = vector.multi_reduction <maximumf>, %106, %cst_28 [1] : vector<128x256xf32> to vector<128xf32>
    %108 = vector.shape_cast %107 : vector<128xf32> to vector<128x1xf32>
    %109 = vector.broadcast %108 : vector<128x1xf32> to vector<128x256xf32>
    %110 = arith.subf %106, %109 : vector<128x256xf32>
    %111 = arith.truncf %110 : vector<128x256xf32> to vector<128x256xbf16>
    %112 = math.exp %111 : vector<128x256xbf16>
    %113 = arith.extf %112 : vector<128x256xbf16> to vector<128x256xf32>
    %cst_29 = arith.constant dense<0.000000e+00> : vector<128xf32>
    %114 = vector.multi_reduction <add>, %113, %cst_29 [1] : vector<128x256xf32> to vector<128xf32>
    %115 = vector.shape_cast %114 : vector<128xf32> to vector<128x1xf32>
    %116 = tpu.reciprocal %115 {approx = true} : vector<128x1xf32> -> vector<128x1xf32>
    %117 = arith.truncf %116 : vector<128x1xf32> to vector<128x1xbf16>
    %118 = vector.broadcast %117 : vector<128x1xbf16> to vector<128x256xbf16>
    %119 = arith.mulf %112, %118 : vector<128x256xbf16>
    %120 = vector.extract_strided_slice %4 {offsets = [0, 96], sizes = [256, 32], strides = [1, 1]} : vector<256x128xbf16> to vector<256x32xbf16>
    %cst_30 = arith.constant dense<0.000000e+00> : vector<128x32xf32>
    %121 = tpu.matmul %119, %120, %cst_30 {dimension_numbers = #tpu.dot_dimension_numbers<[1], [0], [0], [1], [0, 0, 1, 1], [], []>} : vector<128x256xbf16>, vector<256x32xbf16>, vector<128x32xf32> -> vector<128x32xf32>
    %122 = vector.extract_strided_slice %3 {offsets = [0, 96], sizes = [128, 32], strides = [1, 1]} : vector<128x128xf32> to vector<128x32xf32>
    %123 = arith.addf %122, %121 : vector<128x32xf32>
    %cst_31 = arith.constant 0.000000e+00 : f32
    %124 = vector.broadcast %cst_31 : f32 to vector<128x32xf32>
    %125 = arith.maximumf %123, %124 : vector<128x32xf32>
    %126 = arith.addf %0, %125 : vector<128x32xf32>
    %127 = tpu.concatenate %39, %68, %97, %126 in 1 : vector<128x32xf32>, vector<128x32xf32>, vector<128x32xf32>, vector<128x32xf32> -> vector<128x128xf32>
    %c0_32 = arith.constant 0 : index
    %c0_33 = arith.constant 0 : index
    %128 = vector.load %arg7[%c0_32, %c0_33] : memref<128x128xf32, #tpu.memory_space<vmem>>, vector<128x128xf32>
    tpu.vector_store %arg7[%c0_32, %c0_33], %127 {strides = array<i32>} : memref<128x128xf32, #tpu.memory_space<vmem>>, vector<128x128xf32>,
    return
  }
  func.func @transform_0(%arg0: i32) -> (i32, i32) {
    %c0_i32 = arith.constant 0 : i32
    %c0_i32_0 = arith.constant 0 : i32
    return %arg0, %c0_i32 : i32, i32
  }
  func.func @transform_1(%arg0: i32) -> (i32, i32) {
    %c0_i32 = arith.constant 0 : i32
    %c0_i32_0 = arith.constant 0 : i32
    %c0_i32_1 = arith.constant 0 : i32
    return %c0_i32, %c0_i32_0 : i32, i32
  }
  func.func @transform_2(%arg0: i32) -> (i32, i32) {
    %c0_i32 = arith.constant 0 : i32
    %c0_i32_0 = arith.constant 0 : i32
    %c0_i32_1 = arith.constant 0 : i32
    return %c0_i32, %c0_i32_0 : i32, i32
  }
  func.func @transform_3(%arg0: i32) -> (i32, i32) {
    %c0_i32 = arith.constant 0 : i32
    %c0_i32_0 = arith.constant 0 : i32
    %c0_i32_1 = arith.constant 0 : i32
    return %c0_i32, %c0_i32_0 : i32, i32
  }
  func.func @transform_4(%arg0: i32) -> (i32, i32) {
    %c0_i32 = arith.constant 0 : i32
    %c0_i32_0 = arith.constant 0 : i32
    return %arg0, %c0_i32 : i32, i32
  }
  func.func @transform_5(%arg0: i32) -> (i32, i32) {
    %c0_i32 = arith.constant 0 : i32
    %c0_i32_0 = arith.constant 0 : i32
    return %arg0, %c0_i32 : i32, i32
  }
  func.func @transform_6(%arg0: i32) -> (i32, i32) {
    %c0_i32 = arith.constant 0 : i32
    %c0_i32_0 = arith.constant 0 : i32
    return %arg0, %c0_i32 : i32, i32
  }
}

module attributes {stable_mosaic.version = 11 : i64} {
  func.func @_gat_project_kernel(%arg0: i32, %arg1: memref<128x32xbf16, #tpu.memory_space<vmem>>, %arg2: memref<32x128xbf16, #tpu.memory_space<vmem>>, %arg3: memref<128x128xbf16, #tpu.memory_space<vmem>>) attributes {dimension_semantics = [#tpu.dimension_semantics<parallel>], iteration_bounds = array<i64: 2>, scalar_prefetch = 0 : i64, scratch_operands = 0 : i64, tpu.core_type = #tpu.core_type<tc>, window_params = [{transform_indices = @transform_0, window_bounds = array<i64: 128, 32>}, {pipeline_mode = #tpu.pipeline_mode<synchronous>, transform_indices = @transform_1, window_bounds = array<i64: 32, 128>}, {transform_indices = @transform_2, window_bounds = array<i64: 128, 128>}]} {
    %c0 = arith.constant 0 : index
    %c0_0 = arith.constant 0 : index
    %0 = vector.load %arg1[%c0, %c0_0] : memref<128x32xbf16, #tpu.memory_space<vmem>>, vector<128x32xbf16>
    %c0_1 = arith.constant 0 : index
    %c0_2 = arith.constant 0 : index
    %1 = vector.load %arg2[%c0_1, %c0_2] : memref<32x128xbf16, #tpu.memory_space<vmem>>, vector<32x128xbf16>
    %cst = arith.constant dense<0.000000e+00> : vector<128x128xf32>
    %2 = tpu.matmul %0, %1, %cst {dimension_numbers = #tpu.dot_dimension_numbers<[1], [0], [0], [1], [0, 0, 1, 1], [], []>} : vector<128x32xbf16>, vector<32x128xbf16>, vector<128x128xf32> -> vector<128x128xf32>
    %3 = arith.truncf %2 : vector<128x128xf32> to vector<128x128xbf16>
    %c0_3 = arith.constant 0 : index
    %c0_4 = arith.constant 0 : index
    %4 = vector.load %arg3[%c0_3, %c0_4] : memref<128x128xbf16, #tpu.memory_space<vmem>>, vector<128x128xbf16>
    tpu.vector_store %arg3[%c0_3, %c0_4], %3 {strides = array<i32>} : memref<128x128xbf16, #tpu.memory_space<vmem>>, vector<128x128xbf16>,
    return
  }
  func.func @transform_0(%arg0: i32) -> (i32, i32) {
    %c0_i32 = arith.constant 0 : i32
    %c0_i32_0 = arith.constant 0 : i32
    return %arg0, %c0_i32 : i32, i32
  }
  func.func @transform_1(%arg0: i32) -> (i32, i32) {
    %c0_i32 = arith.constant 0 : i32
    %c0_i32_0 = arith.constant 0 : i32
    %c0_i32_1 = arith.constant 0 : i32
    return %c0_i32, %c0_i32_0 : i32, i32
  }
  func.func @transform_2(%arg0: i32) -> (i32, i32) {
    %c0_i32 = arith.constant 0 : i32
    %c0_i32_0 = arith.constant 0 : i32
    return %arg0, %c0_i32 : i32, i32
  }
}

module attributes {stable_mosaic.version = 11 : i64} {
  func.func @_gat_attention_kernel(%arg0: i32, %arg1: memref<128x32xf32, #tpu.memory_space<vmem>>, %arg2: memref<32x128xbf16, #tpu.memory_space<vmem>>, %arg3: memref<256x128xbf16, #tpu.memory_space<vmem>>, %arg4: memref<4x256xf32, #tpu.memory_space<vmem>>, %arg5: memref<128x4xf32, #tpu.memory_space<vmem>>, %arg6: memref<128x256xi8, #tpu.memory_space<vmem>>, %arg7: memref<128x128xf32, #tpu.memory_space<vmem>>) attributes {dimension_semantics = [#tpu.dimension_semantics<parallel>], iteration_bounds = array<i64: 2>, scalar_prefetch = 0 : i64, scratch_operands = 0 : i64, tpu.core_type = #tpu.core_type<tc>, window_params = [{transform_indices = @transform_0, window_bounds = array<i64: 128, 32>}, {pipeline_mode = #tpu.pipeline_mode<synchronous>, transform_indices = @transform_1, window_bounds = array<i64: 32, 128>}, {pipeline_mode = #tpu.pipeline_mode<synchronous>, transform_indices = @transform_2, window_bounds = array<i64: 256, 128>}, {pipeline_mode = #tpu.pipeline_mode<synchronous>, transform_indices = @transform_3, window_bounds = array<i64: 4, 256>}, {transform_indices = @transform_4, window_bounds = array<i64: 128, 4>}, {transform_indices = @transform_5, window_bounds = array<i64: 128, 256>}, {transform_indices = @transform_6, window_bounds = array<i64: 128, 128>}]} {
    %c0 = arith.constant 0 : index
    %c0_0 = arith.constant 0 : index
    %0 = vector.load %arg1[%c0, %c0_0] : memref<128x32xf32, #tpu.memory_space<vmem>>, vector<128x32xf32>
    %1 = arith.truncf %0 : vector<128x32xf32> to vector<128x32xbf16>
    %c0_1 = arith.constant 0 : index
    %c0_2 = arith.constant 0 : index
    %2 = vector.load %arg2[%c0_1, %c0_2] : memref<32x128xbf16, #tpu.memory_space<vmem>>, vector<32x128xbf16>
    %cst = arith.constant dense<0.000000e+00> : vector<128x128xf32>
    %3 = tpu.matmul %1, %2, %cst {dimension_numbers = #tpu.dot_dimension_numbers<[1], [0], [0], [1], [0, 0, 1, 1], [], []>} : vector<128x32xbf16>, vector<32x128xbf16>, vector<128x128xf32> -> vector<128x128xf32>
    %c0_3 = arith.constant 0 : index
    %c0_4 = arith.constant 0 : index
    %4 = vector.load %arg3[%c0_3, %c0_4] : memref<256x128xbf16, #tpu.memory_space<vmem>>, vector<256x128xbf16>
    %c0_5 = arith.constant 0 : index
    %c0_6 = arith.constant 0 : index
    %5 = vector.load %arg4[%c0_5, %c0_6] : memref<4x256xf32, #tpu.memory_space<vmem>>, vector<4x256xf32>
    %c0_7 = arith.constant 0 : index
    %c0_8 = arith.constant 0 : index
    %6 = vector.load %arg5[%c0_7, %c0_8] : memref<128x4xf32, #tpu.memory_space<vmem>>, vector<128x4xf32>
    %c0_9 = arith.constant 0 : index
    %c0_10 = arith.constant 0 : index
    %7 = vector.load %arg6[%c0_9, %c0_10] : memref<128x256xi8, #tpu.memory_space<vmem>>, vector<128x256xi8>
    %8 = arith.sitofp %7 : vector<128x256xi8> to vector<128x256xf32>
    %cst_11 = arith.constant -1.000000e+09 : f32
    %9 = vector.broadcast %cst_11 : f32 to vector<128x256xf32>
    %10 = arith.mulf %8, %9 : vector<128x256xf32>
    %11 = vector.extract_strided_slice %5 {offsets = [0, 0], sizes = [1, 256], strides = [1, 1]} : vector<4x256xf32> to vector<1x256xf32>
    %12 = vector.extract_strided_slice %6 {offsets = [0, 0], sizes = [128, 1], strides = [1, 1]} : vector<128x4xf32> to vector<128x1xf32>
    %13 = vector.broadcast %11 : vector<1x256xf32> to vector<128x256xf32>
    %14 = vector.broadcast %12 : vector<128x1xf32> to vector<128x256xf32>
    %15 = arith.addf %13, %14 : vector<128x256xf32>
    %cst_12 = arith.constant 0.00999999977 : f32
    %16 = vector.broadcast %cst_12 : f32 to vector<128x256xf32>
    %17 = arith.mulf %16, %15 : vector<128x256xf32>
    %18 = arith.maximumf %15, %17 : vector<128x256xf32>
    %19 = arith.addf %18, %10 : vector<128x256xf32>
    %cst_13 = arith.constant dense<0xFF800000> : vector<128xf32>
    %20 = vector.multi_reduction <maximumf>, %19, %cst_13 [1] : vector<128x256xf32> to vector<128xf32>
    %21 = vector.shape_cast %20 : vector<128xf32> to vector<128x1xf32>
    %22 = vector.broadcast %21 : vector<128x1xf32> to vector<128x256xf32>
    %23 = arith.subf %19, %22 : vector<128x256xf32>
    %24 = arith.truncf %23 : vector<128x256xf32> to vector<128x256xbf16>
    %25 = math.exp %24 : vector<128x256xbf16>
    %26 = arith.extf %25 : vector<128x256xbf16> to vector<128x256xf32>
    %cst_14 = arith.constant dense<0.000000e+00> : vector<128xf32>
    %27 = vector.multi_reduction <add>, %26, %cst_14 [1] : vector<128x256xf32> to vector<128xf32>
    %28 = vector.shape_cast %27 : vector<128xf32> to vector<128x1xf32>
    %29 = tpu.reciprocal %28 {approx = true} : vector<128x1xf32> -> vector<128x1xf32>
    %30 = arith.truncf %29 : vector<128x1xf32> to vector<128x1xbf16>
    %31 = vector.broadcast %30 : vector<128x1xbf16> to vector<128x256xbf16>
    %32 = arith.mulf %25, %31 : vector<128x256xbf16>
    %33 = vector.extract_strided_slice %4 {offsets = [0, 0], sizes = [256, 32], strides = [1, 1]} : vector<256x128xbf16> to vector<256x32xbf16>
    %cst_15 = arith.constant dense<0.000000e+00> : vector<128x32xf32>
    %34 = tpu.matmul %32, %33, %cst_15 {dimension_numbers = #tpu.dot_dimension_numbers<[1], [0], [0], [1], [0, 0, 1, 1], [], []>} : vector<128x256xbf16>, vector<256x32xbf16>, vector<128x32xf32> -> vector<128x32xf32>
    %35 = vector.extract_strided_slice %3 {offsets = [0, 0], sizes = [128, 32], strides = [1, 1]} : vector<128x128xf32> to vector<128x32xf32>
    %36 = arith.addf %35, %34 : vector<128x32xf32>
    %cst_16 = arith.constant 0.000000e+00 : f32
    %37 = vector.broadcast %cst_16 : f32 to vector<128x32xf32>
    %38 = arith.maximumf %36, %37 : vector<128x32xf32>
    %39 = arith.addf %0, %38 : vector<128x32xf32>
    %40 = vector.extract_strided_slice %5 {offsets = [1, 0], sizes = [1, 256], strides = [1, 1]} : vector<4x256xf32> to vector<1x256xf32>
    %41 = vector.extract_strided_slice %6 {offsets = [0, 1], sizes = [128, 1], strides = [1, 1]} : vector<128x4xf32> to vector<128x1xf32>
    %42 = vector.broadcast %40 : vector<1x256xf32> to vector<128x256xf32>
    %43 = vector.broadcast %41 : vector<128x1xf32> to vector<128x256xf32>
    %44 = arith.addf %42, %43 : vector<128x256xf32>
    %cst_17 = arith.constant 0.00999999977 : f32
    %45 = vector.broadcast %cst_17 : f32 to vector<128x256xf32>
    %46 = arith.mulf %45, %44 : vector<128x256xf32>
    %47 = arith.maximumf %44, %46 : vector<128x256xf32>
    %48 = arith.addf %47, %10 : vector<128x256xf32>
    %cst_18 = arith.constant dense<0xFF800000> : vector<128xf32>
    %49 = vector.multi_reduction <maximumf>, %48, %cst_18 [1] : vector<128x256xf32> to vector<128xf32>
    %50 = vector.shape_cast %49 : vector<128xf32> to vector<128x1xf32>
    %51 = vector.broadcast %50 : vector<128x1xf32> to vector<128x256xf32>
    %52 = arith.subf %48, %51 : vector<128x256xf32>
    %53 = arith.truncf %52 : vector<128x256xf32> to vector<128x256xbf16>
    %54 = math.exp %53 : vector<128x256xbf16>
    %55 = arith.extf %54 : vector<128x256xbf16> to vector<128x256xf32>
    %cst_19 = arith.constant dense<0.000000e+00> : vector<128xf32>
    %56 = vector.multi_reduction <add>, %55, %cst_19 [1] : vector<128x256xf32> to vector<128xf32>
    %57 = vector.shape_cast %56 : vector<128xf32> to vector<128x1xf32>
    %58 = tpu.reciprocal %57 {approx = true} : vector<128x1xf32> -> vector<128x1xf32>
    %59 = arith.truncf %58 : vector<128x1xf32> to vector<128x1xbf16>
    %60 = vector.broadcast %59 : vector<128x1xbf16> to vector<128x256xbf16>
    %61 = arith.mulf %54, %60 : vector<128x256xbf16>
    %62 = vector.extract_strided_slice %4 {offsets = [0, 32], sizes = [256, 32], strides = [1, 1]} : vector<256x128xbf16> to vector<256x32xbf16>
    %cst_20 = arith.constant dense<0.000000e+00> : vector<128x32xf32>
    %63 = tpu.matmul %61, %62, %cst_20 {dimension_numbers = #tpu.dot_dimension_numbers<[1], [0], [0], [1], [0, 0, 1, 1], [], []>} : vector<128x256xbf16>, vector<256x32xbf16>, vector<128x32xf32> -> vector<128x32xf32>
    %64 = vector.extract_strided_slice %3 {offsets = [0, 32], sizes = [128, 32], strides = [1, 1]} : vector<128x128xf32> to vector<128x32xf32>
    %65 = arith.addf %64, %63 : vector<128x32xf32>
    %cst_21 = arith.constant 0.000000e+00 : f32
    %66 = vector.broadcast %cst_21 : f32 to vector<128x32xf32>
    %67 = arith.maximumf %65, %66 : vector<128x32xf32>
    %68 = arith.addf %0, %67 : vector<128x32xf32>
    %69 = vector.extract_strided_slice %5 {offsets = [2, 0], sizes = [1, 256], strides = [1, 1]} : vector<4x256xf32> to vector<1x256xf32>
    %70 = vector.extract_strided_slice %6 {offsets = [0, 2], sizes = [128, 1], strides = [1, 1]} : vector<128x4xf32> to vector<128x1xf32>
    %71 = vector.broadcast %69 : vector<1x256xf32> to vector<128x256xf32>
    %72 = vector.broadcast %70 : vector<128x1xf32> to vector<128x256xf32>
    %73 = arith.addf %71, %72 : vector<128x256xf32>
    %cst_22 = arith.constant 0.00999999977 : f32
    %74 = vector.broadcast %cst_22 : f32 to vector<128x256xf32>
    %75 = arith.mulf %74, %73 : vector<128x256xf32>
    %76 = arith.maximumf %73, %75 : vector<128x256xf32>
    %77 = arith.addf %76, %10 : vector<128x256xf32>
    %cst_23 = arith.constant dense<0xFF800000> : vector<128xf32>
    %78 = vector.multi_reduction <maximumf>, %77, %cst_23 [1] : vector<128x256xf32> to vector<128xf32>
    %79 = vector.shape_cast %78 : vector<128xf32> to vector<128x1xf32>
    %80 = vector.broadcast %79 : vector<128x1xf32> to vector<128x256xf32>
    %81 = arith.subf %77, %80 : vector<128x256xf32>
    %82 = arith.truncf %81 : vector<128x256xf32> to vector<128x256xbf16>
    %83 = math.exp %82 : vector<128x256xbf16>
    %84 = arith.extf %83 : vector<128x256xbf16> to vector<128x256xf32>
    %cst_24 = arith.constant dense<0.000000e+00> : vector<128xf32>
    %85 = vector.multi_reduction <add>, %84, %cst_24 [1] : vector<128x256xf32> to vector<128xf32>
    %86 = vector.shape_cast %85 : vector<128xf32> to vector<128x1xf32>
    %87 = tpu.reciprocal %86 {approx = true} : vector<128x1xf32> -> vector<128x1xf32>
    %88 = arith.truncf %87 : vector<128x1xf32> to vector<128x1xbf16>
    %89 = vector.broadcast %88 : vector<128x1xbf16> to vector<128x256xbf16>
    %90 = arith.mulf %83, %89 : vector<128x256xbf16>
    %91 = vector.extract_strided_slice %4 {offsets = [0, 64], sizes = [256, 32], strides = [1, 1]} : vector<256x128xbf16> to vector<256x32xbf16>
    %cst_25 = arith.constant dense<0.000000e+00> : vector<128x32xf32>
    %92 = tpu.matmul %90, %91, %cst_25 {dimension_numbers = #tpu.dot_dimension_numbers<[1], [0], [0], [1], [0, 0, 1, 1], [], []>} : vector<128x256xbf16>, vector<256x32xbf16>, vector<128x32xf32> -> vector<128x32xf32>
    %93 = vector.extract_strided_slice %3 {offsets = [0, 64], sizes = [128, 32], strides = [1, 1]} : vector<128x128xf32> to vector<128x32xf32>
    %94 = arith.addf %93, %92 : vector<128x32xf32>
    %cst_26 = arith.constant 0.000000e+00 : f32
    %95 = vector.broadcast %cst_26 : f32 to vector<128x32xf32>
    %96 = arith.maximumf %94, %95 : vector<128x32xf32>
    %97 = arith.addf %0, %96 : vector<128x32xf32>
    %98 = vector.extract_strided_slice %5 {offsets = [3, 0], sizes = [1, 256], strides = [1, 1]} : vector<4x256xf32> to vector<1x256xf32>
    %99 = vector.extract_strided_slice %6 {offsets = [0, 3], sizes = [128, 1], strides = [1, 1]} : vector<128x4xf32> to vector<128x1xf32>
    %100 = vector.broadcast %98 : vector<1x256xf32> to vector<128x256xf32>
    %101 = vector.broadcast %99 : vector<128x1xf32> to vector<128x256xf32>
    %102 = arith.addf %100, %101 : vector<128x256xf32>
    %cst_27 = arith.constant 0.00999999977 : f32
    %103 = vector.broadcast %cst_27 : f32 to vector<128x256xf32>
    %104 = arith.mulf %103, %102 : vector<128x256xf32>
    %105 = arith.maximumf %102, %104 : vector<128x256xf32>
    %106 = arith.addf %105, %10 : vector<128x256xf32>
    %cst_28 = arith.constant dense<0xFF800000> : vector<128xf32>
    %107 = vector.multi_reduction <maximumf>, %106, %cst_28 [1] : vector<128x256xf32> to vector<128xf32>
    %108 = vector.shape_cast %107 : vector<128xf32> to vector<128x1xf32>
    %109 = vector.broadcast %108 : vector<128x1xf32> to vector<128x256xf32>
    %110 = arith.subf %106, %109 : vector<128x256xf32>
    %111 = arith.truncf %110 : vector<128x256xf32> to vector<128x256xbf16>
    %112 = math.exp %111 : vector<128x256xbf16>
    %113 = arith.extf %112 : vector<128x256xbf16> to vector<128x256xf32>
    %cst_29 = arith.constant dense<0.000000e+00> : vector<128xf32>
    %114 = vector.multi_reduction <add>, %113, %cst_29 [1] : vector<128x256xf32> to vector<128xf32>
    %115 = vector.shape_cast %114 : vector<128xf32> to vector<128x1xf32>
    %116 = tpu.reciprocal %115 {approx = true} : vector<128x1xf32> -> vector<128x1xf32>
    %117 = arith.truncf %116 : vector<128x1xf32> to vector<128x1xbf16>
    %118 = vector.broadcast %117 : vector<128x1xbf16> to vector<128x256xbf16>
    %119 = arith.mulf %112, %118 : vector<128x256xbf16>
    %120 = vector.extract_strided_slice %4 {offsets = [0, 96], sizes = [256, 32], strides = [1, 1]} : vector<256x128xbf16> to vector<256x32xbf16>
    %cst_30 = arith.constant dense<0.000000e+00> : vector<128x32xf32>
    %121 = tpu.matmul %119, %120, %cst_30 {dimension_numbers = #tpu.dot_dimension_numbers<[1], [0], [0], [1], [0, 0, 1, 1], [], []>} : vector<128x256xbf16>, vector<256x32xbf16>, vector<128x32xf32> -> vector<128x32xf32>
    %122 = vector.extract_strided_slice %3 {offsets = [0, 96], sizes = [128, 32], strides = [1, 1]} : vector<128x128xf32> to vector<128x32xf32>
    %123 = arith.addf %122, %121 : vector<128x32xf32>
    %cst_31 = arith.constant 0.000000e+00 : f32
    %124 = vector.broadcast %cst_31 : f32 to vector<128x32xf32>
    %125 = arith.maximumf %123, %124 : vector<128x32xf32>
    %126 = arith.addf %0, %125 : vector<128x32xf32>
    %127 = tpu.concatenate %39, %68, %97, %126 in 1 : vector<128x32xf32>, vector<128x32xf32>, vector<128x32xf32>, vector<128x32xf32> -> vector<128x128xf32>
    %c0_32 = arith.constant 0 : index
    %c0_33 = arith.constant 0 : index
    %128 = vector.load %arg7[%c0_32, %c0_33] : memref<128x128xf32, #tpu.memory_space<vmem>>, vector<128x128xf32>
    tpu.vector_store %arg7[%c0_32, %c0_33], %127 {strides = array<i32>} : memref<128x128xf32, #tpu.memory_space<vmem>>, vector<128x128xf32>,
    return
  }
  func.func @transform_0(%arg0: i32) -> (i32, i32) {
    %c0_i32 = arith.constant 0 : i32
    %c0_i32_0 = arith.constant 0 : i32
    return %arg0, %c0_i32 : i32, i32
  }
  func.func @transform_1(%arg0: i32) -> (i32, i32) {
    %c0_i32 = arith.constant 0 : i32
    %c0_i32_0 = arith.constant 0 : i32
    %c0_i32_1 = arith.constant 0 : i32
    return %c0_i32, %c0_i32_0 : i32, i32
  }
  func.func @transform_2(%arg0: i32) -> (i32, i32) {
    %c0_i32 = arith.constant 0 : i32
    %c0_i32_0 = arith.constant 0 : i32
    %c0_i32_1 = arith.constant 0 : i32
    return %c0_i32, %c0_i32_0 : i32, i32
  }
  func.func @transform_3(%arg0: i32) -> (i32, i32) {
    %c0_i32 = arith.constant 0 : i32
    %c0_i32_0 = arith.constant 0 : i32
    %c0_i32_1 = arith.constant 0 : i32
    return %c0_i32, %c0_i32_0 : i32, i32
  }
  func.func @transform_4(%arg0: i32) -> (i32, i32) {
    %c0_i32 = arith.constant 0 : i32
    %c0_i32_0 = arith.constant 0 : i32
    return %arg0, %c0_i32 : i32, i32
  }
  func.func @transform_5(%arg0: i32) -> (i32, i32) {
    %c0_i32 = arith.constant 0 : i32
    %c0_i32_0 = arith.constant 0 : i32
    return %arg0, %c0_i32 : i32, i32
  }
  func.func @transform_6(%arg0: i32) -> (i32, i32) {
    %c0_i32 = arith.constant 0 : i32
    %c0_i32_0 = arith.constant 0 : i32
    return %arg0, %c0_i32 : i32, i32
  }
}

</mosaic_0001>

<llo_original>
// kernel: multi_head_gat_forward.2
$region0: #{multi_head_gat_forward.2}
  #allocation0 [shape = 'u32[]', space=smem, size = 0x4, offset = 0x4, fixed_abs, tag = 'smem constant byte address 0x4 - core index']
  #allocation1 [shape = 'u32[72,128]{1,0:T(1,128)}', space=vmem, size = 0x9000, scoped, tag = 'internal scratch']
  %s0 = inlined_call_operand.vmem [shape: bf16[256,32], index: 0, kind: input, shape index: {}]
  %s1 = inlined_call_operand.vmem [shape: bf16[32,128], index: 1, kind: input, shape index: {}]
  %s2 = inlined_call_operand.vmem [shape: bf16[256,128], index: 2, kind: output, shape index: {}]
  %s3 = sld [smem:[#allocation0]]
  $region41: #{multi_head_gat_forward.2} parent=0
    _
  %s5 = ssub.s32 1, %s3
  %s6 = scalar_select 0, %s5, %s3
  loop: start=0, step=1, limit=4
  $region2: #{multi_head_gat_forward.2} parent=0 // loop_pre_header
    _
  $region3: #{multi_head_gat_forward.2} parent=0 // loop_header
    %s8 = sphi 0, %s12
    %p9 = scmp.ge.s32.totalorder %s8, 4
    %s18 = sphi 0, %s20
    %s21 = sphi 0, %s18
    %s22 = sphi 0, %s21
    %s38 = sphi 0, %s22
    %s42 = sphi 0, %s42
    %s44 = sphi 0, %s42
    %s45 = sphi 0, %s44
    %s59 = sphi 0, %s45
    %s65 = sphi 0, %s67
    %s68 = sphi 0, %s65
    %s69 = sphi 0, %s68
    %s85 = sphi 0, %s69
  $region4: #{multi_head_gat_forward.2} parent=0 // loop_header_branch
    %11 = sbr.rel (%p9) target = $region8
  $region5: #{multi_head_gat_forward.2} parent=0 // loop_body
    %s13 = ssub.s32 %s8, 1
    %s14 = ssub.s32 %s8, 2
    %s15 = sadd.s32 %s8, 1
    %s16 = ssub.s32 %s8, %s15
    %p17 = scmp.eq.s32.totalorder %s16, 0
    %s19 = sadd.s32 %s18, 1
    %s20 = scalar_select %p17, %s18, %s19
    %p23 = pneg %p17
    %p24 = scmp.eq.s32.totalorder %s8, 1
    %p25 = por %p23, %p24
    %p26 = scmp.ne.s32.totalorder %s18, %s21
    %p27 = scmp.eq.s32.totalorder %s8, 0
    %p28 = por %p26, %p27
    %p29 = scmp.ne.s32.totalorder %s18, %s21
    %p30 = scmp.eq.s32.totalorder %s13, 1
    %p31 = por %p29, %p30
    %p32 = scmp.ne.s32.totalorder %s21, %s22
    %p33 = scmp.eq.s32.totalorder %s13, 0
    %p34 = por %p32, %p33
    %p35 = scmp.ne.s32.totalorder %s21, %s22
    %p36 = scmp.eq.s32.totalorder %s14, 1
    %p37 = por %p35, %p36
    %p39 = scmp.ne.s32.totalorder %s22, %s38
    %p40 = scmp.eq.s32.totalorder %s14, 0
    %p41 = por %p39, %p40
    %s43 = sadd.s32 %s42, 1
    %p46 = scmp.eq.s32.totalorder %s8, 1
    %p47 = scmp.ne.s32.totalorder %s42, %s44
    %p48 = scmp.eq.s32.totalorder %s8, 0
    %p49 = por %p47, %p48
    %p50 = scmp.ne.s32.totalorder %s42, %s44
    %p51 = scmp.eq.s32.totalorder %s13, 1
    %p52 = por %p50, %p51
    %p53 = scmp.ne.s32.totalorder %s44, %s45
    %p54 = scmp.eq.s32.totalorder %s13, 0
    %p55 = por %p53, %p54
    %p56 = scmp.ne.s32.totalorder %s44, %s45
    %p57 = scmp.eq.s32.totalorder %s14, 1
    %p58 = por %p56, %p57
    %p60 = scmp.ne.s32.totalorder %s45, %s59
    %p61 = scmp.eq.s32.totalorder %s14, 0
    %p62 = por %p60, %p61
    %s63 = ssub.s32 %s8, %s15
    %p64 = scmp.eq.s32.totalorder %s63, 0
    %s66 = sadd.s32 %s65, 1
    %s67 = scalar_select %p64, %s65, %s66
    %p70 = pneg %p64
    %p71 = scmp.eq.s32.totalorder %s8, 1
    %p72 = por %p70, %p71
    %p73 = scmp.ne.s32.totalorder %s65, %s68
    %p74 = scmp.eq.s32.totalorder %s8, 0
    %p75 = por %p73, %p74
    %p76 = scmp.ne.s32.totalorder %s65, %s68
    %p77 = scmp.eq.s32.totalorder %s13, 1
    %p78 = por %p76, %p77
    %p79 = scmp.ne.s32.totalorder %s68, %s69
    %p80 = scmp.eq.s32.totalorder %s13, 0
    %p81 = por %p79, %p80
    %p82 = scmp.ne.s32.totalorder %s68, %s69
    %p83 = scmp.eq.s32.totalorder %s14, 1
    %p84 = por %p82, %p83
    %p86 = scmp.ne.s32.totalorder %s69, %s85
    %p87 = scmp.eq.s32.totalorder %s14, 0
    %p88 = por %p86, %p87
    %p89 = scmp.le.s32.totalorder 1, %s8
    %p90 = scmp.lt.s32.totalorder %s8, 3
    %p91 = pnand %p89, %p90
    %p92 = pneg %p91
    // Predicated region
    $region9: #{multi_head_gat_forward.2} parent=5 // pred_check
      _
    $region10: #{multi_head_gat_forward.2} parent=5 // pred_check_branch
      %94 = sbr.rel (%p91) target = $region12
    $region11: #{multi_head_gat_forward.2} parent=5 // pred_region
      %s95 = ssub.s32 %s8, 1
      // Predicated region
      $region13: #{multi_head_gat_forward.2} parent=11 // pred_check
        %p96 = pneg %p55
      $region14: #{multi_head_gat_forward.2} parent=11 // pred_check_branch
        %98 = sbr.rel (%p96) target = $region16
      $region15: #{multi_head_gat_forward.2} parent=11 // pred_region
        _
      $region16: #{multi_head_gat_forward.2} parent=11 // pred_fallthru
        _
    $region12: #{multi_head_gat_forward.2} parent=5 // pred_fallthru
      _
    %p99 = scmp.lt.s32.totalorder %s8, 2
    // Predicated region
    $region17: #{multi_head_gat_forward.2} parent=5 // pred_check
      %p100 = pneg %p99
    $region18: #{multi_head_gat_forward.2} parent=5 // pred_check_branch
      %102 = sbr.rel (%p100) target = $region20
    $region19: #{multi_head_gat_forward.2} parent=5 // pred_region
      // Predicated region
      $region21: #{multi_head_gat_forward.2} parent=19 // pred_check
        %p103 = pneg %p28
      $region22: #{multi_head_gat_forward.2} parent=19 // pred_check_branch
        %105 = sbr.rel (%p103) target = $region24
      $region23: #{multi_head_gat_forward.2} parent=19 // pred_region
        %s106 = smul.u32 16, %s8
        %p107 = scmp.lt.s32.totalorder %s106, 31
        %s108 = scalar_select %p107, %s106, 31
        %s109 = smul.addr %s108, 4
        %s110 = scalar_lea.vmem %s0, %s109
        %s111 = smul.u32 16, %s8
      $region24: #{multi_head_gat_forward.2} parent=19 // pred_fallthru
        _
    $region20: #{multi_head_gat_forward.2} parent=5 // pred_fallthru
      _
    %p112 = scmp.le.s32.totalorder 1, %s8
    %p113 = scmp.lt.s32.totalorder %s8, 3
    %p114 = pnand %p112, %p113
    %p115 = pneg %p114
    // Predicated region
    $region25: #{multi_head_gat_forward.2} parent=5 // pred_check
      _
    $region26: #{multi_head_gat_forward.2} parent=5 // pred_check_branch
      %117 = sbr.rel (%p114) target = $region28
    $region27: #{multi_head_gat_forward.2} parent=5 // pred_region
      %s118 = ssub.s32 %s8, 1
      %s119 = smul.u32 16, %s13
      %p120 = scmp.lt.s32.totalorder %s119, 31
      %s121 = scalar_select %p120, %s119, 31
      %s122 = smul.addr %s121, 4
      %s123 = scalar_lea.vmem %s0, %s122
      %p124 = pneg %p34
      %p125 = pneg %p31
      %p126 = pneg %p55
      %p127 = pneg %p52
      %p128 = pneg %p81
      %p129 = pneg %p78
      %s130 = smul.u32 16, %s13
      %p131 = scmp.lt.s32.totalorder %s130, 31
      %s132 = scalar_select %p131, %s130, 31
      %s133 = smul.addr %s132, 4
      %s134 = scalar_lea.vmem %s2, %s133
      %s135 = smul.u32 16, %s13
      %p136 = scmp.lt.s32.totalorder %s135, 31
      %s137 = scalar_select %p136, %s135, 31
      %s138 = smul.addr %s137, 4
      %s139 = scalar_lea.vmem %s0, %s138
      %s140 = smul.u32 16, %s13
      %s141 = smul.u32 16, %s13
      %p142 = scmp.lt.s32.totalorder %s141, 31
      %s143 = scalar_select %p142, %s141, 31
      %s144 = smul.addr %s143, 4
      %s145 = scalar_lea.vmem %s2, %s144
      %s146 = smul.u32 16, %s13
      %v148 = vld [vmem:[%s139] sm:$0xf]
      %v149 = vld [vmem:[%s139 + $0x4] sm:$0xf]
      %v150 = vld [vmem:[%s139 + $0x8] sm:$0xf]
      %v151 = vld [vmem:[%s139 + $0xc] sm:$0xf]
      %v152 = vld [vmem:[%s139 + $0x10] sm:$0xf]
      %v153 = vld [vmem:[%s139 + $0x14] sm:$0xf]
      %v154 = vld [vmem:[%s139 + $0x18] sm:$0xf]
      %v155 = vld [vmem:[%s139 + $0x1c] sm:$0xf]
      %v156 = vld [vmem:[%s139 + $0x20] sm:$0xf]
      %v157 = vld [vmem:[%s139 + $0x24] sm:$0xf]
      %v158 = vld [vmem:[%s139 + $0x28] sm:$0xf]
      %v159 = vld [vmem:[%s139 + $0x2c] sm:$0xf]
      %v160 = vld [vmem:[%s139 + $0x30] sm:$0xf]
      %v161 = vld [vmem:[%s139 + $0x34] sm:$0xf]
      %v162 = vld [vmem:[%s139 + $0x38] sm:$0xf]
      %v163 = vld [vmem:[%s139 + $0x3c] sm:$0xf]
      %v164 = vld [vmem:[%s1] sm:$0xf]
      %v165 = vld [vmem:[%s1 + $0x4] sm:$0xf]
      %v166 = vld [vmem:[%s1 + $0x8] sm:$0xf]
      %v167 = vld [vmem:[%s1 + $0xc] sm:$0xf]
      %v184 = vunpack.c.l.b16 %v148
      %v185 = vunpack.c.l.b16 %v149
      %v186 = vunpack.c.l.b16 %v150
      %v187 = vunpack.c.l.b16 %v151
      %v188 = vunpack.c.l.b16 %v152
      %v189 = vunpack.c.l.b16 %v153
      %v190 = vunpack.c.l.b16 %v154
      %v191 = vunpack.c.l.b16 %v155
      %v192 = vunpack.c.l.b16 %v156
      %v193 = vunpack.c.l.b16 %v157
      %v194 = vunpack.c.l.b16 %v158
      %v195 = vunpack.c.l.b16 %v159
      %v196 = vunpack.c.l.b16 %v160
      %v197 = vunpack.c.l.b16 %v161
      %v198 = vunpack.c.l.b16 %v162
      %v199 = vunpack.c.l.b16 %v163
      %v200 = vpack.c.b16 %v185, %v184
      %v201 = vpack.c.b16 %v187, %v186
      %v202 = vpack.c.b16 %v189, %v188
      %v203 = vpack.c.b16 %v191, %v190
      %v204 = vpack.c.b16 %v193, %v192
      %v205 = vpack.c.b16 %v195, %v194
      %v206 = vpack.c.b16 %v197, %v196
      %v207 = vpack.c.b16 %v199, %v198
      %v212 = vunpack.c.l.b16 %v164
      %v213 = vunpack.c.l.b16 %v165
      %v214 = vunpack.c.l.b16 %v166
      %v215 = vunpack.c.l.b16 %v167
      %v216 = vpack.c.b16 %v213, %v212
      %v217 = vpack.c.b16 %v215, %v214
      %vm220 = vcmask 261120
      %v222 = vsel %vm220, %v200, 0
      %v225 = vsel %vm220, %v201, 0
      %v228 = vsel %vm220, %v202, 0
      %v231 = vsel %vm220, %v203, 0
      %v234 = vsel %vm220, %v204, 0
      %v237 = vsel %vm220, %v205, 0
      %v240 = vsel %vm220, %v206, 0
      %v243 = vsel %vm220, %v207, 0
      %245 = vmatpush.bf16.msra.mxu0 0
      %246 = vmatpush.bf16.msra.mxu0 0
      %247 = vmatpush.bf16.msra.mxu0 0
      %248 = vmatpush.bf16.msra.mxu0 0
      %249 = vmatpush.bf16.msra.mxu0 0
      %250 = vmatpush.bf16.msra.mxu0 0
      %251 = vmatpush.bf16.msra.mxu0 %v217
      %252 = vmatpush.bf16.msra.mxu0 %v216
      %253 = vmatmul.bf16.gmra.mxu0 %v222
      %v254 = vpop.f32.mrf.mxu0
      %v255 = vadd.f32 0.0, %v254
      %v256 = vpop.f32.mrf.mxu0
      %v257 = vadd.f32 0.0, %v256
      %258 = vmatmul.bf16.gmra.mxu0 %v225
      %v259 = vpop.f32.mrf.mxu0
      %v260 = vadd.f32 0.0, %v259
      %v261 = vpop.f32.mrf.mxu0
      %v262 = vadd.f32 0.0, %v261
      %263 = vmatmul.bf16.gmra.mxu0 %v228
      %v264 = vpop.f32.mrf.mxu0
      %v265 = vadd.f32 0.0, %v264
      %v266 = vpop.f32.mrf.mxu0
      %v267 = vadd.f32 0.0, %v266
      %268 = vmatmul.bf16.gmra.mxu0 %v231
      %v269 = vpop.f32.mrf.mxu0
      %v270 = vadd.f32 0.0, %v269
      %v271 = vpop.f32.mrf.mxu0
      %v272 = vadd.f32 0.0, %v271
      %273 = vmatmul.bf16.gmra.mxu0 %v234
      %v274 = vpop.f32.mrf.mxu0
      %v275 = vadd.f32 0.0, %v274
      %v276 = vpop.f32.mrf.mxu0
      %v277 = vadd.f32 0.0, %v276
      %278 = vmatmul.bf16.gmra.mxu0 %v237
      %v279 = vpop.f32.mrf.mxu0
      %v280 = vadd.f32 0.0, %v279
      %v281 = vpop.f32.mrf.mxu0
      %v282 = vadd.f32 0.0, %v281
      %283 = vmatmul.bf16.gmra.mxu0 %v240
      %v284 = vpop.f32.mrf.mxu0
      %v285 = vadd.f32 0.0, %v284
      %v286 = vpop.f32.mrf.mxu0
      %v287 = vadd.f32 0.0, %v286
      %288 = vmatmul.bf16.gmra.mxu0 %v243
      %v289 = vpop.f32.mrf.mxu0
      %v290 = vadd.f32 0.0, %v289
      %v291 = vpop.f32.mrf.mxu0
      %v292 = vadd.f32 0.0, %v291
      %293 = vdwg.mxu0
      %v294 = vpack.c.bf16 %v255, %v255
      %v295 = vpack.c.bf16 %v257, %v257
      %v296 = vpack.c.bf16 %v260, %v260
      %v297 = vpack.c.bf16 %v262, %v262
      %v298 = vpack.c.bf16 %v265, %v265
      %v299 = vpack.c.bf16 %v267, %v267
      %v300 = vpack.c.bf16 %v270, %v270
      %v301 = vpack.c.bf16 %v272, %v272
      %v302 = vpack.c.bf16 %v275, %v275
      %v303 = vpack.c.bf16 %v277, %v277
      %v304 = vpack.c.bf16 %v280, %v280
      %v305 = vpack.c.bf16 %v282, %v282
      %v306 = vpack.c.bf16 %v285, %v285
      %v307 = vpack.c.bf16 %v287, %v287
      %v308 = vpack.c.bf16 %v290, %v290
      %v309 = vpack.c.bf16 %v292, %v292
      %310 = vst [vmem:[%s145] sm:$0xf] %v294
      %311 = vst [vmem:[%s145 + $0x4] sm:$0xf] %v295
      %312 = vst [vmem:[%s145 + $0x8] sm:$0xf] %v296
      %313 = vst [vmem:[%s145 + $0xc] sm:$0xf] %v297
      %314 = vst [vmem:[%s145 + $0x10] sm:$0xf] %v298
      %315 = vst [vmem:[%s145 + $0x14] sm:$0xf] %v299
      %316 = vst [vmem:[%s145 + $0x18] sm:$0xf] %v300
      %317 = vst [vmem:[%s145 + $0x1c] sm:$0xf] %v301
      %318 = vst [vmem:[%s145 + $0x20] sm:$0xf] %v302
      %319 = vst [vmem:[%s145 + $0x24] sm:$0xf] %v303
      %320 = vst [vmem:[%s145 + $0x28] sm:$0xf] %v304
      %321 = vst [vmem:[%s145 + $0x2c] sm:$0xf] %v305
      %322 = vst [vmem:[%s145 + $0x30] sm:$0xf] %v306
      %323 = vst [vmem:[%s145 + $0x34] sm:$0xf] %v307
      %324 = vst [vmem:[%s145 + $0x38] sm:$0xf] %v308
      %325 = vst [vmem:[%s145 + $0x3c] sm:$0xf] %v309
      %s326 = smul.u32 16, %s13
      %p327 = scmp.lt.s32.totalorder %s326, 31
      %s328 = scalar_select %p327, %s326, 31
      %s329 = smul.addr %s328, 4
      %s330 = scalar_lea.vmem %s2, %s329
      // Predicated region
      $region29: #{multi_head_gat_forward.2} parent=27 // pred_check
        %p331 = pneg %p78
      $region30: #{multi_head_gat_forward.2} parent=27 // pred_check_branch
        %333 = sbr.rel (%p331) target = $region32
      $region31: #{multi_head_gat_forward.2} parent=27 // pred_region
        %s334 = smul.u32 16, %s13
      $region32: #{multi_head_gat_forward.2} parent=27 // pred_fallthru
        _
    $region28: #{multi_head_gat_forward.2} parent=5 // pred_fallthru
      _
    %p335 = scmp.le.s32.totalorder 2, %s8
    // Predicated region
    $region33: #{multi_head_gat_forward.2} parent=5 // pred_check
      %p336 = pneg %p335
    $region34: #{multi_head_gat_forward.2} parent=5 // pred_check_branch
      %338 = sbr.rel (%p336) target = $region36
    $region35: #{multi_head_gat_forward.2} parent=5 // pred_region
      %s339 = ssub.s32 %s8, 2
      // Predicated region
      $region37: #{multi_head_gat_forward.2} parent=35 // pred_check
        %p340 = pneg %p84
      $region38: #{multi_head_gat_forward.2} parent=35 // pred_check_branch
        %342 = sbr.rel (%p340) target = $region40
      $region39: #{multi_head_gat_forward.2} parent=35 // pred_region
        %s343 = smul.u32 16, %s14
        %p344 = scmp.lt.s32.totalorder %s343, 31
        %s345 = scalar_select %p344, %s343, 31
        %s346 = smul.addr %s345, 4
        %s347 = scalar_lea.vmem %s2, %s346
      $region40: #{multi_head_gat_forward.2} parent=35 // pred_fallthru
        _
    $region36: #{multi_head_gat_forward.2} parent=5 // pred_fallthru
      _
  $region6: #{multi_head_gat_forward.2} parent=0 // loop_footer
    %s12 = sadd.s32 1, %s8
  $region7: #{multi_head_gat_forward.2} parent=0 // loop_footer_branch
    %7 = sbr.rel target = $region3
  $region8: #{multi_head_gat_forward.2} parent=0 // loop_exit
    _

// kernel: multi_head_gat_forward.3
$region0: #{multi_head_gat_forward.3}
  #allocation0 [shape = 'u32[]', space=smem, size = 0x4, offset = 0x4, fixed_abs, tag = 'smem constant byte address 0x4 - core index']
  #allocation1 [shape = 'u32[72,128]{1,0:T(1,128)}', space=vmem, size = 0x9000, scoped, tag = 'internal scratch']
  %s0 = inlined_call_operand.vmem [shape: f32[256,32], index: 0, kind: input, shape index: {}]
  %s1 = inlined_call_operand.vmem [shape: bf16[32,128], index: 1, kind: input, shape index: {}]
  %s2 = inlined_call_operand.vmem [shape: bf16[256,128], index: 2, kind: input, shape index: {}]
  %s3 = inlined_call_operand.vmem [shape: f32[4,256], index: 3, kind: input, shape index: {}]
  %s4 = inlined_call_operand.vmem [shape: f32[256,4], index: 4, kind: input, shape index: {}]
  %s5 = inlined_call_operand.vmem [shape: s8[256,256], index: 5, kind: input, shape index: {}]
  %s6 = inlined_call_operand.hbm [shape: f32[256,128], index: 6, kind: output, shape index: {}]
  %s7 = sld [smem:[#allocation0]]
  $region57: #{multi_head_gat_forward.3} parent=0
    _
  %s9 = ssub.s32 1, %s7
  %s10 = scalar_select 0, %s9, %s7
  $region1: #{multi_head_gat_forward.3} parent=0
    #allocation2 [shape = 'u8[131072]{0}', space=vmem, size = 0x20000, scoped, tag = 'output window, operand 0']
    #allocation3 [shape = 's32[2]{0}', space=sflag, size = 0x8, scoped, tag = 'scoped memory for multi_head_gat_forward.3']
    %11 = vsyncpa [#allocation3], 0
    %s12 = scalar_lea.sflag [#allocation3], 1
    %13 = vsyncpa %s12, 0
    loop: start=0, step=1, limit=4
    $region2: #{multi_head_gat_forward.3} parent=1 // loop_pre_header
      _
    $region3: #{multi_head_gat_forward.3} parent=1 // loop_header
      %s15 = sphi 0, %s19
      %p16 = scmp.ge.s32.totalorder %s15, 4
      %s25 = sphi 0, %s27
      %s28 = sphi 0, %s25
      %s29 = sphi 0, %s28
      %s45 = sphi 0, %s29
      %s49 = sphi 0, %s49
      %s51 = sphi 0, %s49
      %s52 = sphi 0, %s51
      %s66 = sphi 0, %s52
      %s70 = sphi 0, %s70
      %s72 = sphi 0, %s70
      %s73 = sphi 0, %s72
      %s87 = sphi 0, %s73
      %s91 = sphi 0, %s91
      %s93 = sphi 0, %s91
      %s94 = sphi 0, %s93
      %s108 = sphi 0, %s94
      %s114 = sphi 0, %s116
      %s117 = sphi 0, %s114
      %s118 = sphi 0, %s117
      %s134 = sphi 0, %s118
      %s140 = sphi 0, %s142
      %s143 = sphi 0, %s140
      %s144 = sphi 0, %s143
      %s160 = sphi 0, %s144
      %s166 = sphi 0, %s168
      %s169 = sphi 0, %s166
      %s170 = sphi 0, %s169
      %s186 = sphi 0, %s170
    $region4: #{multi_head_gat_forward.3} parent=1 // loop_header_branch
      %18 = sbr.rel (%p16) target = $region8
    $region5: #{multi_head_gat_forward.3} parent=1 // loop_body
      %s20 = ssub.s32 %s15, 1
      %s21 = ssub.s32 %s15, 2
      %s22 = sadd.s32 %s15, 1
      %s23 = ssub.s32 %s15, %s22
      %p24 = scmp.eq.s32.totalorder %s23, 0
      %s26 = sadd.s32 %s25, 1
      %s27 = scalar_select %p24, %s25, %s26
      %p30 = pneg %p24
      %p31 = scmp.eq.s32.totalorder %s15, 1
      %p32 = por %p30, %p31
      %p33 = scmp.ne.s32.totalorder %s25, %s28
      %p34 = scmp.eq.s32.totalorder %s15, 0
      %p35 = por %p33, %p34
      %p36 = scmp.ne.s32.totalorder %s25, %s28
      %p37 = scmp.eq.s32.totalorder %s20, 1
      %p38 = por %p36, %p37
      %p39 = scmp.ne.s32.totalorder %s28, %s29
      %p40 = scmp.eq.s32.totalorder %s20, 0
      %p41 = por %p39, %p40
      %p42 = scmp.ne.s32.totalorder %s28, %s29
      %p43 = scmp.eq.s32.totalorder %s21, 1
      %p44 = por %p42, %p43
      %p46 = scmp.ne.s32.totalorder %s29, %s45
      %p47 = scmp.eq.s32.totalorder %s21, 0
      %p48 = por %p46, %p47
      %s50 = sadd.s32 %s49, 1
      %p53 = scmp.eq.s32.totalorder %s15, 1
      %p54 = scmp.ne.s32.totalorder %s49, %s51
      %p55 = scmp.eq.s32.totalorder %s15, 0
      %p56 = por %p54, %p55
      %p57 = scmp.ne.s32.totalorder %s49, %s51
      %p58 = scmp.eq.s32.totalorder %s20, 1
      %p59 = por %p57, %p58
      %p60 = scmp.ne.s32.totalorder %s51, %s52
      %p61 = scmp.eq.s32.totalorder %s20, 0
      %p62 = por %p60, %p61
      %p63 = scmp.ne.s32.totalorder %s51, %s52
      %p64 = scmp.eq.s32.totalorder %s21, 1
      %p65 = por %p63, %p64
      %p67 = scmp.ne.s32.totalorder %s52, %s66
      %p68 = scmp.eq.s32.totalorder %s21, 0
      %p69 = por %p67, %p68
      %s71 = sadd.s32 %s70, 1
      %p74 = scmp.eq.s32.totalorder %s15, 1
      %p75 = scmp.ne.s32.totalorder %s70, %s72
      %p76 = scmp.eq.s32.totalorder %s15, 0
      %p77 = por %p75, %p76
      %p78 = scmp.ne.s32.totalorder %s70, %s72
      %p79 = scmp.eq.s32.totalorder %s20, 1
      %p80 = por %p78, %p79
      %p81 = scmp.ne.s32.totalorder %s72, %s73
      %p82 = scmp.eq.s32.totalorder %s20, 0
      %p83 = por %p81, %p82
      %p84 = scmp.ne.s32.totalorder %s72, %s73
      %p85 = scmp.eq.s32.totalorder %s21, 1
      %p86 = por %p84, %p85
      %p88 = scmp.ne.s32.totalorder %s73, %s87
      %p89 = scmp.eq.s32.totalorder %s21, 0
      %p90 = por %p88, %p89
      %s92 = sadd.s32 %s91, 1
      %p95 = scmp.eq.s32.totalorder %s15, 1
      %p96 = scmp.ne.s32.totalorder %s91, %s93
      %p97 = scmp.eq.s32.totalorder %s15, 0
      %p98 = por %p96, %p97
      %p99 = scmp.ne.s32.totalorder %s91, %s93
      %p100 = scmp.eq.s32.totalorder %s20, 1
      %p101 = por %p99, %p100
      %p102 = scmp.ne.s32.totalorder %s93, %s94
      %p103 = scmp.eq.s32.totalorder %s20, 0
      %p104 = por %p102, %p103
      %p105 = scmp.ne.s32.totalorder %s93, %s94
      %p106 = scmp.eq.s32.totalorder %s21, 1
      %p107 = por %p105, %p106
      %p109 = scmp.ne.s32.totalorder %s94, %s108
      %p110 = scmp.eq.s32.totalorder %s21, 0
      %p111 = por %p109, %p110
      %s112 = ssub.s32 %s15, %s22
      %p113 = scmp.eq.s32.totalorder %s112, 0
      %s115 = sadd.s32 %s114, 1
      %s116 = scalar_select %p113, %s114, %s115
      %p119 = pneg %p113
      %p120 = scmp.eq.s32.totalorder %s15, 1
      %p121 = por %p119, %p120
      %p122 = scmp.ne.s32.totalorder %s114, %s117
      %p123 = scmp.eq.s32.totalorder %s15, 0
      %p124 = por %p122, %p123
      %p125 = scmp.ne.s32.totalorder %s114, %s117
      %p126 = scmp.eq.s32.totalorder %s20, 1
      %p127 = por %p125, %p126
      %p128 = scmp.ne.s32.totalorder %s117, %s118
      %p129 = scmp.eq.s32.totalorder %s20, 0
      %p130 = por %p128, %p129
      %p131 = scmp.ne.s32.totalorder %s117, %s118
      %p132 = scmp.eq.s32.totalorder %s21, 1
      %p133 = por %p131, %p132
      %p135 = scmp.ne.s32.totalorder %s118, %s134
      %p136 = scmp.eq.s32.totalorder %s21, 0
      %p137 = por %p135, %p136
      %s138 = ssub.s32 %s15, %s22
      %p139 = scmp.eq.s32.totalorder %s138, 0
      %s141 = sadd.s32 %s140, 1
      %s142 = scalar_select %p139, %s140, %s141
      %p145 = pneg %p139
      %p146 = scmp.eq.s32.totalorder %s15, 1
      %p147 = por %p145, %p146
      %p148 = scmp.ne.s32.totalorder %s140, %s143
      %p149 = scmp.eq.s32.totalorder %s15, 0
      %p150 = por %p148, %p149
      %p151 = scmp.ne.s32.totalorder %s140, %s143
      %p152 = scmp.eq.s32.totalorder %s20, 1
      %p153 = por %p151, %p152
      %p154 = scmp.ne.s32.totalorder %s143, %s144
      %p155 = scmp.eq.s32.totalorder %s20, 0
      %p156 = por %p154, %p155
      %p157 = scmp.ne.s32.totalorder %s143, %s144
      %p158 = scmp.eq.s32.totalorder %s21, 1
      %p159 = por %p157, %p158
      %p161 = scmp.ne.s32.totalorder %s144, %s160
      %p162 = scmp.eq.s32.totalorder %s21, 0
      %p163 = por %p161, %p162
      %s164 = ssub.s32 %s15, %s22
      %p165 = scmp.eq.s32.totalorder %s164, 0
      %s167 = sadd.s32 %s166, 1
      %s168 = scalar_select %p165, %s166, %s167
      %p171 = pneg %p165
      %p172 = scmp.eq.s32.totalorder %s15, 1
      %p173 = por %p171, %p172
      %p174 = scmp.ne.s32.totalorder %s166, %s169
      %p175 = scmp.eq.s32.totalorder %s15, 0
      %p176 = por %p174, %p175
      %p177 = scmp.ne.s32.totalorder %s166, %s169
      %p178 = scmp.eq.s32.totalorder %s20, 1
      %p179 = por %p177, %p178
      %p180 = scmp.ne.s32.totalorder %s169, %s170
      %p181 = scmp.eq.s32.totalorder %s20, 0
      %p182 = por %p180, %p181
      %p183 = scmp.ne.s32.totalorder %s169, %s170
      %p184 = scmp.eq.s32.totalorder %s21, 1
      %p185 = por %p183, %p184
      %p187 = scmp.ne.s32.totalorder %s170, %s186
      %p188 = scmp.eq.s32.totalorder %s21, 0
      %p189 = por %p187, %p188
      %p190 = scmp.le.s32.totalorder 1, %s15
      %p191 = scmp.lt.s32.totalorder %s15, 3
      %p192 = pnand %p190, %p191
      %p193 = pneg %p192
      // Predicated region
      $region9: #{multi_head_gat_forward.3} parent=5 // pred_check
        _
      $region10: #{multi_head_gat_forward.3} parent=5 // pred_check_branch
        %195 = sbr.rel (%p192) target = $region12
      $region11: #{multi_head_gat_forward.3} parent=5 // pred_region
        %s196 = ssub.s32 %s15, 1
        // Predicated region
        $region13: #{multi_head_gat_forward.3} parent=11 // pred_check
          %p197 = pneg %p62
        $region14: #{multi_head_gat_forward.3} parent=11 // pred_check_branch
          %199 = sbr.rel (%p197) target = $region16
        $region15: #{multi_head_gat_forward.3} parent=11 // pred_region
          _
        $region16: #{multi_head_gat_forward.3} parent=11 // pred_fallthru
          _
        // Predicated region
        $region17: #{multi_head_gat_forward.3} parent=11 // pred_check
          %p200 = pneg %p83
        $region18: #{multi_head_gat_forward.3} parent=11 // pred_check_branch
          %202 = sbr.rel (%p200) target = $region20
        $region19: #{multi_head_gat_forward.3} parent=11 // pred_region
          _
        $region20: #{multi_head_gat_forward.3} parent=11 // pred_fallthru
          _
        // Predicated region
        $region21: #{multi_head_gat_forward.3} parent=11 // pred_check
          %p203 = pneg %p104
        $region22: #{multi_head_gat_forward.3} parent=11 // pred_check_branch
          %205 = sbr.rel (%p203) target = $region24
        $region23: #{multi_head_gat_forward.3} parent=11 // pred_region
          _
        $region24: #{multi_head_gat_forward.3} parent=11 // pred_fallthru
          _
      $region12: #{multi_head_gat_forward.3} parent=5 // pred_fallthru
        _
      %p206 = scmp.lt.s32.totalorder %s15, 2
      // Predicated region
      $region25: #{multi_head_gat_forward.3} parent=5 // pred_check
        %p207 = pneg %p206
      $region26: #{multi_head_gat_forward.3} parent=5 // pred_check_branch
        %209 = sbr.rel (%p207) target = $region28
      $region27: #{multi_head_gat_forward.3} parent=5 // pred_region
        // Predicated region
        $region29: #{multi_head_gat_forward.3} parent=27 // pred_check
          %p210 = pneg %p35
        $region30: #{multi_head_gat_forward.3} parent=27 // pred_check_branch
          %212 = sbr.rel (%p210) target = $region32
        $region31: #{multi_head_gat_forward.3} parent=27 // pred_region
          %s213 = smul.u32 16, %s15
          %p214 = scmp.lt.s32.totalorder %s213, 31
          %s215 = scalar_select %p214, %s213, 31
          %s216 = smul.addr %s215, 8
          %s217 = scalar_lea.vmem %s0, %s216
          %s218 = smul.u32 16, %s15
        $region32: #{multi_head_gat_forward.3} parent=27 // pred_fallthru
          _
        // Predicated region
        $region33: #{multi_head_gat_forward.3} parent=27 // pred_check
          %p219 = pneg %p124
        $region34: #{multi_head_gat_forward.3} parent=27 // pred_check_branch
          %221 = sbr.rel (%p219) target = $region36
        $region35: #{multi_head_gat_forward.3} parent=27 // pred_region
          %s222 = smul.u32 16, %s15
          %p223 = scmp.lt.s32.totalorder %s222, 31
          %s224 = scalar_select %p223, %s222, 31
          %s225 = smul.addr %s224, 8
          %s226 = scalar_lea.vmem %s4, %s225
          %s227 = smul.u32 16, %s15
        $region36: #{multi_head_gat_forward.3} parent=27 // pred_fallthru
          _
        // Predicated region
        $region37: #{multi_head_gat_forward.3} parent=27 // pred_check
          %p228 = pneg %p150
        $region38: #{multi_head_gat_forward.3} parent=27 // pred_check_branch
          %230 = sbr.rel (%p228) target = $region40
        $region39: #{multi_head_gat_forward.3} parent=27 // pred_region
          %s231 = smul.u32 4, %s15
          %p232 = scmp.lt.s32.totalorder %s231, 7
          %s233 = scalar_select %p232, %s231, 7
          %s234 = smul.addr %s233, 2
          %s235 = smul.addr %s234, 8
          %s236 = scalar_lea.vmem %s5, %s235
          %s237 = smul.u32 4, %s15
        $region40: #{multi_head_gat_forward.3} parent=27 // pred_fallthru
          _
      $region28: #{multi_head_gat_forward.3} parent=5 // pred_fallthru
        _
      %p238 = scmp.le.s32.totalorder 1, %s15
      %p239 = scmp.lt.s32.totalorder %s15, 3
      %p240 = pnand %p238, %p239
      %p241 = pneg %p240
      // Predicated region
      $region41: #{multi_head_gat_forward.3} parent=5 // pred_check
        _
      $region42: #{multi_head_gat_forward.3} parent=5 // pred_check_branch
        %243 = sbr.rel (%p240) target = $region44
      $region43: #{multi_head_gat_forward.3} parent=5 // pred_region
        %s244 = ssub.s32 %s15, 1
        %s245 = smul.u32 16, %s20
        %p246 = scmp.lt.s32.totalorder %s245, 31
        %s247 = scalar_select %p246, %s245, 31
        %s248 = smul.addr %s247, 8
        %s249 = scalar_lea.vmem %s0, %s248
        %p250 = pneg %p41
        %p251 = pneg %p38
        %p252 = pneg %p62
        %p253 = pneg %p59
        %p254 = pneg %p83
        %p255 = pneg %p80
        %p256 = pneg %p104
        %p257 = pneg %p101
        %s258 = smul.u32 16, %s20
        %p259 = scmp.lt.s32.totalorder %s258, 31
        %s260 = scalar_select %p259, %s258, 31
        %s261 = smul.addr %s260, 8
        %s262 = scalar_lea.vmem %s4, %s261
        %p263 = pneg %p130
        %p264 = pneg %p127
        %s265 = smul.u32 4, %s20
        %p266 = scmp.lt.s32.totalorder %s265, 7
        %s267 = scalar_select %p266, %s265, 7
        %s268 = smul.addr %s267, 2
        %s269 = smul.addr %s268, 8
        %s270 = scalar_lea.vmem %s5, %s269
        %p271 = pneg %p156
        %p272 = pneg %p153
        %p273 = pneg %p182
        %p274 = pneg %p179
        %s275 = sand.u32 %s169, 1
        %s276 = scalar_lea.sflag [#allocation3], %s275
        %s277 = sand.u32 %s169, 1
        %s278 = smul.addr %s277, 128
        %s279 = scalar_lea.vmem [#allocation2], %s278
        %s280 = smul.u32 16, %s20
        %p281 = scmp.lt.s32.totalorder %s280, 31
        %s282 = scalar_select %p281, %s280, 31
        %s283 = smul.addr %s282, 8
        %s284 = scalar_lea.vmem %s0, %s283
        %s285 = smul.u32 16, %s20
        %s286 = smul.u32 16, %s20
        %p287 = scmp.lt.s32.totalorder %s286, 31
        %s288 = scalar_select %p287, %s286, 31
        %s289 = smul.addr %s288, 8
        %s290 = scalar_lea.vmem %s4, %s289
        %s291 = smul.u32 16, %s20
        %s292 = smul.u32 4, %s20
        %p293 = scmp.lt.s32.totalorder %s292, 7
        %s294 = scalar_select %p293, %s292, 7
        %s295 = smul.addr %s294, 2
        %s296 = smul.addr %s295, 8
        %s297 = scalar_lea.vmem %s5, %s296
        %s298 = smul.u32 4, %s20
        %s299 = smul.u32 16, %s20
        %v301 = vld [vmem:[%s284] sm:$0xff]
        %v302 = vld [vmem:[%s284 + $0x8] sm:$0xff]
        %v303 = vld [vmem:[%s284 + $0x10] sm:$0xff]
        %v304 = vld [vmem:[%s284 + $0x18] sm:$0xff]
        %v305 = vld [vmem:[%s284 + $0x20] sm:$0xff]
        %v306 = vld [vmem:[%s284 + $0x28] sm:$0xff]
        %v307 = vld [vmem:[%s284 + $0x30] sm:$0xff]
        %v308 = vld [vmem:[%s284 + $0x38] sm:$0xff]
        %v309 = vld [vmem:[%s284 + $0x40] sm:$0xff]
        %v310 = vld [vmem:[%s284 + $0x48] sm:$0xff]
        %v311 = vld [vmem:[%s284 + $0x50] sm:$0xff]
        %v312 = vld [vmem:[%s284 + $0x58] sm:$0xff]
        %v313 = vld [vmem:[%s284 + $0x60] sm:$0xff]
        %v314 = vld [vmem:[%s284 + $0x68] sm:$0xff]
        %v315 = vld [vmem:[%s284 + $0x70] sm:$0xff]
        %v316 = vld [vmem:[%s284 + $0x78] sm:$0xff]
        %v317 = vpack.c.bf16 %v302, %v301
        %v318 = vpack.c.bf16 %v304, %v303
        %v319 = vpack.c.bf16 %v306, %v305
        %v320 = vpack.c.bf16 %v308, %v307
        %v321 = vpack.c.bf16 %v310, %v309
        %v322 = vpack.c.bf16 %v312, %v311
        %v323 = vpack.c.bf16 %v314, %v313
        %v324 = vpack.c.bf16 %v316, %v315
        %v325 = vld [vmem:[%s1] sm:$0xf]
        %v326 = vld [vmem:[%s1 + $0x4] sm:$0xf]
        %v327 = vld [vmem:[%s1 + $0x8] sm:$0xf]
        %v328 = vld [vmem:[%s1 + $0xc] sm:$0xf]
        %v333 = vunpack.c.l.b16 %v325
        %v334 = vunpack.c.l.b16 %v326
        %v335 = vunpack.c.l.b16 %v327
        %v336 = vunpack.c.l.b16 %v328
        %v337 = vpack.c.b16 %v334, %v333
        %v338 = vpack.c.b16 %v336, %v335
        %vm341 = vcmask 261120
        %v343 = vsel %vm341, %v317, 0
        %v346 = vsel %vm341, %v318, 0
        %v349 = vsel %vm341, %v319, 0
        %v352 = vsel %vm341, %v320, 0
        %v355 = vsel %vm341, %v321, 0
        %v358 = vsel %vm341, %v322, 0
        %v361 = vsel %vm341, %v323, 0
        %v364 = vsel %vm341, %v324, 0
        %366 = vmatpush.bf16.msra.mxu0 0
        %367 = vmatpush.bf16.msra.mxu0 0
        %368 = vmatpush.bf16.msra.mxu0 0
        %369 = vmatpush.bf16.msra.mxu0 0
        %370 = vmatpush.bf16.msra.mxu0 0
        %371 = vmatpush.bf16.msra.mxu0 0
        %372 = vmatpush.bf16.msra.mxu0 %v338
        %373 = vmatpush.bf16.msra.mxu0 %v337
        %374 = vmatmul.bf16.gmra.mxu0 %v343
        %v375 = vpop.f32.mrf.mxu0
        %v376 = vadd.f32 0.0, %v375
        %v377 = vpop.f32.mrf.mxu0
        %v378 = vadd.f32 0.0, %v377
        %379 = vmatmul.bf16.gmra.mxu0 %v346
        %v380 = vpop.f32.mrf.mxu0
        %v381 = vadd.f32 0.0, %v380
        %v382 = vpop.f32.mrf.mxu0
        %v383 = vadd.f32 0.0, %v382
        %384 = vmatmul.bf16.gmra.mxu0 %v349
        %v385 = vpop.f32.mrf.mxu0
        %v386 = vadd.f32 0.0, %v385
        %v387 = vpop.f32.mrf.mxu0
        %v388 = vadd.f32 0.0, %v387
        %389 = vmatmul.bf16.gmra.mxu0 %v352
        %v390 = vpop.f32.mrf.mxu0
        %v391 = vadd.f32 0.0, %v390
        %v392 = vpop.f32.mrf.mxu0
        %v393 = vadd.f32 0.0, %v392
        %394 = vmatmul.bf16.gmra.mxu0 %v355
        %v395 = vpop.f32.mrf.mxu0
        %v396 = vadd.f32 0.0, %v395
        %v397 = vpop.f32.mrf.mxu0
        %v398 = vadd.f32 0.0, %v397
        %399 = vmatmul.bf16.gmra.mxu0 %v358
        %v400 = vpop.f32.mrf.mxu0
        %v401 = vadd.f32 0.0, %v400
        %v402 = vpop.f32.mrf.mxu0
        %v403 = vadd.f32 0.0, %v402
        %404 = vmatmul.bf16.gmra.mxu0 %v361
        %v405 = vpop.f32.mrf.mxu0
        %v406 = vadd.f32 0.0, %v405
        %v407 = vpop.f32.mrf.mxu0
        %v408 = vadd.f32 0.0, %v407
        %409 = vmatmul.bf16.gmra.mxu0 %v364
        %v410 = vpop.f32.mrf.mxu0
        %v411 = vadd.f32 0.0, %v410
        %v412 = vpop.f32.mrf.mxu0
        %v413 = vadd.f32 0.0, %v412
        %414 = vdwg.mxu0
        %v415 = vld [vmem:[%s2] sm:$0xf]
        %v416 = vld [vmem:[%s2 + $0x4] sm:$0xf]
        %v417 = vld [vmem:[%s2 + $0x8] sm:$0xf]
        %v418 = vld [vmem:[%s2 + $0xc] sm:$0xf]
        %v419 = vld [vmem:[%s2 + $0x10] sm:$0xf]
        %v420 = vld [vmem:[%s2 + $0x14] sm:$0xf]
        %v421 = vld [vmem:[%s2 + $0x18] sm:$0xf]
        %v422 = vld [vmem:[%s2 + $0x1c] sm:$0xf]
        %v423 = vld [vmem:[%s2 + $0x20] sm:$0xf]
        %v424 = vld [vmem:[%s2 + $0x24] sm:$0xf]
        %v425 = vld [vmem:[%s2 + $0x28] sm:$0xf]
        %v426 = vld [vmem:[%s2 + $0x2c] sm:$0xf]
        %v427 = vld [vmem:[%s2 + $0x30] sm:$0xf]
        %v428 = vld [vmem:[%s2 + $0x34] sm:$0xf]
        %v429 = vld [vmem:[%s2 + $0x38] sm:$0xf]
        %v430 = vld [vmem:[%s2 + $0x3c] sm:$0xf]
        %v431 = vld [vmem:[%s2 + $0x40] sm:$0xf]
        %v432 = vld [vmem:[%s2 + $0x44] sm:$0xf]
        %v433 = vld [vmem:[%s2 + $0x48] sm:$0xf]
        %v434 = vld [vmem:[%s2 + $0x4c] sm:$0xf]
        %v435 = vld [vmem:[%s2 + $0x50] sm:$0xf]
        %v436 = vld [vmem:[%s2 + $0x54] sm:$0xf]
        %v437 = vld [vmem:[%s2 + $0x58] sm:$0xf]
        %v438 = vld [vmem:[%s2 + $0x5c] sm:$0xf]
        %v439 = vld [vmem:[%s2 + $0x60] sm:$0xf]
        %v440 = vld [vmem:[%s2 + $0x64] sm:$0xf]
        %v441 = vld [vmem:[%s2 + $0x68] sm:$0xf]
        %v442 = vld [vmem:[%s2 + $0x6c] sm:$0xf]
        %v443 = vld [vmem:[%s2 + $0x70] sm:$0xf]
        %v444 = vld [vmem:[%s2 + $0x74] sm:$0xf]
        %v445 = vld [vmem:[%s2 + $0x78] sm:$0xf]
        %v446 = vld [vmem:[%s2 + $0x7c] sm:$0xf]
        %v447 = vld [vmem:[%s3] sm:$0xff]
        %v448 = vld [vmem:[%s290] sm:$0xff]
        %v449 = vld [vmem:[%s290 + $0x8] sm:$0xff]
        %v450 = vld [vmem:[%s290 + $0x10] sm:$0xff]
        %v451 = vld [vmem:[%s290 + $0x18] sm:$0xff]
        %v452 = vld [vmem:[%s290 + $0x20] sm:$0xff]
        %v453 = vld [vmem:[%s290 + $0x28] sm:$0xff]
        %v454 = vld [vmem:[%s290 + $0x30] sm:$0xff]
        %v455 = vld [vmem:[%s290 + $0x38] sm:$0xff]
        %v456 = vld [vmem:[%s290 + $0x40] sm:$0xff]
        %v457 = vld [vmem:[%s290 + $0x48] sm:$0xff]
        %v458 = vld [vmem:[%s290 + $0x50] sm:$0xff]
        %v459 = vld [vmem:[%s290 + $0x58] sm:$0xff]
        %v460 = vld [vmem:[%s290 + $0x60] sm:$0xff]
        %v461 = vld [vmem:[%s290 + $0x68] sm:$0xff]
        %v462 = vld [vmem:[%s290 + $0x70] sm:$0xff]
        %v463 = vld [vmem:[%s290 + $0x78] sm:$0xff]
        %v464 = vld [vmem:[%s297] sm:$0xff]
        %v465 = vld [vmem:[%s297 + $0x8] sm:$0xff]
        %v466 = vld [vmem:[%s297 + $0x10] sm:$0xff]
        %v467 = vld [vmem:[%s297 + $0x18] sm:$0xff]
        %v468 = vld [vmem:[%s297 + $0x20] sm:$0xff]
        %v469 = vld [vmem:[%s297 + $0x28] sm:$0xff]
        %v470 = vld [vmem:[%s297 + $0x30] sm:$0xff]
        %v471 = vld [vmem:[%s297 + $0x38] sm:$0xff]
        %v472 = vunpack.c.0.s8 %v464
        %v473 = vunpack.c.0.s8 %v465
        %v474 = vunpack.c.1.s8 %v464
        %v475 = vunpack.c.1.s8 %v465
        %v476 = vunpack.c.2.s8 %v464
        %v477 = vunpack.c.2.s8 %v465
        %v478 = vunpack.c.3.s8 %v464
        %v479 = vunpack.c.3.s8 %v465
        %v480 = vunpack.c.0.s8 %v466
        %v481 = vunpack.c.0.s8 %v467
        %v482 = vunpack.c.1.s8 %v466
        %v483 = vunpack.c.1.s8 %v467
        %v484 = vunpack.c.2.s8 %v466
        %v485 = vunpack.c.2.s8 %v467
        %v486 = vunpack.c.3.s8 %v466
        %v487 = vunpack.c.3.s8 %v467
        %v488 = vunpack.c.0.s8 %v468
        %v489 = vunpack.c.0.s8 %v469
        %v490 = vunpack.c.1.s8 %v468
        %v491 = vunpack.c.1.s8 %v469
        %v492 = vunpack.c.2.s8 %v468
        %v493 = vunpack.c.2.s8 %v469
        %v494 = vunpack.c.3.s8 %v468
        %v495 = vunpack.c.3.s8 %v469
        %v496 = vunpack.c.0.s8 %v470
        %v497 = vunpack.c.0.s8 %v471
        %v498 = vunpack.c.1.s8 %v470
        %v499 = vunpack.c.1.s8 %v471
        %v500 = vunpack.c.2.s8 %v470
        %v501 = vunpack.c.2.s8 %v471
        %v502 = vunpack.c.3.s8 %v470
        %v503 = vunpack.c.3.s8 %v471
        %v504 = vcvt.s32.f32 %v472
        %v505 = vcvt.s32.f32 %v473
        %v506 = vcvt.s32.f32 %v474
        %v507 = vcvt.s32.f32 %v475
        %v508 = vcvt.s32.f32 %v476
        %v509 = vcvt.s32.f32 %v477
        %v510 = vcvt.s32.f32 %v478
        %v511 = vcvt.s32.f32 %v479
        %v512 = vcvt.s32.f32 %v480
        %v513 = vcvt.s32.f32 %v481
        %v514 = vcvt.s32.f32 %v482
        %v515 = vcvt.s32.f32 %v483
        %v516 = vcvt.s32.f32 %v484
        %v517 = vcvt.s32.f32 %v485
        %v518 = vcvt.s32.f32 %v486
        %v519 = vcvt.s32.f32 %v487
        %v520 = vcvt.s32.f32 %v488
        %v521 = vcvt.s32.f32 %v489
        %v522 = vcvt.s32.f32 %v490
        %v523 = vcvt.s32.f32 %v491
        %v524 = vcvt.s32.f32 %v492
        %v525 = vcvt.s32.f32 %v493
        %v526 = vcvt.s32.f32 %v494
        %v527 = vcvt.s32.f32 %v495
        %v528 = vcvt.s32.f32 %v496
        %v529 = vcvt.s32.f32 %v497
        %v530 = vcvt.s32.f32 %v498
        %v531 = vcvt.s32.f32 %v499
        %v532 = vcvt.s32.f32 %v500
        %v533 = vcvt.s32.f32 %v501
        %v534 = vcvt.s32.f32 %v502
        %v535 = vcvt.s32.f32 %v503
        %v536 = vmul.f32 %v504, -1e+09
        %v537 = vmul.f32 %v505, -1e+09
        %v538 = vmul.f32 %v506, -1e+09
        %v539 = vmul.f32 %v507, -1e+09
        %v540 = vmul.f32 %v508, -1e+09
        %v541 = vmul.f32 %v509, -1e+09
        %v542 = vmul.f32 %v510, -1e+09
        %v543 = vmul.f32 %v511, -1e+09
        %v544 = vmul.f32 %v512, -1e+09
        %v545 = vmul.f32 %v513, -1e+09
        %v546 = vmul.f32 %v514, -1e+09
        %v547 = vmul.f32 %v515, -1e+09
        %v548 = vmul.f32 %v516, -1e+09
        %v549 = vmul.f32 %v517, -1e+09
        %v550 = vmul.f32 %v518, -1e+09
        %v551 = vmul.f32 %v519, -1e+09
        %v552 = vmul.f32 %v520, -1e+09
        %v553 = vmul.f32 %v521, -1e+09
        %v554 = vmul.f32 %v522, -1e+09
        %v555 = vmul.f32 %v523, -1e+09
        %v556 = vmul.f32 %v524, -1e+09
        %v557 = vmul.f32 %v525, -1e+09
        %v558 = vmul.f32 %v526, -1e+09
        %v559 = vmul.f32 %v527, -1e+09
        %v560 = vmul.f32 %v528, -1e+09
        %v561 = vmul.f32 %v529, -1e+09
        %v562 = vmul.f32 %v530, -1e+09
        %v563 = vmul.f32 %v531, -1e+09
        %v564 = vmul.f32 %v532, -1e+09
        %v565 = vmul.f32 %v533, -1e+09
        %v566 = vmul.f32 %v534, -1e+09
        %v567 = vmul.f32 %v535, -1e+09
        %v569 = vperm.slane %v447, 0
        %v570 = vperm.slane %v447, 4
        %v573 = vperm.slane %v569, 0
        %v574 = vperm.slane %v570, 0
        %576 = vset.pattern.permute.xlu0 0
        %577 = vperm.xlu0 %576, %v448
        %v578 = vpop.permute.xlu0 %577
        %581 = vset.pattern.permute.xlu0 0
        %582 = vperm.xlu0 %581, %v449
        %v583 = vpop.permute.xlu0 %582
        %586 = vset.pattern.permute.xlu0 0
        %587 = vperm.xlu0 %586, %v450
        %v588 = vpop.permute.xlu0 %587
        %591 = vset.pattern.permute.xlu0 0
        %592 = vperm.xlu0 %591, %v451
        %v593 = vpop.permute.xlu0 %592
        %596 = vset.pattern.permute.xlu0 0
        %597 = vperm.xlu0 %596, %v452
        %v598 = vpop.permute.xlu0 %597
        %601 = vset.pattern.permute.xlu0 0
        %602 = vperm.xlu0 %601, %v453
        %v603 = vpop.permute.xlu0 %602
        %606 = vset.pattern.permute.xlu0 0
        %607 = vperm.xlu0 %606, %v454
        %v608 = vpop.permute.xlu0 %607
        %611 = vset.pattern.permute.xlu0 0
        %612 = vperm.xlu0 %611, %v455
        %v613 = vpop.permute.xlu0 %612
        %616 = vset.pattern.permute.xlu0 0
        %617 = vperm.xlu0 %616, %v456
        %v618 = vpop.permute.xlu0 %617
        %621 = vset.pattern.permute.xlu0 0
        %622 = vperm.xlu0 %621, %v457
        %v623 = vpop.permute.xlu0 %622
        %626 = vset.pattern.permute.xlu0 0
        %627 = vperm.xlu0 %626, %v458
        %v628 = vpop.permute.xlu0 %627
        %631 = vset.pattern.permute.xlu0 0
        %632 = vperm.xlu0 %631, %v459
        %v633 = vpop.permute.xlu0 %632
        %636 = vset.pattern.permute.xlu0 0
        %637 = vperm.xlu0 %636, %v460
        %v638 = vpop.permute.xlu0 %637
        %641 = vset.pattern.permute.xlu0 0
        %642 = vperm.xlu0 %641, %v461
        %v643 = vpop.permute.xlu0 %642
        %646 = vset.pattern.permute.xlu0 0
        %647 = vperm.xlu0 %646, %v462
        %v648 = vpop.permute.xlu0 %647
        %651 = vset.pattern.permute.xlu0 0
        %652 = vperm.xlu0 %651, %v463
        %v653 = vpop.permute.xlu0 %652
        %v655 = vadd.f32 %v573, %v578
        %v656 = vadd.f32 %v574, %v578
        %v657 = vadd.f32 %v573, %v583
        %v658 = vadd.f32 %v574, %v583
        %v659 = vadd.f32 %v573, %v588
        %v660 = vadd.f32 %v574, %v588
        %v661 = vadd.f32 %v573, %v593
        %v662 = vadd.f32 %v574, %v593
        %v663 = vadd.f32 %v573, %v598
        %v664 = vadd.f32 %v574, %v598
        %v665 = vadd.f32 %v573, %v603
        %v666 = vadd.f32 %v574, %v603
        %v667 = vadd.f32 %v573, %v608
        %v668 = vadd.f32 %v574, %v608
        %v669 = vadd.f32 %v573, %v613
        %v670 = vadd.f32 %v574, %v613
        %v671 = vadd.f32 %v573, %v618
        %v672 = vadd.f32 %v574, %v618
        %v673 = vadd.f32 %v573, %v623
        %v674 = vadd.f32 %v574, %v623
        %v675 = vadd.f32 %v573, %v628
        %v676 = vadd.f32 %v574, %v628
        %v677 = vadd.f32 %v573, %v633
        %v678 = vadd.f32 %v574, %v633
        %v679 = vadd.f32 %v573, %v638
        %v680 = vadd.f32 %v574, %v638
        %v681 = vadd.f32 %v573, %v643
        %v682 = vadd.f32 %v574, %v643
        %v683 = vadd.f32 %v573, %v648
        %v684 = vadd.f32 %v574, %v648
        %v685 = vadd.f32 %v573, %v653
        %v686 = vadd.f32 %v574, %v653
        %v687 = vmul.f32 %v655, 0.01
        %v688 = vmul.f32 %v656, 0.01
        %v689 = vmul.f32 %v657, 0.01
        %v690 = vmul.f32 %v658, 0.01
        %v691 = vmul.f32 %v659, 0.01
        %v692 = vmul.f32 %v660, 0.01
        %v693 = vmul.f32 %v661, 0.01
        %v694 = vmul.f32 %v662, 0.01
        %v695 = vmul.f32 %v663, 0.01
        %v696 = vmul.f32 %v664, 0.01
        %v697 = vmul.f32 %v665, 0.01
        %v698 = vmul.f32 %v666, 0.01
        %v699 = vmul.f32 %v667, 0.01
        %v700 = vmul.f32 %v668, 0.01
        %v701 = vmul.f32 %v669, 0.01
        %v702 = vmul.f32 %v670, 0.01
        %v703 = vmul.f32 %v671, 0.01
        %v704 = vmul.f32 %v672, 0.01
        %v705 = vmul.f32 %v673, 0.01
        %v706 = vmul.f32 %v674, 0.01
        %v707 = vmul.f32 %v675, 0.01
        %v708 = vmul.f32 %v676, 0.01
        %v709 = vmul.f32 %v677, 0.01
        %v710 = vmul.f32 %v678, 0.01
        %v711 = vmul.f32 %v679, 0.01
        %v712 = vmul.f32 %v680, 0.01
        %v713 = vmul.f32 %v681, 0.01
        %v714 = vmul.f32 %v682, 0.01
        %v715 = vmul.f32 %v683, 0.01
        %v716 = vmul.f32 %v684, 0.01
        %v717 = vmul.f32 %v685, 0.01
        %v718 = vmul.f32 %v686, 0.01
        %v719 = vmax.f32 %v655, %v687
        %v720 = vmax.f32 %v656, %v688
        %v721 = vmax.f32 %v657, %v689
        %v722 = vmax.f32 %v658, %v690
        %v723 = vmax.f32 %v659, %v691
        %v724 = vmax.f32 %v660, %v692
        %v725 = vmax.f32 %v661, %v693
        %v726 = vmax.f32 %v662, %v694
        %v727 = vmax.f32 %v663, %v695
        %v728 = vmax.f32 %v664, %v696
        %v729 = vmax.f32 %v665, %v697
        %v730 = vmax.f32 %v666, %v698
        %v731 = vmax.f32 %v667, %v699
        %v732 = vmax.f32 %v668, %v700
        %v733 = vmax.f32 %v669, %v701
        %v734 = vmax.f32 %v670, %v702
        %v735 = vmax.f32 %v671, %v703
        %v736 = vmax.f32 %v672, %v704
        %v737 = vmax.f32 %v673, %v705
        %v738 = vmax.f32 %v674, %v706
        %v739 = vmax.f32 %v675, %v707
        %v740 = vmax.f32 %v676, %v708
        %v741 = vmax.f32 %v677, %v709
        %v742 = vmax.f32 %v678, %v710
        %v743 = vmax.f32 %v679, %v711
        %v744 = vmax.f32 %v680, %v712
        %v745 = vmax.f32 %v681, %v713
        %v746 = vmax.f32 %v682, %v714
        %v747 = vmax.f32 %v683, %v715
        %v748 = vmax.f32 %v684, %v716
        %v749 = vmax.f32 %v685, %v717
        %v750 = vmax.f32 %v686, %v718
        %v751 = vadd.f32 %v719, %v536
        %v752 = vadd.f32 %v720, %v537
        %v753 = vadd.f32 %v721, %v538
        %v754 = vadd.f32 %v722, %v539
        %v755 = vadd.f32 %v723, %v540
        %v756 = vadd.f32 %v724, %v541
        %v757 = vadd.f32 %v725, %v542
        %v758 = vadd.f32 %v726, %v543
        %v759 = vadd.f32 %v727, %v544
        %v760 = vadd.f32 %v728, %v545
        %v761 = vadd.f32 %v729, %v546
        %v762 = vadd.f32 %v730, %v547
        %v763 = vadd.f32 %v731, %v548
        %v764 = vadd.f32 %v732, %v549
        %v765 = vadd.f32 %v733, %v550
        %v766 = vadd.f32 %v734, %v551
        %v767 = vadd.f32 %v735, %v552
        %v768 = vadd.f32 %v736, %v553
        %v769 = vadd.f32 %v737, %v554
        %v770 = vadd.f32 %v738, %v555
        %v771 = vadd.f32 %v739, %v556
        %v772 = vadd.f32 %v740, %v557
        %v773 = vadd.f32 %v741, %v558
        %v774 = vadd.f32 %v742, %v559
        %v775 = vadd.f32 %v743, %v560
        %v776 = vadd.f32 %v744, %v561
        %v777 = vadd.f32 %v745, %v562
        %v778 = vadd.f32 %v746, %v563
        %v779 = vadd.f32 %v747, %v564
        %v780 = vadd.f32 %v748, %v565
        %v781 = vadd.f32 %v749, %v566
        %v782 = vadd.f32 %v750, %v567
        %v783 = vmax.f32 %v751, %v752
        %784 = vmax.xlane.f32.xlu0 %v783
        %v785 = vpop.xlane.xlu0 %784
        %v786 = vmax.f32 %v753, %v754
        %787 = vmax.xlane.f32.xlu0 %v786
        %v788 = vpop.xlane.xlu0 %787
        %v789 = vmax.f32 %v755, %v756
        %790 = vmax.xlane.f32.xlu0 %v789
        %v791 = vpop.xlane.xlu0 %790
        %v792 = vmax.f32 %v757, %v758
        %793 = vmax.xlane.f32.xlu0 %v792
        %v794 = vpop.xlane.xlu0 %793
        %v795 = vmax.f32 %v759, %v760
        %796 = vmax.xlane.f32.xlu0 %v795
        %v797 = vpop.xlane.xlu0 %796
        %v798 = vmax.f32 %v761, %v762
        %799 = vmax.xlane.f32.xlu0 %v798
        %v800 = vpop.xlane.xlu0 %799
        %v801 = vmax.f32 %v763, %v764
        %802 = vmax.xlane.f32.xlu0 %v801
        %v803 = vpop.xlane.xlu0 %802
        %v804 = vmax.f32 %v765, %v766
        %805 = vmax.xlane.f32.xlu0 %v804
        %v806 = vpop.xlane.xlu0 %805
        %v807 = vmax.f32 %v767, %v768
        %808 = vmax.xlane.f32.xlu0 %v807
        %v809 = vpop.xlane.xlu0 %808
        %v810 = vmax.f32 %v769, %v770
        %811 = vmax.xlane.f32.xlu0 %v810
        %v812 = vpop.xlane.xlu0 %811
        %v813 = vmax.f32 %v771, %v772
        %814 = vmax.xlane.f32.xlu0 %v813
        %v815 = vpop.xlane.xlu0 %814
        %v816 = vmax.f32 %v773, %v774
        %817 = vmax.xlane.f32.xlu0 %v816
        %v818 = vpop.xlane.xlu0 %817
        %v819 = vmax.f32 %v775, %v776
        %820 = vmax.xlane.f32.xlu0 %v819
        %v821 = vpop.xlane.xlu0 %820
        %v822 = vmax.f32 %v777, %v778
        %823 = vmax.xlane.f32.xlu0 %v822
        %v824 = vpop.xlane.xlu0 %823
        %v825 = vmax.f32 %v779, %v780
        %826 = vmax.xlane.f32.xlu0 %v825
        %v827 = vpop.xlane.xlu0 %826
        %v828 = vmax.f32 %v781, %v782
        %829 = vmax.xlane.f32.xlu0 %v828
        %v830 = vpop.xlane.xlu0 %829
        %v831 = vsub.f32 %v751, %v785
        %v832 = vsub.f32 %v752, %v785
        %v833 = vsub.f32 %v753, %v788
        %v834 = vsub.f32 %v754, %v788
        %v835 = vsub.f32 %v755, %v791
        %v836 = vsub.f32 %v756, %v791
        %v837 = vsub.f32 %v757, %v794
        %v838 = vsub.f32 %v758, %v794
        %v839 = vsub.f32 %v759, %v797
        %v840 = vsub.f32 %v760, %v797
        %v841 = vsub.f32 %v761, %v800
        %v842 = vsub.f32 %v762, %v800
        %v843 = vsub.f32 %v763, %v803
        %v844 = vsub.f32 %v764, %v803
        %v845 = vsub.f32 %v765, %v806
        %v846 = vsub.f32 %v766, %v806
        %v847 = vsub.f32 %v767, %v809
        %v848 = vsub.f32 %v768, %v809
        %v849 = vsub.f32 %v769, %v812
        %v850 = vsub.f32 %v770, %v812
        %v851 = vsub.f32 %v771, %v815
        %v852 = vsub.f32 %v772, %v815
        %v853 = vsub.f32 %v773, %v818
        %v854 = vsub.f32 %v774, %v818
        %v855 = vsub.f32 %v775, %v821
        %v856 = vsub.f32 %v776, %v821
        %v857 = vsub.f32 %v777, %v824
        %v858 = vsub.f32 %v778, %v824
        %v859 = vsub.f32 %v779, %v827
        %v860 = vsub.f32 %v780, %v827
        %v861 = vsub.f32 %v781, %v830
        %v862 = vsub.f32 %v782, %v830
        %v863 = vpack.c.bf16 %v832, %v831
        %v864 = vpack.c.bf16 %v834, %v833
        %v865 = vpack.c.bf16 %v836, %v835
        %v866 = vpack.c.bf16 %v838, %v837
        %v867 = vpack.c.bf16 %v840, %v839
        %v868 = vpack.c.bf16 %v842, %v841
        %v869 = vpack.c.bf16 %v844, %v843
        %v870 = vpack.c.bf16 %v846, %v845
        %v871 = vpack.c.bf16 %v848, %v847
        %v872 = vpack.c.bf16 %v850, %v849
        %v873 = vpack.c.bf16 %v852, %v851
        %v874 = vpack.c.bf16 %v854, %v853
        %v875 = vpack.c.bf16 %v856, %v855
        %v876 = vpack.c.bf16 %v858, %v857
        %v877 = vpack.c.bf16 %v860, %v859
        %v878 = vpack.c.bf16 %v862, %v861
        %v879 = vunpack.c.l.bf16 %v863
        %v880 = vunpack.c.h.bf16 %v863
        %v881 = vunpack.c.l.bf16 %v864
        %v882 = vunpack.c.h.bf16 %v864
        %v883 = vunpack.c.l.bf16 %v865
        %v884 = vunpack.c.h.bf16 %v865
        %v885 = vunpack.c.l.bf16 %v866
        %v886 = vunpack.c.h.bf16 %v866
        %v887 = vunpack.c.l.bf16 %v867
        %v888 = vunpack.c.h.bf16 %v867
        %v889 = vunpack.c.l.bf16 %v868
        %v890 = vunpack.c.h.bf16 %v868
        %v891 = vunpack.c.l.bf16 %v869
        %v892 = vunpack.c.h.bf16 %v869
        %v893 = vunpack.c.l.bf16 %v870
        %v894 = vunpack.c.h.bf16 %v870
        %v895 = vunpack.c.l.bf16 %v871
        %v896 = vunpack.c.h.bf16 %v871
        %v897 = vunpack.c.l.bf16 %v872
        %v898 = vunpack.c.h.bf16 %v872
        %v899 = vunpack.c.l.bf16 %v873
        %v900 = vunpack.c.h.bf16 %v873
        %v901 = vunpack.c.l.bf16 %v874
        %v902 = vunpack.c.h.bf16 %v874
        %v903 = vunpack.c.l.bf16 %v875
        %v904 = vunpack.c.h.bf16 %v875
        %v905 = vunpack.c.l.bf16 %v876
        %v906 = vunpack.c.h.bf16 %v876
        %v907 = vunpack.c.l.bf16 %v877
        %v908 = vunpack.c.h.bf16 %v877
        %v909 = vunpack.c.l.bf16 %v878
        %v910 = vunpack.c.h.bf16 %v878
        %v911 = vmul.f32 %v879, 1.442695
        %v912 = vpow.pop %v911
        %v913 = vmul.f32 %v880, 1.442695
        %v914 = vpow.pop %v913
        %v915 = vmul.f32 %v881, 1.442695
        %v916 = vpow.pop %v915
        %v917 = vmul.f32 %v882, 1.442695
        %v918 = vpow.pop %v917
        %v919 = vmul.f32 %v883, 1.442695
        %v920 = vpow.pop %v919
        %v921 = vmul.f32 %v884, 1.442695
        %v922 = vpow.pop %v921
        %v923 = vmul.f32 %v885, 1.442695
        %v924 = vpow.pop %v923
        %v925 = vmul.f32 %v886, 1.442695
        %v926 = vpow.pop %v925
        %v927 = vmul.f32 %v887, 1.442695
        %v928 = vpow.pop %v927
        %v929 = vmul.f32 %v888, 1.442695
        %v930 = vpow.pop %v929
        %v931 = vmul.f32 %v889, 1.442695
        %v932 = vpow.pop %v931
        %v933 = vmul.f32 %v890, 1.442695
        %v934 = vpow.pop %v933
        %v935 = vmul.f32 %v891, 1.442695
        %v936 = vpow.pop %v935
        %v937 = vmul.f32 %v892, 1.442695
        %v938 = vpow.pop %v937
        %v939 = vmul.f32 %v893, 1.442695
        %v940 = vpow.pop %v939
        %v941 = vmul.f32 %v894, 1.442695
        %v942 = vpow.pop %v941
        %v943 = vmul.f32 %v895, 1.442695
        %v944 = vpow.pop %v943
        %v945 = vmul.f32 %v896, 1.442695
        %v946 = vpow.pop %v945
        %v947 = vmul.f32 %v897, 1.442695
        %v948 = vpow.pop %v947
        %v949 = vmul.f32 %v898, 1.442695
        %v950 = vpow.pop %v949
        %v951 = vmul.f32 %v899, 1.442695
        %v952 = vpow.pop %v951
        %v953 = vmul.f32 %v900, 1.442695
        %v954 = vpow.pop %v953
        %v955 = vmul.f32 %v901, 1.442695
        %v956 = vpow.pop %v955
        %v957 = vmul.f32 %v902, 1.442695
        %v958 = vpow.pop %v957
        %v959 = vmul.f32 %v903, 1.442695
        %v960 = vpow.pop %v959
        %v961 = vmul.f32 %v904, 1.442695
        %v962 = vpow.pop %v961
        %v963 = vmul.f32 %v905, 1.442695
        %v964 = vpow.pop %v963
        %v965 = vmul.f32 %v906, 1.442695
        %v966 = vpow.pop %v965
        %v967 = vmul.f32 %v907, 1.442695
        %v968 = vpow.pop %v967
        %v969 = vmul.f32 %v908, 1.442695
        %v970 = vpow.pop %v969
        %v971 = vmul.f32 %v909, 1.442695
        %v972 = vpow.pop %v971
        %v973 = vmul.f32 %v910, 1.442695
        %v974 = vpow.pop %v973
        %v975 = vpack.c.bf16 %v914, %v912
        %v976 = vpack.c.bf16 %v918, %v916
        %v977 = vpack.c.bf16 %v922, %v920
        %v978 = vpack.c.bf16 %v926, %v924
        %v979 = vpack.c.bf16 %v930, %v928
        %v980 = vpack.c.bf16 %v934, %v932
        %v981 = vpack.c.bf16 %v938, %v936
        %v982 = vpack.c.bf16 %v942, %v940
        %v983 = vpack.c.bf16 %v946, %v944
        %v984 = vpack.c.bf16 %v950, %v948
        %v985 = vpack.c.bf16 %v954, %v952
        %v986 = vpack.c.bf16 %v958, %v956
        %v987 = vpack.c.bf16 %v962, %v960
        %v988 = vpack.c.bf16 %v966, %v964
        %v989 = vpack.c.bf16 %v970, %v968
        %v990 = vpack.c.bf16 %v974, %v972
        %v991 = vunpack.c.l.bf16 %v975
        %v992 = vunpack.c.h.bf16 %v975
        %v993 = vunpack.c.l.bf16 %v976
        %v994 = vunpack.c.h.bf16 %v976
        %v995 = vunpack.c.l.bf16 %v977
        %v996 = vunpack.c.h.bf16 %v977
        %v997 = vunpack.c.l.bf16 %v978
        %v998 = vunpack.c.h.bf16 %v978
        %v999 = vunpack.c.l.bf16 %v979
        %v1000 = vunpack.c.h.bf16 %v979
        %v1001 = vunpack.c.l.bf16 %v980
        %v1002 = vunpack.c.h.bf16 %v980
        %v1003 = vunpack.c.l.bf16 %v981
        %v1004 = vunpack.c.h.bf16 %v981
        %v1005 = vunpack.c.l.bf16 %v982
        %v1006 = vunpack.c.h.bf16 %v982
        %v1007 = vunpack.c.l.bf16 %v983
        %v1008 = vunpack.c.h.bf16 %v983
        %v1009 = vunpack.c.l.bf16 %v984
        %v1010 = vunpack.c.h.bf16 %v984
        %v1011 = vunpack.c.l.bf16 %v985
        %v1012 = vunpack.c.h.bf16 %v985
        %v1013 = vunpack.c.l.bf16 %v986
        %v1014 = vunpack.c.h.bf16 %v986
        %v1015 = vunpack.c.l.bf16 %v987
        %v1016 = vunpack.c.h.bf16 %v987
        %v1017 = vunpack.c.l.bf16 %v988
        %v1018 = vunpack.c.h.bf16 %v988
        %v1019 = vunpack.c.l.bf16 %v989
        %v1020 = vunpack.c.h.bf16 %v989
        %v1021 = vunpack.c.l.bf16 %v990
        %v1022 = vunpack.c.h.bf16 %v990
        %v1023 = vadd.f32 %v991, %v992
        %1024 = vadd.xlane.f32.xlu0 %v1023
        %v1025 = vpop.xlane.xlu0 %1024
        %v1026 = vadd.f32 %v993, %v994
        %1027 = vadd.xlane.f32.xlu0 %v1026
        %v1028 = vpop.xlane.xlu0 %1027
        %v1029 = vadd.f32 %v995, %v996
        %1030 = vadd.xlane.f32.xlu0 %v1029
        %v1031 = vpop.xlane.xlu0 %1030
        %v1032 = vadd.f32 %v997, %v998
        %1033 = vadd.xlane.f32.xlu0 %v1032
        %v1034 = vpop.xlane.xlu0 %1033
        %v1035 = vadd.f32 %v999, %v1000
        %1036 = vadd.xlane.f32.xlu0 %v1035
        %v1037 = vpop.xlane.xlu0 %1036
        %v1038 = vadd.f32 %v1001, %v1002
        %1039 = vadd.xlane.f32.xlu0 %v1038
        %v1040 = vpop.xlane.xlu0 %1039
        %v1041 = vadd.f32 %v1003, %v1004
        %1042 = vadd.xlane.f32.xlu0 %v1041
        %v1043 = vpop.xlane.xlu0 %1042
        %v1044 = vadd.f32 %v1005, %v1006
        %1045 = vadd.xlane.f32.xlu0 %v1044
        %v1046 = vpop.xlane.xlu0 %1045
        %v1047 = vadd.f32 %v1007, %v1008
        %1048 = vadd.xlane.f32.xlu0 %v1047
        %v1049 = vpop.xlane.xlu0 %1048
        %v1050 = vadd.f32 %v1009, %v1010
        %1051 = vadd.xlane.f32.xlu0 %v1050
        %v1052 = vpop.xlane.xlu0 %1051
        %v1053 = vadd.f32 %v1011, %v1012
        %1054 = vadd.xlane.f32.xlu0 %v1053
        %v1055 = vpop.xlane.xlu0 %1054
        %v1056 = vadd.f32 %v1013, %v1014
        %1057 = vadd.xlane.f32.xlu0 %v1056
        %v1058 = vpop.xlane.xlu0 %1057
        %v1059 = vadd.f32 %v1015, %v1016
        %1060 = vadd.xlane.f32.xlu0 %v1059
        %v1061 = vpop.xlane.xlu0 %1060
        %v1062 = vadd.f32 %v1017, %v1018
        %1063 = vadd.xlane.f32.xlu0 %v1062
        %v1064 = vpop.xlane.xlu0 %1063
        %v1065 = vadd.f32 %v1019, %v1020
        %1066 = vadd.xlane.f32.xlu0 %v1065
        %v1067 = vpop.xlane.xlu0 %1066
        %v1068 = vadd.f32 %v1021, %v1022
        %1069 = vadd.xlane.f32.xlu0 %v1068
        %v1070 = vpop.xlane.xlu0 %1069
        %v1071 = vrcp.pop %v1025
        %v1072 = vrcp.pop %v1028
        %v1073 = vrcp.pop %v1031
        %v1074 = vrcp.pop %v1034
        %v1075 = vrcp.pop %v1037
        %v1076 = vrcp.pop %v1040
        %v1077 = vrcp.pop %v1043
        %v1078 = vrcp.pop %v1046
        %v1079 = vrcp.pop %v1049
        %v1080 = vrcp.pop %v1052
        %v1081 = vrcp.pop %v1055
        %v1082 = vrcp.pop %v1058
        %v1083 = vrcp.pop %v1061
        %v1084 = vrcp.pop %v1064
        %v1085 = vrcp.pop %v1067
        %v1086 = vrcp.pop %v1070
        %v1087 = vpack.c.bf16 %v1071, %v1071
        %v1088 = vpack.c.bf16 %v1072, %v1072
        %v1089 = vpack.c.bf16 %v1073, %v1073
        %v1090 = vpack.c.bf16 %v1074, %v1074
        %v1091 = vpack.c.bf16 %v1075, %v1075
        %v1092 = vpack.c.bf16 %v1076, %v1076
        %v1093 = vpack.c.bf16 %v1077, %v1077
        %v1094 = vpack.c.bf16 %v1078, %v1078
        %v1095 = vpack.c.bf16 %v1079, %v1079
        %v1096 = vpack.c.bf16 %v1080, %v1080
        %v1097 = vpack.c.bf16 %v1081, %v1081
        %v1098 = vpack.c.bf16 %v1082, %v1082
        %v1099 = vpack.c.bf16 %v1083, %v1083
        %v1100 = vpack.c.bf16 %v1084, %v1084
        %v1101 = vpack.c.bf16 %v1085, %v1085
        %v1102 = vpack.c.bf16 %v1086, %v1086
        %v1103 = vunpack.c.l.bf16 %v1087
        %v1104 = vunpack.c.l.bf16 %v1088
        %v1105 = vunpack.c.l.bf16 %v1089
        %v1106 = vunpack.c.l.bf16 %v1090
        %v1107 = vunpack.c.l.bf16 %v1091
        %v1108 = vunpack.c.l.bf16 %v1092
        %v1109 = vunpack.c.l.bf16 %v1093
        %v1110 = vunpack.c.l.bf16 %v1094
        %v1111 = vunpack.c.l.bf16 %v1095
        %v1112 = vunpack.c.l.bf16 %v1096
        %v1113 = vunpack.c.l.bf16 %v1097
        %v1114 = vunpack.c.l.bf16 %v1098
        %v1115 = vunpack.c.l.bf16 %v1099
        %v1116 = vunpack.c.l.bf16 %v1100
        %v1117 = vunpack.c.l.bf16 %v1101
        %v1118 = vunpack.c.l.bf16 %v1102
        %v1119 = vmul.f32 %v991, %v1103
        %v1120 = vmul.f32 %v992, %v1103
        %v1121 = vmul.f32 %v993, %v1104
        %v1122 = vmul.f32 %v994, %v1104
        %v1123 = vmul.f32 %v995, %v1105
        %v1124 = vmul.f32 %v996, %v1105
        %v1125 = vmul.f32 %v997, %v1106
        %v1126 = vmul.f32 %v998, %v1106
        %v1127 = vmul.f32 %v999, %v1107
        %v1128 = vmul.f32 %v1000, %v1107
        %v1129 = vmul.f32 %v1001, %v1108
        %v1130 = vmul.f32 %v1002, %v1108
        %v1131 = vmul.f32 %v1003, %v1109
        %v1132 = vmul.f32 %v1004, %v1109
        %v1133 = vmul.f32 %v1005, %v1110
        %v1134 = vmul.f32 %v1006, %v1110
        %v1135 = vmul.f32 %v1007, %v1111
        %v1136 = vmul.f32 %v1008, %v1111
        %v1137 = vmul.f32 %v1009, %v1112
        %v1138 = vmul.f32 %v1010, %v1112
        %v1139 = vmul.f32 %v1011, %v1113
        %v1140 = vmul.f32 %v1012, %v1113
        %v1141 = vmul.f32 %v1013, %v1114
        %v1142 = vmul.f32 %v1014, %v1114
        %v1143 = vmul.f32 %v1015, %v1115
        %v1144 = vmul.f32 %v1016, %v1115
        %v1145 = vmul.f32 %v1017, %v1116
        %v1146 = vmul.f32 %v1018, %v1116
        %v1147 = vmul.f32 %v1019, %v1117
        %v1148 = vmul.f32 %v1020, %v1117
        %v1149 = vmul.f32 %v1021, %v1118
        %v1150 = vmul.f32 %v1022, %v1118
        %v1151 = vpack.c.bf16 %v1121, %v1119
        %v1152 = vpack.c.bf16 %v1122, %v1120
        %v1153 = vpack.c.bf16 %v1125, %v1123
        %v1154 = vpack.c.bf16 %v1126, %v1124
        %v1155 = vpack.c.bf16 %v1129, %v1127
        %v1156 = vpack.c.bf16 %v1130, %v1128
        %v1157 = vpack.c.bf16 %v1133, %v1131
        %v1158 = vpack.c.bf16 %v1134, %v1132
        %v1159 = vpack.c.bf16 %v1137, %v1135
        %v1160 = vpack.c.bf16 %v1138, %v1136
        %v1161 = vpack.c.bf16 %v1141, %v1139
        %v1162 = vpack.c.bf16 %v1142, %v1140
        %v1163 = vpack.c.bf16 %v1145, %v1143
        %v1164 = vpack.c.bf16 %v1146, %v1144
        %v1165 = vpack.c.bf16 %v1149, %v1147
        %v1166 = vpack.c.bf16 %v1150, %v1148
        %v1199 = vunpack.c.l.b16 %v415
        %v1200 = vunpack.c.l.b16 %v416
        %v1201 = vunpack.c.l.b16 %v417
        %v1202 = vunpack.c.l.b16 %v418
        %v1203 = vunpack.c.l.b16 %v419
        %v1204 = vunpack.c.l.b16 %v420
        %v1205 = vunpack.c.l.b16 %v421
        %v1206 = vunpack.c.l.b16 %v422
        %v1207 = vunpack.c.l.b16 %v423
        %v1208 = vunpack.c.l.b16 %v424
        %v1209 = vunpack.c.l.b16 %v425
        %v1210 = vunpack.c.l.b16 %v426
        %v1211 = vunpack.c.l.b16 %v427
        %v1212 = vunpack.c.l.b16 %v428
        %v1213 = vunpack.c.l.b16 %v429
        %v1214 = vunpack.c.l.b16 %v430
        %v1215 = vunpack.c.l.b16 %v431
        %v1216 = vunpack.c.l.b16 %v432
        %v1217 = vunpack.c.l.b16 %v433
        %v1218 = vunpack.c.l.b16 %v434
        %v1219 = vunpack.c.l.b16 %v435
        %v1220 = vunpack.c.l.b16 %v436
        %v1221 = vunpack.c.l.b16 %v437
        %v1222 = vunpack.c.l.b16 %v438
        %v1223 = vunpack.c.l.b16 %v439
        %v1224 = vunpack.c.l.b16 %v440
        %v1225 = vunpack.c.l.b16 %v441
        %v1226 = vunpack.c.l.b16 %v442
        %v1227 = vunpack.c.l.b16 %v443
        %v1228 = vunpack.c.l.b16 %v444
        %v1229 = vunpack.c.l.b16 %v445
        %v1230 = vunpack.c.l.b16 %v446
        %v1231 = vpack.c.b16 %v1200, %v1199
        %v1232 = vpack.c.b16 %v1202, %v1201
        %v1233 = vpack.c.b16 %v1204, %v1203
        %v1234 = vpack.c.b16 %v1206, %v1205
        %v1235 = vpack.c.b16 %v1208, %v1207
        %v1236 = vpack.c.b16 %v1210, %v1209
        %v1237 = vpack.c.b16 %v1212, %v1211
        %v1238 = vpack.c.b16 %v1214, %v1213
        %v1239 = vpack.c.b16 %v1216, %v1215
        %v1240 = vpack.c.b16 %v1218, %v1217
        %v1241 = vpack.c.b16 %v1220, %v1219
        %v1242 = vpack.c.b16 %v1222, %v1221
        %v1243 = vpack.c.b16 %v1224, %v1223
        %v1244 = vpack.c.b16 %v1226, %v1225
        %v1245 = vpack.c.b16 %v1228, %v1227
        %v1246 = vpack.c.b16 %v1230, %v1229
        %1263 = vmatpush.bf16.msra.mxu0 %v1238
        %1264 = vmatpush.bf16.msra.mxu0 %v1237
        %1265 = vmatpush.bf16.msra.mxu0 %v1236
        %1266 = vmatpush.bf16.msra.mxu0 %v1235
        %1267 = vmatpush.bf16.msra.mxu0 %v1234
        %1268 = vmatpush.bf16.msra.mxu0 %v1233
        %1269 = vmatpush.bf16.msra.mxu0 %v1232
        %1270 = vmatpush.bf16.msra.mxu0 %v1231
        %1271 = vmatmul.bf16.gmra.mxu0 %v1151
        %v1272 = vpop.f32.mrf.mxu0
        %v1273 = vadd.f32 0.0, %v1272
        %v1274 = vpop.f32.mrf.mxu0
        %v1275 = vadd.f32 0.0, %v1274
        %1276 = vmatmul.bf16.gmra.mxu0 %v1153
        %v1277 = vpop.f32.mrf.mxu0
        %v1278 = vadd.f32 0.0, %v1277
        %v1279 = vpop.f32.mrf.mxu0
        %v1280 = vadd.f32 0.0, %v1279
        %1281 = vmatmul.bf16.gmra.mxu0 %v1155
        %v1282 = vpop.f32.mrf.mxu0
        %v1283 = vadd.f32 0.0, %v1282
        %v1284 = vpop.f32.mrf.mxu0
        %v1285 = vadd.f32 0.0, %v1284
        %1286 = vmatmul.bf16.gmra.mxu0 %v1157
        %v1287 = vpop.f32.mrf.mxu0
        %v1288 = vadd.f32 0.0, %v1287
        %v1289 = vpop.f32.mrf.mxu0
        %v1290 = vadd.f32 0.0, %v1289
        %1291 = vmatmul.bf16.gmra.mxu0 %v1159
        %v1292 = vpop.f32.mrf.mxu0
        %v1293 = vadd.f32 0.0, %v1292
        %v1294 = vpop.f32.mrf.mxu0
        %v1295 = vadd.f32 0.0, %v1294
        %1296 = vmatmul.bf16.gmra.mxu0 %v1161
        %v1297 = vpop.f32.mrf.mxu0
        %v1298 = vadd.f32 0.0, %v1297
        %v1299 = vpop.f32.mrf.mxu0
        %v1300 = vadd.f32 0.0, %v1299
        %1301 = vmatmul.bf16.gmra.mxu0 %v1163
        %v1302 = vpop.f32.mrf.mxu0
        %v1303 = vadd.f32 0.0, %v1302
        %v1304 = vpop.f32.mrf.mxu0
        %v1305 = vadd.f32 0.0, %v1304
        %1306 = vmatmul.bf16.gmra.mxu0 %v1165
        %v1307 = vpop.f32.mrf.mxu0
        %v1308 = vadd.f32 0.0, %v1307
        %v1309 = vpop.f32.mrf.mxu0
        %v1310 = vadd.f32 0.0, %v1309
        %1311 = vdwg.mxu0
        %1312 = vmatpush.bf16.msra.mxu0 %v1246
        %1313 = vmatpush.bf16.msra.mxu0 %v1245
        %1314 = vmatpush.bf16.msra.mxu0 %v1244
        %1315 = vmatpush.bf16.msra.mxu0 %v1243
        %1316 = vmatpush.bf16.msra.mxu0 %v1242
        %1317 = vmatpush.bf16.msra.mxu0 %v1241
        %1318 = vmatpush.bf16.msra.mxu0 %v1240
        %1319 = vmatpush.bf16.msra.mxu0 %v1239
        %1320 = vmatmul.bf16.gmra.mxu0 %v1152
        %v1321 = vpop.f32.mrf.mxu0
        %v1322 = vadd.f32 %v1273, %v1321
        %v1323 = vpop.f32.mrf.mxu0
        %v1324 = vadd.f32 %v1275, %v1323
        %1325 = vmatmul.bf16.gmra.mxu0 %v1154
        %v1326 = vpop.f32.mrf.mxu0
        %v1327 = vadd.f32 %v1278, %v1326
        %v1328 = vpop.f32.mrf.mxu0
        %v1329 = vadd.f32 %v1280, %v1328
        %1330 = vmatmul.bf16.gmra.mxu0 %v1156
        %v1331 = vpop.f32.mrf.mxu0
        %v1332 = vadd.f32 %v1283, %v1331
        %v1333 = vpop.f32.mrf.mxu0
        %v1334 = vadd.f32 %v1285, %v1333
        %1335 = vmatmul.bf16.gmra.mxu0 %v1158
        %v1336 = vpop.f32.mrf.mxu0
        %v1337 = vadd.f32 %v1288, %v1336
        %v1338 = vpop.f32.mrf.mxu0
        %v1339 = vadd.f32 %v1290, %v1338
        %1340 = vmatmul.bf16.gmra.mxu0 %v1160
        %v1341 = vpop.f32.mrf.mxu0
        %v1342 = vadd.f32 %v1293, %v1341
        %v1343 = vpop.f32.mrf.mxu0
        %v1344 = vadd.f32 %v1295, %v1343
        %1345 = vmatmul.bf16.gmra.mxu0 %v1162
        %v1346 = vpop.f32.mrf.mxu0
        %v1347 = vadd.f32 %v1298, %v1346
        %v1348 = vpop.f32.mrf.mxu0
        %v1349 = vadd.f32 %v1300, %v1348
        %1350 = vmatmul.bf16.gmra.mxu0 %v1164
        %v1351 = vpop.f32.mrf.mxu0
        %v1352 = vadd.f32 %v1303, %v1351
        %v1353 = vpop.f32.mrf.mxu0
        %v1354 = vadd.f32 %v1305, %v1353
        %1355 = vmatmul.bf16.gmra.mxu0 %v1166
        %v1356 = vpop.f32.mrf.mxu0
        %v1357 = vadd.f32 %v1308, %v1356
        %v1358 = vpop.f32.mrf.mxu0
        %v1359 = vadd.f32 %v1310, %v1358
        %1360 = vdwg.mxu0
        %v1361 = vadd.f32 %v376, %v1322
        %v1362 = vadd.f32 %v378, %v1324
        %v1363 = vadd.f32 %v381, %v1327
        %v1364 = vadd.f32 %v383, %v1329
        %v1365 = vadd.f32 %v386, %v1332
        %v1366 = vadd.f32 %v388, %v1334
        %v1367 = vadd.f32 %v391, %v1337
        %v1368 = vadd.f32 %v393, %v1339
        %v1369 = vadd.f32 %v396, %v1342
        %v1370 = vadd.f32 %v398, %v1344
        %v1371 = vadd.f32 %v401, %v1347
        %v1372 = vadd.f32 %v403, %v1349
        %v1373 = vadd.f32 %v406, %v1352
        %v1374 = vadd.f32 %v408, %v1354
        %v1375 = vadd.f32 %v411, %v1357
        %v1376 = vadd.f32 %v413, %v1359
        %v1377 = vmax.f32 %v1361, 0.0
        %v1378 = vmax.f32 %v1362, 0.0
        %v1379 = vmax.f32 %v1363, 0.0
        %v1380 = vmax.f32 %v1364, 0.0
        %v1381 = vmax.f32 %v1365, 0.0
        %v1382 = vmax.f32 %v1366, 0.0
        %v1383 = vmax.f32 %v1367, 0.0
        %v1384 = vmax.f32 %v1368, 0.0
        %v1385 = vmax.f32 %v1369, 0.0
        %v1386 = vmax.f32 %v1370, 0.0
        %v1387 = vmax.f32 %v1371, 0.0
        %v1388 = vmax.f32 %v1372, 0.0
        %v1389 = vmax.f32 %v1373, 0.0
        %v1390 = vmax.f32 %v1374, 0.0
        %v1391 = vmax.f32 %v1375, 0.0
        %v1392 = vmax.f32 %v1376, 0.0
        %v1393 = vadd.f32 %v301, %v1377
        %v1394 = vadd.f32 %v302, %v1378
        %v1395 = vadd.f32 %v303, %v1379
        %v1396 = vadd.f32 %v304, %v1380
        %v1397 = vadd.f32 %v305, %v1381
        %v1398 = vadd.f32 %v306, %v1382
        %v1399 = vadd.f32 %v307, %v1383
        %v1400 = vadd.f32 %v308, %v1384
        %v1401 = vadd.f32 %v309, %v1385
        %v1402 = vadd.f32 %v310, %v1386
        %v1403 = vadd.f32 %v311, %v1387
        %v1404 = vadd.f32 %v312, %v1388
        %v1405 = vadd.f32 %v313, %v1389
        %v1406 = vadd.f32 %v314, %v1390
        %v1407 = vadd.f32 %v315, %v1391
        %v1408 = vadd.f32 %v316, %v1392
        %v1409 = vperm.slane %v447, 1
        %v1410 = vperm.slane %v447, 5
        %v1413 = vperm.slane %v1409, 1
        %v1414 = vperm.slane %v1410, 1
        %1415 = vset.pattern.permute.xlu0 1
        %1416 = vperm.xlu0 %1415, %v448
        %v1417 = vpop.permute.xlu0 %1416
        %1419 = vset.pattern.permute.xlu0 1
        %1420 = vperm.xlu0 %1419, %v449
        %v1421 = vpop.permute.xlu0 %1420
        %1423 = vset.pattern.permute.xlu0 1
        %1424 = vperm.xlu0 %1423, %v450
        %v1425 = vpop.permute.xlu0 %1424
        %1427 = vset.pattern.permute.xlu0 1
        %1428 = vperm.xlu0 %1427, %v451
        %v1429 = vpop.permute.xlu0 %1428
        %1431 = vset.pattern.permute.xlu0 1
        %1432 = vperm.xlu0 %1431, %v452
        %v1433 = vpop.permute.xlu0 %1432
        %1435 = vset.pattern.permute.xlu0 1
        %1436 = vperm.xlu0 %1435, %v453
        %v1437 = vpop.permute.xlu0 %1436
        %1439 = vset.pattern.permute.xlu0 1
        %1440 = vperm.xlu0 %1439, %v454
        %v1441 = vpop.permute.xlu0 %1440
        %1443 = vset.pattern.permute.xlu0 1
        %1444 = vperm.xlu0 %1443, %v455
        %v1445 = vpop.permute.xlu0 %1444
        %1447 = vset.pattern.permute.xlu0 1
        %1448 = vperm.xlu0 %1447, %v456
        %v1449 = vpop.permute.xlu0 %1448
        %1451 = vset.pattern.permute.xlu0 1
        %1452 = vperm.xlu0 %1451, %v457
        %v1453 = vpop.permute.xlu0 %1452
        %1455 = vset.pattern.permute.xlu0 1
        %1456 = vperm.xlu0 %1455, %v458
        %v1457 = vpop.permute.xlu0 %1456
        %1459 = vset.pattern.permute.xlu0 1
        %1460 = vperm.xlu0 %1459, %v459
        %v1461 = vpop.permute.xlu0 %1460
        %1463 = vset.pattern.permute.xlu0 1
        %1464 = vperm.xlu0 %1463, %v460
        %v1465 = vpop.permute.xlu0 %1464
        %1467 = vset.pattern.permute.xlu0 1
        %1468 = vperm.xlu0 %1467, %v461
        %v1469 = vpop.permute.xlu0 %1468
        %1471 = vset.pattern.permute.xlu0 1
        %1472 = vperm.xlu0 %1471, %v462
        %v1473 = vpop.permute.xlu0 %1472
        %1475 = vset.pattern.permute.xlu0 1
        %1476 = vperm.xlu0 %1475, %v463
        %v1477 = vpop.permute.xlu0 %1476
        %v1479 = vadd.f32 %v1413, %v1417
        %v1480 = vadd.f32 %v1414, %v1417
        %v1481 = vadd.f32 %v1413, %v1421
        %v1482 = vadd.f32 %v1414, %v1421
        %v1483 = vadd.f32 %v1413, %v1425
        %v1484 = vadd.f32 %v1414, %v1425
        %v1485 = vadd.f32 %v1413, %v1429
        %v1486 = vadd.f32 %v1414, %v1429
        %v1487 = vadd.f32 %v1413, %v1433
        %v1488 = vadd.f32 %v1414, %v1433
        %v1489 = vadd.f32 %v1413, %v1437
        %v1490 = vadd.f32 %v1414, %v1437
        %v1491 = vadd.f32 %v1413, %v1441
        %v1492 = vadd.f32 %v1414, %v1441
        %v1493 = vadd.f32 %v1413, %v1445
        %v1494 = vadd.f32 %v1414, %v1445
        %v1495 = vadd.f32 %v1413, %v1449
        %v1496 = vadd.f32 %v1414, %v1449
        %v1497 = vadd.f32 %v1413, %v1453
        %v1498 = vadd.f32 %v1414, %v1453
        %v1499 = vadd.f32 %v1413, %v1457
        %v1500 = vadd.f32 %v1414, %v1457
        %v1501 = vadd.f32 %v1413, %v1461
        %v1502 = vadd.f32 %v1414, %v1461
        %v1503 = vadd.f32 %v1413, %v1465
        %v1504 = vadd.f32 %v1414, %v1465
        %v1505 = vadd.f32 %v1413, %v1469
        %v1506 = vadd.f32 %v1414, %v1469
        %v1507 = vadd.f32 %v1413, %v1473
        %v1508 = vadd.f32 %v1414, %v1473
        %v1509 = vadd.f32 %v1413, %v1477
        %v1510 = vadd.f32 %v1414, %v1477
        %v1511 = vmul.f32 %v1479, 0.01
        %v1512 = vmul.f32 %v1480, 0.01
        %v1513 = vmul.f32 %v1481, 0.01
        %v1514 = vmul.f32 %v1482, 0.01
        %v1515 = vmul.f32 %v1483, 0.01
        %v1516 = vmul.f32 %v1484, 0.01
        %v1517 = vmul.f32 %v1485, 0.01
        %v1518 = vmul.f32 %v1486, 0.01
        %v1519 = vmul.f32 %v1487, 0.01
        %v1520 = vmul.f32 %v1488, 0.01
        %v1521 = vmul.f32 %v1489, 0.01
        %v1522 = vmul.f32 %v1490, 0.01
        %v1523 = vmul.f32 %v1491, 0.01
        %v1524 = vmul.f32 %v1492, 0.01
        %v1525 = vmul.f32 %v1493, 0.01
        %v1526 = vmul.f32 %v1494, 0.01
        %v1527 = vmul.f32 %v1495, 0.01
        %v1528 = vmul.f32 %v1496, 0.01
        %v1529 = vmul.f32 %v1497, 0.01
        %v1530 = vmul.f32 %v1498, 0.01
        %v1531 = vmul.f32 %v1499, 0.01
        %v1532 = vmul.f32 %v1500, 0.01
        %v1533 = vmul.f32 %v1501, 0.01
        %v1534 = vmul.f32 %v1502, 0.01
        %v1535 = vmul.f32 %v1503, 0.01
        %v1536 = vmul.f32 %v1504, 0.01
        %v1537 = vmul.f32 %v1505, 0.01
        %v1538 = vmul.f32 %v1506, 0.01
        %v1539 = vmul.f32 %v1507, 0.01
        %v1540 = vmul.f32 %v1508, 0.01
        %v1541 = vmul.f32 %v1509, 0.01
        %v1542 = vmul.f32 %v1510, 0.01
        %v1543 = vmax.f32 %v1479, %v1511
        %v1544 = vmax.f32 %v1480, %v1512
        %v1545 = vmax.f32 %v1481, %v1513
        %v1546 = vmax.f32 %v1482, %v1514
        %v1547 = vmax.f32 %v1483, %v1515
        %v1548 = vmax.f32 %v1484, %v1516
        %v1549 = vmax.f32 %v1485, %v1517
        %v1550 = vmax.f32 %v1486, %v1518
        %v1551 = vmax.f32 %v1487, %v1519
        %v1552 = vmax.f32 %v1488, %v1520
        %v1553 = vmax.f32 %v1489, %v1521
        %v1554 = vmax.f32 %v1490, %v1522
        %v1555 = vmax.f32 %v1491, %v1523
        %v1556 = vmax.f32 %v1492, %v1524
        %v1557 = vmax.f32 %v1493, %v1525
        %v1558 = vmax.f32 %v1494, %v1526
        %v1559 = vmax.f32 %v1495, %v1527
        %v1560 = vmax.f32 %v1496, %v1528
        %v1561 = vmax.f32 %v1497, %v1529
        %v1562 = vmax.f32 %v1498, %v1530
        %v1563 = vmax.f32 %v1499, %v1531
        %v1564 = vmax.f32 %v1500, %v1532
        %v1565 = vmax.f32 %v1501, %v1533
        %v1566 = vmax.f32 %v1502, %v1534
        %v1567 = vmax.f32 %v1503, %v1535
        %v1568 = vmax.f32 %v1504, %v1536
        %v1569 = vmax.f32 %v1505, %v1537
        %v1570 = vmax.f32 %v1506, %v1538
        %v1571 = vmax.f32 %v1507, %v1539
        %v1572 = vmax.f32 %v1508, %v1540
        %v1573 = vmax.f32 %v1509, %v1541
        %v1574 = vmax.f32 %v1510, %v1542
        %v1575 = vadd.f32 %v1543, %v536
        %v1576 = vadd.f32 %v1544, %v537
        %v1577 = vadd.f32 %v1545, %v538
        %v1578 = vadd.f32 %v1546, %v539
        %v1579 = vadd.f32 %v1547, %v540
        %v1580 = vadd.f32 %v1548, %v541
        %v1581 = vadd.f32 %v1549, %v542
        %v1582 = vadd.f32 %v1550, %v543
        %v1583 = vadd.f32 %v1551, %v544
        %v1584 = vadd.f32 %v1552, %v545
        %v1585 = vadd.f32 %v1553, %v546
        %v1586 = vadd.f32 %v1554, %v547
        %v1587 = vadd.f32 %v1555, %v548
        %v1588 = vadd.f32 %v1556, %v549
        %v1589 = vadd.f32 %v1557, %v550
        %v1590 = vadd.f32 %v1558, %v551
        %v1591 = vadd.f32 %v1559, %v552
        %v1592 = vadd.f32 %v1560, %v553
        %v1593 = vadd.f32 %v1561, %v554
        %v1594 = vadd.f32 %v1562, %v555
        %v1595 = vadd.f32 %v1563, %v556
        %v1596 = vadd.f32 %v1564, %v557
        %v1597 = vadd.f32 %v1565, %v558
        %v1598 = vadd.f32 %v1566, %v559
        %v1599 = vadd.f32 %v1567, %v560
        %v1600 = vadd.f32 %v1568, %v561
        %v1601 = vadd.f32 %v1569, %v562
        %v1602 = vadd.f32 %v1570, %v563
        %v1603 = vadd.f32 %v1571, %v564
        %v1604 = vadd.f32 %v1572, %v565
        %v1605 = vadd.f32 %v1573, %v566
        %v1606 = vadd.f32 %v1574, %v567
        %v1607 = vmax.f32 %v1575, %v1576
        %1608 = vmax.xlane.f32.xlu0 %v1607
        %v1609 = vpop.xlane.xlu0 %1608
        %v1610 = vmax.f32 %v1577, %v1578
        %1611 = vmax.xlane.f32.xlu0 %v1610
        %v1612 = vpop.xlane.xlu0 %1611
        %v1613 = vmax.f32 %v1579, %v1580
        %1614 = vmax.xlane.f32.xlu0 %v1613
        %v1615 = vpop.xlane.xlu0 %1614
        %v1616 = vmax.f32 %v1581, %v1582
        %1617 = vmax.xlane.f32.xlu0 %v1616
        %v1618 = vpop.xlane.xlu0 %1617
        %v1619 = vmax.f32 %v1583, %v1584
        %1620 = vmax.xlane.f32.xlu0 %v1619
        %v1621 = vpop.xlane.xlu0 %1620
        %v1622 = vmax.f32 %v1585, %v1586
        %1623 = vmax.xlane.f32.xlu0 %v1622
        %v1624 = vpop.xlane.xlu0 %1623
        %v1625 = vmax.f32 %v1587, %v1588
        %1626 = vmax.xlane.f32.xlu0 %v1625
        %v1627 = vpop.xlane.xlu0 %1626
        %v1628 = vmax.f32 %v1589, %v1590
        %1629 = vmax.xlane.f32.xlu0 %v1628
        %v1630 = vpop.xlane.xlu0 %1629
        %v1631 = vmax.f32 %v1591, %v1592
        %1632 = vmax.xlane.f32.xlu0 %v1631
        %v1633 = vpop.xlane.xlu0 %1632
        %v1634 = vmax.f32 %v1593, %v1594
        %1635 = vmax.xlane.f32.xlu0 %v1634
        %v1636 = vpop.xlane.xlu0 %1635
        %v1637 = vmax.f32 %v1595, %v1596
        %1638 = vmax.xlane.f32.xlu0 %v1637
        %v1639 = vpop.xlane.xlu0 %1638
        %v1640 = vmax.f32 %v1597, %v1598
        %1641 = vmax.xlane.f32.xlu0 %v1640
        %v1642 = vpop.xlane.xlu0 %1641
        %v1643 = vmax.f32 %v1599, %v1600
        %1644 = vmax.xlane.f32.xlu0 %v1643
        %v1645 = vpop.xlane.xlu0 %1644
        %v1646 = vmax.f32 %v1601, %v1602
        %1647 = vmax.xlane.f32.xlu0 %v1646
        %v1648 = vpop.xlane.xlu0 %1647
        %v1649 = vmax.f32 %v1603, %v1604
        %1650 = vmax.xlane.f32.xlu0 %v1649
        %v1651 = vpop.xlane.xlu0 %1650
        %v1652 = vmax.f32 %v1605, %v1606
        %1653 = vmax.xlane.f32.xlu0 %v1652
        %v1654 = vpop.xlane.xlu0 %1653
        %v1655 = vsub.f32 %v1575, %v1609
        %v1656 = vsub.f32 %v1576, %v1609
        %v1657 = vsub.f32 %v1577, %v1612
        %v1658 = vsub.f32 %v1578, %v1612
        %v1659 = vsub.f32 %v1579, %v1615
        %v1660 = vsub.f32 %v1580, %v1615
        %v1661 = vsub.f32 %v1581, %v1618
        %v1662 = vsub.f32 %v1582, %v1618
        %v1663 = vsub.f32 %v1583, %v1621
        %v1664 = vsub.f32 %v1584, %v1621
        %v1665 = vsub.f32 %v1585, %v1624
        %v1666 = vsub.f32 %v1586, %v1624
        %v1667 = vsub.f32 %v1587, %v1627
        %v1668 = vsub.f32 %v1588, %v1627
        %v1669 = vsub.f32 %v1589, %v1630
        %v1670 = vsub.f32 %v1590, %v1630
        %v1671 = vsub.f32 %v1591, %v1633
        %v1672 = vsub.f32 %v1592, %v1633
        %v1673 = vsub.f32 %v1593, %v1636
        %v1674 = vsub.f32 %v1594, %v1636
        %v1675 = vsub.f32 %v1595, %v1639
        %v1676 = vsub.f32 %v1596, %v1639
        %v1677 = vsub.f32 %v1597, %v1642
        %v1678 = vsub.f32 %v1598, %v1642
        %v1679 = vsub.f32 %v1599, %v1645
        %v1680 = vsub.f32 %v1600, %v1645
        %v1681 = vsub.f32 %v1601, %v1648
        %v1682 = vsub.f32 %v1602, %v1648
        %v1683 = vsub.f32 %v1603, %v1651
        %v1684 = vsub.f32 %v1604, %v1651
        %v1685 = vsub.f32 %v1605, %v1654
        %v1686 = vsub.f32 %v1606, %v1654
        %v1687 = vpack.c.bf16 %v1656, %v1655
        %v1688 = vpack.c.bf16 %v1658, %v1657
        %v1689 = vpack.c.bf16 %v1660, %v1659
        %v1690 = vpack.c.bf16 %v1662, %v1661
        %v1691 = vpack.c.bf16 %v1664, %v1663
        %v1692 = vpack.c.bf16 %v1666, %v1665
        %v1693 = vpack.c.bf16 %v1668, %v1667
        %v1694 = vpack.c.bf16 %v1670, %v1669
        %v1695 = vpack.c.bf16 %v1672, %v1671
        %v1696 = vpack.c.bf16 %v1674, %v1673
        %v1697 = vpack.c.bf16 %v1676, %v1675
        %v1698 = vpack.c.bf16 %v1678, %v1677
        %v1699 = vpack.c.bf16 %v1680, %v1679
        %v1700 = vpack.c.bf16 %v1682, %v1681
        %v1701 = vpack.c.bf16 %v1684, %v1683
        %v1702 = vpack.c.bf16 %v1686, %v1685
        %v1703 = vunpack.c.l.bf16 %v1687
        %v1704 = vunpack.c.h.bf16 %v1687
        %v1705 = vunpack.c.l.bf16 %v1688
        %v1706 = vunpack.c.h.bf16 %v1688
        %v1707 = vunpack.c.l.bf16 %v1689
        %v1708 = vunpack.c.h.bf16 %v1689
        %v1709 = vunpack.c.l.bf16 %v1690
        %v1710 = vunpack.c.h.bf16 %v1690
        %v1711 = vunpack.c.l.bf16 %v1691
        %v1712 = vunpack.c.h.bf16 %v1691
        %v1713 = vunpack.c.l.bf16 %v1692
        %v1714 = vunpack.c.h.bf16 %v1692
        %v1715 = vunpack.c.l.bf16 %v1693
        %v1716 = vunpack.c.h.bf16 %v1693
        %v1717 = vunpack.c.l.bf16 %v1694
        %v1718 = vunpack.c.h.bf16 %v1694
        %v1719 = vunpack.c.l.bf16 %v1695
        %v1720 = vunpack.c.h.bf16 %v1695
        %v1721 = vunpack.c.l.bf16 %v1696
        %v1722 = vunpack.c.h.bf16 %v1696
        %v1723 = vunpack.c.l.bf16 %v1697
        %v1724 = vunpack.c.h.bf16 %v1697
        %v1725 = vunpack.c.l.bf16 %v1698
        %v1726 = vunpack.c.h.bf16 %v1698
        %v1727 = vunpack.c.l.bf16 %v1699
        %v1728 = vunpack.c.h.bf16 %v1699
        %v1729 = vunpack.c.l.bf16 %v1700
        %v1730 = vunpack.c.h.bf16 %v1700
        %v1731 = vunpack.c.l.bf16 %v1701
        %v1732 = vunpack.c.h.bf16 %v1701
        %v1733 = vunpack.c.l.bf16 %v1702
        %v1734 = vunpack.c.h.bf16 %v1702
        %v1735 = vmul.f32 %v1703, 1.442695
        %v1736 = vpow.pop %v1735
        %v1737 = vmul.f32 %v1704, 1.442695
        %v1738 = vpow.pop %v1737
        %v1739 = vmul.f32 %v1705, 1.442695
        %v1740 = vpow.pop %v1739
        %v1741 = vmul.f32 %v1706, 1.442695
        %v1742 = vpow.pop %v1741
        %v1743 = vmul.f32 %v1707, 1.442695
        %v1744 = vpow.pop %v1743
        %v1745 = vmul.f32 %v1708, 1.442695
        %v1746 = vpow.pop %v1745
        %v1747 = vmul.f32 %v1709, 1.442695
        %v1748 = vpow.pop %v1747
        %v1749 = vmul.f32 %v1710, 1.442695
        %v1750 = vpow.pop %v1749
        %v1751 = vmul.f32 %v1711, 1.442695
        %v1752 = vpow.pop %v1751
        %v1753 = vmul.f32 %v1712, 1.442695
        %v1754 = vpow.pop %v1753
        %v1755 = vmul.f32 %v1713, 1.442695
        %v1756 = vpow.pop %v1755
        %v1757 = vmul.f32 %v1714, 1.442695
        %v1758 = vpow.pop %v1757
        %v1759 = vmul.f32 %v1715, 1.442695
        %v1760 = vpow.pop %v1759
        %v1761 = vmul.f32 %v1716, 1.442695
        %v1762 = vpow.pop %v1761
        %v1763 = vmul.f32 %v1717, 1.442695
        %v1764 = vpow.pop %v1763
        %v1765 = vmul.f32 %v1718, 1.442695
        %v1766 = vpow.pop %v1765
        %v1767 = vmul.f32 %v1719, 1.442695
        %v1768 = vpow.pop %v1767
        %v1769 = vmul.f32 %v1720, 1.442695
        %v1770 = vpow.pop %v1769
        %v1771 = vmul.f32 %v1721, 1.442695
        %v1772 = vpow.pop %v1771
        %v1773 = vmul.f32 %v1722, 1.442695
        %v1774 = vpow.pop %v1773
        %v1775 = vmul.f32 %v1723, 1.442695
        %v1776 = vpow.pop %v1775
        %v1777 = vmul.f32 %v1724, 1.442695
        %v1778 = vpow.pop %v1777
        %v1779 = vmul.f32 %v1725, 1.442695
        %v1780 = vpow.pop %v1779
        %v1781 = vmul.f32 %v1726, 1.442695
        %v1782 = vpow.pop %v1781
        %v1783 = vmul.f32 %v1727, 1.442695
        %v1784 = vpow.pop %v1783
        %v1785 = vmul.f32 %v1728, 1.442695
        %v1786 = vpow.pop %v1785
        %v1787 = vmul.f32 %v1729, 1.442695
        %v1788 = vpow.pop %v1787
        %v1789 = vmul.f32 %v1730, 1.442695
        %v1790 = vpow.pop %v1789
        %v1791 = vmul.f32 %v1731, 1.442695
        %v1792 = vpow.pop %v1791
        %v1793 = vmul.f32 %v1732, 1.442695
        %v1794 = vpow.pop %v1793
        %v1795 = vmul.f32 %v1733, 1.442695
        %v1796 = vpow.pop %v1795
        %v1797 = vmul.f32 %v1734, 1.442695
        %v1798 = vpow.pop %v1797
        %v1799 = vpack.c.bf16 %v1738, %v1736
        %v1800 = vpack.c.bf16 %v1742, %v1740
        %v1801 = vpack.c.bf16 %v1746, %v1744
        %v1802 = vpack.c.bf16 %v1750, %v1748
        %v1803 = vpack.c.bf16 %v1754, %v1752
        %v1804 = vpack.c.bf16 %v1758, %v1756
        %v1805 = vpack.c.bf16 %v1762, %v1760
        %v1806 = vpack.c.bf16 %v1766, %v1764
        %v1807 = vpack.c.bf16 %v1770, %v1768
        %v1808 = vpack.c.bf16 %v1774, %v1772
        %v1809 = vpack.c.bf16 %v1778, %v1776
        %v1810 = vpack.c.bf16 %v1782, %v1780
        %v1811 = vpack.c.bf16 %v1786, %v1784
        %v1812 = vpack.c.bf16 %v1790, %v1788
        %v1813 = vpack.c.bf16 %v1794, %v1792
        %v1814 = vpack.c.bf16 %v1798, %v1796
        %v1815 = vunpack.c.l.bf16 %v1799
        %v1816 = vunpack.c.h.bf16 %v1799
        %v1817 = vunpack.c.l.bf16 %v1800
        %v1818 = vunpack.c.h.bf16 %v1800
        %v1819 = vunpack.c.l.bf16 %v1801
        %v1820 = vunpack.c.h.bf16 %v1801
        %v1821 = vunpack.c.l.bf16 %v1802
        %v1822 = vunpack.c.h.bf16 %v1802
        %v1823 = vunpack.c.l.bf16 %v1803
        %v1824 = vunpack.c.h.bf16 %v1803
        %v1825 = vunpack.c.l.bf16 %v1804
        %v1826 = vunpack.c.h.bf16 %v1804
        %v1827 = vunpack.c.l.bf16 %v1805
        %v1828 = vunpack.c.h.bf16 %v1805
        %v1829 = vunpack.c.l.bf16 %v1806
        %v1830 = vunpack.c.h.bf16 %v1806
        %v1831 = vunpack.c.l.bf16 %v1807
        %v1832 = vunpack.c.h.bf16 %v1807
        %v1833 = vunpack.c.l.bf16 %v1808
        %v1834 = vunpack.c.h.bf16 %v1808
        %v1835 = vunpack.c.l.bf16 %v1809
        %v1836 = vunpack.c.h.bf16 %v1809
        %v1837 = vunpack.c.l.bf16 %v1810
        %v1838 = vunpack.c.h.bf16 %v1810
        %v1839 = vunpack.c.l.bf16 %v1811
        %v1840 = vunpack.c.h.bf16 %v1811
        %v1841 = vunpack.c.l.bf16 %v1812
        %v1842 = vunpack.c.h.bf16 %v1812
        %v1843 = vunpack.c.l.bf16 %v1813
        %v1844 = vunpack.c.h.bf16 %v1813
        %v1845 = vunpack.c.l.bf16 %v1814
        %v1846 = vunpack.c.h.bf16 %v1814
        %v1847 = vadd.f32 %v1815, %v1816
        %1848 = vadd.xlane.f32.xlu0 %v1847
        %v1849 = vpop.xlane.xlu0 %1848
        %v1850 = vadd.f32 %v1817, %v1818
        %1851 = vadd.xlane.f32.xlu0 %v1850
        %v1852 = vpop.xlane.xlu0 %1851
        %v1853 = vadd.f32 %v1819, %v1820
        %1854 = vadd.xlane.f32.xlu0 %v1853
        %v1855 = vpop.xlane.xlu0 %1854
        %v1856 = vadd.f32 %v1821, %v1822
        %1857 = vadd.xlane.f32.xlu0 %v1856
        %v1858 = vpop.xlane.xlu0 %1857
        %v1859 = vadd.f32 %v1823, %v1824
        %1860 = vadd.xlane.f32.xlu0 %v1859
        %v1861 = vpop.xlane.xlu0 %1860
        %v1862 = vadd.f32 %v1825, %v1826
        %1863 = vadd.xlane.f32.xlu0 %v1862
        %v1864 = vpop.xlane.xlu0 %1863
        %v1865 = vadd.f32 %v1827, %v1828
        %1866 = vadd.xlane.f32.xlu0 %v1865
        %v1867 = vpop.xlane.xlu0 %1866
        %v1868 = vadd.f32 %v1829, %v1830
        %1869 = vadd.xlane.f32.xlu0 %v1868
        %v1870 = vpop.xlane.xlu0 %1869
        %v1871 = vadd.f32 %v1831, %v1832
        %1872 = vadd.xlane.f32.xlu0 %v1871
        %v1873 = vpop.xlane.xlu0 %1872
        %v1874 = vadd.f32 %v1833, %v1834
        %1875 = vadd.xlane.f32.xlu0 %v1874
        %v1876 = vpop.xlane.xlu0 %1875
        %v1877 = vadd.f32 %v1835, %v1836
        %1878 = vadd.xlane.f32.xlu0 %v1877
        %v1879 = vpop.xlane.xlu0 %1878
        %v1880 = vadd.f32 %v1837, %v1838
        %1881 = vadd.xlane.f32.xlu0 %v1880
        %v1882 = vpop.xlane.xlu0 %1881
        %v1883 = vadd.f32 %v1839, %v1840
        %1884 = vadd.xlane.f32.xlu0 %v1883
        %v1885 = vpop.xlane.xlu0 %1884
        %v1886 = vadd.f32 %v1841, %v1842
        %1887 = vadd.xlane.f32.xlu0 %v1886
        %v1888 = vpop.xlane.xlu0 %1887
        %v1889 = vadd.f32 %v1843, %v1844
        %1890 = vadd.xlane.f32.xlu0 %v1889
        %v1891 = vpop.xlane.xlu0 %1890
        %v1892 = vadd.f32 %v1845, %v1846
        %1893 = vadd.xlane.f32.xlu0 %v1892
        %v1894 = vpop.xlane.xlu0 %1893
        %v1895 = vrcp.pop %v1849
        %v1896 = vrcp.pop %v1852
        %v1897 = vrcp.pop %v1855
        %v1898 = vrcp.pop %v1858
        %v1899 = vrcp.pop %v1861
        %v1900 = vrcp.pop %v1864
        %v1901 = vrcp.pop %v1867
        %v1902 = vrcp.pop %v1870
        %v1903 = vrcp.pop %v1873
        %v1904 = vrcp.pop %v1876
        %v1905 = vrcp.pop %v1879
        %v1906 = vrcp.pop %v1882
        %v1907 = vrcp.pop %v1885
        %v1908 = vrcp.pop %v1888
        %v1909 = vrcp.pop %v1891
        %v1910 = vrcp.pop %v1894
        %v1911 = vpack.c.bf16 %v1895, %v1895
        %v1912 = vpack.c.bf16 %v1896, %v1896
        %v1913 = vpack.c.bf16 %v1897, %v1897
        %v1914 = vpack.c.bf16 %v1898, %v1898
        %v1915 = vpack.c.bf16 %v1899, %v1899
        %v1916 = vpack.c.bf16 %v1900, %v1900
        %v1917 = vpack.c.bf16 %v1901, %v1901
        %v1918 = vpack.c.bf16 %v1902, %v1902
        %v1919 = vpack.c.bf16 %v1903, %v1903
        %v1920 = vpack.c.bf16 %v1904, %v1904
        %v1921 = vpack.c.bf16 %v1905, %v1905
        %v1922 = vpack.c.bf16 %v1906, %v1906
        %v1923 = vpack.c.bf16 %v1907, %v1907
        %v1924 = vpack.c.bf16 %v1908, %v1908
        %v1925 = vpack.c.bf16 %v1909, %v1909
        %v1926 = vpack.c.bf16 %v1910, %v1910
        %v1927 = vunpack.c.l.bf16 %v1911
        %v1928 = vunpack.c.l.bf16 %v1912
        %v1929 = vunpack.c.l.bf16 %v1913
        %v1930 = vunpack.c.l.bf16 %v1914
        %v1931 = vunpack.c.l.bf16 %v1915
        %v1932 = vunpack.c.l.bf16 %v1916
        %v1933 = vunpack.c.l.bf16 %v1917
        %v1934 = vunpack.c.l.bf16 %v1918
        %v1935 = vunpack.c.l.bf16 %v1919
        %v1936 = vunpack.c.l.bf16 %v1920
        %v1937 = vunpack.c.l.bf16 %v1921
        %v1938 = vunpack.c.l.bf16 %v1922
        %v1939 = vunpack.c.l.bf16 %v1923
        %v1940 = vunpack.c.l.bf16 %v1924
        %v1941 = vunpack.c.l.bf16 %v1925
        %v1942 = vunpack.c.l.bf16 %v1926
        %v1943 = vmul.f32 %v1815, %v1927
        %v1944 = vmul.f32 %v1816, %v1927
        %v1945 = vmul.f32 %v1817, %v1928
        %v1946 = vmul.f32 %v1818, %v1928
        %v1947 = vmul.f32 %v1819, %v1929
        %v1948 = vmul.f32 %v1820, %v1929
        %v1949 = vmul.f32 %v1821, %v1930
        %v1950 = vmul.f32 %v1822, %v1930
        %v1951 = vmul.f32 %v1823, %v1931
        %v1952 = vmul.f32 %v1824, %v1931
        %v1953 = vmul.f32 %v1825, %v1932
        %v1954 = vmul.f32 %v1826, %v1932
        %v1955 = vmul.f32 %v1827, %v1933
        %v1956 = vmul.f32 %v1828, %v1933
        %v1957 = vmul.f32 %v1829, %v1934
        %v1958 = vmul.f32 %v1830, %v1934
        %v1959 = vmul.f32 %v1831, %v1935
        %v1960 = vmul.f32 %v1832, %v1935
        %v1961 = vmul.f32 %v1833, %v1936
        %v1962 = vmul.f32 %v1834, %v1936
        %v1963 = vmul.f32 %v1835, %v1937
        %v1964 = vmul.f32 %v1836, %v1937
        %v1965 = vmul.f32 %v1837, %v1938
        %v1966 = vmul.f32 %v1838, %v1938
        %v1967 = vmul.f32 %v1839, %v1939
        %v1968 = vmul.f32 %v1840, %v1939
        %v1969 = vmul.f32 %v1841, %v1940
        %v1970 = vmul.f32 %v1842, %v1940
        %v1971 = vmul.f32 %v1843, %v1941
        %v1972 = vmul.f32 %v1844, %v1941
        %v1973 = vmul.f32 %v1845, %v1942
        %v1974 = vmul.f32 %v1846, %v1942
        %v1975 = vpack.c.bf16 %v1945, %v1943
        %v1976 = vpack.c.bf16 %v1946, %v1944
        %v1977 = vpack.c.bf16 %v1949, %v1947
        %v1978 = vpack.c.bf16 %v1950, %v1948
        %v1979 = vpack.c.bf16 %v1953, %v1951
        %v1980 = vpack.c.bf16 %v1954, %v1952
        %v1981 = vpack.c.bf16 %v1957, %v1955
        %v1982 = vpack.c.bf16 %v1958, %v1956
        %v1983 = vpack.c.bf16 %v1961, %v1959
        %v1984 = vpack.c.bf16 %v1962, %v1960
        %v1985 = vpack.c.bf16 %v1965, %v1963
        %v1986 = vpack.c.bf16 %v1966, %v1964
        %v1987 = vpack.c.bf16 %v1969, %v1967
        %v1988 = vpack.c.bf16 %v1970, %v1968
        %v1989 = vpack.c.bf16 %v1973, %v1971
        %v1990 = vpack.c.bf16 %v1974, %v1972
        %1991 = vrot.lane.b32.xlu0 %v1231, 96
        %v1992 = vpop.permute.xlu0 %1991
        %1993 = vrot.lane.b32.xlu0 %v1232, 96
        %v1994 = vpop.permute.xlu0 %1993
        %1995 = vrot.lane.b32.xlu0 %v1233, 96
        %v1996 = vpop.permute.xlu0 %1995
        %1997 = vrot.lane.b32.xlu0 %v1234, 96
        %v1998 = vpop.permute.xlu0 %1997
        %1999 = vrot.lane.b32.xlu0 %v1235, 96
        %v2000 = vpop.permute.xlu0 %1999
        %2001 = vrot.lane.b32.xlu0 %v1236, 96
        %v2002 = vpop.permute.xlu0 %2001
        %2003 = vrot.lane.b32.xlu0 %v1237, 96
        %v2004 = vpop.permute.xlu0 %2003
        %2005 = vrot.lane.b32.xlu0 %v1238, 96
        %v2006 = vpop.permute.xlu0 %2005
        %2007 = vrot.lane.b32.xlu0 %v1239, 96
        %v2008 = vpop.permute.xlu0 %2007
        %2009 = vrot.lane.b32.xlu0 %v1240, 96
        %v2010 = vpop.permute.xlu0 %2009
        %2011 = vrot.lane.b32.xlu0 %v1241, 96
        %v2012 = vpop.permute.xlu0 %2011
        %2013 = vrot.lane.b32.xlu0 %v1242, 96
        %v2014 = vpop.permute.xlu0 %2013
        %2015 = vrot.lane.b32.xlu0 %v1243, 96
        %v2016 = vpop.permute.xlu0 %2015
        %2017 = vrot.lane.b32.xlu0 %v1244, 96
        %v2018 = vpop.permute.xlu0 %2017
        %2019 = vrot.lane.b32.xlu0 %v1245, 96
        %v2020 = vpop.permute.xlu0 %2019
        %2021 = vrot.lane.b32.xlu0 %v1246, 96
        %v2022 = vpop.permute.xlu0 %2021
        %2039 = vmatpush.bf16.msra.mxu0 %v2006
        %2040 = vmatpush.bf16.msra.mxu0 %v2004
        %2041 = vmatpush.bf16.msra.mxu0 %v2002
        %2042 = vmatpush.bf16.msra.mxu0 %v2000
        %2043 = vmatpush.bf16.msra.mxu0 %v1998
        %2044 = vmatpush.bf16.msra.mxu0 %v1996
        %2045 = vmatpush.bf16.msra.mxu0 %v1994
        %2046 = vmatpush.bf16.msra.mxu0 %v1992
        %2047 = vmatmul.bf16.gmra.mxu0 %v1975
        %v2048 = vpop.f32.mrf.mxu0
        %v2049 = vadd.f32 0.0, %v2048
        %v2050 = vpop.f32.mrf.mxu0
        %v2051 = vadd.f32 0.0, %v2050
        %2052 = vmatmul.bf16.gmra.mxu0 %v1977
        %v2053 = vpop.f32.mrf.mxu0
        %v2054 = vadd.f32 0.0, %v2053
        %v2055 = vpop.f32.mrf.mxu0
        %v2056 = vadd.f32 0.0, %v2055
        %2057 = vmatmul.bf16.gmra.mxu0 %v1979
        %v2058 = vpop.f32.mrf.mxu0
        %v2059 = vadd.f32 0.0, %v2058
        %v2060 = vpop.f32.mrf.mxu0
        %v2061 = vadd.f32 0.0, %v2060
        %2062 = vmatmul.bf16.gmra.mxu0 %v1981
        %v2063 = vpop.f32.mrf.mxu0
        %v2064 = vadd.f32 0.0, %v2063
        %v2065 = vpop.f32.mrf.mxu0
        %v2066 = vadd.f32 0.0, %v2065
        %2067 = vmatmul.bf16.gmra.mxu0 %v1983
        %v2068 = vpop.f32.mrf.mxu0
        %v2069 = vadd.f32 0.0, %v2068
        %v2070 = vpop.f32.mrf.mxu0
        %v2071 = vadd.f32 0.0, %v2070
        %2072 = vmatmul.bf16.gmra.mxu0 %v1985
        %v2073 = vpop.f32.mrf.mxu0
        %v2074 = vadd.f32 0.0, %v2073
        %v2075 = vpop.f32.mrf.mxu0
        %v2076 = vadd.f32 0.0, %v2075
        %2077 = vmatmul.bf16.gmra.mxu0 %v1987
        %v2078 = vpop.f32.mrf.mxu0
        %v2079 = vadd.f32 0.0, %v2078
        %v2080 = vpop.f32.mrf.mxu0
        %v2081 = vadd.f32 0.0, %v2080
        %2082 = vmatmul.bf16.gmra.mxu0 %v1989
        %v2083 = vpop.f32.mrf.mxu0
        %v2084 = vadd.f32 0.0, %v2083
        %v2085 = vpop.f32.mrf.mxu0
        %v2086 = vadd.f32 0.0, %v2085
        %2087 = vdwg.mxu0
        %2088 = vmatpush.bf16.msra.mxu0 %v2022
        %2089 = vmatpush.bf16.msra.mxu0 %v2020
        %2090 = vmatpush.bf16.msra.mxu0 %v2018
        %2091 = vmatpush.bf16.msra.mxu0 %v2016
        %2092 = vmatpush.bf16.msra.mxu0 %v2014
        %2093 = vmatpush.bf16.msra.mxu0 %v2012
        %2094 = vmatpush.bf16.msra.mxu0 %v2010
        %2095 = vmatpush.bf16.msra.mxu0 %v2008
        %2096 = vmatmul.bf16.gmra.mxu0 %v1976
        %v2097 = vpop.f32.mrf.mxu0
        %v2098 = vadd.f32 %v2049, %v2097
        %v2099 = vpop.f32.mrf.mxu0
        %v2100 = vadd.f32 %v2051, %v2099
        %2101 = vmatmul.bf16.gmra.mxu0 %v1978
        %v2102 = vpop.f32.mrf.mxu0
        %v2103 = vadd.f32 %v2054, %v2102
        %v2104 = vpop.f32.mrf.mxu0
        %v2105 = vadd.f32 %v2056, %v2104
        %2106 = vmatmul.bf16.gmra.mxu0 %v1980
        %v2107 = vpop.f32.mrf.mxu0
        %v2108 = vadd.f32 %v2059, %v2107
        %v2109 = vpop.f32.mrf.mxu0
        %v2110 = vadd.f32 %v2061, %v2109
        %2111 = vmatmul.bf16.gmra.mxu0 %v1982
        %v2112 = vpop.f32.mrf.mxu0
        %v2113 = vadd.f32 %v2064, %v2112
        %v2114 = vpop.f32.mrf.mxu0
        %v2115 = vadd.f32 %v2066, %v2114
        %2116 = vmatmul.bf16.gmra.mxu0 %v1984
        %v2117 = vpop.f32.mrf.mxu0
        %v2118 = vadd.f32 %v2069, %v2117
        %v2119 = vpop.f32.mrf.mxu0
        %v2120 = vadd.f32 %v2071, %v2119
        %2121 = vmatmul.bf16.gmra.mxu0 %v1986
        %v2122 = vpop.f32.mrf.mxu0
        %v2123 = vadd.f32 %v2074, %v2122
        %v2124 = vpop.f32.mrf.mxu0
        %v2125 = vadd.f32 %v2076, %v2124
        %2126 = vmatmul.bf16.gmra.mxu0 %v1988
        %v2127 = vpop.f32.mrf.mxu0
        %v2128 = vadd.f32 %v2079, %v2127
        %v2129 = vpop.f32.mrf.mxu0
        %v2130 = vadd.f32 %v2081, %v2129
        %2131 = vmatmul.bf16.gmra.mxu0 %v1990
        %v2132 = vpop.f32.mrf.mxu0
        %v2133 = vadd.f32 %v2084, %v2132
        %v2134 = vpop.f32.mrf.mxu0
        %v2135 = vadd.f32 %v2086, %v2134
        %2136 = vdwg.mxu0
        %2153 = vrot.lane.b32.xlu0 %v2098, 32
        %v2154 = vpop.permute.xlu0 %2153
        %2155 = vrot.lane.b32.xlu0 %v2100, 32
        %v2156 = vpop.permute.xlu0 %2155
        %2157 = vrot.lane.b32.xlu0 %v2103, 32
        %v2158 = vpop.permute.xlu0 %2157
        %2159 = vrot.lane.b32.xlu0 %v2105, 32
        %v2160 = vpop.permute.xlu0 %2159
        %2161 = vrot.lane.b32.xlu0 %v2108, 32
        %v2162 = vpop.permute.xlu0 %2161
        %2163 = vrot.lane.b32.xlu0 %v2110, 32
        %v2164 = vpop.permute.xlu0 %2163
        %2165 = vrot.lane.b32.xlu0 %v2113, 32
        %v2166 = vpop.permute.xlu0 %2165
        %2167 = vrot.lane.b32.xlu0 %v2115, 32
        %v2168 = vpop.permute.xlu0 %2167
        %2169 = vrot.lane.b32.xlu0 %v2118, 32
        %v2170 = vpop.permute.xlu0 %2169
        %2171 = vrot.lane.b32.xlu0 %v2120, 32
        %v2172 = vpop.permute.xlu0 %2171
        %2173 = vrot.lane.b32.xlu0 %v2123, 32
        %v2174 = vpop.permute.xlu0 %2173
        %2175 = vrot.lane.b32.xlu0 %v2125, 32
        %v2176 = vpop.permute.xlu0 %2175
        %2177 = vrot.lane.b32.xlu0 %v2128, 32
        %v2178 = vpop.permute.xlu0 %2177
        %2179 = vrot.lane.b32.xlu0 %v2130, 32
        %v2180 = vpop.permute.xlu0 %2179
        %2181 = vrot.lane.b32.xlu0 %v2133, 32
        %v2182 = vpop.permute.xlu0 %2181
        %2183 = vrot.lane.b32.xlu0 %v2135, 32
        %v2184 = vpop.permute.xlu0 %2183
        %v2201 = vadd.f32 %v376, %v2154
        %v2202 = vadd.f32 %v378, %v2156
        %v2203 = vadd.f32 %v381, %v2158
        %v2204 = vadd.f32 %v383, %v2160
        %v2205 = vadd.f32 %v386, %v2162
        %v2206 = vadd.f32 %v388, %v2164
        %v2207 = vadd.f32 %v391, %v2166
        %v2208 = vadd.f32 %v393, %v2168
        %v2209 = vadd.f32 %v396, %v2170
        %v2210 = vadd.f32 %v398, %v2172
        %v2211 = vadd.f32 %v401, %v2174
        %v2212 = vadd.f32 %v403, %v2176
        %v2213 = vadd.f32 %v406, %v2178
        %v2214 = vadd.f32 %v408, %v2180
        %v2215 = vadd.f32 %v411, %v2182
        %v2216 = vadd.f32 %v413, %v2184
        %v2217 = vmax.f32 %v2201, 0.0
        %v2218 = vmax.f32 %v2202, 0.0
        %v2219 = vmax.f32 %v2203, 0.0
        %v2220 = vmax.f32 %v2204, 0.0
        %v2221 = vmax.f32 %v2205, 0.0
        %v2222 = vmax.f32 %v2206, 0.0
        %v2223 = vmax.f32 %v2207, 0.0
        %v2224 = vmax.f32 %v2208, 0.0
        %v2225 = vmax.f32 %v2209, 0.0
        %v2226 = vmax.f32 %v2210, 0.0
        %v2227 = vmax.f32 %v2211, 0.0
        %v2228 = vmax.f32 %v2212, 0.0
        %v2229 = vmax.f32 %v2213, 0.0
        %v2230 = vmax.f32 %v2214, 0.0
        %v2231 = vmax.f32 %v2215, 0.0
        %v2232 = vmax.f32 %v2216, 0.0
        %2249 = vrot.lane.b32.xlu0 %v2217, 96
        %v2250 = vpop.permute.xlu0 %2249
        %2251 = vrot.lane.b32.xlu0 %v2218, 96
        %v2252 = vpop.permute.xlu0 %2251
        %2253 = vrot.lane.b32.xlu0 %v2219, 96
        %v2254 = vpop.permute.xlu0 %2253
        %2255 = vrot.lane.b32.xlu0 %v2220, 96
        %v2256 = vpop.permute.xlu0 %2255
        %2257 = vrot.lane.b32.xlu0 %v2221, 96
        %v2258 = vpop.permute.xlu0 %2257
        %2259 = vrot.lane.b32.xlu0 %v2222, 96
        %v2260 = vpop.permute.xlu0 %2259
        %2261 = vrot.lane.b32.xlu0 %v2223, 96
        %v2262 = vpop.permute.xlu0 %2261
        %2263 = vrot.lane.b32.xlu0 %v2224, 96
        %v2264 = vpop.permute.xlu0 %2263
        %2265 = vrot.lane.b32.xlu0 %v2225, 96
        %v2266 = vpop.permute.xlu0 %2265
        %2267 = vrot.lane.b32.xlu0 %v2226, 96
        %v2268 = vpop.permute.xlu0 %2267
        %2269 = vrot.lane.b32.xlu0 %v2227, 96
        %v2270 = vpop.permute.xlu0 %2269
        %2271 = vrot.lane.b32.xlu0 %v2228, 96
        %v2272 = vpop.permute.xlu0 %2271
        %2273 = vrot.lane.b32.xlu0 %v2229, 96
        %v2274 = vpop.permute.xlu0 %2273
        %2275 = vrot.lane.b32.xlu0 %v2230, 96
        %v2276 = vpop.permute.xlu0 %2275
        %2277 = vrot.lane.b32.xlu0 %v2231, 96
        %v2278 = vpop.permute.xlu0 %2277
        %2279 = vrot.lane.b32.xlu0 %v2232, 96
        %v2280 = vpop.permute.xlu0 %2279
        %v2297 = vadd.f32 %v301, %v2250
        %v2298 = vadd.f32 %v302, %v2252
        %v2299 = vadd.f32 %v303, %v2254
        %v2300 = vadd.f32 %v304, %v2256
        %v2301 = vadd.f32 %v305, %v2258
        %v2302 = vadd.f32 %v306, %v2260
        %v2303 = vadd.f32 %v307, %v2262
        %v2304 = vadd.f32 %v308, %v2264
        %v2305 = vadd.f32 %v309, %v2266
        %v2306 = vadd.f32 %v310, %v2268
        %v2307 = vadd.f32 %v311, %v2270
        %v2308 = vadd.f32 %v312, %v2272
        %v2309 = vadd.f32 %v313, %v2274
        %v2310 = vadd.f32 %v314, %v2276
        %v2311 = vadd.f32 %v315, %v2278
        %v2312 = vadd.f32 %v316, %v2280
        %v2313 = vperm.slane %v447, 2
        %v2314 = vperm.slane %v447, 6
        %v2317 = vperm.slane %v2313, 2
        %v2318 = vperm.slane %v2314, 2
        %2319 = vset.pattern.permute.xlu0 2
        %2320 = vperm.xlu0 %2319, %v448
        %v2321 = vpop.permute.xlu0 %2320
        %2323 = vset.pattern.permute.xlu0 2
        %2324 = vperm.xlu0 %2323, %v449
        %v2325 = vpop.permute.xlu0 %2324
        %2327 = vset.pattern.permute.xlu0 2
        %2328 = vperm.xlu0 %2327, %v450
        %v2329 = vpop.permute.xlu0 %2328
        %2331 = vset.pattern.permute.xlu0 2
        %2332 = vperm.xlu0 %2331, %v451
        %v2333 = vpop.permute.xlu0 %2332
        %2335 = vset.pattern.permute.xlu0 2
        %2336 = vperm.xlu0 %2335, %v452
        %v2337 = vpop.permute.xlu0 %2336
        %2339 = vset.pattern.permute.xlu0 2
        %2340 = vperm.xlu0 %2339, %v453
        %v2341 = vpop.permute.xlu0 %2340
        %2343 = vset.pattern.permute.xlu0 2
        %2344 = vperm.xlu0 %2343, %v454
        %v2345 = vpop.permute.xlu0 %2344
        %2347 = vset.pattern.permute.xlu0 2
        %2348 = vperm.xlu0 %2347, %v455
        %v2349 = vpop.permute.xlu0 %2348
        %2351 = vset.pattern.permute.xlu0 2
        %2352 = vperm.xlu0 %2351, %v456
        %v2353 = vpop.permute.xlu0 %2352
        %2355 = vset.pattern.permute.xlu0 2
        %2356 = vperm.xlu0 %2355, %v457
        %v2357 = vpop.permute.xlu0 %2356
        %2359 = vset.pattern.permute.xlu0 2
        %2360 = vperm.xlu0 %2359, %v458
        %v2361 = vpop.permute.xlu0 %2360
        %2363 = vset.pattern.permute.xlu0 2
        %2364 = vperm.xlu0 %2363, %v459
        %v2365 = vpop.permute.xlu0 %2364
        %2367 = vset.pattern.permute.xlu0 2
        %2368 = vperm.xlu0 %2367, %v460
        %v2369 = vpop.permute.xlu0 %2368
        %2371 = vset.pattern.permute.xlu0 2
        %2372 = vperm.xlu0 %2371, %v461
        %v2373 = vpop.permute.xlu0 %2372
        %2375 = vset.pattern.permute.xlu0 2
        %2376 = vperm.xlu0 %2375, %v462
        %v2377 = vpop.permute.xlu0 %2376
        %2379 = vset.pattern.permute.xlu0 2
        %2380 = vperm.xlu0 %2379, %v463
        %v2381 = vpop.permute.xlu0 %2380
        %v2383 = vadd.f32 %v2317, %v2321
        %v2384 = vadd.f32 %v2318, %v2321
        %v2385 = vadd.f32 %v2317, %v2325
        %v2386 = vadd.f32 %v2318, %v2325
        %v2387 = vadd.f32 %v2317, %v2329
        %v2388 = vadd.f32 %v2318, %v2329
        %v2389 = vadd.f32 %v2317, %v2333
        %v2390 = vadd.f32 %v2318, %v2333
        %v2391 = vadd.f32 %v2317, %v2337
        %v2392 = vadd.f32 %v2318, %v2337
        %v2393 = vadd.f32 %v2317, %v2341
        %v2394 = vadd.f32 %v2318, %v2341
        %v2395 = vadd.f32 %v2317, %v2345
        %v2396 = vadd.f32 %v2318, %v2345
        %v2397 = vadd.f32 %v2317, %v2349
        %v2398 = vadd.f32 %v2318, %v2349
        %v2399 = vadd.f32 %v2317, %v2353
        %v2400 = vadd.f32 %v2318, %v2353
        %v2401 = vadd.f32 %v2317, %v2357
        %v2402 = vadd.f32 %v2318, %v2357
        %v2403 = vadd.f32 %v2317, %v2361
        %v2404 = vadd.f32 %v2318, %v2361
        %v2405 = vadd.f32 %v2317, %v2365
        %v2406 = vadd.f32 %v2318, %v2365
        %v2407 = vadd.f32 %v2317, %v2369
        %v2408 = vadd.f32 %v2318, %v2369
        %v2409 = vadd.f32 %v2317, %v2373
        %v2410 = vadd.f32 %v2318, %v2373
        %v2411 = vadd.f32 %v2317, %v2377
        %v2412 = vadd.f32 %v2318, %v2377
        %v2413 = vadd.f32 %v2317, %v2381
        %v2414 = vadd.f32 %v2318, %v2381
        %v2415 = vmul.f32 %v2383, 0.01
        %v2416 = vmul.f32 %v2384, 0.01
        %v2417 = vmul.f32 %v2385, 0.01
        %v2418 = vmul.f32 %v2386, 0.01
        %v2419 = vmul.f32 %v2387, 0.01
        %v2420 = vmul.f32 %v2388, 0.01
        %v2421 = vmul.f32 %v2389, 0.01
        %v2422 = vmul.f32 %v2390, 0.01
        %v2423 = vmul.f32 %v2391, 0.01
        %v2424 = vmul.f32 %v2392, 0.01
        %v2425 = vmul.f32 %v2393, 0.01
        %v2426 = vmul.f32 %v2394, 0.01
        %v2427 = vmul.f32 %v2395, 0.01
        %v2428 = vmul.f32 %v2396, 0.01
        %v2429 = vmul.f32 %v2397, 0.01
        %v2430 = vmul.f32 %v2398, 0.01
        %v2431 = vmul.f32 %v2399, 0.01
        %v2432 = vmul.f32 %v2400, 0.01
        %v2433 = vmul.f32 %v2401, 0.01
        %v2434 = vmul.f32 %v2402, 0.01
        %v2435 = vmul.f32 %v2403, 0.01
        %v2436 = vmul.f32 %v2404, 0.01
        %v2437 = vmul.f32 %v2405, 0.01
        %v2438 = vmul.f32 %v2406, 0.01
        %v2439 = vmul.f32 %v2407, 0.01
        %v2440 = vmul.f32 %v2408, 0.01
        %v2441 = vmul.f32 %v2409, 0.01
        %v2442 = vmul.f32 %v2410, 0.01
        %v2443 = vmul.f32 %v2411, 0.01
        %v2444 = vmul.f32 %v2412, 0.01
        %v2445 = vmul.f32 %v2413, 0.01
        %v2446 = vmul.f32 %v2414, 0.01
        %v2447 = vmax.f32 %v2383, %v2415
        %v2448 = vmax.f32 %v2384, %v2416
        %v2449 = vmax.f32 %v2385, %v2417
        %v2450 = vmax.f32 %v2386, %v2418
        %v2451 = vmax.f32 %v2387, %v2419
        %v2452 = vmax.f32 %v2388, %v2420
        %v2453 = vmax.f32 %v2389, %v2421
        %v2454 = vmax.f32 %v2390, %v2422
        %v2455 = vmax.f32 %v2391, %v2423
        %v2456 = vmax.f32 %v2392, %v2424
        %v2457 = vmax.f32 %v2393, %v2425
        %v2458 = vmax.f32 %v2394, %v2426
        %v2459 = vmax.f32 %v2395, %v2427
        %v2460 = vmax.f32 %v2396, %v2428
        %v2461 = vmax.f32 %v2397, %v2429
        %v2462 = vmax.f32 %v2398, %v2430
        %v2463 = vmax.f32 %v2399, %v2431
        %v2464 = vmax.f32 %v2400, %v2432
        %v2465 = vmax.f32 %v2401, %v2433
        %v2466 = vmax.f32 %v2402, %v2434
        %v2467 = vmax.f32 %v2403, %v2435
        %v2468 = vmax.f32 %v2404, %v2436
        %v2469 = vmax.f32 %v2405, %v2437
        %v2470 = vmax.f32 %v2406, %v2438
        %v2471 = vmax.f32 %v2407, %v2439
        %v2472 = vmax.f32 %v2408, %v2440
        %v2473 = vmax.f32 %v2409, %v2441
        %v2474 = vmax.f32 %v2410, %v2442
        %v2475 = vmax.f32 %v2411, %v2443
        %v2476 = vmax.f32 %v2412, %v2444
        %v2477 = vmax.f32 %v2413, %v2445
        %v2478 = vmax.f32 %v2414, %v2446
        %v2479 = vadd.f32 %v2447, %v536
        %v2480 = vadd.f32 %v2448, %v537
        %v2481 = vadd.f32 %v2449, %v538
        %v2482 = vadd.f32 %v2450, %v539
        %v2483 = vadd.f32 %v2451, %v540
        %v2484 = vadd.f32 %v2452, %v541
        %v2485 = vadd.f32 %v2453, %v542
        %v2486 = vadd.f32 %v2454, %v543
        %v2487 = vadd.f32 %v2455, %v544
        %v2488 = vadd.f32 %v2456, %v545
        %v2489 = vadd.f32 %v2457, %v546
        %v2490 = vadd.f32 %v2458, %v547
        %v2491 = vadd.f32 %v2459, %v548
        %v2492 = vadd.f32 %v2460, %v549
        %v2493 = vadd.f32 %v2461, %v550
        %v2494 = vadd.f32 %v2462, %v551
        %v2495 = vadd.f32 %v2463, %v552
        %v2496 = vadd.f32 %v2464, %v553
        %v2497 = vadd.f32 %v2465, %v554
        %v2498 = vadd.f32 %v2466, %v555
        %v2499 = vadd.f32 %v2467, %v556
        %v2500 = vadd.f32 %v2468, %v557
        %v2501 = vadd.f32 %v2469, %v558
        %v2502 = vadd.f32 %v2470, %v559
        %v2503 = vadd.f32 %v2471, %v560
        %v2504 = vadd.f32 %v2472, %v561
        %v2505 = vadd.f32 %v2473, %v562
        %v2506 = vadd.f32 %v2474, %v563
        %v2507 = vadd.f32 %v2475, %v564
        %v2508 = vadd.f32 %v2476, %v565
        %v2509 = vadd.f32 %v2477, %v566
        %v2510 = vadd.f32 %v2478, %v567
        %v2511 = vmax.f32 %v2479, %v2480
        %2512 = vmax.xlane.f32.xlu0 %v2511
        %v2513 = vpop.xlane.xlu0 %2512
        %v2514 = vmax.f32 %v2481, %v2482
        %2515 = vmax.xlane.f32.xlu0 %v2514
        %v2516 = vpop.xlane.xlu0 %2515
        %v2517 = vmax.f32 %v2483, %v2484
        %2518 = vmax.xlane.f32.xlu0 %v2517
        %v2519 = vpop.xlane.xlu0 %2518
        %v2520 = vmax.f32 %v2485, %v2486
        %2521 = vmax.xlane.f32.xlu0 %v2520
        %v2522 = vpop.xlane.xlu0 %2521
        %v2523 = vmax.f32 %v2487, %v2488
        %2524 = vmax.xlane.f32.xlu0 %v2523
        %v2525 = vpop.xlane.xlu0 %2524
        %v2526 = vmax.f32 %v2489, %v2490
        %2527 = vmax.xlane.f32.xlu0 %v2526
        %v2528 = vpop.xlane.xlu0 %2527
        %v2529 = vmax.f32 %v2491, %v2492
        %2530 = vmax.xlane.f32.xlu0 %v2529
        %v2531 = vpop.xlane.xlu0 %2530
        %v2532 = vmax.f32 %v2493, %v2494
        %2533 = vmax.xlane.f32.xlu0 %v2532
        %v2534 = vpop.xlane.xlu0 %2533
        %v2535 = vmax.f32 %v2495, %v2496
        %2536 = vmax.xlane.f32.xlu0 %v2535
        %v2537 = vpop.xlane.xlu0 %2536
        %v2538 = vmax.f32 %v2497, %v2498
        %2539 = vmax.xlane.f32.xlu0 %v2538
        %v2540 = vpop.xlane.xlu0 %2539
        %v2541 = vmax.f32 %v2499, %v2500
        %2542 = vmax.xlane.f32.xlu0 %v2541
        %v2543 = vpop.xlane.xlu0 %2542
        %v2544 = vmax.f32 %v2501, %v2502
        %2545 = vmax.xlane.f32.xlu0 %v2544
        %v2546 = vpop.xlane.xlu0 %2545
        %v2547 = vmax.f32 %v2503, %v2504
        %2548 = vmax.xlane.f32.xlu0 %v2547
        %v2549 = vpop.xlane.xlu0 %2548
        %v2550 = vmax.f32 %v2505, %v2506
        %2551 = vmax.xlane.f32.xlu0 %v2550
        %v2552 = vpop.xlane.xlu0 %2551
        %v2553 = vmax.f32 %v2507, %v2508
        %2554 = vmax.xlane.f32.xlu0 %v2553
        %v2555 = vpop.xlane.xlu0 %2554
        %v2556 = vmax.f32 %v2509, %v2510
        %2557 = vmax.xlane.f32.xlu0 %v2556
        %v2558 = vpop.xlane.xlu0 %2557
        %v2559 = vsub.f32 %v2479, %v2513
        %v2560 = vsub.f32 %v2480, %v2513
        %v2561 = vsub.f32 %v2481, %v2516
        %v2562 = vsub.f32 %v2482, %v2516
        %v2563 = vsub.f32 %v2483, %v2519
        %v2564 = vsub.f32 %v2484, %v2519
        %v2565 = vsub.f32 %v2485, %v2522
        %v2566 = vsub.f32 %v2486, %v2522
        %v2567 = vsub.f32 %v2487, %v2525
        %v2568 = vsub.f32 %v2488, %v2525
        %v2569 = vsub.f32 %v2489, %v2528
        %v2570 = vsub.f32 %v2490, %v2528
        %v2571 = vsub.f32 %v2491, %v2531
        %v2572 = vsub.f32 %v2492, %v2531
        %v2573 = vsub.f32 %v2493, %v2534
        %v2574 = vsub.f32 %v2494, %v2534
        %v2575 = vsub.f32 %v2495, %v2537
        %v2576 = vsub.f32 %v2496, %v2537
        %v2577 = vsub.f32 %v2497, %v2540
        %v2578 = vsub.f32 %v2498, %v2540
        %v2579 = vsub.f32 %v2499, %v2543
        %v2580 = vsub.f32 %v2500, %v2543
        %v2581 = vsub.f32 %v2501, %v2546
        %v2582 = vsub.f32 %v2502, %v2546
        %v2583 = vsub.f32 %v2503, %v2549
        %v2584 = vsub.f32 %v2504, %v2549
        %v2585 = vsub.f32 %v2505, %v2552
        %v2586 = vsub.f32 %v2506, %v2552
        %v2587 = vsub.f32 %v2507, %v2555
        %v2588 = vsub.f32 %v2508, %v2555
        %v2589 = vsub.f32 %v2509, %v2558
        %v2590 = vsub.f32 %v2510, %v2558
        %v2591 = vpack.c.bf16 %v2560, %v2559
        %v2592 = vpack.c.bf16 %v2562, %v2561
        %v2593 = vpack.c.bf16 %v2564, %v2563
        %v2594 = vpack.c.bf16 %v2566, %v2565
        %v2595 = vpack.c.bf16 %v2568, %v2567
        %v2596 = vpack.c.bf16 %v2570, %v2569
        %v2597 = vpack.c.bf16 %v2572, %v2571
        %v2598 = vpack.c.bf16 %v2574, %v2573
        %v2599 = vpack.c.bf16 %v2576, %v2575
        %v2600 = vpack.c.bf16 %v2578, %v2577
        %v2601 = vpack.c.bf16 %v2580, %v2579
        %v2602 = vpack.c.bf16 %v2582, %v2581
        %v2603 = vpack.c.bf16 %v2584, %v2583
        %v2604 = vpack.c.bf16 %v2586, %v2585
        %v2605 = vpack.c.bf16 %v2588, %v2587
        %v2606 = vpack.c.bf16 %v2590, %v2589
        %v2607 = vunpack.c.l.bf16 %v2591
        %v2608 = vunpack.c.h.bf16 %v2591
        %v2609 = vunpack.c.l.bf16 %v2592
        %v2610 = vunpack.c.h.bf16 %v2592
        %v2611 = vunpack.c.l.bf16 %v2593
        %v2612 = vunpack.c.h.bf16 %v2593
        %v2613 = vunpack.c.l.bf16 %v2594
        %v2614 = vunpack.c.h.bf16 %v2594
        %v2615 = vunpack.c.l.bf16 %v2595
        %v2616 = vunpack.c.h.bf16 %v2595
        %v2617 = vunpack.c.l.bf16 %v2596
        %v2618 = vunpack.c.h.bf16 %v2596
        %v2619 = vunpack.c.l.bf16 %v2597
        %v2620 = vunpack.c.h.bf16 %v2597
        %v2621 = vunpack.c.l.bf16 %v2598
        %v2622 = vunpack.c.h.bf16 %v2598
        %v2623 = vunpack.c.l.bf16 %v2599
        %v2624 = vunpack.c.h.bf16 %v2599
        %v2625 = vunpack.c.l.bf16 %v2600
        %v2626 = vunpack.c.h.bf16 %v2600
        %v2627 = vunpack.c.l.bf16 %v2601
        %v2628 = vunpack.c.h.bf16 %v2601
        %v2629 = vunpack.c.l.bf16 %v2602
        %v2630 = vunpack.c.h.bf16 %v2602
        %v2631 = vunpack.c.l.bf16 %v2603
        %v2632 = vunpack.c.h.bf16 %v2603
        %v2633 = vunpack.c.l.bf16 %v2604
        %v2634 = vunpack.c.h.bf16 %v2604
        %v2635 = vunpack.c.l.bf16 %v2605
        %v2636 = vunpack.c.h.bf16 %v2605
        %v2637 = vunpack.c.l.bf16 %v2606
        %v2638 = vunpack.c.h.bf16 %v2606
        %v2639 = vmul.f32 %v2607, 1.442695
        %v2640 = vpow.pop %v2639
        %v2641 = vmul.f32 %v2608, 1.442695
        %v2642 = vpow.pop %v2641
        %v2643 = vmul.f32 %v2609, 1.442695
        %v2644 = vpow.pop %v2643
        %v2645 = vmul.f32 %v2610, 1.442695
        %v2646 = vpow.pop %v2645
        %v2647 = vmul.f32 %v2611, 1.442695
        %v2648 = vpow.pop %v2647
        %v2649 = vmul.f32 %v2612, 1.442695
        %v2650 = vpow.pop %v2649
        %v2651 = vmul.f32 %v2613, 1.442695
        %v2652 = vpow.pop %v2651
        %v2653 = vmul.f32 %v2614, 1.442695
        %v2654 = vpow.pop %v2653
        %v2655 = vmul.f32 %v2615, 1.442695
        %v2656 = vpow.pop %v2655
        %v2657 = vmul.f32 %v2616, 1.442695
        %v2658 = vpow.pop %v2657
        %v2659 = vmul.f32 %v2617, 1.442695
        %v2660 = vpow.pop %v2659
        %v2661 = vmul.f32 %v2618, 1.442695
        %v2662 = vpow.pop %v2661
        %v2663 = vmul.f32 %v2619, 1.442695
        %v2664 = vpow.pop %v2663
        %v2665 = vmul.f32 %v2620, 1.442695
        %v2666 = vpow.pop %v2665
        %v2667 = vmul.f32 %v2621, 1.442695
        %v2668 = vpow.pop %v2667
        %v2669 = vmul.f32 %v2622, 1.442695
        %v2670 = vpow.pop %v2669
        %v2671 = vmul.f32 %v2623, 1.442695
        %v2672 = vpow.pop %v2671
        %v2673 = vmul.f32 %v2624, 1.442695
        %v2674 = vpow.pop %v2673
        %v2675 = vmul.f32 %v2625, 1.442695
        %v2676 = vpow.pop %v2675
        %v2677 = vmul.f32 %v2626, 1.442695
        %v2678 = vpow.pop %v2677
        %v2679 = vmul.f32 %v2627, 1.442695
        %v2680 = vpow.pop %v2679
        %v2681 = vmul.f32 %v2628, 1.442695
        %v2682 = vpow.pop %v2681
        %v2683 = vmul.f32 %v2629, 1.442695
        %v2684 = vpow.pop %v2683
        %v2685 = vmul.f32 %v2630, 1.442695
        %v2686 = vpow.pop %v2685
        %v2687 = vmul.f32 %v2631, 1.442695
        %v2688 = vpow.pop %v2687
        %v2689 = vmul.f32 %v2632, 1.442695
        %v2690 = vpow.pop %v2689
        %v2691 = vmul.f32 %v2633, 1.442695
        %v2692 = vpow.pop %v2691
        %v2693 = vmul.f32 %v2634, 1.442695
        %v2694 = vpow.pop %v2693
        %v2695 = vmul.f32 %v2635, 1.442695
        %v2696 = vpow.pop %v2695
        %v2697 = vmul.f32 %v2636, 1.442695
        %v2698 = vpow.pop %v2697
        %v2699 = vmul.f32 %v2637, 1.442695
        %v2700 = vpow.pop %v2699
        %v2701 = vmul.f32 %v2638, 1.442695
        %v2702 = vpow.pop %v2701
        %v2703 = vpack.c.bf16 %v2642, %v2640
        %v2704 = vpack.c.bf16 %v2646, %v2644
        %v2705 = vpack.c.bf16 %v2650, %v2648
        %v2706 = vpack.c.bf16 %v2654, %v2652
        %v2707 = vpack.c.bf16 %v2658, %v2656
        %v2708 = vpack.c.bf16 %v2662, %v2660
        %v2709 = vpack.c.bf16 %v2666, %v2664
        %v2710 = vpack.c.bf16 %v2670, %v2668
        %v2711 = vpack.c.bf16 %v2674, %v2672
        %v2712 = vpack.c.bf16 %v2678, %v2676
        %v2713 = vpack.c.bf16 %v2682, %v2680
        %v2714 = vpack.c.bf16 %v2686, %v2684
        %v2715 = vpack.c.bf16 %v2690, %v2688
        %v2716 = vpack.c.bf16 %v2694, %v2692
        %v2717 = vpack.c.bf16 %v2698, %v2696
        %v2718 = vpack.c.bf16 %v2702, %v2700
        %v2719 = vunpack.c.l.bf16 %v2703
        %v2720 = vunpack.c.h.bf16 %v2703
        %v2721 = vunpack.c.l.bf16 %v2704
        %v2722 = vunpack.c.h.bf16 %v2704
        %v2723 = vunpack.c.l.bf16 %v2705
        %v2724 = vunpack.c.h.bf16 %v2705
        %v2725 = vunpack.c.l.bf16 %v2706
        %v2726 = vunpack.c.h.bf16 %v2706
        %v2727 = vunpack.c.l.bf16 %v2707
        %v2728 = vunpack.c.h.bf16 %v2707
        %v2729 = vunpack.c.l.bf16 %v2708
        %v2730 = vunpack.c.h.bf16 %v2708
        %v2731 = vunpack.c.l.bf16 %v2709
        %v2732 = vunpack.c.h.bf16 %v2709
        %v2733 = vunpack.c.l.bf16 %v2710
        %v2734 = vunpack.c.h.bf16 %v2710
        %v2735 = vunpack.c.l.bf16 %v2711
        %v2736 = vunpack.c.h.bf16 %v2711
        %v2737 = vunpack.c.l.bf16 %v2712
        %v2738 = vunpack.c.h.bf16 %v2712
        %v2739 = vunpack.c.l.bf16 %v2713
        %v2740 = vunpack.c.h.bf16 %v2713
        %v2741 = vunpack.c.l.bf16 %v2714
        %v2742 = vunpack.c.h.bf16 %v2714
        %v2743 = vunpack.c.l.bf16 %v2715
        %v2744 = vunpack.c.h.bf16 %v2715
        %v2745 = vunpack.c.l.bf16 %v2716
        %v2746 = vunpack.c.h.bf16 %v2716
        %v2747 = vunpack.c.l.bf16 %v2717
        %v2748 = vunpack.c.h.bf16 %v2717
        %v2749 = vunpack.c.l.bf16 %v2718
        %v2750 = vunpack.c.h.bf16 %v2718
        %v2751 = vadd.f32 %v2719, %v2720
        %2752 = vadd.xlane.f32.xlu0 %v2751
        %v2753 = vpop.xlane.xlu0 %2752
        %v2754 = vadd.f32 %v2721, %v2722
        %2755 = vadd.xlane.f32.xlu0 %v2754
        %v2756 = vpop.xlane.xlu0 %2755
        %v2757 = vadd.f32 %v2723, %v2724
        %2758 = vadd.xlane.f32.xlu0 %v2757
        %v2759 = vpop.xlane.xlu0 %2758
        %v2760 = vadd.f32 %v2725, %v2726
        %2761 = vadd.xlane.f32.xlu0 %v2760
        %v2762 = vpop.xlane.xlu0 %2761
        %v2763 = vadd.f32 %v2727, %v2728
        %2764 = vadd.xlane.f32.xlu0 %v2763
        %v2765 = vpop.xlane.xlu0 %2764
        %v2766 = vadd.f32 %v2729, %v2730
        %2767 = vadd.xlane.f32.xlu0 %v2766
        %v2768 = vpop.xlane.xlu0 %2767
        %v2769 = vadd.f32 %v2731, %v2732
        %2770 = vadd.xlane.f32.xlu0 %v2769
        %v2771 = vpop.xlane.xlu0 %2770
        %v2772 = vadd.f32 %v2733, %v2734
        %2773 = vadd.xlane.f32.xlu0 %v2772
        %v2774 = vpop.xlane.xlu0 %2773
        %v2775 = vadd.f32 %v2735, %v2736
        %2776 = vadd.xlane.f32.xlu0 %v2775
        %v2777 = vpop.xlane.xlu0 %2776
        %v2778 = vadd.f32 %v2737, %v2738
        %2779 = vadd.xlane.f32.xlu0 %v2778
        %v2780 = vpop.xlane.xlu0 %2779
        %v2781 = vadd.f32 %v2739, %v2740
        %2782 = vadd.xlane.f32.xlu0 %v2781
        %v2783 = vpop.xlane.xlu0 %2782
        %v2784 = vadd.f32 %v2741, %v2742
        %2785 = vadd.xlane.f32.xlu0 %v2784
        %v2786 = vpop.xlane.xlu0 %2785
        %v2787 = vadd.f32 %v2743, %v2744
        %2788 = vadd.xlane.f32.xlu0 %v2787
        %v2789 = vpop.xlane.xlu0 %2788
        %v2790 = vadd.f32 %v2745, %v2746
        %2791 = vadd.xlane.f32.xlu0 %v2790
        %v2792 = vpop.xlane.xlu0 %2791
        %v2793 = vadd.f32 %v2747, %v2748
        %2794 = vadd.xlane.f32.xlu0 %v2793
        %v2795 = vpop.xlane.xlu0 %2794
        %v2796 = vadd.f32 %v2749, %v2750
        %2797 = vadd.xlane.f32.xlu0 %v2796
        %v2798 = vpop.xlane.xlu0 %2797
        %v2799 = vrcp.pop %v2753
        %v2800 = vrcp.pop %v2756
        %v2801 = vrcp.pop %v2759
        %v2802 = vrcp.pop %v2762
        %v2803 = vrcp.pop %v2765
        %v2804 = vrcp.pop %v2768
        %v2805 = vrcp.pop %v2771
        %v2806 = vrcp.pop %v2774
        %v2807 = vrcp.pop %v2777
        %v2808 = vrcp.pop %v2780
        %v2809 = vrcp.pop %v2783
        %v2810 = vrcp.pop %v2786
        %v2811 = vrcp.pop %v2789
        %v2812 = vrcp.pop %v2792
        %v2813 = vrcp.pop %v2795
        %v2814 = vrcp.pop %v2798
        %v2815 = vpack.c.bf16 %v2799, %v2799
        %v2816 = vpack.c.bf16 %v2800, %v2800
        %v2817 = vpack.c.bf16 %v2801, %v2801
        %v2818 = vpack.c.bf16 %v2802, %v2802
        %v2819 = vpack.c.bf16 %v2803, %v2803
        %v2820 = vpack.c.bf16 %v2804, %v2804
        %v2821 = vpack.c.bf16 %v2805, %v2805
        %v2822 = vpack.c.bf16 %v2806, %v2806
        %v2823 = vpack.c.bf16 %v2807, %v2807
        %v2824 = vpack.c.bf16 %v2808, %v2808
        %v2825 = vpack.c.bf16 %v2809, %v2809
        %v2826 = vpack.c.bf16 %v2810, %v2810
        %v2827 = vpack.c.bf16 %v2811, %v2811
        %v2828 = vpack.c.bf16 %v2812, %v2812
        %v2829 = vpack.c.bf16 %v2813, %v2813
        %v2830 = vpack.c.bf16 %v2814, %v2814
        %v2831 = vunpack.c.l.bf16 %v2815
        %v2832 = vunpack.c.l.bf16 %v2816
        %v2833 = vunpack.c.l.bf16 %v2817
        %v2834 = vunpack.c.l.bf16 %v2818
        %v2835 = vunpack.c.l.bf16 %v2819
        %v2836 = vunpack.c.l.bf16 %v2820
        %v2837 = vunpack.c.l.bf16 %v2821
        %v2838 = vunpack.c.l.bf16 %v2822
        %v2839 = vunpack.c.l.bf16 %v2823
        %v2840 = vunpack.c.l.bf16 %v2824
        %v2841 = vunpack.c.l.bf16 %v2825
        %v2842 = vunpack.c.l.bf16 %v2826
        %v2843 = vunpack.c.l.bf16 %v2827
        %v2844 = vunpack.c.l.bf16 %v2828
        %v2845 = vunpack.c.l.bf16 %v2829
        %v2846 = vunpack.c.l.bf16 %v2830
        %v2847 = vmul.f32 %v2719, %v2831
        %v2848 = vmul.f32 %v2720, %v2831
        %v2849 = vmul.f32 %v2721, %v2832
        %v2850 = vmul.f32 %v2722, %v2832
        %v2851 = vmul.f32 %v2723, %v2833
        %v2852 = vmul.f32 %v2724, %v2833
        %v2853 = vmul.f32 %v2725, %v2834
        %v2854 = vmul.f32 %v2726, %v2834
        %v2855 = vmul.f32 %v2727, %v2835
        %v2856 = vmul.f32 %v2728, %v2835
        %v2857 = vmul.f32 %v2729, %v2836
        %v2858 = vmul.f32 %v2730, %v2836
        %v2859 = vmul.f32 %v2731, %v2837
        %v2860 = vmul.f32 %v2732, %v2837
        %v2861 = vmul.f32 %v2733, %v2838
        %v2862 = vmul.f32 %v2734, %v2838
        %v2863 = vmul.f32 %v2735, %v2839
        %v2864 = vmul.f32 %v2736, %v2839
        %v2865 = vmul.f32 %v2737, %v2840
        %v2866 = vmul.f32 %v2738, %v2840
        %v2867 = vmul.f32 %v2739, %v2841
        %v2868 = vmul.f32 %v2740, %v2841
        %v2869 = vmul.f32 %v2741, %v2842
        %v2870 = vmul.f32 %v2742, %v2842
        %v2871 = vmul.f32 %v2743, %v2843
        %v2872 = vmul.f32 %v2744, %v2843
        %v2873 = vmul.f32 %v2745, %v2844
        %v2874 = vmul.f32 %v2746, %v2844
        %v2875 = vmul.f32 %v2747, %v2845
        %v2876 = vmul.f32 %v2748, %v2845
        %v2877 = vmul.f32 %v2749, %v2846
        %v2878 = vmul.f32 %v2750, %v2846
        %v2879 = vpack.c.bf16 %v2849, %v2847
        %v2880 = vpack.c.bf16 %v2850, %v2848
        %v2881 = vpack.c.bf16 %v2853, %v2851
        %v2882 = vpack.c.bf16 %v2854, %v2852
        %v2883 = vpack.c.bf16 %v2857, %v2855
        %v2884 = vpack.c.bf16 %v2858, %v2856
        %v2885 = vpack.c.bf16 %v2861, %v2859
        %v2886 = vpack.c.bf16 %v2862, %v2860
        %v2887 = vpack.c.bf16 %v2865, %v2863
        %v2888 = vpack.c.bf16 %v2866, %v2864
        %v2889 = vpack.c.bf16 %v2869, %v2867
        %v2890 = vpack.c.bf16 %v2870, %v2868
        %v2891 = vpack.c.bf16 %v2873, %v2871
        %v2892 = vpack.c.bf16 %v2874, %v2872
        %v2893 = vpack.c.bf16 %v2877, %v2875
        %v2894 = vpack.c.bf16 %v2878, %v2876
        %2895 = vrot.lane.b32.xlu0 %v1231, 64
        %v2896 = vpop.permute.xlu0 %2895
        %2897 = vrot.lane.b32.xlu0 %v1232, 64
        %v2898 = vpop.permute.xlu0 %2897
        %2899 = vrot.lane.b32.xlu0 %v1233, 64
        %v2900 = vpop.permute.xlu0 %2899
        %2901 = vrot.lane.b32.xlu0 %v1234, 64
        %v2902 = vpop.permute.xlu0 %2901
        %2903 = vrot.lane.b32.xlu0 %v1235, 64
        %v2904 = vpop.permute.xlu0 %2903
        %2905 = vrot.lane.b32.xlu0 %v1236, 64
        %v2906 = vpop.permute.xlu0 %2905
        %2907 = vrot.lane.b32.xlu0 %v1237, 64
        %v2908 = vpop.permute.xlu0 %2907
        %2909 = vrot.lane.b32.xlu0 %v1238, 64
        %v2910 = vpop.permute.xlu0 %2909
        %2911 = vrot.lane.b32.xlu0 %v1239, 64
        %v2912 = vpop.permute.xlu0 %2911
        %2913 = vrot.lane.b32.xlu0 %v1240, 64
        %v2914 = vpop.permute.xlu0 %2913
        %2915 = vrot.lane.b32.xlu0 %v1241, 64
        %v2916 = vpop.permute.xlu0 %2915
        %2917 = vrot.lane.b32.xlu0 %v1242, 64
        %v2918 = vpop.permute.xlu0 %2917
        %2919 = vrot.lane.b32.xlu0 %v1243, 64
        %v2920 = vpop.permute.xlu0 %2919
        %2921 = vrot.lane.b32.xlu0 %v1244, 64
        %v2922 = vpop.permute.xlu0 %2921
        %2923 = vrot.lane.b32.xlu0 %v1245, 64
        %v2924 = vpop.permute.xlu0 %2923
        %2925 = vrot.lane.b32.xlu0 %v1246, 64
        %v2926 = vpop.permute.xlu0 %2925
        %2943 = vmatpush.bf16.msra.mxu0 %v2910
        %2944 = vmatpush.bf16.msra.mxu0 %v2908
        %2945 = vmatpush.bf16.msra.mxu0 %v2906
        %2946 = vmatpush.bf16.msra.mxu0 %v2904
        %2947 = vmatpush.bf16.msra.mxu0 %v2902
        %2948 = vmatpush.bf16.msra.mxu0 %v2900
        %2949 = vmatpush.bf16.msra.mxu0 %v2898
        %2950 = vmatpush.bf16.msra.mxu0 %v2896
        %2951 = vmatmul.bf16.gmra.mxu0 %v2879
        %v2952 = vpop.f32.mrf.mxu0
        %v2953 = vadd.f32 0.0, %v2952
        %v2954 = vpop.f32.mrf.mxu0
        %v2955 = vadd.f32 0.0, %v2954
        %2956 = vmatmul.bf16.gmra.mxu0 %v2881
        %v2957 = vpop.f32.mrf.mxu0
        %v2958 = vadd.f32 0.0, %v2957
        %v2959 = vpop.f32.mrf.mxu0
        %v2960 = vadd.f32 0.0, %v2959
        %2961 = vmatmul.bf16.gmra.mxu0 %v2883
        %v2962 = vpop.f32.mrf.mxu0
        %v2963 = vadd.f32 0.0, %v2962
        %v2964 = vpop.f32.mrf.mxu0
        %v2965 = vadd.f32 0.0, %v2964
        %2966 = vmatmul.bf16.gmra.mxu0 %v2885
        %v2967 = vpop.f32.mrf.mxu0
        %v2968 = vadd.f32 0.0, %v2967
        %v2969 = vpop.f32.mrf.mxu0
        %v2970 = vadd.f32 0.0, %v2969
        %2971 = vmatmul.bf16.gmra.mxu0 %v2887
        %v2972 = vpop.f32.mrf.mxu0
        %v2973 = vadd.f32 0.0, %v2972
        %v2974 = vpop.f32.mrf.mxu0
        %v2975 = vadd.f32 0.0, %v2974
        %2976 = vmatmul.bf16.gmra.mxu0 %v2889
        %v2977 = vpop.f32.mrf.mxu0
        %v2978 = vadd.f32 0.0, %v2977
        %v2979 = vpop.f32.mrf.mxu0
        %v2980 = vadd.f32 0.0, %v2979
        %2981 = vmatmul.bf16.gmra.mxu0 %v2891
        %v2982 = vpop.f32.mrf.mxu0
        %v2983 = vadd.f32 0.0, %v2982
        %v2984 = vpop.f32.mrf.mxu0
        %v2985 = vadd.f32 0.0, %v2984
        %2986 = vmatmul.bf16.gmra.mxu0 %v2893
        %v2987 = vpop.f32.mrf.mxu0
        %v2988 = vadd.f32 0.0, %v2987
        %v2989 = vpop.f32.mrf.mxu0
        %v2990 = vadd.f32 0.0, %v2989
        %2991 = vdwg.mxu0
        %2992 = vmatpush.bf16.msra.mxu0 %v2926
        %2993 = vmatpush.bf16.msra.mxu0 %v2924
        %2994 = vmatpush.bf16.msra.mxu0 %v2922
        %2995 = vmatpush.bf16.msra.mxu0 %v2920
        %2996 = vmatpush.bf16.msra.mxu0 %v2918
        %2997 = vmatpush.bf16.msra.mxu0 %v2916
        %2998 = vmatpush.bf16.msra.mxu0 %v2914
        %2999 = vmatpush.bf16.msra.mxu0 %v2912
        %3000 = vmatmul.bf16.gmra.mxu0 %v2880
        %v3001 = vpop.f32.mrf.mxu0
        %v3002 = vadd.f32 %v2953, %v3001
        %v3003 = vpop.f32.mrf.mxu0
        %v3004 = vadd.f32 %v2955, %v3003
        %3005 = vmatmul.bf16.gmra.mxu0 %v2882
        %v3006 = vpop.f32.mrf.mxu0
        %v3007 = vadd.f32 %v2958, %v3006
        %v3008 = vpop.f32.mrf.mxu0
        %v3009 = vadd.f32 %v2960, %v3008
        %3010 = vmatmul.bf16.gmra.mxu0 %v2884
        %v3011 = vpop.f32.mrf.mxu0
        %v3012 = vadd.f32 %v2963, %v3011
        %v3013 = vpop.f32.mrf.mxu0
        %v3014 = vadd.f32 %v2965, %v3013
        %3015 = vmatmul.bf16.gmra.mxu0 %v2886
        %v3016 = vpop.f32.mrf.mxu0
        %v3017 = vadd.f32 %v2968, %v3016
        %v3018 = vpop.f32.mrf.mxu0
        %v3019 = vadd.f32 %v2970, %v3018
        %3020 = vmatmul.bf16.gmra.mxu0 %v2888
        %v3021 = vpop.f32.mrf.mxu0
        %v3022 = vadd.f32 %v2973, %v3021
        %v3023 = vpop.f32.mrf.mxu0
        %v3024 = vadd.f32 %v2975, %v3023
        %3025 = vmatmul.bf16.gmra.mxu0 %v2890
        %v3026 = vpop.f32.mrf.mxu0
        %v3027 = vadd.f32 %v2978, %v3026
        %v3028 = vpop.f32.mrf.mxu0
        %v3029 = vadd.f32 %v2980, %v3028
        %3030 = vmatmul.bf16.gmra.mxu0 %v2892
        %v3031 = vpop.f32.mrf.mxu0
        %v3032 = vadd.f32 %v2983, %v3031
        %v3033 = vpop.f32.mrf.mxu0
        %v3034 = vadd.f32 %v2985, %v3033
        %3035 = vmatmul.bf16.gmra.mxu0 %v2894
        %v3036 = vpop.f32.mrf.mxu0
        %v3037 = vadd.f32 %v2988, %v3036
        %v3038 = vpop.f32.mrf.mxu0
        %v3039 = vadd.f32 %v2990, %v3038
        %3040 = vdwg.mxu0
        %3057 = vrot.lane.b32.xlu0 %v3002, 64
        %v3058 = vpop.permute.xlu0 %3057
        %3059 = vrot.lane.b32.xlu0 %v3004, 64
        %v3060 = vpop.permute.xlu0 %3059
        %3061 = vrot.lane.b32.xlu0 %v3007, 64
        %v3062 = vpop.permute.xlu0 %3061
        %3063 = vrot.lane.b32.xlu0 %v3009, 64
        %v3064 = vpop.permute.xlu0 %3063
        %3065 = vrot.lane.b32.xlu0 %v3012, 64
        %v3066 = vpop.permute.xlu0 %3065
        %3067 = vrot.lane.b32.xlu0 %v3014, 64
        %v3068 = vpop.permute.xlu0 %3067
        %3069 = vrot.lane.b32.xlu0 %v3017, 64
        %v3070 = vpop.permute.xlu0 %3069
        %3071 = vrot.lane.b32.xlu0 %v3019, 64
        %v3072 = vpop.permute.xlu0 %3071
        %3073 = vrot.lane.b32.xlu0 %v3022, 64
        %v3074 = vpop.permute.xlu0 %3073
        %3075 = vrot.lane.b32.xlu0 %v3024, 64
        %v3076 = vpop.permute.xlu0 %3075
        %3077 = vrot.lane.b32.xlu0 %v3027, 64
        %v3078 = vpop.permute.xlu0 %3077
        %3079 = vrot.lane.b32.xlu0 %v3029, 64
        %v3080 = vpop.permute.xlu0 %3079
        %3081 = vrot.lane.b32.xlu0 %v3032, 64
        %v3082 = vpop.permute.xlu0 %3081
        %3083 = vrot.lane.b32.xlu0 %v3034, 64
        %v3084 = vpop.permute.xlu0 %3083
        %3085 = vrot.lane.b32.xlu0 %v3037, 64
        %v3086 = vpop.permute.xlu0 %3085
        %3087 = vrot.lane.b32.xlu0 %v3039, 64
        %v3088 = vpop.permute.xlu0 %3087
        %v3105 = vadd.f32 %v376, %v3058
        %v3106 = vadd.f32 %v378, %v3060
        %v3107 = vadd.f32 %v381, %v3062
        %v3108 = vadd.f32 %v383, %v3064
        %v3109 = vadd.f32 %v386, %v3066
        %v3110 = vadd.f32 %v388, %v3068
        %v3111 = vadd.f32 %v391, %v3070
        %v3112 = vadd.f32 %v393, %v3072
        %v3113 = vadd.f32 %v396, %v3074
        %v3114 = vadd.f32 %v398, %v3076
        %v3115 = vadd.f32 %v401, %v3078
        %v3116 = vadd.f32 %v403, %v3080
        %v3117 = vadd.f32 %v406, %v3082
        %v3118 = vadd.f32 %v408, %v3084
        %v3119 = vadd.f32 %v411, %v3086
        %v3120 = vadd.f32 %v413, %v3088
        %v3121 = vmax.f32 %v3105, 0.0
        %v3122 = vmax.f32 %v3106, 0.0
        %v3123 = vmax.f32 %v3107, 0.0
        %v3124 = vmax.f32 %v3108, 0.0
        %v3125 = vmax.f32 %v3109, 0.0
        %v3126 = vmax.f32 %v3110, 0.0
        %v3127 = vmax.f32 %v3111, 0.0
        %v3128 = vmax.f32 %v3112, 0.0
        %v3129 = vmax.f32 %v3113, 0.0
        %v3130 = vmax.f32 %v3114, 0.0
        %v3131 = vmax.f32 %v3115, 0.0
        %v3132 = vmax.f32 %v3116, 0.0
        %v3133 = vmax.f32 %v3117, 0.0
        %v3134 = vmax.f32 %v3118, 0.0
        %v3135 = vmax.f32 %v3119, 0.0
        %v3136 = vmax.f32 %v3120, 0.0
        %3153 = vrot.lane.b32.xlu0 %v3121, 64
        %v3154 = vpop.permute.xlu0 %3153
        %3155 = vrot.lane.b32.xlu0 %v3122, 64
        %v3156 = vpop.permute.xlu0 %3155
        %3157 = vrot.lane.b32.xlu0 %v3123, 64
        %v3158 = vpop.permute.xlu0 %3157
        %3159 = vrot.lane.b32.xlu0 %v3124, 64
        %v3160 = vpop.permute.xlu0 %3159
        %3161 = vrot.lane.b32.xlu0 %v3125, 64
        %v3162 = vpop.permute.xlu0 %3161
        %3163 = vrot.lane.b32.xlu0 %v3126, 64
        %v3164 = vpop.permute.xlu0 %3163
        %3165 = vrot.lane.b32.xlu0 %v3127, 64
        %v3166 = vpop.permute.xlu0 %3165
        %3167 = vrot.lane.b32.xlu0 %v3128, 64
        %v3168 = vpop.permute.xlu0 %3167
        %3169 = vrot.lane.b32.xlu0 %v3129, 64
        %v3170 = vpop.permute.xlu0 %3169
        %3171 = vrot.lane.b32.xlu0 %v3130, 64
        %v3172 = vpop.permute.xlu0 %3171
        %3173 = vrot.lane.b32.xlu0 %v3131, 64
        %v3174 = vpop.permute.xlu0 %3173
        %3175 = vrot.lane.b32.xlu0 %v3132, 64
        %v3176 = vpop.permute.xlu0 %3175
        %3177 = vrot.lane.b32.xlu0 %v3133, 64
        %v3178 = vpop.permute.xlu0 %3177
        %3179 = vrot.lane.b32.xlu0 %v3134, 64
        %v3180 = vpop.permute.xlu0 %3179
        %3181 = vrot.lane.b32.xlu0 %v3135, 64
        %v3182 = vpop.permute.xlu0 %3181
        %3183 = vrot.lane.b32.xlu0 %v3136, 64
        %v3184 = vpop.permute.xlu0 %3183
        %v3201 = vadd.f32 %v301, %v3154
        %v3202 = vadd.f32 %v302, %v3156
        %v3203 = vadd.f32 %v303, %v3158
        %v3204 = vadd.f32 %v304, %v3160
        %v3205 = vadd.f32 %v305, %v3162
        %v3206 = vadd.f32 %v306, %v3164
        %v3207 = vadd.f32 %v307, %v3166
        %v3208 = vadd.f32 %v308, %v3168
        %v3209 = vadd.f32 %v309, %v3170
        %v3210 = vadd.f32 %v310, %v3172
        %v3211 = vadd.f32 %v311, %v3174
        %v3212 = vadd.f32 %v312, %v3176
        %v3213 = vadd.f32 %v313, %v3178
        %v3214 = vadd.f32 %v314, %v3180
        %v3215 = vadd.f32 %v315, %v3182
        %v3216 = vadd.f32 %v316, %v3184
        %v3217 = vperm.slane %v447, 3
        %v3218 = vperm.slane %v447, 7
        %v3221 = vperm.slane %v3217, 3
        %v3222 = vperm.slane %v3218, 3
        %3223 = vset.pattern.permute.xlu0 3
        %3224 = vperm.xlu0 %3223, %v448
        %v3225 = vpop.permute.xlu0 %3224
        %3227 = vset.pattern.permute.xlu0 3
        %3228 = vperm.xlu0 %3227, %v449
        %v3229 = vpop.permute.xlu0 %3228
        %3231 = vset.pattern.permute.xlu0 3
        %3232 = vperm.xlu0 %3231, %v450
        %v3233 = vpop.permute.xlu0 %3232
        %3235 = vset.pattern.permute.xlu0 3
        %3236 = vperm.xlu0 %3235, %v451
        %v3237 = vpop.permute.xlu0 %3236
        %3239 = vset.pattern.permute.xlu0 3
        %3240 = vperm.xlu0 %3239, %v452
        %v3241 = vpop.permute.xlu0 %3240
        %3243 = vset.pattern.permute.xlu0 3
        %3244 = vperm.xlu0 %3243, %v453
        %v3245 = vpop.permute.xlu0 %3244
        %3247 = vset.pattern.permute.xlu0 3
        %3248 = vperm.xlu0 %3247, %v454
        %v3249 = vpop.permute.xlu0 %3248
        %3251 = vset.pattern.permute.xlu0 3
        %3252 = vperm.xlu0 %3251, %v455
        %v3253 = vpop.permute.xlu0 %3252
        %3255 = vset.pattern.permute.xlu0 3
        %3256 = vperm.xlu0 %3255, %v456
        %v3257 = vpop.permute.xlu0 %3256
        %3259 = vset.pattern.permute.xlu0 3
        %3260 = vperm.xlu0 %3259, %v457
        %v3261 = vpop.permute.xlu0 %3260
        %3263 = vset.pattern.permute.xlu0 3
        %3264 = vperm.xlu0 %3263, %v458
        %v3265 = vpop.permute.xlu0 %3264
        %3267 = vset.pattern.permute.xlu0 3
        %3268 = vperm.xlu0 %3267, %v459
        %v3269 = vpop.permute.xlu0 %3268
        %3271 = vset.pattern.permute.xlu0 3
        %3272 = vperm.xlu0 %3271, %v460
        %v3273 = vpop.permute.xlu0 %3272
        %3275 = vset.pattern.permute.xlu0 3
        %3276 = vperm.xlu0 %3275, %v461
        %v3277 = vpop.permute.xlu0 %3276
        %3279 = vset.pattern.permute.xlu0 3
        %3280 = vperm.xlu0 %3279, %v462
        %v3281 = vpop.permute.xlu0 %3280
        %3283 = vset.pattern.permute.xlu0 3
        %3284 = vperm.xlu0 %3283, %v463
        %v3285 = vpop.permute.xlu0 %3284
        %v3287 = vadd.f32 %v3221, %v3225
        %v3288 = vadd.f32 %v3222, %v3225
        %v3289 = vadd.f32 %v3221, %v3229
        %v3290 = vadd.f32 %v3222, %v3229
        %v3291 = vadd.f32 %v3221, %v3233
        %v3292 = vadd.f32 %v3222, %v3233
        %v3293 = vadd.f32 %v3221, %v3237
        %v3294 = vadd.f32 %v3222, %v3237
        %v3295 = vadd.f32 %v3221, %v3241
        %v3296 = vadd.f32 %v3222, %v3241
        %v3297 = vadd.f32 %v3221, %v3245
        %v3298 = vadd.f32 %v3222, %v3245
        %v3299 = vadd.f32 %v3221, %v3249
        %v3300 = vadd.f32 %v3222, %v3249
        %v3301 = vadd.f32 %v3221, %v3253
        %v3302 = vadd.f32 %v3222, %v3253
        %v3303 = vadd.f32 %v3221, %v3257
        %v3304 = vadd.f32 %v3222, %v3257
        %v3305 = vadd.f32 %v3221, %v3261
        %v3306 = vadd.f32 %v3222, %v3261
        %v3307 = vadd.f32 %v3221, %v3265
        %v3308 = vadd.f32 %v3222, %v3265
        %v3309 = vadd.f32 %v3221, %v3269
        %v3310 = vadd.f32 %v3222, %v3269
        %v3311 = vadd.f32 %v3221, %v3273
        %v3312 = vadd.f32 %v3222, %v3273
        %v3313 = vadd.f32 %v3221, %v3277
        %v3314 = vadd.f32 %v3222, %v3277
        %v3315 = vadd.f32 %v3221, %v3281
        %v3316 = vadd.f32 %v3222, %v3281
        %v3317 = vadd.f32 %v3221, %v3285
        %v3318 = vadd.f32 %v3222, %v3285
        %v3319 = vmul.f32 %v3287, 0.01
        %v3320 = vmul.f32 %v3288, 0.01
        %v3321 = vmul.f32 %v3289, 0.01
        %v3322 = vmul.f32 %v3290, 0.01
        %v3323 = vmul.f32 %v3291, 0.01
        %v3324 = vmul.f32 %v3292, 0.01
        %v3325 = vmul.f32 %v3293, 0.01
        %v3326 = vmul.f32 %v3294, 0.01
        %v3327 = vmul.f32 %v3295, 0.01
        %v3328 = vmul.f32 %v3296, 0.01
        %v3329 = vmul.f32 %v3297, 0.01
        %v3330 = vmul.f32 %v3298, 0.01
        %v3331 = vmul.f32 %v3299, 0.01
        %v3332 = vmul.f32 %v3300, 0.01
        %v3333 = vmul.f32 %v3301, 0.01
        %v3334 = vmul.f32 %v3302, 0.01
        %v3335 = vmul.f32 %v3303, 0.01
        %v3336 = vmul.f32 %v3304, 0.01
        %v3337 = vmul.f32 %v3305, 0.01
        %v3338 = vmul.f32 %v3306, 0.01
        %v3339 = vmul.f32 %v3307, 0.01
        %v3340 = vmul.f32 %v3308, 0.01
        %v3341 = vmul.f32 %v3309, 0.01
        %v3342 = vmul.f32 %v3310, 0.01
        %v3343 = vmul.f32 %v3311, 0.01
        %v3344 = vmul.f32 %v3312, 0.01
        %v3345 = vmul.f32 %v3313, 0.01
        %v3346 = vmul.f32 %v3314, 0.01
        %v3347 = vmul.f32 %v3315, 0.01
        %v3348 = vmul.f32 %v3316, 0.01
        %v3349 = vmul.f32 %v3317, 0.01
        %v3350 = vmul.f32 %v3318, 0.01
        %v3351 = vmax.f32 %v3287, %v3319
        %v3352 = vmax.f32 %v3288, %v3320
        %v3353 = vmax.f32 %v3289, %v3321
        %v3354 = vmax.f32 %v3290, %v3322
        %v3355 = vmax.f32 %v3291, %v3323
        %v3356 = vmax.f32 %v3292, %v3324
        %v3357 = vmax.f32 %v3293, %v3325
        %v3358 = vmax.f32 %v3294, %v3326
        %v3359 = vmax.f32 %v3295, %v3327
        %v3360 = vmax.f32 %v3296, %v3328
        %v3361 = vmax.f32 %v3297, %v3329
        %v3362 = vmax.f32 %v3298, %v3330
        %v3363 = vmax.f32 %v3299, %v3331
        %v3364 = vmax.f32 %v3300, %v3332
        %v3365 = vmax.f32 %v3301, %v3333
        %v3366 = vmax.f32 %v3302, %v3334
        %v3367 = vmax.f32 %v3303, %v3335
        %v3368 = vmax.f32 %v3304, %v3336
        %v3369 = vmax.f32 %v3305, %v3337
        %v3370 = vmax.f32 %v3306, %v3338
        %v3371 = vmax.f32 %v3307, %v3339
        %v3372 = vmax.f32 %v3308, %v3340
        %v3373 = vmax.f32 %v3309, %v3341
        %v3374 = vmax.f32 %v3310, %v3342
        %v3375 = vmax.f32 %v3311, %v3343
        %v3376 = vmax.f32 %v3312, %v3344
        %v3377 = vmax.f32 %v3313, %v3345
        %v3378 = vmax.f32 %v3314, %v3346
        %v3379 = vmax.f32 %v3315, %v3347
        %v3380 = vmax.f32 %v3316, %v3348
        %v3381 = vmax.f32 %v3317, %v3349
        %v3382 = vmax.f32 %v3318, %v3350
        %v3383 = vadd.f32 %v3351, %v536
        %v3384 = vadd.f32 %v3352, %v537
        %v3385 = vadd.f32 %v3353, %v538
        %v3386 = vadd.f32 %v3354, %v539
        %v3387 = vadd.f32 %v3355, %v540
        %v3388 = vadd.f32 %v3356, %v541
        %v3389 = vadd.f32 %v3357, %v542
        %v3390 = vadd.f32 %v3358, %v543
        %v3391 = vadd.f32 %v3359, %v544
        %v3392 = vadd.f32 %v3360, %v545
        %v3393 = vadd.f32 %v3361, %v546
        %v3394 = vadd.f32 %v3362, %v547
        %v3395 = vadd.f32 %v3363, %v548
        %v3396 = vadd.f32 %v3364, %v549
        %v3397 = vadd.f32 %v3365, %v550
        %v3398 = vadd.f32 %v3366, %v551
        %v3399 = vadd.f32 %v3367, %v552
        %v3400 = vadd.f32 %v3368, %v553
        %v3401 = vadd.f32 %v3369, %v554
        %v3402 = vadd.f32 %v3370, %v555
        %v3403 = vadd.f32 %v3371, %v556
        %v3404 = vadd.f32 %v3372, %v557
        %v3405 = vadd.f32 %v3373, %v558
        %v3406 = vadd.f32 %v3374, %v559
        %v3407 = vadd.f32 %v3375, %v560
        %v3408 = vadd.f32 %v3376, %v561
        %v3409 = vadd.f32 %v3377, %v562
        %v3410 = vadd.f32 %v3378, %v563
        %v3411 = vadd.f32 %v3379, %v564
        %v3412 = vadd.f32 %v3380, %v565
        %v3413 = vadd.f32 %v3381, %v566
        %v3414 = vadd.f32 %v3382, %v567
        %v3415 = vmax.f32 %v3383, %v3384
        %3416 = vmax.xlane.f32.xlu0 %v3415
        %v3417 = vpop.xlane.xlu0 %3416
        %v3418 = vmax.f32 %v3385, %v3386
        %3419 = vmax.xlane.f32.xlu0 %v3418
        %v3420 = vpop.xlane.xlu0 %3419
        %v3421 = vmax.f32 %v3387, %v3388
        %3422 = vmax.xlane.f32.xlu0 %v3421
        %v3423 = vpop.xlane.xlu0 %3422
        %v3424 = vmax.f32 %v3389, %v3390
        %3425 = vmax.xlane.f32.xlu0 %v3424
        %v3426 = vpop.xlane.xlu0 %3425
        %v3427 = vmax.f32 %v3391, %v3392
        %3428 = vmax.xlane.f32.xlu0 %v3427
        %v3429 = vpop.xlane.xlu0 %3428
        %v3430 = vmax.f32 %v3393, %v3394
        %3431 = vmax.xlane.f32.xlu0 %v3430
        %v3432 = vpop.xlane.xlu0 %3431
        %v3433 = vmax.f32 %v3395, %v3396
        %3434 = vmax.xlane.f32.xlu0 %v3433
        %v3435 = vpop.xlane.xlu0 %3434
        %v3436 = vmax.f32 %v3397, %v3398
        %3437 = vmax.xlane.f32.xlu0 %v3436
        %v3438 = vpop.xlane.xlu0 %3437
        %v3439 = vmax.f32 %v3399, %v3400
        %3440 = vmax.xlane.f32.xlu0 %v3439
        %v3441 = vpop.xlane.xlu0 %3440
        %v3442 = vmax.f32 %v3401, %v3402
        %3443 = vmax.xlane.f32.xlu0 %v3442
        %v3444 = vpop.xlane.xlu0 %3443
        %v3445 = vmax.f32 %v3403, %v3404
        %3446 = vmax.xlane.f32.xlu0 %v3445
        %v3447 = vpop.xlane.xlu0 %3446
        %v3448 = vmax.f32 %v3405, %v3406
        %3449 = vmax.xlane.f32.xlu0 %v3448
        %v3450 = vpop.xlane.xlu0 %3449
        %v3451 = vmax.f32 %v3407, %v3408
        %3452 = vmax.xlane.f32.xlu0 %v3451
        %v3453 = vpop.xlane.xlu0 %3452
        %v3454 = vmax.f32 %v3409, %v3410
        %3455 = vmax.xlane.f32.xlu0 %v3454
        %v3456 = vpop.xlane.xlu0 %3455
        %v3457 = vmax.f32 %v3411, %v3412
        %3458 = vmax.xlane.f32.xlu0 %v3457
        %v3459 = vpop.xlane.xlu0 %3458
        %v3460 = vmax.f32 %v3413, %v3414
        %3461 = vmax.xlane.f32.xlu0 %v3460
        %v3462 = vpop.xlane.xlu0 %3461
        %v3463 = vsub.f32 %v3383, %v3417
        %v3464 = vsub.f32 %v3384, %v3417
        %v3465 = vsub.f32 %v3385, %v3420
        %v3466 = vsub.f32 %v3386, %v3420
        %v3467 = vsub.f32 %v3387, %v3423
        %v3468 = vsub.f32 %v3388, %v3423
        %v3469 = vsub.f32 %v3389, %v3426
        %v3470 = vsub.f32 %v3390, %v3426
        %v3471 = vsub.f32 %v3391, %v3429
        %v3472 = vsub.f32 %v3392, %v3429
        %v3473 = vsub.f32 %v3393, %v3432
        %v3474 = vsub.f32 %v3394, %v3432
        %v3475 = vsub.f32 %v3395, %v3435
        %v3476 = vsub.f32 %v3396, %v3435
        %v3477 = vsub.f32 %v3397, %v3438
        %v3478 = vsub.f32 %v3398, %v3438
        %v3479 = vsub.f32 %v3399, %v3441
        %v3480 = vsub.f32 %v3400, %v3441
        %v3481 = vsub.f32 %v3401, %v3444
        %v3482 = vsub.f32 %v3402, %v3444
        %v3483 = vsub.f32 %v3403, %v3447
        %v3484 = vsub.f32 %v3404, %v3447
        %v3485 = vsub.f32 %v3405, %v3450
        %v3486 = vsub.f32 %v3406, %v3450
        %v3487 = vsub.f32 %v3407, %v3453
        %v3488 = vsub.f32 %v3408, %v3453
        %v3489 = vsub.f32 %v3409, %v3456
        %v3490 = vsub.f32 %v3410, %v3456
        %v3491 = vsub.f32 %v3411, %v3459
        %v3492 = vsub.f32 %v3412, %v3459
        %v3493 = vsub.f32 %v3413, %v3462
        %v3494 = vsub.f32 %v3414, %v3462
        %v3495 = vpack.c.bf16 %v3464, %v3463
        %v3496 = vpack.c.bf16 %v3466, %v3465
        %v3497 = vpack.c.bf16 %v3468, %v3467
        %v3498 = vpack.c.bf16 %v3470, %v3469
        %v3499 = vpack.c.bf16 %v3472, %v3471
        %v3500 = vpack.c.bf16 %v3474, %v3473
        %v3501 = vpack.c.bf16 %v3476, %v3475
        %v3502 = vpack.c.bf16 %v3478, %v3477
        %v3503 = vpack.c.bf16 %v3480, %v3479
        %v3504 = vpack.c.bf16 %v3482, %v3481
        %v3505 = vpack.c.bf16 %v3484, %v3483
        %v3506 = vpack.c.bf16 %v3486, %v3485
        %v3507 = vpack.c.bf16 %v3488, %v3487
        %v3508 = vpack.c.bf16 %v3490, %v3489
        %v3509 = vpack.c.bf16 %v3492, %v3491
        %v3510 = vpack.c.bf16 %v3494, %v3493
        %v3511 = vunpack.c.l.bf16 %v3495
        %v3512 = vunpack.c.h.bf16 %v3495
        %v3513 = vunpack.c.l.bf16 %v3496
        %v3514 = vunpack.c.h.bf16 %v3496
        %v3515 = vunpack.c.l.bf16 %v3497
        %v3516 = vunpack.c.h.bf16 %v3497
        %v3517 = vunpack.c.l.bf16 %v3498
        %v3518 = vunpack.c.h.bf16 %v3498
        %v3519 = vunpack.c.l.bf16 %v3499
        %v3520 = vunpack.c.h.bf16 %v3499
        %v3521 = vunpack.c.l.bf16 %v3500
        %v3522 = vunpack.c.h.bf16 %v3500
        %v3523 = vunpack.c.l.bf16 %v3501
        %v3524 = vunpack.c.h.bf16 %v3501
        %v3525 = vunpack.c.l.bf16 %v3502
        %v3526 = vunpack.c.h.bf16 %v3502
        %v3527 = vunpack.c.l.bf16 %v3503
        %v3528 = vunpack.c.h.bf16 %v3503
        %v3529 = vunpack.c.l.bf16 %v3504
        %v3530 = vunpack.c.h.bf16 %v3504
        %v3531 = vunpack.c.l.bf16 %v3505
        %v3532 = vunpack.c.h.bf16 %v3505
        %v3533 = vunpack.c.l.bf16 %v3506
        %v3534 = vunpack.c.h.bf16 %v3506
        %v3535 = vunpack.c.l.bf16 %v3507
        %v3536 = vunpack.c.h.bf16 %v3507
        %v3537 = vunpack.c.l.bf16 %v3508
        %v3538 = vunpack.c.h.bf16 %v3508
        %v3539 = vunpack.c.l.bf16 %v3509
        %v3540 = vunpack.c.h.bf16 %v3509
        %v3541 = vunpack.c.l.bf16 %v3510
        %v3542 = vunpack.c.h.bf16 %v3510
        %v3543 = vmul.f32 %v3511, 1.442695
        %v3544 = vpow.pop %v3543
        %v3545 = vmul.f32 %v3512, 1.442695
        %v3546 = vpow.pop %v3545
        %v3547 = vmul.f32 %v3513, 1.442695
        %v3548 = vpow.pop %v3547
        %v3549 = vmul.f32 %v3514, 1.442695
        %v3550 = vpow.pop %v3549
        %v3551 = vmul.f32 %v3515, 1.442695
        %v3552 = vpow.pop %v3551
        %v3553 = vmul.f32 %v3516, 1.442695
        %v3554 = vpow.pop %v3553
        %v3555 = vmul.f32 %v3517, 1.442695
        %v3556 = vpow.pop %v3555
        %v3557 = vmul.f32 %v3518, 1.442695
        %v3558 = vpow.pop %v3557
        %v3559 = vmul.f32 %v3519, 1.442695
        %v3560 = vpow.pop %v3559
        %v3561 = vmul.f32 %v3520, 1.442695
        %v3562 = vpow.pop %v3561
        %v3563 = vmul.f32 %v3521, 1.442695
        %v3564 = vpow.pop %v3563
        %v3565 = vmul.f32 %v3522, 1.442695
        %v3566 = vpow.pop %v3565
        %v3567 = vmul.f32 %v3523, 1.442695
        %v3568 = vpow.pop %v3567
        %v3569 = vmul.f32 %v3524, 1.442695
        %v3570 = vpow.pop %v3569
        %v3571 = vmul.f32 %v3525, 1.442695
        %v3572 = vpow.pop %v3571
        %v3573 = vmul.f32 %v3526, 1.442695
        %v3574 = vpow.pop %v3573
        %v3575 = vmul.f32 %v3527, 1.442695
        %v3576 = vpow.pop %v3575
        %v3577 = vmul.f32 %v3528, 1.442695
        %v3578 = vpow.pop %v3577
        %v3579 = vmul.f32 %v3529, 1.442695
        %v3580 = vpow.pop %v3579
        %v3581 = vmul.f32 %v3530, 1.442695
        %v3582 = vpow.pop %v3581
        %v3583 = vmul.f32 %v3531, 1.442695
        %v3584 = vpow.pop %v3583
        %v3585 = vmul.f32 %v3532, 1.442695
        %v3586 = vpow.pop %v3585
        %v3587 = vmul.f32 %v3533, 1.442695
        %v3588 = vpow.pop %v3587
        %v3589 = vmul.f32 %v3534, 1.442695
        %v3590 = vpow.pop %v3589
        %v3591 = vmul.f32 %v3535, 1.442695
        %v3592 = vpow.pop %v3591
        %v3593 = vmul.f32 %v3536, 1.442695
        %v3594 = vpow.pop %v3593
        %v3595 = vmul.f32 %v3537, 1.442695
        %v3596 = vpow.pop %v3595
        %v3597 = vmul.f32 %v3538, 1.442695
        %v3598 = vpow.pop %v3597
        %v3599 = vmul.f32 %v3539, 1.442695
        %v3600 = vpow.pop %v3599
        %v3601 = vmul.f32 %v3540, 1.442695
        %v3602 = vpow.pop %v3601
        %v3603 = vmul.f32 %v3541, 1.442695
        %v3604 = vpow.pop %v3603
        %v3605 = vmul.f32 %v3542, 1.442695
        %v3606 = vpow.pop %v3605
        %v3607 = vpack.c.bf16 %v3546, %v3544
        %v3608 = vpack.c.bf16 %v3550, %v3548
        %v3609 = vpack.c.bf16 %v3554, %v3552
        %v3610 = vpack.c.bf16 %v3558, %v3556
        %v3611 = vpack.c.bf16 %v3562, %v3560
        %v3612 = vpack.c.bf16 %v3566, %v3564
        %v3613 = vpack.c.bf16 %v3570, %v3568
        %v3614 = vpack.c.bf16 %v3574, %v3572
        %v3615 = vpack.c.bf16 %v3578, %v3576
        %v3616 = vpack.c.bf16 %v3582, %v3580
        %v3617 = vpack.c.bf16 %v3586, %v3584
        %v3618 = vpack.c.bf16 %v3590, %v3588
        %v3619 = vpack.c.bf16 %v3594, %v3592
        %v3620 = vpack.c.bf16 %v3598, %v3596
        %v3621 = vpack.c.bf16 %v3602, %v3600
        %v3622 = vpack.c.bf16 %v3606, %v3604
        %v3623 = vunpack.c.l.bf16 %v3607
        %v3624 = vunpack.c.h.bf16 %v3607
        %v3625 = vunpack.c.l.bf16 %v3608
        %v3626 = vunpack.c.h.bf16 %v3608
        %v3627 = vunpack.c.l.bf16 %v3609
        %v3628 = vunpack.c.h.bf16 %v3609
        %v3629 = vunpack.c.l.bf16 %v3610
        %v3630 = vunpack.c.h.bf16 %v3610
        %v3631 = vunpack.c.l.bf16 %v3611
        %v3632 = vunpack.c.h.bf16 %v3611
        %v3633 = vunpack.c.l.bf16 %v3612
        %v3634 = vunpack.c.h.bf16 %v3612
        %v3635 = vunpack.c.l.bf16 %v3613
        %v3636 = vunpack.c.h.bf16 %v3613
        %v3637 = vunpack.c.l.bf16 %v3614
        %v3638 = vunpack.c.h.bf16 %v3614
        %v3639 = vunpack.c.l.bf16 %v3615
        %v3640 = vunpack.c.h.bf16 %v3615
        %v3641 = vunpack.c.l.bf16 %v3616
        %v3642 = vunpack.c.h.bf16 %v3616
        %v3643 = vunpack.c.l.bf16 %v3617
        %v3644 = vunpack.c.h.bf16 %v3617
        %v3645 = vunpack.c.l.bf16 %v3618
        %v3646 = vunpack.c.h.bf16 %v3618
        %v3647 = vunpack.c.l.bf16 %v3619
        %v3648 = vunpack.c.h.bf16 %v3619
        %v3649 = vunpack.c.l.bf16 %v3620
        %v3650 = vunpack.c.h.bf16 %v3620
        %v3651 = vunpack.c.l.bf16 %v3621
        %v3652 = vunpack.c.h.bf16 %v3621
        %v3653 = vunpack.c.l.bf16 %v3622
        %v3654 = vunpack.c.h.bf16 %v3622
        %v3655 = vadd.f32 %v3623, %v3624
        %3656 = vadd.xlane.f32.xlu0 %v3655
        %v3657 = vpop.xlane.xlu0 %3656
        %v3658 = vadd.f32 %v3625, %v3626
        %3659 = vadd.xlane.f32.xlu0 %v3658
        %v3660 = vpop.xlane.xlu0 %3659
        %v3661 = vadd.f32 %v3627, %v3628
        %3662 = vadd.xlane.f32.xlu0 %v3661
        %v3663 = vpop.xlane.xlu0 %3662
        %v3664 = vadd.f32 %v3629, %v3630
        %3665 = vadd.xlane.f32.xlu0 %v3664
        %v3666 = vpop.xlane.xlu0 %3665
        %v3667 = vadd.f32 %v3631, %v3632
        %3668 = vadd.xlane.f32.xlu0 %v3667
        %v3669 = vpop.xlane.xlu0 %3668
        %v3670 = vadd.f32 %v3633, %v3634
        %3671 = vadd.xlane.f32.xlu0 %v3670
        %v3672 = vpop.xlane.xlu0 %3671
        %v3673 = vadd.f32 %v3635, %v3636
        %3674 = vadd.xlane.f32.xlu0 %v3673
        %v3675 = vpop.xlane.xlu0 %3674
        %v3676 = vadd.f32 %v3637, %v3638
        %3677 = vadd.xlane.f32.xlu0 %v3676
        %v3678 = vpop.xlane.xlu0 %3677
        %v3679 = vadd.f32 %v3639, %v3640
        %3680 = vadd.xlane.f32.xlu0 %v3679
        %v3681 = vpop.xlane.xlu0 %3680
        %v3682 = vadd.f32 %v3641, %v3642
        %3683 = vadd.xlane.f32.xlu0 %v3682
        %v3684 = vpop.xlane.xlu0 %3683
        %v3685 = vadd.f32 %v3643, %v3644
        %3686 = vadd.xlane.f32.xlu0 %v3685
        %v3687 = vpop.xlane.xlu0 %3686
        %v3688 = vadd.f32 %v3645, %v3646
        %3689 = vadd.xlane.f32.xlu0 %v3688
        %v3690 = vpop.xlane.xlu0 %3689
        %v3691 = vadd.f32 %v3647, %v3648
        %3692 = vadd.xlane.f32.xlu0 %v3691
        %v3693 = vpop.xlane.xlu0 %3692
        %v3694 = vadd.f32 %v3649, %v3650
        %3695 = vadd.xlane.f32.xlu0 %v3694
        %v3696 = vpop.xlane.xlu0 %3695
        %v3697 = vadd.f32 %v3651, %v3652
        %3698 = vadd.xlane.f32.xlu0 %v3697
        %v3699 = vpop.xlane.xlu0 %3698
        %v3700 = vadd.f32 %v3653, %v3654
        %3701 = vadd.xlane.f32.xlu0 %v3700
        %v3702 = vpop.xlane.xlu0 %3701
        %v3703 = vrcp.pop %v3657
        %v3704 = vrcp.pop %v3660
        %v3705 = vrcp.pop %v3663
        %v3706 = vrcp.pop %v3666
        %v3707 = vrcp.pop %v3669
        %v3708 = vrcp.pop %v3672
        %v3709 = vrcp.pop %v3675
        %v3710 = vrcp.pop %v3678
        %v3711 = vrcp.pop %v3681
        %v3712 = vrcp.pop %v3684
        %v3713 = vrcp.pop %v3687
        %v3714 = vrcp.pop %v3690
        %v3715 = vrcp.pop %v3693
        %v3716 = vrcp.pop %v3696
        %v3717 = vrcp.pop %v3699
        %v3718 = vrcp.pop %v3702
        %v3719 = vpack.c.bf16 %v3703, %v3703
        %v3720 = vpack.c.bf16 %v3704, %v3704
        %v3721 = vpack.c.bf16 %v3705, %v3705
        %v3722 = vpack.c.bf16 %v3706, %v3706
        %v3723 = vpack.c.bf16 %v3707, %v3707
        %v3724 = vpack.c.bf16 %v3708, %v3708
        %v3725 = vpack.c.bf16 %v3709, %v3709
        %v3726 = vpack.c.bf16 %v3710, %v3710
        %v3727 = vpack.c.bf16 %v3711, %v3711
        %v3728 = vpack.c.bf16 %v3712, %v3712
        %v3729 = vpack.c.bf16 %v3713, %v3713
        %v3730 = vpack.c.bf16 %v3714, %v3714
        %v3731 = vpack.c.bf16 %v3715, %v3715
        %v3732 = vpack.c.bf16 %v3716, %v3716
        %v3733 = vpack.c.bf16 %v3717, %v3717
        %v3734 = vpack.c.bf16 %v3718, %v3718
        %v3735 = vunpack.c.l.bf16 %v3719
        %v3736 = vunpack.c.l.bf16 %v3720
        %v3737 = vunpack.c.l.bf16 %v3721
        %v3738 = vunpack.c.l.bf16 %v3722
        %v3739 = vunpack.c.l.bf16 %v3723
        %v3740 = vunpack.c.l.bf16 %v3724
        %v3741 = vunpack.c.l.bf16 %v3725
        %v3742 = vunpack.c.l.bf16 %v3726
        %v3743 = vunpack.c.l.bf16 %v3727
        %v3744 = vunpack.c.l.bf16 %v3728
        %v3745 = vunpack.c.l.bf16 %v3729
        %v3746 = vunpack.c.l.bf16 %v3730
        %v3747 = vunpack.c.l.bf16 %v3731
        %v3748 = vunpack.c.l.bf16 %v3732
        %v3749 = vunpack.c.l.bf16 %v3733
        %v3750 = vunpack.c.l.bf16 %v3734
        %v3751 = vmul.f32 %v3623, %v3735
        %v3752 = vmul.f32 %v3624, %v3735
        %v3753 = vmul.f32 %v3625, %v3736
        %v3754 = vmul.f32 %v3626, %v3736
        %v3755 = vmul.f32 %v3627, %v3737
        %v3756 = vmul.f32 %v3628, %v3737
        %v3757 = vmul.f32 %v3629, %v3738
        %v3758 = vmul.f32 %v3630, %v3738
        %v3759 = vmul.f32 %v3631, %v3739
        %v3760 = vmul.f32 %v3632, %v3739
        %v3761 = vmul.f32 %v3633, %v3740
        %v3762 = vmul.f32 %v3634, %v3740
        %v3763 = vmul.f32 %v3635, %v3741
        %v3764 = vmul.f32 %v3636, %v3741
        %v3765 = vmul.f32 %v3637, %v3742
        %v3766 = vmul.f32 %v3638, %v3742
        %v3767 = vmul.f32 %v3639, %v3743
        %v3768 = vmul.f32 %v3640, %v3743
        %v3769 = vmul.f32 %v3641, %v3744
        %v3770 = vmul.f32 %v3642, %v3744
        %v3771 = vmul.f32 %v3643, %v3745
        %v3772 = vmul.f32 %v3644, %v3745
        %v3773 = vmul.f32 %v3645, %v3746
        %v3774 = vmul.f32 %v3646, %v3746
        %v3775 = vmul.f32 %v3647, %v3747
        %v3776 = vmul.f32 %v3648, %v3747
        %v3777 = vmul.f32 %v3649, %v3748
        %v3778 = vmul.f32 %v3650, %v3748
        %v3779 = vmul.f32 %v3651, %v3749
        %v3780 = vmul.f32 %v3652, %v3749
        %v3781 = vmul.f32 %v3653, %v3750
        %v3782 = vmul.f32 %v3654, %v3750
        %v3783 = vpack.c.bf16 %v3753, %v3751
        %v3784 = vpack.c.bf16 %v3754, %v3752
        %v3785 = vpack.c.bf16 %v3757, %v3755
        %v3786 = vpack.c.bf16 %v3758, %v3756
        %v3787 = vpack.c.bf16 %v3761, %v3759
        %v3788 = vpack.c.bf16 %v3762, %v3760
        %v3789 = vpack.c.bf16 %v3765, %v3763
        %v3790 = vpack.c.bf16 %v3766, %v3764
        %v3791 = vpack.c.bf16 %v3769, %v3767
        %v3792 = vpack.c.bf16 %v3770, %v3768
        %v3793 = vpack.c.bf16 %v3773, %v3771
        %v3794 = vpack.c.bf16 %v3774, %v3772
        %v3795 = vpack.c.bf16 %v3777, %v3775
        %v3796 = vpack.c.bf16 %v3778, %v3776
        %v3797 = vpack.c.bf16 %v3781, %v3779
        %v3798 = vpack.c.bf16 %v3782, %v3780
        %3799 = vrot.lane.b32.xlu0 %v1231, 32
        %v3800 = vpop.permute.xlu0 %3799
        %3801 = vrot.lane.b32.xlu0 %v1232, 32
        %v3802 = vpop.permute.xlu0 %3801
        %3803 = vrot.lane.b32.xlu0 %v1233, 32
        %v3804 = vpop.permute.xlu0 %3803
        %3805 = vrot.lane.b32.xlu0 %v1234, 32
        %v3806 = vpop.permute.xlu0 %3805
        %3807 = vrot.lane.b32.xlu0 %v1235, 32
        %v3808 = vpop.permute.xlu0 %3807
        %3809 = vrot.lane.b32.xlu0 %v1236, 32
        %v3810 = vpop.permute.xlu0 %3809
        %3811 = vrot.lane.b32.xlu0 %v1237, 32
        %v3812 = vpop.permute.xlu0 %3811
        %3813 = vrot.lane.b32.xlu0 %v1238, 32
        %v3814 = vpop.permute.xlu0 %3813
        %3815 = vrot.lane.b32.xlu0 %v1239, 32
        %v3816 = vpop.permute.xlu0 %3815
        %3817 = vrot.lane.b32.xlu0 %v1240, 32
        %v3818 = vpop.permute.xlu0 %3817
        %3819 = vrot.lane.b32.xlu0 %v1241, 32
        %v3820 = vpop.permute.xlu0 %3819
        %3821 = vrot.lane.b32.xlu0 %v1242, 32
        %v3822 = vpop.permute.xlu0 %3821
        %3823 = vrot.lane.b32.xlu0 %v1243, 32
        %v3824 = vpop.permute.xlu0 %3823
        %3825 = vrot.lane.b32.xlu0 %v1244, 32
        %v3826 = vpop.permute.xlu0 %3825
        %3827 = vrot.lane.b32.xlu0 %v1245, 32
        %v3828 = vpop.permute.xlu0 %3827
        %3829 = vrot.lane.b32.xlu0 %v1246, 32
        %v3830 = vpop.permute.xlu0 %3829
        %3847 = vmatpush.bf16.msra.mxu0 %v3814
        %3848 = vmatpush.bf16.msra.mxu0 %v3812
        %3849 = vmatpush.bf16.msra.mxu0 %v3810
        %3850 = vmatpush.bf16.msra.mxu0 %v3808
        %3851 = vmatpush.bf16.msra.mxu0 %v3806
        %3852 = vmatpush.bf16.msra.mxu0 %v3804
        %3853 = vmatpush.bf16.msra.mxu0 %v3802
        %3854 = vmatpush.bf16.msra.mxu0 %v3800
        %3855 = vmatmul.bf16.gmra.mxu0 %v3783
        %v3856 = vpop.f32.mrf.mxu0
        %v3857 = vadd.f32 0.0, %v3856
        %v3858 = vpop.f32.mrf.mxu0
        %v3859 = vadd.f32 0.0, %v3858
        %3860 = vmatmul.bf16.gmra.mxu0 %v3785
        %v3861 = vpop.f32.mrf.mxu0
        %v3862 = vadd.f32 0.0, %v3861
        %v3863 = vpop.f32.mrf.mxu0
        %v3864 = vadd.f32 0.0, %v3863
        %3865 = vmatmul.bf16.gmra.mxu0 %v3787
        %v3866 = vpop.f32.mrf.mxu0
        %v3867 = vadd.f32 0.0, %v3866
        %v3868 = vpop.f32.mrf.mxu0
        %v3869 = vadd.f32 0.0, %v3868
        %3870 = vmatmul.bf16.gmra.mxu0 %v3789
        %v3871 = vpop.f32.mrf.mxu0
        %v3872 = vadd.f32 0.0, %v3871
        %v3873 = vpop.f32.mrf.mxu0
        %v3874 = vadd.f32 0.0, %v3873
        %3875 = vmatmul.bf16.gmra.mxu0 %v3791
        %v3876 = vpop.f32.mrf.mxu0
        %v3877 = vadd.f32 0.0, %v3876
        %v3878 = vpop.f32.mrf.mxu0
        %v3879 = vadd.f32 0.0, %v3878
        %3880 = vmatmul.bf16.gmra.mxu0 %v3793
        %v3881 = vpop.f32.mrf.mxu0
        %v3882 = vadd.f32 0.0, %v3881
        %v3883 = vpop.f32.mrf.mxu0
        %v3884 = vadd.f32 0.0, %v3883
        %3885 = vmatmul.bf16.gmra.mxu0 %v3795
        %v3886 = vpop.f32.mrf.mxu0
        %v3887 = vadd.f32 0.0, %v3886
        %v3888 = vpop.f32.mrf.mxu0
        %v3889 = vadd.f32 0.0, %v3888
        %3890 = vmatmul.bf16.gmra.mxu0 %v3797
        %v3891 = vpop.f32.mrf.mxu0
        %v3892 = vadd.f32 0.0, %v3891
        %v3893 = vpop.f32.mrf.mxu0
        %v3894 = vadd.f32 0.0, %v3893
        %3895 = vdwg.mxu0
        %3896 = vmatpush.bf16.msra.mxu0 %v3830
        %3897 = vmatpush.bf16.msra.mxu0 %v3828
        %3898 = vmatpush.bf16.msra.mxu0 %v3826
        %3899 = vmatpush.bf16.msra.mxu0 %v3824
        %3900 = vmatpush.bf16.msra.mxu0 %v3822
        %3901 = vmatpush.bf16.msra.mxu0 %v3820
        %3902 = vmatpush.bf16.msra.mxu0 %v3818
        %3903 = vmatpush.bf16.msra.mxu0 %v3816
        %3904 = vmatmul.bf16.gmra.mxu0 %v3784
        %v3905 = vpop.f32.mrf.mxu0
        %v3906 = vadd.f32 %v3857, %v3905
        %v3907 = vpop.f32.mrf.mxu0
        %v3908 = vadd.f32 %v3859, %v3907
        %3909 = vmatmul.bf16.gmra.mxu0 %v3786
        %v3910 = vpop.f32.mrf.mxu0
        %v3911 = vadd.f32 %v3862, %v3910
        %v3912 = vpop.f32.mrf.mxu0
        %v3913 = vadd.f32 %v3864, %v3912
        %3914 = vmatmul.bf16.gmra.mxu0 %v3788
        %v3915 = vpop.f32.mrf.mxu0
        %v3916 = vadd.f32 %v3867, %v3915
        %v3917 = vpop.f32.mrf.mxu0
        %v3918 = vadd.f32 %v3869, %v3917
        %3919 = vmatmul.bf16.gmra.mxu0 %v3790
        %v3920 = vpop.f32.mrf.mxu0
        %v3921 = vadd.f32 %v3872, %v3920
        %v3922 = vpop.f32.mrf.mxu0
        %v3923 = vadd.f32 %v3874, %v3922
        %3924 = vmatmul.bf16.gmra.mxu0 %v3792
        %v3925 = vpop.f32.mrf.mxu0
        %v3926 = vadd.f32 %v3877, %v3925
        %v3927 = vpop.f32.mrf.mxu0
        %v3928 = vadd.f32 %v3879, %v3927
        %3929 = vmatmul.bf16.gmra.mxu0 %v3794
        %v3930 = vpop.f32.mrf.mxu0
        %v3931 = vadd.f32 %v3882, %v3930
        %v3932 = vpop.f32.mrf.mxu0
        %v3933 = vadd.f32 %v3884, %v3932
        %3934 = vmatmul.bf16.gmra.mxu0 %v3796
        %v3935 = vpop.f32.mrf.mxu0
        %v3936 = vadd.f32 %v3887, %v3935
        %v3937 = vpop.f32.mrf.mxu0
        %v3938 = vadd.f32 %v3889, %v3937
        %3939 = vmatmul.bf16.gmra.mxu0 %v3798
        %v3940 = vpop.f32.mrf.mxu0
        %v3941 = vadd.f32 %v3892, %v3940
        %v3942 = vpop.f32.mrf.mxu0
        %v3943 = vadd.f32 %v3894, %v3942
        %3944 = vdwg.mxu0
        %3961 = vrot.lane.b32.xlu0 %v3906, 96
        %v3962 = vpop.permute.xlu0 %3961
        %3963 = vrot.lane.b32.xlu0 %v3908, 96
        %v3964 = vpop.permute.xlu0 %3963
        %3965 = vrot.lane.b32.xlu0 %v3911, 96
        %v3966 = vpop.permute.xlu0 %3965
        %3967 = vrot.lane.b32.xlu0 %v3913, 96
        %v3968 = vpop.permute.xlu0 %3967
        %3969 = vrot.lane.b32.xlu0 %v3916, 96
        %v3970 = vpop.permute.xlu0 %3969
        %3971 = vrot.lane.b32.xlu0 %v3918, 96
        %v3972 = vpop.permute.xlu0 %3971
        %3973 = vrot.lane.b32.xlu0 %v3921, 96
        %v3974 = vpop.permute.xlu0 %3973
        %3975 = vrot.lane.b32.xlu0 %v3923, 96
        %v3976 = vpop.permute.xlu0 %3975
        %3977 = vrot.lane.b32.xlu0 %v3926, 96
        %v3978 = vpop.permute.xlu0 %3977
        %3979 = vrot.lane.b32.xlu0 %v3928, 96
        %v3980 = vpop.permute.xlu0 %3979
        %3981 = vrot.lane.b32.xlu0 %v3931, 96
        %v3982 = vpop.permute.xlu0 %3981
        %3983 = vrot.lane.b32.xlu0 %v3933, 96
        %v3984 = vpop.permute.xlu0 %3983
        %3985 = vrot.lane.b32.xlu0 %v3936, 96
        %v3986 = vpop.permute.xlu0 %3985
        %3987 = vrot.lane.b32.xlu0 %v3938, 96
        %v3988 = vpop.permute.xlu0 %3987
        %3989 = vrot.lane.b32.xlu0 %v3941, 96
        %v3990 = vpop.permute.xlu0 %3989
        %3991 = vrot.lane.b32.xlu0 %v3943, 96
        %v3992 = vpop.permute.xlu0 %3991
        %v4009 = vadd.f32 %v376, %v3962
        %v4010 = vadd.f32 %v378, %v3964
        %v4011 = vadd.f32 %v381, %v3966
        %v4012 = vadd.f32 %v383, %v3968
        %v4013 = vadd.f32 %v386, %v3970
        %v4014 = vadd.f32 %v388, %v3972
        %v4015 = vadd.f32 %v391, %v3974
        %v4016 = vadd.f32 %v393, %v3976
        %v4017 = vadd.f32 %v396, %v3978
        %v4018 = vadd.f32 %v398, %v3980
        %v4019 = vadd.f32 %v401, %v3982
        %v4020 = vadd.f32 %v403, %v3984
        %v4021 = vadd.f32 %v406, %v3986
        %v4022 = vadd.f32 %v408, %v3988
        %v4023 = vadd.f32 %v411, %v3990
        %v4024 = vadd.f32 %v413, %v3992
        %v4025 = vmax.f32 %v4009, 0.0
        %v4026 = vmax.f32 %v4010, 0.0
        %v4027 = vmax.f32 %v4011, 0.0
        %v4028 = vmax.f32 %v4012, 0.0
        %v4029 = vmax.f32 %v4013, 0.0
        %v4030 = vmax.f32 %v4014, 0.0
        %v4031 = vmax.f32 %v4015, 0.0
        %v4032 = vmax.f32 %v4016, 0.0
        %v4033 = vmax.f32 %v4017, 0.0
        %v4034 = vmax.f32 %v4018, 0.0
        %v4035 = vmax.f32 %v4019, 0.0
        %v4036 = vmax.f32 %v4020, 0.0
        %v4037 = vmax.f32 %v4021, 0.0
        %v4038 = vmax.f32 %v4022, 0.0
        %v4039 = vmax.f32 %v4023, 0.0
        %v4040 = vmax.f32 %v4024, 0.0
        %4057 = vrot.lane.b32.xlu0 %v4025, 32
        %v4058 = vpop.permute.xlu0 %4057
        %4059 = vrot.lane.b32.xlu0 %v4026, 32
        %v4060 = vpop.permute.xlu0 %4059
        %4061 = vrot.lane.b32.xlu0 %v4027, 32
        %v4062 = vpop.permute.xlu0 %4061
        %4063 = vrot.lane.b32.xlu0 %v4028, 32
        %v4064 = vpop.permute.xlu0 %4063
        %4065 = vrot.lane.b32.xlu0 %v4029, 32
        %v4066 = vpop.permute.xlu0 %4065
        %4067 = vrot.lane.b32.xlu0 %v4030, 32
        %v4068 = vpop.permute.xlu0 %4067
        %4069 = vrot.lane.b32.xlu0 %v4031, 32
        %v4070 = vpop.permute.xlu0 %4069
        %4071 = vrot.lane.b32.xlu0 %v4032, 32
        %v4072 = vpop.permute.xlu0 %4071
        %4073 = vrot.lane.b32.xlu0 %v4033, 32
        %v4074 = vpop.permute.xlu0 %4073
        %4075 = vrot.lane.b32.xlu0 %v4034, 32
        %v4076 = vpop.permute.xlu0 %4075
        %4077 = vrot.lane.b32.xlu0 %v4035, 32
        %v4078 = vpop.permute.xlu0 %4077
        %4079 = vrot.lane.b32.xlu0 %v4036, 32
        %v4080 = vpop.permute.xlu0 %4079
        %4081 = vrot.lane.b32.xlu0 %v4037, 32
        %v4082 = vpop.permute.xlu0 %4081
        %4083 = vrot.lane.b32.xlu0 %v4038, 32
        %v4084 = vpop.permute.xlu0 %4083
        %4085 = vrot.lane.b32.xlu0 %v4039, 32
        %v4086 = vpop.permute.xlu0 %4085
        %4087 = vrot.lane.b32.xlu0 %v4040, 32
        %v4088 = vpop.permute.xlu0 %4087
        %v4105 = vadd.f32 %v301, %v4058
        %v4106 = vadd.f32 %v302, %v4060
        %v4107 = vadd.f32 %v303, %v4062
        %v4108 = vadd.f32 %v304, %v4064
        %v4109 = vadd.f32 %v305, %v4066
        %v4110 = vadd.f32 %v306, %v4068
        %v4111 = vadd.f32 %v307, %v4070
        %v4112 = vadd.f32 %v308, %v4072
        %v4113 = vadd.f32 %v309, %v4074
        %v4114 = vadd.f32 %v310, %v4076
        %v4115 = vadd.f32 %v311, %v4078
        %v4116 = vadd.f32 %v312, %v4080
        %v4117 = vadd.f32 %v313, %v4082
        %v4118 = vadd.f32 %v314, %v4084
        %v4119 = vadd.f32 %v315, %v4086
        %v4120 = vadd.f32 %v316, %v4088
        %4137 = vrot.lane.b32.xlu0 %v2297, 32
        %v4138 = vpop.permute.xlu0 %4137
        %4139 = vrot.lane.b32.xlu0 %v2298, 32
        %v4140 = vpop.permute.xlu0 %4139
        %4141 = vrot.lane.b32.xlu0 %v2299, 32
        %v4142 = vpop.permute.xlu0 %4141
        %4143 = vrot.lane.b32.xlu0 %v2300, 32
        %v4144 = vpop.permute.xlu0 %4143
        %4145 = vrot.lane.b32.xlu0 %v2301, 32
        %v4146 = vpop.permute.xlu0 %4145
        %4147 = vrot.lane.b32.xlu0 %v2302, 32
        %v4148 = vpop.permute.xlu0 %4147
        %4149 = vrot.lane.b32.xlu0 %v2303, 32
        %v4150 = vpop.permute.xlu0 %4149
        %4151 = vrot.lane.b32.xlu0 %v2304, 32
        %v4152 = vpop.permute.xlu0 %4151
        %4153 = vrot.lane.b32.xlu0 %v2305, 32
        %v4154 = vpop.permute.xlu0 %4153
        %4155 = vrot.lane.b32.xlu0 %v2306, 32
        %v4156 = vpop.permute.xlu0 %4155
        %4157 = vrot.lane.b32.xlu0 %v2307, 32
        %v4158 = vpop.permute.xlu0 %4157
        %4159 = vrot.lane.b32.xlu0 %v2308, 32
        %v4160 = vpop.permute.xlu0 %4159
        %4161 = vrot.lane.b32.xlu0 %v2309, 32
        %v4162 = vpop.permute.xlu0 %4161
        %4163 = vrot.lane.b32.xlu0 %v2310, 32
        %v4164 = vpop.permute.xlu0 %4163
        %4165 = vrot.lane.b32.xlu0 %v2311, 32
        %v4166 = vpop.permute.xlu0 %4165
        %4167 = vrot.lane.b32.xlu0 %v2312, 32
        %v4168 = vpop.permute.xlu0 %4167
        %4201 = vrot.lane.b32.xlu0 %v3201, 64
        %v4202 = vpop.permute.xlu0 %4201
        %4203 = vrot.lane.b32.xlu0 %v3202, 64
        %v4204 = vpop.permute.xlu0 %4203
        %4205 = vrot.lane.b32.xlu0 %v3203, 64
        %v4206 = vpop.permute.xlu0 %4205
        %4207 = vrot.lane.b32.xlu0 %v3204, 64
        %v4208 = vpop.permute.xlu0 %4207
        %4209 = vrot.lane.b32.xlu0 %v3205, 64
        %v4210 = vpop.permute.xlu0 %4209
        %4211 = vrot.lane.b32.xlu0 %v3206, 64
        %v4212 = vpop.permute.xlu0 %4211
        %4213 = vrot.lane.b32.xlu0 %v3207, 64
        %v4214 = vpop.permute.xlu0 %4213
        %4215 = vrot.lane.b32.xlu0 %v3208, 64
        %v4216 = vpop.permute.xlu0 %4215
        %4217 = vrot.lane.b32.xlu0 %v3209, 64
        %v4218 = vpop.permute.xlu0 %4217
        %4219 = vrot.lane.b32.xlu0 %v3210, 64
        %v4220 = vpop.permute.xlu0 %4219
        %4221 = vrot.lane.b32.xlu0 %v3211, 64
        %v4222 = vpop.permute.xlu0 %4221
        %4223 = vrot.lane.b32.xlu0 %v3212, 64
        %v4224 = vpop.permute.xlu0 %4223
        %4225 = vrot.lane.b32.xlu0 %v3213, 64
        %v4226 = vpop.permute.xlu0 %4225
        %4227 = vrot.lane.b32.xlu0 %v3214, 64
        %v4228 = vpop.permute.xlu0 %4227
        %4229 = vrot.lane.b32.xlu0 %v3215, 64
        %v4230 = vpop.permute.xlu0 %4229
        %4231 = vrot.lane.b32.xlu0 %v3216, 64
        %v4232 = vpop.permute.xlu0 %4231
        %4265 = vrot.lane.b32.xlu0 %v4105, 96
        %v4266 = vpop.permute.xlu0 %4265
        %4267 = vrot.lane.b32.xlu0 %v4106, 96
        %v4268 = vpop.permute.xlu0 %4267
        %4269 = vrot.lane.b32.xlu0 %v4107, 96
        %v4270 = vpop.permute.xlu0 %4269
        %4271 = vrot.lane.b32.xlu0 %v4108, 96
        %v4272 = vpop.permute.xlu0 %4271
        %4273 = vrot.lane.b32.xlu0 %v4109, 96
        %v4274 = vpop.permute.xlu0 %4273
        %4275 = vrot.lane.b32.xlu0 %v4110, 96
        %v4276 = vpop.permute.xlu0 %4275
        %4277 = vrot.lane.b32.xlu0 %v4111, 96
        %v4278 = vpop.permute.xlu0 %4277
        %4279 = vrot.lane.b32.xlu0 %v4112, 96
        %v4280 = vpop.permute.xlu0 %4279
        %4281 = vrot.lane.b32.xlu0 %v4113, 96
        %v4282 = vpop.permute.xlu0 %4281
        %4283 = vrot.lane.b32.xlu0 %v4114, 96
        %v4284 = vpop.permute.xlu0 %4283
        %4285 = vrot.lane.b32.xlu0 %v4115, 96
        %v4286 = vpop.permute.xlu0 %4285
        %4287 = vrot.lane.b32.xlu0 %v4116, 96
        %v4288 = vpop.permute.xlu0 %4287
        %4289 = vrot.lane.b32.xlu0 %v4117, 96
        %v4290 = vpop.permute.xlu0 %4289
        %4291 = vrot.lane.b32.xlu0 %v4118, 96
        %v4292 = vpop.permute.xlu0 %4291
        %4293 = vrot.lane.b32.xlu0 %v4119, 96
        %v4294 = vpop.permute.xlu0 %4293
        %4295 = vrot.lane.b32.xlu0 %v4120, 96
        %v4296 = vpop.permute.xlu0 %4295
        %v4313 = vsel %vm341, %v1393, %v4138
        %v4314 = vsel %vm341, %v1394, %v4140
        %v4315 = vsel %vm341, %v1395, %v4142
        %v4316 = vsel %vm341, %v1396, %v4144
        %v4317 = vsel %vm341, %v1397, %v4146
        %v4318 = vsel %vm341, %v1398, %v4148
        %v4319 = vsel %vm341, %v1399, %v4150
        %v4320 = vsel %vm341, %v1400, %v4152
        %v4321 = vsel %vm341, %v1401, %v4154
        %v4322 = vsel %vm341, %v1402, %v4156
        %v4323 = vsel %vm341, %v1403, %v4158
        %v4324 = vsel %vm341, %v1404, %v4160
        %v4325 = vsel %vm341, %v1405, %v4162
        %v4326 = vsel %vm341, %v1406, %v4164
        %v4327 = vsel %vm341, %v1407, %v4166
        %v4328 = vsel %vm341, %v1408, %v4168
        %vm4329 = vcmask 523264
        %v4330 = vsel %vm4329, %v4313, %v4202
        %v4331 = vsel %vm4329, %v4314, %v4204
        %v4332 = vsel %vm4329, %v4315, %v4206
        %v4333 = vsel %vm4329, %v4316, %v4208
        %v4334 = vsel %vm4329, %v4317, %v4210
        %v4335 = vsel %vm4329, %v4318, %v4212
        %v4336 = vsel %vm4329, %v4319, %v4214
        %v4337 = vsel %vm4329, %v4320, %v4216
        %v4338 = vsel %vm4329, %v4321, %v4218
        %v4339 = vsel %vm4329, %v4322, %v4220
        %v4340 = vsel %vm4329, %v4323, %v4222
        %v4341 = vsel %vm4329, %v4324, %v4224
        %v4342 = vsel %vm4329, %v4325, %v4226
        %v4343 = vsel %vm4329, %v4326, %v4228
        %v4344 = vsel %vm4329, %v4327, %v4230
        %v4345 = vsel %vm4329, %v4328, %v4232
        %vm4346 = vcmask 785408
        %v4347 = vsel %vm4346, %v4330, %v4266
        %v4348 = vsel %vm4346, %v4331, %v4268
        %v4349 = vsel %vm4346, %v4332, %v4270
        %v4350 = vsel %vm4346, %v4333, %v4272
        %v4351 = vsel %vm4346, %v4334, %v4274
        %v4352 = vsel %vm4346, %v4335, %v4276
        %v4353 = vsel %vm4346, %v4336, %v4278
        %v4354 = vsel %vm4346, %v4337, %v4280
        %v4355 = vsel %vm4346, %v4338, %v4282
        %v4356 = vsel %vm4346, %v4339, %v4284
        %v4357 = vsel %vm4346, %v4340, %v4286
        %v4358 = vsel %vm4346, %v4341, %v4288
        %v4359 = vsel %vm4346, %v4342, %v4290
        %v4360 = vsel %vm4346, %v4343, %v4292
        %v4361 = vsel %vm4346, %v4344, %v4294
        %v4362 = vsel %vm4346, %v4345, %v4296
        %4363 = vst [vmem:[%s279] sm:$0xff] %v4347
        %4364 = vst [vmem:[%s279 + $0x8] sm:$0xff] %v4348
        %4365 = vst [vmem:[%s279 + $0x10] sm:$0xff] %v4349
        %4366 = vst [vmem:[%s279 + $0x18] sm:$0xff] %v4350
        %4367 = vst [vmem:[%s279 + $0x20] sm:$0xff] %v4351
        %4368 = vst [vmem:[%s279 + $0x28] sm:$0xff] %v4352
        %4369 = vst [vmem:[%s279 + $0x30] sm:$0xff] %v4353
        %4370 = vst [vmem:[%s279 + $0x38] sm:$0xff] %v4354
        %4371 = vst [vmem:[%s279 + $0x40] sm:$0xff] %v4355
        %4372 = vst [vmem:[%s279 + $0x48] sm:$0xff] %v4356
        %4373 = vst [vmem:[%s279 + $0x50] sm:$0xff] %v4357
        %4374 = vst [vmem:[%s279 + $0x58] sm:$0xff] %v4358
        %4375 = vst [vmem:[%s279 + $0x60] sm:$0xff] %v4359
        %4376 = vst [vmem:[%s279 + $0x68] sm:$0xff] %v4360
        %4377 = vst [vmem:[%s279 + $0x70] sm:$0xff] %v4361
        %4378 = vst [vmem:[%s279 + $0x78] sm:$0xff] %v4362
        %s4379 = sand.u32 %s169, 1
        %s4380 = scalar_lea.sflag [#allocation3], %s4379
        %s4381 = sand.u32 %s169, 1
        %s4382 = smul.addr %s4381, 128
        %s4383 = scalar_lea.vmem [#allocation2], %s4382
        // Predicated region
        $region45: #{multi_head_gat_forward.3} parent=43 // pred_check
          %p4384 = pneg %p179
        $region46: #{multi_head_gat_forward.3} parent=43 // pred_check_branch
          %4386 = sbr.rel (%p4384) target = $region48
        $region47: #{multi_head_gat_forward.3} parent=43 // pred_region
          %s4387 = smul.u32 16, %s20
          %4389 = vsyncadd %s4380, 0
          %s4390 = smul.addr %s4387, 8
          %s4391 = scalar_lea.hbm %s6, %s4390
          %s4392 = sshll.u32 %s4383, 4
          %s4393 = int_to_ptr.vmem [resolvable:$true] %s4392
          %s4394 = sshll.u32 %s4391, 4
          %s4395 = int_to_ptr.hbm [resolvable:$true] %s4394
          %4400 = dma.vmem_to_hbm [thread:$0]  %s4393, 2048, %s4395, %s4380, 128, 128, 8
        $region48: #{multi_head_gat_forward.3} parent=43 // pred_fallthru
          _
      $region44: #{multi_head_gat_forward.3} parent=5 // pred_fallthru
        _
      %p4401 = scmp.le.s32.totalorder 2, %s15
      // Predicated region
      $region49: #{multi_head_gat_forward.3} parent=5 // pred_check
        %p4402 = pneg %p4401
      $region50: #{multi_head_gat_forward.3} parent=5 // pred_check_branch
        %4404 = sbr.rel (%p4402) target = $region52
      $region51: #{multi_head_gat_forward.3} parent=5 // pred_region
        %s4405 = ssub.s32 %s15, 2
        // Predicated region
        $region53: #{multi_head_gat_forward.3} parent=51 // pred_check
          %p4406 = pneg %p185
        $region54: #{multi_head_gat_forward.3} parent=51 // pred_check_branch
          %4408 = sbr.rel (%p4406) target = $region56
        $region55: #{multi_head_gat_forward.3} parent=51 // pred_region
          %s4409 = sand.u32 %s170, 1
          %s4410 = scalar_lea.sflag [#allocation3], %s4409
          %s4411 = sand.u32 %s170, 1
          %s4412 = smul.addr %s4411, 128
          %s4413 = scalar_lea.vmem [#allocation2], %s4412
          %4415 = dma.done %s4410, 2048
        $region56: #{multi_head_gat_forward.3} parent=51 // pred_fallthru
          _
      $region52: #{multi_head_gat_forward.3} parent=5 // pred_fallthru
        _
    $region6: #{multi_head_gat_forward.3} parent=1 // loop_footer
      %s19 = sadd.s32 1, %s15
    $region7: #{multi_head_gat_forward.3} parent=1 // loop_footer_branch
      %14 = sbr.rel target = $region3
    $region8: #{multi_head_gat_forward.3} parent=1 // loop_exit
      _
    %4416 = vsyncpa [#allocation3], 1
    %s4417 = scalar_lea.sflag [#allocation3], 1
    %4418 = vsyncpa %s4417, 1

// kernel: multi_head_gat_forward.2
$region0: #{multi_head_gat_forward.2}
  #allocation0 [shape = 'u32[]', space=smem, size = 0x4, offset = 0x4, fixed_abs, tag = 'smem constant byte address 0x4 - core index']
  #allocation1 [shape = 'u32[72,128]{1,0:T(1,128)}', space=vmem, size = 0x9000, scoped, tag = 'internal scratch']
  %s0 = inlined_call_operand.vmem [shape: bf16[256,32], index: 0, kind: input, shape index: {}]
  %s1 = inlined_call_operand.vmem [shape: bf16[32,128], index: 1, kind: input, shape index: {}]
  %s2 = inlined_call_operand.vmem [shape: bf16[256,128], index: 2, kind: output, shape index: {}]
  %s3 = sld [smem:[#allocation0]]
  $region41: #{multi_head_gat_forward.2} parent=0
    _
  %s5 = ssub.s32 1, %s3
  %s6 = scalar_select 0, %s5, %s3
  loop: start=0, step=1, limit=4
  $region2: #{multi_head_gat_forward.2} parent=0 // loop_pre_header
    _
  $region3: #{multi_head_gat_forward.2} parent=0 // loop_header
    %s8 = sphi 0, %s12
    %p9 = scmp.ge.s32.totalorder %s8, 4
    %s18 = sphi 0, %s20
    %s21 = sphi 0, %s18
    %s22 = sphi 0, %s21
    %s38 = sphi 0, %s22
    %s42 = sphi 0, %s42
    %s44 = sphi 0, %s42
    %s45 = sphi 0, %s44
    %s59 = sphi 0, %s45
    %s65 = sphi 0, %s67
    %s68 = sphi 0, %s65
    %s69 = sphi 0, %s68
    %s85 = sphi 0, %s69
  $region4: #{multi_head_gat_forward.2} parent=0 // loop_header_branch
    %11 = sbr.rel (%p9) target = $region8
  $region5: #{multi_head_gat_forward.2} parent=0 // loop_body
    %s13 = ssub.s32 %s8, 1
    %s14 = ssub.s32 %s8, 2
    %s15 = sadd.s32 %s8, 1
    %s16 = ssub.s32 %s8, %s15
    %p17 = scmp.eq.s32.totalorder %s16, 0
    %s19 = sadd.s32 %s18, 1
    %s20 = scalar_select %p17, %s18, %s19
    %p23 = pneg %p17
    %p24 = scmp.eq.s32.totalorder %s8, 1
    %p25 = por %p23, %p24
    %p26 = scmp.ne.s32.totalorder %s18, %s21
    %p27 = scmp.eq.s32.totalorder %s8, 0
    %p28 = por %p26, %p27
    %p29 = scmp.ne.s32.totalorder %s18, %s21
    %p30 = scmp.eq.s32.totalorder %s13, 1
    %p31 = por %p29, %p30
    %p32 = scmp.ne.s32.totalorder %s21, %s22
    %p33 = scmp.eq.s32.totalorder %s13, 0
    %p34 = por %p32, %p33
    %p35 = scmp.ne.s32.totalorder %s21, %s22
    %p36 = scmp.eq.s32.totalorder %s14, 1
    %p37 = por %p35, %p36
    %p39 = scmp.ne.s32.totalorder %s22, %s38
    %p40 = scmp.eq.s32.totalorder %s14, 0
    %p41 = por %p39, %p40
    %s43 = sadd.s32 %s42, 1
    %p46 = scmp.eq.s32.totalorder %s8, 1
    %p47 = scmp.ne.s32.totalorder %s42, %s44
    %p48 = scmp.eq.s32.totalorder %s8, 0
    %p49 = por %p47, %p48
    %p50 = scmp.ne.s32.totalorder %s42, %s44
    %p51 = scmp.eq.s32.totalorder %s13, 1
    %p52 = por %p50, %p51
    %p53 = scmp.ne.s32.totalorder %s44, %s45
    %p54 = scmp.eq.s32.totalorder %s13, 0
    %p55 = por %p53, %p54
    %p56 = scmp.ne.s32.totalorder %s44, %s45
    %p57 = scmp.eq.s32.totalorder %s14, 1
    %p58 = por %p56, %p57
    %p60 = scmp.ne.s32.totalorder %s45, %s59
    %p61 = scmp.eq.s32.totalorder %s14, 0
    %p62 = por %p60, %p61
    %s63 = ssub.s32 %s8, %s15
    %p64 = scmp.eq.s32.totalorder %s63, 0
    %s66 = sadd.s32 %s65, 1
    %s67 = scalar_select %p64, %s65, %s66
    %p70 = pneg %p64
    %p71 = scmp.eq.s32.totalorder %s8, 1
    %p72 = por %p70, %p71
    %p73 = scmp.ne.s32.totalorder %s65, %s68
    %p74 = scmp.eq.s32.totalorder %s8, 0
    %p75 = por %p73, %p74
    %p76 = scmp.ne.s32.totalorder %s65, %s68
    %p77 = scmp.eq.s32.totalorder %s13, 1
    %p78 = por %p76, %p77
    %p79 = scmp.ne.s32.totalorder %s68, %s69
    %p80 = scmp.eq.s32.totalorder %s13, 0
    %p81 = por %p79, %p80
    %p82 = scmp.ne.s32.totalorder %s68, %s69
    %p83 = scmp.eq.s32.totalorder %s14, 1
    %p84 = por %p82, %p83
    %p86 = scmp.ne.s32.totalorder %s69, %s85
    %p87 = scmp.eq.s32.totalorder %s14, 0
    %p88 = por %p86, %p87
    %p89 = scmp.le.s32.totalorder 1, %s8
    %p90 = scmp.lt.s32.totalorder %s8, 3
    %p91 = pnand %p89, %p90
    %p92 = pneg %p91
    // Predicated region
    $region9: #{multi_head_gat_forward.2} parent=5 // pred_check
      _
    $region10: #{multi_head_gat_forward.2} parent=5 // pred_check_branch
      %94 = sbr.rel (%p91) target = $region12
    $region11: #{multi_head_gat_forward.2} parent=5 // pred_region
      %s95 = ssub.s32 %s8, 1
      // Predicated region
      $region13: #{multi_head_gat_forward.2} parent=11 // pred_check
        %p96 = pneg %p55
      $region14: #{multi_head_gat_forward.2} parent=11 // pred_check_branch
        %98 = sbr.rel (%p96) target = $region16
      $region15: #{multi_head_gat_forward.2} parent=11 // pred_region
        _
      $region16: #{multi_head_gat_forward.2} parent=11 // pred_fallthru
        _
    $region12: #{multi_head_gat_forward.2} parent=5 // pred_fallthru
      _
    %p99 = scmp.lt.s32.totalorder %s8, 2
    // Predicated region
    $region17: #{multi_head_gat_forward.2} parent=5 // pred_check
      %p100 = pneg %p99
    $region18: #{multi_head_gat_forward.2} parent=5 // pred_check_branch
      %102 = sbr.rel (%p100) target = $region20
    $region19: #{multi_head_gat_forward.2} parent=5 // pred_region
      // Predicated region
      $region21: #{multi_head_gat_forward.2} parent=19 // pred_check
        %p103 = pneg %p28
      $region22: #{multi_head_gat_forward.2} parent=19 // pred_check_branch
        %105 = sbr.rel (%p103) target = $region24
      $region23: #{multi_head_gat_forward.2} parent=19 // pred_region
        %s106 = smul.u32 16, %s8
        %p107 = scmp.lt.s32.totalorder %s106, 31
        %s108 = scalar_select %p107, %s106, 31
        %s109 = smul.addr %s108, 4
        %s110 = scalar_lea.vmem %s0, %s109
        %s111 = smul.u32 16, %s8
      $region24: #{multi_head_gat_forward.2} parent=19 // pred_fallthru
        _
    $region20: #{multi_head_gat_forward.2} parent=5 // pred_fallthru
      _
    %p112 = scmp.le.s32.totalorder 1, %s8
    %p113 = scmp.lt.s32.totalorder %s8, 3
    %p114 = pnand %p112, %p113
    %p115 = pneg %p114
    // Predicated region
    $region25: #{multi_head_gat_forward.2} parent=5 // pred_check
      _
    $region26: #{multi_head_gat_forward.2} parent=5 // pred_check_branch
      %117 = sbr.rel (%p114) target = $region28
    $region27: #{multi_head_gat_forward.2} parent=5 // pred_region
      %s118 = ssub.s32 %s8, 1
      %s119 = smul.u32 16, %s13
      %p120 = scmp.lt.s32.totalorder %s119, 31
      %s121 = scalar_select %p120, %s119, 31
      %s122 = smul.addr %s121, 4
      %s123 = scalar_lea.vmem %s0, %s122
      %p124 = pneg %p34
      %p125 = pneg %p31
      %p126 = pneg %p55
      %p127 = pneg %p52
      %p128 = pneg %p81
      %p129 = pneg %p78
      %s130 = smul.u32 16, %s13
      %p131 = scmp.lt.s32.totalorder %s130, 31
      %s132 = scalar_select %p131, %s130, 31
      %s133 = smul.addr %s132, 4
      %s134 = scalar_lea.vmem %s2, %s133
      %s135 = smul.u32 16, %s13
      %p136 = scmp.lt.s32.totalorder %s135, 31
      %s137 = scalar_select %p136, %s135, 31
      %s138 = smul.addr %s137, 4
      %s139 = scalar_lea.vmem %s0, %s138
      %s140 = smul.u32 16, %s13
      %s141 = smul.u32 16, %s13
      %p142 = scmp.lt.s32.totalorder %s141, 31
      %s143 = scalar_select %p142, %s141, 31
      %s144 = smul.addr %s143, 4
      %s145 = scalar_lea.vmem %s2, %s144
      %s146 = smul.u32 16, %s13
      %v148 = vld [vmem:[%s139] sm:$0xf]
      %v149 = vld [vmem:[%s139 + $0x4] sm:$0xf]
      %v150 = vld [vmem:[%s139 + $0x8] sm:$0xf]
      %v151 = vld [vmem:[%s139 + $0xc] sm:$0xf]
      %v152 = vld [vmem:[%s139 + $0x10] sm:$0xf]
      %v153 = vld [vmem:[%s139 + $0x14] sm:$0xf]
      %v154 = vld [vmem:[%s139 + $0x18] sm:$0xf]
      %v155 = vld [vmem:[%s139 + $0x1c] sm:$0xf]
      %v156 = vld [vmem:[%s139 + $0x20] sm:$0xf]
      %v157 = vld [vmem:[%s139 + $0x24] sm:$0xf]
      %v158 = vld [vmem:[%s139 + $0x28] sm:$0xf]
      %v159 = vld [vmem:[%s139 + $0x2c] sm:$0xf]
      %v160 = vld [vmem:[%s139 + $0x30] sm:$0xf]
      %v161 = vld [vmem:[%s139 + $0x34] sm:$0xf]
      %v162 = vld [vmem:[%s139 + $0x38] sm:$0xf]
      %v163 = vld [vmem:[%s139 + $0x3c] sm:$0xf]
      %v164 = vld [vmem:[%s1] sm:$0xf]
      %v165 = vld [vmem:[%s1 + $0x4] sm:$0xf]
      %v166 = vld [vmem:[%s1 + $0x8] sm:$0xf]
      %v167 = vld [vmem:[%s1 + $0xc] sm:$0xf]
      %v184 = vunpack.c.l.b16 %v148
      %v185 = vunpack.c.l.b16 %v149
      %v186 = vunpack.c.l.b16 %v150
      %v187 = vunpack.c.l.b16 %v151
      %v188 = vunpack.c.l.b16 %v152
      %v189 = vunpack.c.l.b16 %v153
      %v190 = vunpack.c.l.b16 %v154
      %v191 = vunpack.c.l.b16 %v155
      %v192 = vunpack.c.l.b16 %v156
      %v193 = vunpack.c.l.b16 %v157
      %v194 = vunpack.c.l.b16 %v158
      %v195 = vunpack.c.l.b16 %v159
      %v196 = vunpack.c.l.b16 %v160
      %v197 = vunpack.c.l.b16 %v161
      %v198 = vunpack.c.l.b16 %v162
      %v199 = vunpack.c.l.b16 %v163
      %v200 = vpack.c.b16 %v185, %v184
      %v201 = vpack.c.b16 %v187, %v186
      %v202 = vpack.c.b16 %v189, %v188
      %v203 = vpack.c.b16 %v191, %v190
      %v204 = vpack.c.b16 %v193, %v192
      %v205 = vpack.c.b16 %v195, %v194
      %v206 = vpack.c.b16 %v197, %v196
      %v207 = vpack.c.b16 %v199, %v198
      %v212 = vunpack.c.l.b16 %v164
      %v213 = vunpack.c.l.b16 %v165
      %v214 = vunpack.c.l.b16 %v166
      %v215 = vunpack.c.l.b16 %v167
      %v216 = vpack.c.b16 %v213, %v212
      %v217 = vpack.c.b16 %v215, %v214
      %vm220 = vcmask 261120
      %v222 = vsel %vm220, %v200, 0
      %v225 = vsel %vm220, %v201, 0
      %v228 = vsel %vm220, %v202, 0
      %v231 = vsel %vm220, %v203, 0
      %v234 = vsel %vm220, %v204, 0
      %v237 = vsel %vm220, %v205, 0
      %v240 = vsel %vm220, %v206, 0
      %v243 = vsel %vm220, %v207, 0
      %245 = vmatpush.bf16.msra.mxu0 0
      %246 = vmatpush.bf16.msra.mxu0 0
      %247 = vmatpush.bf16.msra.mxu0 0
      %248 = vmatpush.bf16.msra.mxu0 0
      %249 = vmatpush.bf16.msra.mxu0 0
      %250 = vmatpush.bf16.msra.mxu0 0
      %251 = vmatpush.bf16.msra.mxu0 %v217
      %252 = vmatpush.bf16.msra.mxu0 %v216
      %253 = vmatmul.bf16.gmra.mxu0 %v222
      %v254 = vpop.f32.mrf.mxu0
      %v255 = vadd.f32 0.0, %v254
      %v256 = vpop.f32.mrf.mxu0
      %v257 = vadd.f32 0.0, %v256
      %258 = vmatmul.bf16.gmra.mxu0 %v225
      %v259 = vpop.f32.mrf.mxu0
      %v260 = vadd.f32 0.0, %v259
      %v261 = vpop.f32.mrf.mxu0
      %v262 = vadd.f32 0.0, %v261
      %263 = vmatmul.bf16.gmra.mxu0 %v228
      %v264 = vpop.f32.mrf.mxu0
      %v265 = vadd.f32 0.0, %v264
      %v266 = vpop.f32.mrf.mxu0
      %v267 = vadd.f32 0.0, %v266
      %268 = vmatmul.bf16.gmra.mxu0 %v231
      %v269 = vpop.f32.mrf.mxu0
      %v270 = vadd.f32 0.0, %v269
      %v271 = vpop.f32.mrf.mxu0
      %v272 = vadd.f32 0.0, %v271
      %273 = vmatmul.bf16.gmra.mxu0 %v234
      %v274 = vpop.f32.mrf.mxu0
      %v275 = vadd.f32 0.0, %v274
      %v276 = vpop.f32.mrf.mxu0
      %v277 = vadd.f32 0.0, %v276
      %278 = vmatmul.bf16.gmra.mxu0 %v237
      %v279 = vpop.f32.mrf.mxu0
      %v280 = vadd.f32 0.0, %v279
      %v281 = vpop.f32.mrf.mxu0
      %v282 = vadd.f32 0.0, %v281
      %283 = vmatmul.bf16.gmra.mxu0 %v240
      %v284 = vpop.f32.mrf.mxu0
      %v285 = vadd.f32 0.0, %v284
      %v286 = vpop.f32.mrf.mxu0
      %v287 = vadd.f32 0.0, %v286
      %288 = vmatmul.bf16.gmra.mxu0 %v243
      %v289 = vpop.f32.mrf.mxu0
      %v290 = vadd.f32 0.0, %v289
      %v291 = vpop.f32.mrf.mxu0
      %v292 = vadd.f32 0.0, %v291
      %293 = vdwg.mxu0
      %v294 = vpack.c.bf16 %v255, %v255
      %v295 = vpack.c.bf16 %v257, %v257
      %v296 = vpack.c.bf16 %v260, %v260
      %v297 = vpack.c.bf16 %v262, %v262
      %v298 = vpack.c.bf16 %v265, %v265
      %v299 = vpack.c.bf16 %v267, %v267
      %v300 = vpack.c.bf16 %v270, %v270
      %v301 = vpack.c.bf16 %v272, %v272
      %v302 = vpack.c.bf16 %v275, %v275
      %v303 = vpack.c.bf16 %v277, %v277
      %v304 = vpack.c.bf16 %v280, %v280
      %v305 = vpack.c.bf16 %v282, %v282
      %v306 = vpack.c.bf16 %v285, %v285
      %v307 = vpack.c.bf16 %v287, %v287
      %v308 = vpack.c.bf16 %v290, %v290
      %v309 = vpack.c.bf16 %v292, %v292
      %310 = vst [vmem:[%s145] sm:$0xf] %v294
      %311 = vst [vmem:[%s145 + $0x4] sm:$0xf] %v295
      %312 = vst [vmem:[%s145 + $0x8] sm:$0xf] %v296
      %313 = vst [vmem:[%s145 + $0xc] sm:$0xf] %v297
      %314 = vst [vmem:[%s145 + $0x10] sm:$0xf] %v298
      %315 = vst [vmem:[%s145 + $0x14] sm:$0xf] %v299
      %316 = vst [vmem:[%s145 + $0x18] sm:$0xf] %v300
      %317 = vst [vmem:[%s145 + $0x1c] sm:$0xf] %v301
      %318 = vst [vmem:[%s145 + $0x20] sm:$0xf] %v302
      %319 = vst [vmem:[%s145 + $0x24] sm:$0xf] %v303
      %320 = vst [vmem:[%s145 + $0x28] sm:$0xf] %v304
      %321 = vst [vmem:[%s145 + $0x2c] sm:$0xf] %v305
      %322 = vst [vmem:[%s145 + $0x30] sm:$0xf] %v306
      %323 = vst [vmem:[%s145 + $0x34] sm:$0xf] %v307
      %324 = vst [vmem:[%s145 + $0x38] sm:$0xf] %v308
      %325 = vst [vmem:[%s145 + $0x3c] sm:$0xf] %v309
      %s326 = smul.u32 16, %s13
      %p327 = scmp.lt.s32.totalorder %s326, 31
      %s328 = scalar_select %p327, %s326, 31
      %s329 = smul.addr %s328, 4
      %s330 = scalar_lea.vmem %s2, %s329
      // Predicated region
      $region29: #{multi_head_gat_forward.2} parent=27 // pred_check
        %p331 = pneg %p78
      $region30: #{multi_head_gat_forward.2} parent=27 // pred_check_branch
        %333 = sbr.rel (%p331) target = $region32
      $region31: #{multi_head_gat_forward.2} parent=27 // pred_region
        %s334 = smul.u32 16, %s13
      $region32: #{multi_head_gat_forward.2} parent=27 // pred_fallthru
        _
    $region28: #{multi_head_gat_forward.2} parent=5 // pred_fallthru
      _
    %p335 = scmp.le.s32.totalorder 2, %s8
    // Predicated region
    $region33: #{multi_head_gat_forward.2} parent=5 // pred_check
      %p336 = pneg %p335
    $region34: #{multi_head_gat_forward.2} parent=5 // pred_check_branch
      %338 = sbr.rel (%p336) target = $region36
    $region35: #{multi_head_gat_forward.2} parent=5 // pred_region
      %s339 = ssub.s32 %s8, 2
      // Predicated region
      $region37: #{multi_head_gat_forward.2} parent=35 // pred_check
        %p340 = pneg %p84
      $region38: #{multi_head_gat_forward.2} parent=35 // pred_check_branch
        %342 = sbr.rel (%p340) target = $region40
      $region39: #{multi_head_gat_forward.2} parent=35 // pred_region
        %s343 = smul.u32 16, %s14
        %p344 = scmp.lt.s32.totalorder %s343, 31
        %s345 = scalar_select %p344, %s343, 31
        %s346 = smul.addr %s345, 4
        %s347 = scalar_lea.vmem %s2, %s346
      $region40: #{multi_head_gat_forward.2} parent=35 // pred_fallthru
        _
    $region36: #{multi_head_gat_forward.2} parent=5 // pred_fallthru
      _
  $region6: #{multi_head_gat_forward.2} parent=0 // loop_footer
    %s12 = sadd.s32 1, %s8
  $region7: #{multi_head_gat_forward.2} parent=0 // loop_footer_branch
    %7 = sbr.rel target = $region3
  $region8: #{multi_head_gat_forward.2} parent=0 // loop_exit
    _

// kernel: multi_head_gat_forward.3
$region0: #{multi_head_gat_forward.3}
  #allocation0 [shape = 'u32[]', space=smem, size = 0x4, offset = 0x4, fixed_abs, tag = 'smem constant byte address 0x4 - core index']
  #allocation1 [shape = 'u32[72,128]{1,0:T(1,128)}', space=vmem, size = 0x9000, scoped, tag = 'internal scratch']
  %s0 = inlined_call_operand.vmem [shape: f32[256,32], index: 0, kind: input, shape index: {}]
  %s1 = inlined_call_operand.vmem [shape: bf16[32,128], index: 1, kind: input, shape index: {}]
  %s2 = inlined_call_operand.vmem [shape: bf16[256,128], index: 2, kind: input, shape index: {}]
  %s3 = inlined_call_operand.vmem [shape: f32[4,256], index: 3, kind: input, shape index: {}]
  %s4 = inlined_call_operand.vmem [shape: f32[256,4], index: 4, kind: input, shape index: {}]
  %s5 = inlined_call_operand.vmem [shape: s8[256,256], index: 5, kind: input, shape index: {}]
  %s6 = inlined_call_operand.hbm [shape: f32[256,128], index: 6, kind: output, shape index: {}]
  %s7 = sld [smem:[#allocation0]]
  $region57: #{multi_head_gat_forward.3} parent=0
    _
  %s9 = ssub.s32 1, %s7
  %s10 = scalar_select 0, %s9, %s7
  $region1: #{multi_head_gat_forward.3} parent=0
    #allocation2 [shape = 'u8[131072]{0}', space=vmem, size = 0x20000, scoped, tag = 'output window, operand 0']
    #allocation3 [shape = 's32[2]{0}', space=sflag, size = 0x8, scoped, tag = 'scoped memory for multi_head_gat_forward.3']
    %11 = vsyncpa [#allocation3], 0
    %s12 = scalar_lea.sflag [#allocation3], 1
    %13 = vsyncpa %s12, 0
    loop: start=0, step=1, limit=4
    $region2: #{multi_head_gat_forward.3} parent=1 // loop_pre_header
      _
    $region3: #{multi_head_gat_forward.3} parent=1 // loop_header
      %s15 = sphi 0, %s19
      %p16 = scmp.ge.s32.totalorder %s15, 4
      %s25 = sphi 0, %s27
      %s28 = sphi 0, %s25
      %s29 = sphi 0, %s28
      %s45 = sphi 0, %s29
      %s49 = sphi 0, %s49
      %s51 = sphi 0, %s49
      %s52 = sphi 0, %s51
      %s66 = sphi 0, %s52
      %s70 = sphi 0, %s70
      %s72 = sphi 0, %s70
      %s73 = sphi 0, %s72
      %s87 = sphi 0, %s73
      %s91 = sphi 0, %s91
      %s93 = sphi 0, %s91
      %s94 = sphi 0, %s93
      %s108 = sphi 0, %s94
      %s114 = sphi 0, %s116
      %s117 = sphi 0, %s114
      %s118 = sphi 0, %s117
      %s134 = sphi 0, %s118
      %s140 = sphi 0, %s142
      %s143 = sphi 0, %s140
      %s144 = sphi 0, %s143
      %s160 = sphi 0, %s144
      %s166 = sphi 0, %s168
      %s169 = sphi 0, %s166
      %s170 = sphi 0, %s169
      %s186 = sphi 0, %s170
    $region4: #{multi_head_gat_forward.3} parent=1 // loop_header_branch
      %18 = sbr.rel (%p16) target = $region8
    $region5: #{multi_head_gat_forward.3} parent=1 // loop_body
      %s20 = ssub.s32 %s15, 1
      %s21 = ssub.s32 %s15, 2
      %s22 = sadd.s32 %s15, 1
      %s23 = ssub.s32 %s15, %s22
      %p24 = scmp.eq.s32.totalorder %s23, 0
      %s26 = sadd.s32 %s25, 1
      %s27 = scalar_select %p24, %s25, %s26
      %p30 = pneg %p24
      %p31 = scmp.eq.s32.totalorder %s15, 1
      %p32 = por %p30, %p31
      %p33 = scmp.ne.s32.totalorder %s25, %s28
      %p34 = scmp.eq.s32.totalorder %s15, 0
      %p35 = por %p33, %p34
      %p36 = scmp.ne.s32.totalorder %s25, %s28
      %p37 = scmp.eq.s32.totalorder %s20, 1
      %p38 = por %p36, %p37
      %p39 = scmp.ne.s32.totalorder %s28, %s29
      %p40 = scmp.eq.s32.totalorder %s20, 0
      %p41 = por %p39, %p40
      %p42 = scmp.ne.s32.totalorder %s28, %s29
      %p43 = scmp.eq.s32.totalorder %s21, 1
      %p44 = por %p42, %p43
      %p46 = scmp.ne.s32.totalorder %s29, %s45
      %p47 = scmp.eq.s32.totalorder %s21, 0
      %p48 = por %p46, %p47
      %s50 = sadd.s32 %s49, 1
      %p53 = scmp.eq.s32.totalorder %s15, 1
      %p54 = scmp.ne.s32.totalorder %s49, %s51
      %p55 = scmp.eq.s32.totalorder %s15, 0
      %p56 = por %p54, %p55
      %p57 = scmp.ne.s32.totalorder %s49, %s51
      %p58 = scmp.eq.s32.totalorder %s20, 1
      %p59 = por %p57, %p58
      %p60 = scmp.ne.s32.totalorder %s51, %s52
      %p61 = scmp.eq.s32.totalorder %s20, 0
      %p62 = por %p60, %p61
      %p63 = scmp.ne.s32.totalorder %s51, %s52
      %p64 = scmp.eq.s32.totalorder %s21, 1
      %p65 = por %p63, %p64
      %p67 = scmp.ne.s32.totalorder %s52, %s66
      %p68 = scmp.eq.s32.totalorder %s21, 0
      %p69 = por %p67, %p68
      %s71 = sadd.s32 %s70, 1
      %p74 = scmp.eq.s32.totalorder %s15, 1
      %p75 = scmp.ne.s32.totalorder %s70, %s72
      %p76 = scmp.eq.s32.totalorder %s15, 0
      %p77 = por %p75, %p76
      %p78 = scmp.ne.s32.totalorder %s70, %s72
      %p79 = scmp.eq.s32.totalorder %s20, 1
      %p80 = por %p78, %p79
      %p81 = scmp.ne.s32.totalorder %s72, %s73
      %p82 = scmp.eq.s32.totalorder %s20, 0
      %p83 = por %p81, %p82
      %p84 = scmp.ne.s32.totalorder %s72, %s73
      %p85 = scmp.eq.s32.totalorder %s21, 1
      %p86 = por %p84, %p85
      %p88 = scmp.ne.s32.totalorder %s73, %s87
      %p89 = scmp.eq.s32.totalorder %s21, 0
      %p90 = por %p88, %p89
      %s92 = sadd.s32 %s91, 1
      %p95 = scmp.eq.s32.totalorder %s15, 1
      %p96 = scmp.ne.s32.totalorder %s91, %s93
      %p97 = scmp.eq.s32.totalorder %s15, 0
      %p98 = por %p96, %p97
      %p99 = scmp.ne.s32.totalorder %s91, %s93
      %p100 = scmp.eq.s32.totalorder %s20, 1
      %p101 = por %p99, %p100
      %p102 = scmp.ne.s32.totalorder %s93, %s94
      %p103 = scmp.eq.s32.totalorder %s20, 0
      %p104 = por %p102, %p103
      %p105 = scmp.ne.s32.totalorder %s93, %s94
      %p106 = scmp.eq.s32.totalorder %s21, 1
      %p107 = por %p105, %p106
      %p109 = scmp.ne.s32.totalorder %s94, %s108
      %p110 = scmp.eq.s32.totalorder %s21, 0
      %p111 = por %p109, %p110
      %s112 = ssub.s32 %s15, %s22
      %p113 = scmp.eq.s32.totalorder %s112, 0
      %s115 = sadd.s32 %s114, 1
      %s116 = scalar_select %p113, %s114, %s115
      %p119 = pneg %p113
      %p120 = scmp.eq.s32.totalorder %s15, 1
      %p121 = por %p119, %p120
      %p122 = scmp.ne.s32.totalorder %s114, %s117
      %p123 = scmp.eq.s32.totalorder %s15, 0
      %p124 = por %p122, %p123
      %p125 = scmp.ne.s32.totalorder %s114, %s117
      %p126 = scmp.eq.s32.totalorder %s20, 1
      %p127 = por %p125, %p126
      %p128 = scmp.ne.s32.totalorder %s117, %s118
      %p129 = scmp.eq.s32.totalorder %s20, 0
      %p130 = por %p128, %p129
      %p131 = scmp.ne.s32.totalorder %s117, %s118
      %p132 = scmp.eq.s32.totalorder %s21, 1
      %p133 = por %p131, %p132
      %p135 = scmp.ne.s32.totalorder %s118, %s134
      %p136 = scmp.eq.s32.totalorder %s21, 0
      %p137 = por %p135, %p136
      %s138 = ssub.s32 %s15, %s22
      %p139 = scmp.eq.s32.totalorder %s138, 0
      %s141 = sadd.s32 %s140, 1
      %s142 = scalar_select %p139, %s140, %s141
      %p145 = pneg %p139
      %p146 = scmp.eq.s32.totalorder %s15, 1
      %p147 = por %p145, %p146
      %p148 = scmp.ne.s32.totalorder %s140, %s143
      %p149 = scmp.eq.s32.totalorder %s15, 0
      %p150 = por %p148, %p149
      %p151 = scmp.ne.s32.totalorder %s140, %s143
      %p152 = scmp.eq.s32.totalorder %s20, 1
      %p153 = por %p151, %p152
      %p154 = scmp.ne.s32.totalorder %s143, %s144
      %p155 = scmp.eq.s32.totalorder %s20, 0
      %p156 = por %p154, %p155
      %p157 = scmp.ne.s32.totalorder %s143, %s144
      %p158 = scmp.eq.s32.totalorder %s21, 1
      %p159 = por %p157, %p158
      %p161 = scmp.ne.s32.totalorder %s144, %s160
      %p162 = scmp.eq.s32.totalorder %s21, 0
      %p163 = por %p161, %p162
      %s164 = ssub.s32 %s15, %s22
      %p165 = scmp.eq.s32.totalorder %s164, 0
      %s167 = sadd.s32 %s166, 1
      %s168 = scalar_select %p165, %s166, %s167
      %p171 = pneg %p165
      %p172 = scmp.eq.s32.totalorder %s15, 1
      %p173 = por %p171, %p172
      %p174 = scmp.ne.s32.totalorder %s166, %s169
      %p175 = scmp.eq.s32.totalorder %s15, 0
      %p176 = por %p174, %p175
      %p177 = scmp.ne.s32.totalorder %s166, %s169
      %p178 = scmp.eq.s32.totalorder %s20, 1
      %p179 = por %p177, %p178
      %p180 = scmp.ne.s32.totalorder %s169, %s170
      %p181 = scmp.eq.s32.totalorder %s20, 0
      %p182 = por %p180, %p181
      %p183 = scmp.ne.s32.totalorder %s169, %s170
      %p184 = scmp.eq.s32.totalorder %s21, 1
      %p185 = por %p183, %p184
      %p187 = scmp.ne.s32.totalorder %s170, %s186
      %p188 = scmp.eq.s32.totalorder %s21, 0
      %p189 = por %p187, %p188
      %p190 = scmp.le.s32.totalorder 1, %s15
      %p191 = scmp.lt.s32.totalorder %s15, 3
      %p192 = pnand %p190, %p191
      %p193 = pneg %p192
      // Predicated region
      $region9: #{multi_head_gat_forward.3} parent=5 // pred_check
        _
      $region10: #{multi_head_gat_forward.3} parent=5 // pred_check_branch
        %195 = sbr.rel (%p192) target = $region12
      $region11: #{multi_head_gat_forward.3} parent=5 // pred_region
        %s196 = ssub.s32 %s15, 1
        // Predicated region
        $region13: #{multi_head_gat_forward.3} parent=11 // pred_check
          %p197 = pneg %p62
        $region14: #{multi_head_gat_forward.3} parent=11 // pred_check_branch
          %199 = sbr.rel (%p197) target = $region16
        $region15: #{multi_head_gat_forward.3} parent=11 // pred_region
          _
        $region16: #{multi_head_gat_forward.3} parent=11 // pred_fallthru
          _
        // Predicated region
        $region17: #{multi_head_gat_forward.3} parent=11 // pred_check
          %p200 = pneg %p83
        $region18: #{multi_head_gat_forward.3} parent=11 // pred_check_branch
          %202 = sbr.rel (%p200) target = $region20
        $region19: #{multi_head_gat_forward.3} parent=11 // pred_region
          _
        $region20: #{multi_head_gat_forward.3} parent=11 // pred_fallthru
          _
        // Predicated region
        $region21: #{multi_head_gat_forward.3} parent=11 // pred_check
          %p203 = pneg %p104
        $region22: #{multi_head_gat_forward.3} parent=11 // pred_check_branch
          %205 = sbr.rel (%p203) target = $region24
        $region23: #{multi_head_gat_forward.3} parent=11 // pred_region
          _
        $region24: #{multi_head_gat_forward.3} parent=11 // pred_fallthru
          _
      $region12: #{multi_head_gat_forward.3} parent=5 // pred_fallthru
        _
      %p206 = scmp.lt.s32.totalorder %s15, 2
      // Predicated region
      $region25: #{multi_head_gat_forward.3} parent=5 // pred_check
        %p207 = pneg %p206
      $region26: #{multi_head_gat_forward.3} parent=5 // pred_check_branch
        %209 = sbr.rel (%p207) target = $region28
      $region27: #{multi_head_gat_forward.3} parent=5 // pred_region
        // Predicated region
        $region29: #{multi_head_gat_forward.3} parent=27 // pred_check
          %p210 = pneg %p35
        $region30: #{multi_head_gat_forward.3} parent=27 // pred_check_branch
          %212 = sbr.rel (%p210) target = $region32
        $region31: #{multi_head_gat_forward.3} parent=27 // pred_region
          %s213 = smul.u32 16, %s15
          %p214 = scmp.lt.s32.totalorder %s213, 31
          %s215 = scalar_select %p214, %s213, 31
          %s216 = smul.addr %s215, 8
          %s217 = scalar_lea.vmem %s0, %s216
          %s218 = smul.u32 16, %s15
        $region32: #{multi_head_gat_forward.3} parent=27 // pred_fallthru
          _
        // Predicated region
        $region33: #{multi_head_gat_forward.3} parent=27 // pred_check
          %p219 = pneg %p124
        $region34: #{multi_head_gat_forward.3} parent=27 // pred_check_branch
          %221 = sbr.rel (%p219) target = $region36
        $region35: #{multi_head_gat_forward.3} parent=27 // pred_region
          %s222 = smul.u32 16, %s15
          %p223 = scmp.lt.s32.totalorder %s222, 31
          %s224 = scalar_select %p223, %s222, 31
          %s225 = smul.addr %s224, 8
          %s226 = scalar_lea.vmem %s4, %s225
          %s227 = smul.u32 16, %s15
        $region36: #{multi_head_gat_forward.3} parent=27 // pred_fallthru
          _
        // Predicated region
        $region37: #{multi_head_gat_forward.3} parent=27 // pred_check
          %p228 = pneg %p150
        $region38: #{multi_head_gat_forward.3} parent=27 // pred_check_branch
          %230 = sbr.rel (%p228) target = $region40
        $region39: #{multi_head_gat_forward.3} parent=27 // pred_region
          %s231 = smul.u32 4, %s15
          %p232 = scmp.lt.s32.totalorder %s231, 7
          %s233 = scalar_select %p232, %s231, 7
          %s234 = smul.addr %s233, 2
          %s235 = smul.addr %s234, 8
          %s236 = scalar_lea.vmem %s5, %s235
          %s237 = smul.u32 4, %s15
        $region40: #{multi_head_gat_forward.3} parent=27 // pred_fallthru
          _
      $region28: #{multi_head_gat_forward.3} parent=5 // pred_fallthru
        _
      %p238 = scmp.le.s32.totalorder 1, %s15
      %p239 = scmp.lt.s32.totalorder %s15, 3
      %p240 = pnand %p238, %p239
      %p241 = pneg %p240
      // Predicated region
      $region41: #{multi_head_gat_forward.3} parent=5 // pred_check
        _
      $region42: #{multi_head_gat_forward.3} parent=5 // pred_check_branch
        %243 = sbr.rel (%p240) target = $region44
      $region43: #{multi_head_gat_forward.3} parent=5 // pred_region
        %s244 = ssub.s32 %s15, 1
        %s245 = smul.u32 16, %s20
        %p246 = scmp.lt.s32.totalorder %s245, 31
        %s247 = scalar_select %p246, %s245, 31
        %s248 = smul.addr %s247, 8
        %s249 = scalar_lea.vmem %s0, %s248
        %p250 = pneg %p41
        %p251 = pneg %p38
        %p252 = pneg %p62
        %p253 = pneg %p59
        %p254 = pneg %p83
        %p255 = pneg %p80
        %p256 = pneg %p104
        %p257 = pneg %p101
        %s258 = smul.u32 16, %s20
        %p259 = scmp.lt.s32.totalorder %s258, 31
        %s260 = scalar_select %p259, %s258, 31
        %s261 = smul.addr %s260, 8
        %s262 = scalar_lea.vmem %s4, %s261
        %p263 = pneg %p130
        %p264 = pneg %p127
        %s265 = smul.u32 4, %s20
        %p266 = scmp.lt.s32.totalorder %s265, 7
        %s267 = scalar_select %p266, %s265, 7
        %s268 = smul.addr %s267, 2
        %s269 = smul.addr %s268, 8
        %s270 = scalar_lea.vmem %s5, %s269
        %p271 = pneg %p156
        %p272 = pneg %p153
        %p273 = pneg %p182
        %p274 = pneg %p179
        %s275 = sand.u32 %s169, 1
        %s276 = scalar_lea.sflag [#allocation3], %s275
        %s277 = sand.u32 %s169, 1
        %s278 = smul.addr %s277, 128
        %s279 = scalar_lea.vmem [#allocation2], %s278
        %s280 = smul.u32 16, %s20
        %p281 = scmp.lt.s32.totalorder %s280, 31
        %s282 = scalar_select %p281, %s280, 31
        %s283 = smul.addr %s282, 8
        %s284 = scalar_lea.vmem %s0, %s283
        %s285 = smul.u32 16, %s20
        %s286 = smul.u32 16, %s20
        %p287 = scmp.lt.s32.totalorder %s286, 31
        %s288 = scalar_select %p287, %s286, 31
        %s289 = smul.addr %s288, 8
        %s290 = scalar_lea.vmem %s4, %s289
        %s291 = smul.u32 16, %s20
        %s292 = smul.u32 4, %s20
        %p293 = scmp.lt.s32.totalorder %s292, 7
        %s294 = scalar_select %p293, %s292, 7
        %s295 = smul.addr %s294, 2
        %s296 = smul.addr %s295, 8
        %s297 = scalar_lea.vmem %s5, %s296
        %s298 = smul.u32 4, %s20
        %s299 = smul.u32 16, %s20
        %v301 = vld [vmem:[%s284] sm:$0xff]
        %v302 = vld [vmem:[%s284 + $0x8] sm:$0xff]
        %v303 = vld [vmem:[%s284 + $0x10] sm:$0xff]
        %v304 = vld [vmem:[%s284 + $0x18] sm:$0xff]
        %v305 = vld [vmem:[%s284 + $0x20] sm:$0xff]
        %v306 = vld [vmem:[%s284 + $0x28] sm:$0xff]
        %v307 = vld [vmem:[%s284 + $0x30] sm:$0xff]
        %v308 = vld [vmem:[%s284 + $0x38] sm:$0xff]
        %v309 = vld [vmem:[%s284 + $0x40] sm:$0xff]
        %v310 = vld [vmem:[%s284 + $0x48] sm:$0xff]
        %v311 = vld [vmem:[%s284 + $0x50] sm:$0xff]
        %v312 = vld [vmem:[%s284 + $0x58] sm:$0xff]
        %v313 = vld [vmem:[%s284 + $0x60] sm:$0xff]
        %v314 = vld [vmem:[%s284 + $0x68] sm:$0xff]
        %v315 = vld [vmem:[%s284 + $0x70] sm:$0xff]
        %v316 = vld [vmem:[%s284 + $0x78] sm:$0xff]
        %v317 = vpack.c.bf16 %v302, %v301
        %v318 = vpack.c.bf16 %v304, %v303
        %v319 = vpack.c.bf16 %v306, %v305
        %v320 = vpack.c.bf16 %v308, %v307
        %v321 = vpack.c.bf16 %v310, %v309
        %v322 = vpack.c.bf16 %v312, %v311
        %v323 = vpack.c.bf16 %v314, %v313
        %v324 = vpack.c.bf16 %v316, %v315
        %v325 = vld [vmem:[%s1] sm:$0xf]
        %v326 = vld [vmem:[%s1 + $0x4] sm:$0xf]
        %v327 = vld [vmem:[%s1 + $0x8] sm:$0xf]
        %v328 = vld [vmem:[%s1 + $0xc] sm:$0xf]
        %v333 = vunpack.c.l.b16 %v325
        %v334 = vunpack.c.l.b16 %v326
        %v335 = vunpack.c.l.b16 %v327
        %v336 = vunpack.c.l.b16 %v328
        %v337 = vpack.c.b16 %v334, %v333
        %v338 = vpack.c.b16 %v336, %v335
        %vm341 = vcmask 261120
        %v343 = vsel %vm341, %v317, 0
        %v346 = vsel %vm341, %v318, 0
        %v349 = vsel %vm341, %v319, 0
        %v352 = vsel %vm341, %v320, 0
        %v355 = vsel %vm341, %v321, 0
        %v358 = vsel %vm341, %v322, 0
        %v361 = vsel %vm341, %v323, 0
        %v364 = vsel %vm341, %v324, 0
        %366 = vmatpush.bf16.msra.mxu0 0
        %367 = vmatpush.bf16.msra.mxu0 0
        %368 = vmatpush.bf16.msra.mxu0 0
        %369 = vmatpush.bf16.msra.mxu0 0
        %370 = vmatpush.bf16.msra.mxu0 0
        %371 = vmatpush.bf16.msra.mxu0 0
        %372 = vmatpush.bf16.msra.mxu0 %v338
        %373 = vmatpush.bf16.msra.mxu0 %v337
        %374 = vmatmul.bf16.gmra.mxu0 %v343
        %v375 = vpop.f32.mrf.mxu0
        %v376 = vadd.f32 0.0, %v375
        %v377 = vpop.f32.mrf.mxu0
        %v378 = vadd.f32 0.0, %v377
        %379 = vmatmul.bf16.gmra.mxu0 %v346
        %v380 = vpop.f32.mrf.mxu0
        %v381 = vadd.f32 0.0, %v380
        %v382 = vpop.f32.mrf.mxu0
        %v383 = vadd.f32 0.0, %v382
        %384 = vmatmul.bf16.gmra.mxu0 %v349
        %v385 = vpop.f32.mrf.mxu0
        %v386 = vadd.f32 0.0, %v385
        %v387 = vpop.f32.mrf.mxu0
        %v388 = vadd.f32 0.0, %v387
        %389 = vmatmul.bf16.gmra.mxu0 %v352
        %v390 = vpop.f32.mrf.mxu0
        %v391 = vadd.f32 0.0, %v390
        %v392 = vpop.f32.mrf.mxu0
        %v393 = vadd.f32 0.0, %v392
        %394 = vmatmul.bf16.gmra.mxu0 %v355
        %v395 = vpop.f32.mrf.mxu0
        %v396 = vadd.f32 0.0, %v395
        %v397 = vpop.f32.mrf.mxu0
        %v398 = vadd.f32 0.0, %v397
        %399 = vmatmul.bf16.gmra.mxu0 %v358
        %v400 = vpop.f32.mrf.mxu0
        %v401 = vadd.f32 0.0, %v400
        %v402 = vpop.f32.mrf.mxu0
        %v403 = vadd.f32 0.0, %v402
        %404 = vmatmul.bf16.gmra.mxu0 %v361
        %v405 = vpop.f32.mrf.mxu0
        %v406 = vadd.f32 0.0, %v405
        %v407 = vpop.f32.mrf.mxu0
        %v408 = vadd.f32 0.0, %v407
        %409 = vmatmul.bf16.gmra.mxu0 %v364
        %v410 = vpop.f32.mrf.mxu0
        %v411 = vadd.f32 0.0, %v410
        %v412 = vpop.f32.mrf.mxu0
        %v413 = vadd.f32 0.0, %v412
        %414 = vdwg.mxu0
        %v415 = vld [vmem:[%s2] sm:$0xf]
        %v416 = vld [vmem:[%s2 + $0x4] sm:$0xf]
        %v417 = vld [vmem:[%s2 + $0x8] sm:$0xf]
        %v418 = vld [vmem:[%s2 + $0xc] sm:$0xf]
        %v419 = vld [vmem:[%s2 + $0x10] sm:$0xf]
        %v420 = vld [vmem:[%s2 + $0x14] sm:$0xf]
        %v421 = vld [vmem:[%s2 + $0x18] sm:$0xf]
        %v422 = vld [vmem:[%s2 + $0x1c] sm:$0xf]
        %v423 = vld [vmem:[%s2 + $0x20] sm:$0xf]
        %v424 = vld [vmem:[%s2 + $0x24] sm:$0xf]
        %v425 = vld [vmem:[%s2 + $0x28] sm:$0xf]
        %v426 = vld [vmem:[%s2 + $0x2c] sm:$0xf]
        %v427 = vld [vmem:[%s2 + $0x30] sm:$0xf]
        %v428 = vld [vmem:[%s2 + $0x34] sm:$0xf]
        %v429 = vld [vmem:[%s2 + $0x38] sm:$0xf]
        %v430 = vld [vmem:[%s2 + $0x3c] sm:$0xf]
        %v431 = vld [vmem:[%s2 + $0x40] sm:$0xf]
        %v432 = vld [vmem:[%s2 + $0x44] sm:$0xf]
        %v433 = vld [vmem:[%s2 + $0x48] sm:$0xf]
        %v434 = vld [vmem:[%s2 + $0x4c] sm:$0xf]
        %v435 = vld [vmem:[%s2 + $0x50] sm:$0xf]
        %v436 = vld [vmem:[%s2 + $0x54] sm:$0xf]
        %v437 = vld [vmem:[%s2 + $0x58] sm:$0xf]
        %v438 = vld [vmem:[%s2 + $0x5c] sm:$0xf]
        %v439 = vld [vmem:[%s2 + $0x60] sm:$0xf]
        %v440 = vld [vmem:[%s2 + $0x64] sm:$0xf]
        %v441 = vld [vmem:[%s2 + $0x68] sm:$0xf]
        %v442 = vld [vmem:[%s2 + $0x6c] sm:$0xf]
        %v443 = vld [vmem:[%s2 + $0x70] sm:$0xf]
        %v444 = vld [vmem:[%s2 + $0x74] sm:$0xf]
        %v445 = vld [vmem:[%s2 + $0x78] sm:$0xf]
        %v446 = vld [vmem:[%s2 + $0x7c] sm:$0xf]
        %v447 = vld [vmem:[%s3] sm:$0xff]
        %v448 = vld [vmem:[%s290] sm:$0xff]
        %v449 = vld [vmem:[%s290 + $0x8] sm:$0xff]
        %v450 = vld [vmem:[%s290 + $0x10] sm:$0xff]
        %v451 = vld [vmem:[%s290 + $0x18] sm:$0xff]
        %v452 = vld [vmem:[%s290 + $0x20] sm:$0xff]
        %v453 = vld [vmem:[%s290 + $0x28] sm:$0xff]
        %v454 = vld [vmem:[%s290 + $0x30] sm:$0xff]
        %v455 = vld [vmem:[%s290 + $0x38] sm:$0xff]
        %v456 = vld [vmem:[%s290 + $0x40] sm:$0xff]
        %v457 = vld [vmem:[%s290 + $0x48] sm:$0xff]
        %v458 = vld [vmem:[%s290 + $0x50] sm:$0xff]
        %v459 = vld [vmem:[%s290 + $0x58] sm:$0xff]
        %v460 = vld [vmem:[%s290 + $0x60] sm:$0xff]
        %v461 = vld [vmem:[%s290 + $0x68] sm:$0xff]
        %v462 = vld [vmem:[%s290 + $0x70] sm:$0xff]
        %v463 = vld [vmem:[%s290 + $0x78] sm:$0xff]
        %v464 = vld [vmem:[%s297] sm:$0xff]
        %v465 = vld [vmem:[%s297 + $0x8] sm:$0xff]
        %v466 = vld [vmem:[%s297 + $0x10] sm:$0xff]
        %v467 = vld [vmem:[%s297 + $0x18] sm:$0xff]
        %v468 = vld [vmem:[%s297 + $0x20] sm:$0xff]
        %v469 = vld [vmem:[%s297 + $0x28] sm:$0xff]
        %v470 = vld [vmem:[%s297 + $0x30] sm:$0xff]
        %v471 = vld [vmem:[%s297 + $0x38] sm:$0xff]
        %v472 = vunpack.c.0.s8 %v464
        %v473 = vunpack.c.0.s8 %v465
        %v474 = vunpack.c.1.s8 %v464
        %v475 = vunpack.c.1.s8 %v465
        %v476 = vunpack.c.2.s8 %v464
        %v477 = vunpack.c.2.s8 %v465
        %v478 = vunpack.c.3.s8 %v464
        %v479 = vunpack.c.3.s8 %v465
        %v480 = vunpack.c.0.s8 %v466
        %v481 = vunpack.c.0.s8 %v467
        %v482 = vunpack.c.1.s8 %v466
        %v483 = vunpack.c.1.s8 %v467
        %v484 = vunpack.c.2.s8 %v466
        %v485 = vunpack.c.2.s8 %v467
        %v486 = vunpack.c.3.s8 %v466
        %v487 = vunpack.c.3.s8 %v467
        %v488 = vunpack.c.0.s8 %v468
        %v489 = vunpack.c.0.s8 %v469
        %v490 = vunpack.c.1.s8 %v468
        %v491 = vunpack.c.1.s8 %v469
        %v492 = vunpack.c.2.s8 %v468
        %v493 = vunpack.c.2.s8 %v469
        %v494 = vunpack.c.3.s8 %v468
        %v495 = vunpack.c.3.s8 %v469
        %v496 = vunpack.c.0.s8 %v470
        %v497 = vunpack.c.0.s8 %v471
        %v498 = vunpack.c.1.s8 %v470
        %v499 = vunpack.c.1.s8 %v471
        %v500 = vunpack.c.2.s8 %v470
        %v501 = vunpack.c.2.s8 %v471
        %v502 = vunpack.c.3.s8 %v470
        %v503 = vunpack.c.3.s8 %v471
        %v504 = vcvt.s32.f32 %v472
        %v505 = vcvt.s32.f32 %v473
        %v506 = vcvt.s32.f32 %v474
        %v507 = vcvt.s32.f32 %v475
        %v508 = vcvt.s32.f32 %v476
        %v509 = vcvt.s32.f32 %v477
        %v510 = vcvt.s32.f32 %v478
        %v511 = vcvt.s32.f32 %v479
        %v512 = vcvt.s32.f32 %v480
        %v513 = vcvt.s32.f32 %v481
        %v514 = vcvt.s32.f32 %v482
        %v515 = vcvt.s32.f32 %v483
        %v516 = vcvt.s32.f32 %v484
        %v517 = vcvt.s32.f32 %v485
        %v518 = vcvt.s32.f32 %v486
        %v519 = vcvt.s32.f32 %v487
        %v520 = vcvt.s32.f32 %v488
        %v521 = vcvt.s32.f32 %v489
        %v522 = vcvt.s32.f32 %v490
        %v523 = vcvt.s32.f32 %v491
        %v524 = vcvt.s32.f32 %v492
        %v525 = vcvt.s32.f32 %v493
        %v526 = vcvt.s32.f32 %v494
        %v527 = vcvt.s32.f32 %v495
        %v528 = vcvt.s32.f32 %v496
        %v529 = vcvt.s32.f32 %v497
        %v530 = vcvt.s32.f32 %v498
        %v531 = vcvt.s32.f32 %v499
        %v532 = vcvt.s32.f32 %v500
        %v533 = vcvt.s32.f32 %v501
        %v534 = vcvt.s32.f32 %v502
        %v535 = vcvt.s32.f32 %v503
        %v536 = vmul.f32 %v504, -1e+09
        %v537 = vmul.f32 %v505, -1e+09
        %v538 = vmul.f32 %v506, -1e+09
        %v539 = vmul.f32 %v507, -1e+09
        %v540 = vmul.f32 %v508, -1e+09
        %v541 = vmul.f32 %v509, -1e+09
        %v542 = vmul.f32 %v510, -1e+09
        %v543 = vmul.f32 %v511, -1e+09
        %v544 = vmul.f32 %v512, -1e+09
        %v545 = vmul.f32 %v513, -1e+09
        %v546 = vmul.f32 %v514, -1e+09
        %v547 = vmul.f32 %v515, -1e+09
        %v548 = vmul.f32 %v516, -1e+09
        %v549 = vmul.f32 %v517, -1e+09
        %v550 = vmul.f32 %v518, -1e+09
        %v551 = vmul.f32 %v519, -1e+09
        %v552 = vmul.f32 %v520, -1e+09
        %v553 = vmul.f32 %v521, -1e+09
        %v554 = vmul.f32 %v522, -1e+09
        %v555 = vmul.f32 %v523, -1e+09
        %v556 = vmul.f32 %v524, -1e+09
        %v557 = vmul.f32 %v525, -1e+09
        %v558 = vmul.f32 %v526, -1e+09
        %v559 = vmul.f32 %v527, -1e+09
        %v560 = vmul.f32 %v528, -1e+09
        %v561 = vmul.f32 %v529, -1e+09
        %v562 = vmul.f32 %v530, -1e+09
        %v563 = vmul.f32 %v531, -1e+09
        %v564 = vmul.f32 %v532, -1e+09
        %v565 = vmul.f32 %v533, -1e+09
        %v566 = vmul.f32 %v534, -1e+09
        %v567 = vmul.f32 %v535, -1e+09
        %v569 = vperm.slane %v447, 0
        %v570 = vperm.slane %v447, 4
        %v573 = vperm.slane %v569, 0
        %v574 = vperm.slane %v570, 0
        %576 = vset.pattern.permute.xlu0 0
        %577 = vperm.xlu0 %576, %v448
        %v578 = vpop.permute.xlu0 %577
        %581 = vset.pattern.permute.xlu0 0
        %582 = vperm.xlu0 %581, %v449
        %v583 = vpop.permute.xlu0 %582
        %586 = vset.pattern.permute.xlu0 0
        %587 = vperm.xlu0 %586, %v450
        %v588 = vpop.permute.xlu0 %587
        %591 = vset.pattern.permute.xlu0 0
        %592 = vperm.xlu0 %591, %v451
        %v593 = vpop.permute.xlu0 %592
        %596 = vset.pattern.permute.xlu0 0
        %597 = vperm.xlu0 %596, %v452
        %v598 = vpop.permute.xlu0 %597
        %601 = vset.pattern.permute.xlu0 0
        %602 = vperm.xlu0 %601, %v453
        %v603 = vpop.permute.xlu0 %602
        %606 = vset.pattern.permute.xlu0 0
        %607 = vperm.xlu0 %606, %v454
        %v608 = vpop.permute.xlu0 %607
        %611 = vset.pattern.permute.xlu0 0
        %612 = vperm.xlu0 %611, %v455
        %v613 = vpop.permute.xlu0 %612
        %616 = vset.pattern.permute.xlu0 0
        %617 = vperm.xlu0 %616, %v456
        %v618 = vpop.permute.xlu0 %617
        %621 = vset.pattern.permute.xlu0 0
        %622 = vperm.xlu0 %621, %v457
        %v623 = vpop.permute.xlu0 %622
        %626 = vset.pattern.permute.xlu0 0
        %627 = vperm.xlu0 %626, %v458
        %v628 = vpop.permute.xlu0 %627
        %631 = vset.pattern.permute.xlu0 0
        %632 = vperm.xlu0 %631, %v459
        %v633 = vpop.permute.xlu0 %632
        %636 = vset.pattern.permute.xlu0 0
        %637 = vperm.xlu0 %636, %v460
        %v638 = vpop.permute.xlu0 %637
        %641 = vset.pattern.permute.xlu0 0
        %642 = vperm.xlu0 %641, %v461
        %v643 = vpop.permute.xlu0 %642
        %646 = vset.pattern.permute.xlu0 0
        %647 = vperm.xlu0 %646, %v462
        %v648 = vpop.permute.xlu0 %647
        %651 = vset.pattern.permute.xlu0 0
        %652 = vperm.xlu0 %651, %v463
        %v653 = vpop.permute.xlu0 %652
        %v655 = vadd.f32 %v573, %v578
        %v656 = vadd.f32 %v574, %v578
        %v657 = vadd.f32 %v573, %v583
        %v658 = vadd.f32 %v574, %v583
        %v659 = vadd.f32 %v573, %v588
        %v660 = vadd.f32 %v574, %v588
        %v661 = vadd.f32 %v573, %v593
        %v662 = vadd.f32 %v574, %v593
        %v663 = vadd.f32 %v573, %v598
        %v664 = vadd.f32 %v574, %v598
        %v665 = vadd.f32 %v573, %v603
        %v666 = vadd.f32 %v574, %v603
        %v667 = vadd.f32 %v573, %v608
        %v668 = vadd.f32 %v574, %v608
        %v669 = vadd.f32 %v573, %v613
        %v670 = vadd.f32 %v574, %v613
        %v671 = vadd.f32 %v573, %v618
        %v672 = vadd.f32 %v574, %v618
        %v673 = vadd.f32 %v573, %v623
        %v674 = vadd.f32 %v574, %v623
        %v675 = vadd.f32 %v573, %v628
        %v676 = vadd.f32 %v574, %v628
        %v677 = vadd.f32 %v573, %v633
        %v678 = vadd.f32 %v574, %v633
        %v679 = vadd.f32 %v573, %v638
        %v680 = vadd.f32 %v574, %v638
        %v681 = vadd.f32 %v573, %v643
        %v682 = vadd.f32 %v574, %v643
        %v683 = vadd.f32 %v573, %v648
        %v684 = vadd.f32 %v574, %v648
        %v685 = vadd.f32 %v573, %v653
        %v686 = vadd.f32 %v574, %v653
        %v687 = vmul.f32 %v655, 0.01
        %v688 = vmul.f32 %v656, 0.01
        %v689 = vmul.f32 %v657, 0.01
        %v690 = vmul.f32 %v658, 0.01
        %v691 = vmul.f32 %v659, 0.01
        %v692 = vmul.f32 %v660, 0.01
        %v693 = vmul.f32 %v661, 0.01
        %v694 = vmul.f32 %v662, 0.01
        %v695 = vmul.f32 %v663, 0.01
        %v696 = vmul.f32 %v664, 0.01
        %v697 = vmul.f32 %v665, 0.01
        %v698 = vmul.f32 %v666, 0.01
        %v699 = vmul.f32 %v667, 0.01
        %v700 = vmul.f32 %v668, 0.01
        %v701 = vmul.f32 %v669, 0.01
        %v702 = vmul.f32 %v670, 0.01
        %v703 = vmul.f32 %v671, 0.01
        %v704 = vmul.f32 %v672, 0.01
        %v705 = vmul.f32 %v673, 0.01
        %v706 = vmul.f32 %v674, 0.01
        %v707 = vmul.f32 %v675, 0.01
        %v708 = vmul.f32 %v676, 0.01
        %v709 = vmul.f32 %v677, 0.01
        %v710 = vmul.f32 %v678, 0.01
        %v711 = vmul.f32 %v679, 0.01
        %v712 = vmul.f32 %v680, 0.01
        %v713 = vmul.f32 %v681, 0.01
        %v714 = vmul.f32 %v682, 0.01
        %v715 = vmul.f32 %v683, 0.01
        %v716 = vmul.f32 %v684, 0.01
        %v717 = vmul.f32 %v685, 0.01
        %v718 = vmul.f32 %v686, 0.01
        %v719 = vmax.f32 %v655, %v687
        %v720 = vmax.f32 %v656, %v688
        %v721 = vmax.f32 %v657, %v689
        %v722 = vmax.f32 %v658, %v690
        %v723 = vmax.f32 %v659, %v691
        %v724 = vmax.f32 %v660, %v692
        %v725 = vmax.f32 %v661, %v693
        %v726 = vmax.f32 %v662, %v694
        %v727 = vmax.f32 %v663, %v695
        %v728 = vmax.f32 %v664, %v696
        %v729 = vmax.f32 %v665, %v697
        %v730 = vmax.f32 %v666, %v698
        %v731 = vmax.f32 %v667, %v699
        %v732 = vmax.f32 %v668, %v700
        %v733 = vmax.f32 %v669, %v701
        %v734 = vmax.f32 %v670, %v702
        %v735 = vmax.f32 %v671, %v703
        %v736 = vmax.f32 %v672, %v704
        %v737 = vmax.f32 %v673, %v705
        %v738 = vmax.f32 %v674, %v706
        %v739 = vmax.f32 %v675, %v707
        %v740 = vmax.f32 %v676, %v708
        %v741 = vmax.f32 %v677, %v709
        %v742 = vmax.f32 %v678, %v710
        %v743 = vmax.f32 %v679, %v711
        %v744 = vmax.f32 %v680, %v712
        %v745 = vmax.f32 %v681, %v713
        %v746 = vmax.f32 %v682, %v714
        %v747 = vmax.f32 %v683, %v715
        %v748 = vmax.f32 %v684, %v716
        %v749 = vmax.f32 %v685, %v717
        %v750 = vmax.f32 %v686, %v718
        %v751 = vadd.f32 %v719, %v536
        %v752 = vadd.f32 %v720, %v537
        %v753 = vadd.f32 %v721, %v538
        %v754 = vadd.f32 %v722, %v539
        %v755 = vadd.f32 %v723, %v540
        %v756 = vadd.f32 %v724, %v541
        %v757 = vadd.f32 %v725, %v542
        %v758 = vadd.f32 %v726, %v543
        %v759 = vadd.f32 %v727, %v544
        %v760 = vadd.f32 %v728, %v545
        %v761 = vadd.f32 %v729, %v546
        %v762 = vadd.f32 %v730, %v547
        %v763 = vadd.f32 %v731, %v548
        %v764 = vadd.f32 %v732, %v549
        %v765 = vadd.f32 %v733, %v550
        %v766 = vadd.f32 %v734, %v551
        %v767 = vadd.f32 %v735, %v552
        %v768 = vadd.f32 %v736, %v553
        %v769 = vadd.f32 %v737, %v554
        %v770 = vadd.f32 %v738, %v555
        %v771 = vadd.f32 %v739, %v556
        %v772 = vadd.f32 %v740, %v557
        %v773 = vadd.f32 %v741, %v558
        %v774 = vadd.f32 %v742, %v559
        %v775 = vadd.f32 %v743, %v560
        %v776 = vadd.f32 %v744, %v561
        %v777 = vadd.f32 %v745, %v562
        %v778 = vadd.f32 %v746, %v563
        %v779 = vadd.f32 %v747, %v564
        %v780 = vadd.f32 %v748, %v565
        %v781 = vadd.f32 %v749, %v566
        %v782 = vadd.f32 %v750, %v567
        %v783 = vmax.f32 %v751, %v752
        %784 = vmax.xlane.f32.xlu0 %v783
        %v785 = vpop.xlane.xlu0 %784
        %v786 = vmax.f32 %v753, %v754
        %787 = vmax.xlane.f32.xlu0 %v786
        %v788 = vpop.xlane.xlu0 %787
        %v789 = vmax.f32 %v755, %v756
        %790 = vmax.xlane.f32.xlu0 %v789
        %v791 = vpop.xlane.xlu0 %790
        %v792 = vmax.f32 %v757, %v758
        %793 = vmax.xlane.f32.xlu0 %v792
        %v794 = vpop.xlane.xlu0 %793
        %v795 = vmax.f32 %v759, %v760
        %796 = vmax.xlane.f32.xlu0 %v795
        %v797 = vpop.xlane.xlu0 %796
        %v798 = vmax.f32 %v761, %v762
        %799 = vmax.xlane.f32.xlu0 %v798
        %v800 = vpop.xlane.xlu0 %799
        %v801 = vmax.f32 %v763, %v764
        %802 = vmax.xlane.f32.xlu0 %v801
        %v803 = vpop.xlane.xlu0 %802
        %v804 = vmax.f32 %v765, %v766
        %805 = vmax.xlane.f32.xlu0 %v804
        %v806 = vpop.xlane.xlu0 %805
        %v807 = vmax.f32 %v767, %v768
        %808 = vmax.xlane.f32.xlu0 %v807
        %v809 = vpop.xlane.xlu0 %808
        %v810 = vmax.f32 %v769, %v770
        %811 = vmax.xlane.f32.xlu0 %v810
        %v812 = vpop.xlane.xlu0 %811
        %v813 = vmax.f32 %v771, %v772
        %814 = vmax.xlane.f32.xlu0 %v813
        %v815 = vpop.xlane.xlu0 %814
        %v816 = vmax.f32 %v773, %v774
        %817 = vmax.xlane.f32.xlu0 %v816
        %v818 = vpop.xlane.xlu0 %817
        %v819 = vmax.f32 %v775, %v776
        %820 = vmax.xlane.f32.xlu0 %v819
        %v821 = vpop.xlane.xlu0 %820
        %v822 = vmax.f32 %v777, %v778
        %823 = vmax.xlane.f32.xlu0 %v822
        %v824 = vpop.xlane.xlu0 %823
        %v825 = vmax.f32 %v779, %v780
        %826 = vmax.xlane.f32.xlu0 %v825
        %v827 = vpop.xlane.xlu0 %826
        %v828 = vmax.f32 %v781, %v782
        %829 = vmax.xlane.f32.xlu0 %v828
        %v830 = vpop.xlane.xlu0 %829
        %v831 = vsub.f32 %v751, %v785
        %v832 = vsub.f32 %v752, %v785
        %v833 = vsub.f32 %v753, %v788
        %v834 = vsub.f32 %v754, %v788
        %v835 = vsub.f32 %v755, %v791
        %v836 = vsub.f32 %v756, %v791
        %v837 = vsub.f32 %v757, %v794
        %v838 = vsub.f32 %v758, %v794
        %v839 = vsub.f32 %v759, %v797
        %v840 = vsub.f32 %v760, %v797
        %v841 = vsub.f32 %v761, %v800
        %v842 = vsub.f32 %v762, %v800
        %v843 = vsub.f32 %v763, %v803
        %v844 = vsub.f32 %v764, %v803
        %v845 = vsub.f32 %v765, %v806
        %v846 = vsub.f32 %v766, %v806
        %v847 = vsub.f32 %v767, %v809
        %v848 = vsub.f32 %v768, %v809
        %v849 = vsub.f32 %v769, %v812
        %v850 = vsub.f32 %v770, %v812
        %v851 = vsub.f32 %v771, %v815
        %v852 = vsub.f32 %v772, %v815
        %v853 = vsub.f32 %v773, %v818
        %v854 = vsub.f32 %v774, %v818
        %v855 = vsub.f32 %v775, %v821
        %v856 = vsub.f32 %v776, %v821
        %v857 = vsub.f32 %v777, %v824
        %v858 = vsub.f32 %v778, %v824
        %v859 = vsub.f32 %v779, %v827
        %v860 = vsub.f32 %v780, %v827
        %v861 = vsub.f32 %v781, %v830
        %v862 = vsub.f32 %v782, %v830
        %v863 = vpack.c.bf16 %v832, %v831
        %v864 = vpack.c.bf16 %v834, %v833
        %v865 = vpack.c.bf16 %v836, %v835
        %v866 = vpack.c.bf16 %v838, %v837
        %v867 = vpack.c.bf16 %v840, %v839
        %v868 = vpack.c.bf16 %v842, %v841
        %v869 = vpack.c.bf16 %v844, %v843
        %v870 = vpack.c.bf16 %v846, %v845
        %v871 = vpack.c.bf16 %v848, %v847
        %v872 = vpack.c.bf16 %v850, %v849
        %v873 = vpack.c.bf16 %v852, %v851
        %v874 = vpack.c.bf16 %v854, %v853
        %v875 = vpack.c.bf16 %v856, %v855
        %v876 = vpack.c.bf16 %v858, %v857
        %v877 = vpack.c.bf16 %v860, %v859
        %v878 = vpack.c.bf16 %v862, %v861
        %v879 = vunpack.c.l.bf16 %v863
        %v880 = vunpack.c.h.bf16 %v863
        %v881 = vunpack.c.l.bf16 %v864
        %v882 = vunpack.c.h.bf16 %v864
        %v883 = vunpack.c.l.bf16 %v865
        %v884 = vunpack.c.h.bf16 %v865
        %v885 = vunpack.c.l.bf16 %v866
        %v886 = vunpack.c.h.bf16 %v866
        %v887 = vunpack.c.l.bf16 %v867
        %v888 = vunpack.c.h.bf16 %v867
        %v889 = vunpack.c.l.bf16 %v868
        %v890 = vunpack.c.h.bf16 %v868
        %v891 = vunpack.c.l.bf16 %v869
        %v892 = vunpack.c.h.bf16 %v869
        %v893 = vunpack.c.l.bf16 %v870
        %v894 = vunpack.c.h.bf16 %v870
        %v895 = vunpack.c.l.bf16 %v871
        %v896 = vunpack.c.h.bf16 %v871
        %v897 = vunpack.c.l.bf16 %v872
        %v898 = vunpack.c.h.bf16 %v872
        %v899 = vunpack.c.l.bf16 %v873
        %v900 = vunpack.c.h.bf16 %v873
        %v901 = vunpack.c.l.bf16 %v874
        %v902 = vunpack.c.h.bf16 %v874
        %v903 = vunpack.c.l.bf16 %v875
        %v904 = vunpack.c.h.bf16 %v875
        %v905 = vunpack.c.l.bf16 %v876
        %v906 = vunpack.c.h.bf16 %v876
        %v907 = vunpack.c.l.bf16 %v877
        %v908 = vunpack.c.h.bf16 %v877
        %v909 = vunpack.c.l.bf16 %v878
        %v910 = vunpack.c.h.bf16 %v878
        %v911 = vmul.f32 %v879, 1.442695
        %v912 = vpow.pop %v911
        %v913 = vmul.f32 %v880, 1.442695
        %v914 = vpow.pop %v913
        %v915 = vmul.f32 %v881, 1.442695
        %v916 = vpow.pop %v915
        %v917 = vmul.f32 %v882, 1.442695
        %v918 = vpow.pop %v917
        %v919 = vmul.f32 %v883, 1.442695
        %v920 = vpow.pop %v919
        %v921 = vmul.f32 %v884, 1.442695
        %v922 = vpow.pop %v921
        %v923 = vmul.f32 %v885, 1.442695
        %v924 = vpow.pop %v923
        %v925 = vmul.f32 %v886, 1.442695
        %v926 = vpow.pop %v925
        %v927 = vmul.f32 %v887, 1.442695
        %v928 = vpow.pop %v927
        %v929 = vmul.f32 %v888, 1.442695
        %v930 = vpow.pop %v929
        %v931 = vmul.f32 %v889, 1.442695
        %v932 = vpow.pop %v931
        %v933 = vmul.f32 %v890, 1.442695
        %v934 = vpow.pop %v933
        %v935 = vmul.f32 %v891, 1.442695
        %v936 = vpow.pop %v935
        %v937 = vmul.f32 %v892, 1.442695
        %v938 = vpow.pop %v937
        %v939 = vmul.f32 %v893, 1.442695
        %v940 = vpow.pop %v939
        %v941 = vmul.f32 %v894, 1.442695
        %v942 = vpow.pop %v941
        %v943 = vmul.f32 %v895, 1.442695
        %v944 = vpow.pop %v943
        %v945 = vmul.f32 %v896, 1.442695
        %v946 = vpow.pop %v945
        %v947 = vmul.f32 %v897, 1.442695
        %v948 = vpow.pop %v947
        %v949 = vmul.f32 %v898, 1.442695
        %v950 = vpow.pop %v949
        %v951 = vmul.f32 %v899, 1.442695
        %v952 = vpow.pop %v951
        %v953 = vmul.f32 %v900, 1.442695
        %v954 = vpow.pop %v953
        %v955 = vmul.f32 %v901, 1.442695
        %v956 = vpow.pop %v955
        %v957 = vmul.f32 %v902, 1.442695
        %v958 = vpow.pop %v957
        %v959 = vmul.f32 %v903, 1.442695
        %v960 = vpow.pop %v959
        %v961 = vmul.f32 %v904, 1.442695
        %v962 = vpow.pop %v961
        %v963 = vmul.f32 %v905, 1.442695
        %v964 = vpow.pop %v963
        %v965 = vmul.f32 %v906, 1.442695
        %v966 = vpow.pop %v965
        %v967 = vmul.f32 %v907, 1.442695
        %v968 = vpow.pop %v967
        %v969 = vmul.f32 %v908, 1.442695
        %v970 = vpow.pop %v969
        %v971 = vmul.f32 %v909, 1.442695
        %v972 = vpow.pop %v971
        %v973 = vmul.f32 %v910, 1.442695
        %v974 = vpow.pop %v973
        %v975 = vpack.c.bf16 %v914, %v912
        %v976 = vpack.c.bf16 %v918, %v916
        %v977 = vpack.c.bf16 %v922, %v920
        %v978 = vpack.c.bf16 %v926, %v924
        %v979 = vpack.c.bf16 %v930, %v928
        %v980 = vpack.c.bf16 %v934, %v932
        %v981 = vpack.c.bf16 %v938, %v936
        %v982 = vpack.c.bf16 %v942, %v940
        %v983 = vpack.c.bf16 %v946, %v944
        %v984 = vpack.c.bf16 %v950, %v948
        %v985 = vpack.c.bf16 %v954, %v952
        %v986 = vpack.c.bf16 %v958, %v956
        %v987 = vpack.c.bf16 %v962, %v960
        %v988 = vpack.c.bf16 %v966, %v964
        %v989 = vpack.c.bf16 %v970, %v968
        %v990 = vpack.c.bf16 %v974, %v972
        %v991 = vunpack.c.l.bf16 %v975
        %v992 = vunpack.c.h.bf16 %v975
        %v993 = vunpack.c.l.bf16 %v976
        %v994 = vunpack.c.h.bf16 %v976
        %v995 = vunpack.c.l.bf16 %v977
        %v996 = vunpack.c.h.bf16 %v977
        %v997 = vunpack.c.l.bf16 %v978
        %v998 = vunpack.c.h.bf16 %v978
        %v999 = vunpack.c.l.bf16 %v979
        %v1000 = vunpack.c.h.bf16 %v979
        %v1001 = vunpack.c.l.bf16 %v980
        %v1002 = vunpack.c.h.bf16 %v980
        %v1003 = vunpack.c.l.bf16 %v981
        %v1004 = vunpack.c.h.bf16 %v981
        %v1005 = vunpack.c.l.bf16 %v982
        %v1006 = vunpack.c.h.bf16 %v982
        %v1007 = vunpack.c.l.bf16 %v983
        %v1008 = vunpack.c.h.bf16 %v983
        %v1009 = vunpack.c.l.bf16 %v984
        %v1010 = vunpack.c.h.bf16 %v984
        %v1011 = vunpack.c.l.bf16 %v985
        %v1012 = vunpack.c.h.bf16 %v985
        %v1013 = vunpack.c.l.bf16 %v986
        %v1014 = vunpack.c.h.bf16 %v986
        %v1015 = vunpack.c.l.bf16 %v987
        %v1016 = vunpack.c.h.bf16 %v987
        %v1017 = vunpack.c.l.bf16 %v988
        %v1018 = vunpack.c.h.bf16 %v988
        %v1019 = vunpack.c.l.bf16 %v989
        %v1020 = vunpack.c.h.bf16 %v989
        %v1021 = vunpack.c.l.bf16 %v990
        %v1022 = vunpack.c.h.bf16 %v990
        %v1023 = vadd.f32 %v991, %v992
        %1024 = vadd.xlane.f32.xlu0 %v1023
        %v1025 = vpop.xlane.xlu0 %1024
        %v1026 = vadd.f32 %v993, %v994
        %1027 = vadd.xlane.f32.xlu0 %v1026
        %v1028 = vpop.xlane.xlu0 %1027
        %v1029 = vadd.f32 %v995, %v996
        %1030 = vadd.xlane.f32.xlu0 %v1029
        %v1031 = vpop.xlane.xlu0 %1030
        %v1032 = vadd.f32 %v997, %v998
        %1033 = vadd.xlane.f32.xlu0 %v1032
        %v1034 = vpop.xlane.xlu0 %1033
        %v1035 = vadd.f32 %v999, %v1000
        %1036 = vadd.xlane.f32.xlu0 %v1035
        %v1037 = vpop.xlane.xlu0 %1036
        %v1038 = vadd.f32 %v1001, %v1002
        %1039 = vadd.xlane.f32.xlu0 %v1038
        %v1040 = vpop.xlane.xlu0 %1039
        %v1041 = vadd.f32 %v1003, %v1004
        %1042 = vadd.xlane.f32.xlu0 %v1041
        %v1043 = vpop.xlane.xlu0 %1042
        %v1044 = vadd.f32 %v1005, %v1006
        %1045 = vadd.xlane.f32.xlu0 %v1044
        %v1046 = vpop.xlane.xlu0 %1045
        %v1047 = vadd.f32 %v1007, %v1008
        %1048 = vadd.xlane.f32.xlu0 %v1047
        %v1049 = vpop.xlane.xlu0 %1048
        %v1050 = vadd.f32 %v1009, %v1010
        %1051 = vadd.xlane.f32.xlu0 %v1050
        %v1052 = vpop.xlane.xlu0 %1051
        %v1053 = vadd.f32 %v1011, %v1012
        %1054 = vadd.xlane.f32.xlu0 %v1053
        %v1055 = vpop.xlane.xlu0 %1054
        %v1056 = vadd.f32 %v1013, %v1014
        %1057 = vadd.xlane.f32.xlu0 %v1056
        %v1058 = vpop.xlane.xlu0 %1057
        %v1059 = vadd.f32 %v1015, %v1016
        %1060 = vadd.xlane.f32.xlu0 %v1059
        %v1061 = vpop.xlane.xlu0 %1060
        %v1062 = vadd.f32 %v1017, %v1018
        %1063 = vadd.xlane.f32.xlu0 %v1062
        %v1064 = vpop.xlane.xlu0 %1063
        %v1065 = vadd.f32 %v1019, %v1020
        %1066 = vadd.xlane.f32.xlu0 %v1065
        %v1067 = vpop.xlane.xlu0 %1066
        %v1068 = vadd.f32 %v1021, %v1022
        %1069 = vadd.xlane.f32.xlu0 %v1068
        %v1070 = vpop.xlane.xlu0 %1069
        %v1071 = vrcp.pop %v1025
        %v1072 = vrcp.pop %v1028
        %v1073 = vrcp.pop %v1031
        %v1074 = vrcp.pop %v1034
        %v1075 = vrcp.pop %v1037
        %v1076 = vrcp.pop %v1040
        %v1077 = vrcp.pop %v1043
        %v1078 = vrcp.pop %v1046
        %v1079 = vrcp.pop %v1049
        %v1080 = vrcp.pop %v1052
        %v1081 = vrcp.pop %v1055
        %v1082 = vrcp.pop %v1058
        %v1083 = vrcp.pop %v1061
        %v1084 = vrcp.pop %v1064
        %v1085 = vrcp.pop %v1067
        %v1086 = vrcp.pop %v1070
        %v1087 = vpack.c.bf16 %v1071, %v1071
        %v1088 = vpack.c.bf16 %v1072, %v1072
        %v1089 = vpack.c.bf16 %v1073, %v1073
        %v1090 = vpack.c.bf16 %v1074, %v1074
        %v1091 = vpack.c.bf16 %v1075, %v1075
        %v1092 = vpack.c.bf16 %v1076, %v1076
        %v1093 = vpack.c.bf16 %v1077, %v1077
        %v1094 = vpack.c.bf16 %v1078, %v1078
        %v1095 = vpack.c.bf16 %v1079, %v1079
        %v1096 = vpack.c.bf16 %v1080, %v1080
        %v1097 = vpack.c.bf16 %v1081, %v1081
        %v1098 = vpack.c.bf16 %v1082, %v1082
        %v1099 = vpack.c.bf16 %v1083, %v1083
        %v1100 = vpack.c.bf16 %v1084, %v1084
        %v1101 = vpack.c.bf16 %v1085, %v1085
        %v1102 = vpack.c.bf16 %v1086, %v1086
        %v1103 = vunpack.c.l.bf16 %v1087
        %v1104 = vunpack.c.l.bf16 %v1088
        %v1105 = vunpack.c.l.bf16 %v1089
        %v1106 = vunpack.c.l.bf16 %v1090
        %v1107 = vunpack.c.l.bf16 %v1091
        %v1108 = vunpack.c.l.bf16 %v1092
        %v1109 = vunpack.c.l.bf16 %v1093
        %v1110 = vunpack.c.l.bf16 %v1094
        %v1111 = vunpack.c.l.bf16 %v1095
        %v1112 = vunpack.c.l.bf16 %v1096
        %v1113 = vunpack.c.l.bf16 %v1097
        %v1114 = vunpack.c.l.bf16 %v1098
        %v1115 = vunpack.c.l.bf16 %v1099
        %v1116 = vunpack.c.l.bf16 %v1100
        %v1117 = vunpack.c.l.bf16 %v1101
        %v1118 = vunpack.c.l.bf16 %v1102
        %v1119 = vmul.f32 %v991, %v1103
        %v1120 = vmul.f32 %v992, %v1103
        %v1121 = vmul.f32 %v993, %v1104
        %v1122 = vmul.f32 %v994, %v1104
        %v1123 = vmul.f32 %v995, %v1105
        %v1124 = vmul.f32 %v996, %v1105
        %v1125 = vmul.f32 %v997, %v1106
        %v1126 = vmul.f32 %v998, %v1106
        %v1127 = vmul.f32 %v999, %v1107
        %v1128 = vmul.f32 %v1000, %v1107
        %v1129 = vmul.f32 %v1001, %v1108
        %v1130 = vmul.f32 %v1002, %v1108
        %v1131 = vmul.f32 %v1003, %v1109
        %v1132 = vmul.f32 %v1004, %v1109
        %v1133 = vmul.f32 %v1005, %v1110
        %v1134 = vmul.f32 %v1006, %v1110
        %v1135 = vmul.f32 %v1007, %v1111
        %v1136 = vmul.f32 %v1008, %v1111
        %v1137 = vmul.f32 %v1009, %v1112
        %v1138 = vmul.f32 %v1010, %v1112
        %v1139 = vmul.f32 %v1011, %v1113
        %v1140 = vmul.f32 %v1012, %v1113
        %v1141 = vmul.f32 %v1013, %v1114
        %v1142 = vmul.f32 %v1014, %v1114
        %v1143 = vmul.f32 %v1015, %v1115
        %v1144 = vmul.f32 %v1016, %v1115
        %v1145 = vmul.f32 %v1017, %v1116
        %v1146 = vmul.f32 %v1018, %v1116
        %v1147 = vmul.f32 %v1019, %v1117
        %v1148 = vmul.f32 %v1020, %v1117
        %v1149 = vmul.f32 %v1021, %v1118
        %v1150 = vmul.f32 %v1022, %v1118
        %v1151 = vpack.c.bf16 %v1121, %v1119
        %v1152 = vpack.c.bf16 %v1122, %v1120
        %v1153 = vpack.c.bf16 %v1125, %v1123
        %v1154 = vpack.c.bf16 %v1126, %v1124
        %v1155 = vpack.c.bf16 %v1129, %v1127
        %v1156 = vpack.c.bf16 %v1130, %v1128
        %v1157 = vpack.c.bf16 %v1133, %v1131
        %v1158 = vpack.c.bf16 %v1134, %v1132
        %v1159 = vpack.c.bf16 %v1137, %v1135
        %v1160 = vpack.c.bf16 %v1138, %v1136
        %v1161 = vpack.c.bf16 %v1141, %v1139
        %v1162 = vpack.c.bf16 %v1142, %v1140
        %v1163 = vpack.c.bf16 %v1145, %v1143
        %v1164 = vpack.c.bf16 %v1146, %v1144
        %v1165 = vpack.c.bf16 %v1149, %v1147
        %v1166 = vpack.c.bf16 %v1150, %v1148
        %v1199 = vunpack.c.l.b16 %v415
        %v1200 = vunpack.c.l.b16 %v416
        %v1201 = vunpack.c.l.b16 %v417
        %v1202 = vunpack.c.l.b16 %v418
        %v1203 = vunpack.c.l.b16 %v419
        %v1204 = vunpack.c.l.b16 %v420
        %v1205 = vunpack.c.l.b16 %v421
        %v1206 = vunpack.c.l.b16 %v422
        %v1207 = vunpack.c.l.b16 %v423
        %v1208 = vunpack.c.l.b16 %v424
        %v1209 = vunpack.c.l.b16 %v425
        %v1210 = vunpack.c.l.b16 %v426
        %v1211 = vunpack.c.l.b16 %v427
        %v1212 = vunpack.c.l.b16 %v428
        %v1213 = vunpack.c.l.b16 %v429
        %v1214 = vunpack.c.l.b16 %v430
        %v1215 = vunpack.c.l.b16 %v431
        %v1216 = vunpack.c.l.b16 %v432
        %v1217 = vunpack.c.l.b16 %v433
        %v1218 = vunpack.c.l.b16 %v434
        %v1219 = vunpack.c.l.b16 %v435
        %v1220 = vunpack.c.l.b16 %v436
        %v1221 = vunpack.c.l.b16 %v437
        %v1222 = vunpack.c.l.b16 %v438
        %v1223 = vunpack.c.l.b16 %v439
        %v1224 = vunpack.c.l.b16 %v440
        %v1225 = vunpack.c.l.b16 %v441
        %v1226 = vunpack.c.l.b16 %v442
        %v1227 = vunpack.c.l.b16 %v443
        %v1228 = vunpack.c.l.b16 %v444
        %v1229 = vunpack.c.l.b16 %v445
        %v1230 = vunpack.c.l.b16 %v446
        %v1231 = vpack.c.b16 %v1200, %v1199
        %v1232 = vpack.c.b16 %v1202, %v1201
        %v1233 = vpack.c.b16 %v1204, %v1203
        %v1234 = vpack.c.b16 %v1206, %v1205
        %v1235 = vpack.c.b16 %v1208, %v1207
        %v1236 = vpack.c.b16 %v1210, %v1209
        %v1237 = vpack.c.b16 %v1212, %v1211
        %v1238 = vpack.c.b16 %v1214, %v1213
        %v1239 = vpack.c.b16 %v1216, %v1215
        %v1240 = vpack.c.b16 %v1218, %v1217
        %v1241 = vpack.c.b16 %v1220, %v1219
        %v1242 = vpack.c.b16 %v1222, %v1221
        %v1243 = vpack.c.b16 %v1224, %v1223
        %v1244 = vpack.c.b16 %v1226, %v1225
        %v1245 = vpack.c.b16 %v1228, %v1227
        %v1246 = vpack.c.b16 %v1230, %v1229
        %1263 = vmatpush.bf16.msra.mxu0 %v1238
        %1264 = vmatpush.bf16.msra.mxu0 %v1237
        %1265 = vmatpush.bf16.msra.mxu0 %v1236
        %1266 = vmatpush.bf16.msra.mxu0 %v1235
        %1267 = vmatpush.bf16.msra.mxu0 %v1234
        %1268 = vmatpush.bf16.msra.mxu0 %v1233
        %1269 = vmatpush.bf16.msra.mxu0 %v1232
        %1270 = vmatpush.bf16.msra.mxu0 %v1231
        %1271 = vmatmul.bf16.gmra.mxu0 %v1151
        %v1272 = vpop.f32.mrf.mxu0
        %v1273 = vadd.f32 0.0, %v1272
        %v1274 = vpop.f32.mrf.mxu0
        %v1275 = vadd.f32 0.0, %v1274
        %1276 = vmatmul.bf16.gmra.mxu0 %v1153
        %v1277 = vpop.f32.mrf.mxu0
        %v1278 = vadd.f32 0.0, %v1277
        %v1279 = vpop.f32.mrf.mxu0
        %v1280 = vadd.f32 0.0, %v1279
        %1281 = vmatmul.bf16.gmra.mxu0 %v1155
        %v1282 = vpop.f32.mrf.mxu0
        %v1283 = vadd.f32 0.0, %v1282
        %v1284 = vpop.f32.mrf.mxu0
        %v1285 = vadd.f32 0.0, %v1284
        %1286 = vmatmul.bf16.gmra.mxu0 %v1157
        %v1287 = vpop.f32.mrf.mxu0
        %v1288 = vadd.f32 0.0, %v1287
        %v1289 = vpop.f32.mrf.mxu0
        %v1290 = vadd.f32 0.0, %v1289
        %1291 = vmatmul.bf16.gmra.mxu0 %v1159
        %v1292 = vpop.f32.mrf.mxu0
        %v1293 = vadd.f32 0.0, %v1292
        %v1294 = vpop.f32.mrf.mxu0
        %v1295 = vadd.f32 0.0, %v1294
        %1296 = vmatmul.bf16.gmra.mxu0 %v1161
        %v1297 = vpop.f32.mrf.mxu0
        %v1298 = vadd.f32 0.0, %v1297
        %v1299 = vpop.f32.mrf.mxu0
        %v1300 = vadd.f32 0.0, %v1299
        %1301 = vmatmul.bf16.gmra.mxu0 %v1163
        %v1302 = vpop.f32.mrf.mxu0
        %v1303 = vadd.f32 0.0, %v1302
        %v1304 = vpop.f32.mrf.mxu0
        %v1305 = vadd.f32 0.0, %v1304
        %1306 = vmatmul.bf16.gmra.mxu0 %v1165
        %v1307 = vpop.f32.mrf.mxu0
        %v1308 = vadd.f32 0.0, %v1307
        %v1309 = vpop.f32.mrf.mxu0
        %v1310 = vadd.f32 0.0, %v1309
        %1311 = vdwg.mxu0
        %1312 = vmatpush.bf16.msra.mxu0 %v1246
        %1313 = vmatpush.bf16.msra.mxu0 %v1245
        %1314 = vmatpush.bf16.msra.mxu0 %v1244
        %1315 = vmatpush.bf16.msra.mxu0 %v1243
        %1316 = vmatpush.bf16.msra.mxu0 %v1242
        %1317 = vmatpush.bf16.msra.mxu0 %v1241
        %1318 = vmatpush.bf16.msra.mxu0 %v1240
        %1319 = vmatpush.bf16.msra.mxu0 %v1239
        %1320 = vmatmul.bf16.gmra.mxu0 %v1152
        %v1321 = vpop.f32.mrf.mxu0
        %v1322 = vadd.f32 %v1273, %v1321
        %v1323 = vpop.f32.mrf.mxu0
        %v1324 = vadd.f32 %v1275, %v1323
        %1325 = vmatmul.bf16.gmra.mxu0 %v1154
        %v1326 = vpop.f32.mrf.mxu0
        %v1327 = vadd.f32 %v1278, %v1326
        %v1328 = vpop.f32.mrf.mxu0
        %v1329 = vadd.f32 %v1280, %v1328
        %1330 = vmatmul.bf16.gmra.mxu0 %v1156
        %v1331 = vpop.f32.mrf.mxu0
        %v1332 = vadd.f32 %v1283, %v1331
        %v1333 = vpop.f32.mrf.mxu0
        %v1334 = vadd.f32 %v1285, %v1333
        %1335 = vmatmul.bf16.gmra.mxu0 %v1158
        %v1336 = vpop.f32.mrf.mxu0
        %v1337 = vadd.f32 %v1288, %v1336
        %v1338 = vpop.f32.mrf.mxu0
        %v1339 = vadd.f32 %v1290, %v1338
        %1340 = vmatmul.bf16.gmra.mxu0 %v1160
        %v1341 = vpop.f32.mrf.mxu0
        %v1342 = vadd.f32 %v1293, %v1341
        %v1343 = vpop.f32.mrf.mxu0
        %v1344 = vadd.f32 %v1295, %v1343
        %1345 = vmatmul.bf16.gmra.mxu0 %v1162
        %v1346 = vpop.f32.mrf.mxu0
        %v1347 = vadd.f32 %v1298, %v1346
        %v1348 = vpop.f32.mrf.mxu0
        %v1349 = vadd.f32 %v1300, %v1348
        %1350 = vmatmul.bf16.gmra.mxu0 %v1164
        %v1351 = vpop.f32.mrf.mxu0
        %v1352 = vadd.f32 %v1303, %v1351
        %v1353 = vpop.f32.mrf.mxu0
        %v1354 = vadd.f32 %v1305, %v1353
        %1355 = vmatmul.bf16.gmra.mxu0 %v1166
        %v1356 = vpop.f32.mrf.mxu0
        %v1357 = vadd.f32 %v1308, %v1356
        %v1358 = vpop.f32.mrf.mxu0
        %v1359 = vadd.f32 %v1310, %v1358
        %1360 = vdwg.mxu0
        %v1361 = vadd.f32 %v376, %v1322
        %v1362 = vadd.f32 %v378, %v1324
        %v1363 = vadd.f32 %v381, %v1327
        %v1364 = vadd.f32 %v383, %v1329
        %v1365 = vadd.f32 %v386, %v1332
        %v1366 = vadd.f32 %v388, %v1334
        %v1367 = vadd.f32 %v391, %v1337
        %v1368 = vadd.f32 %v393, %v1339
        %v1369 = vadd.f32 %v396, %v1342
        %v1370 = vadd.f32 %v398, %v1344
        %v1371 = vadd.f32 %v401, %v1347
        %v1372 = vadd.f32 %v403, %v1349
        %v1373 = vadd.f32 %v406, %v1352
        %v1374 = vadd.f32 %v408, %v1354
        %v1375 = vadd.f32 %v411, %v1357
        %v1376 = vadd.f32 %v413, %v1359
        %v1377 = vmax.f32 %v1361, 0.0
        %v1378 = vmax.f32 %v1362, 0.0
        %v1379 = vmax.f32 %v1363, 0.0
        %v1380 = vmax.f32 %v1364, 0.0
        %v1381 = vmax.f32 %v1365, 0.0
        %v1382 = vmax.f32 %v1366, 0.0
        %v1383 = vmax.f32 %v1367, 0.0
        %v1384 = vmax.f32 %v1368, 0.0
        %v1385 = vmax.f32 %v1369, 0.0
        %v1386 = vmax.f32 %v1370, 0.0
        %v1387 = vmax.f32 %v1371, 0.0
        %v1388 = vmax.f32 %v1372, 0.0
        %v1389 = vmax.f32 %v1373, 0.0
        %v1390 = vmax.f32 %v1374, 0.0
        %v1391 = vmax.f32 %v1375, 0.0
        %v1392 = vmax.f32 %v1376, 0.0
        %v1393 = vadd.f32 %v301, %v1377
        %v1394 = vadd.f32 %v302, %v1378
        %v1395 = vadd.f32 %v303, %v1379
        %v1396 = vadd.f32 %v304, %v1380
        %v1397 = vadd.f32 %v305, %v1381
        %v1398 = vadd.f32 %v306, %v1382
        %v1399 = vadd.f32 %v307, %v1383
        %v1400 = vadd.f32 %v308, %v1384
        %v1401 = vadd.f32 %v309, %v1385
        %v1402 = vadd.f32 %v310, %v1386
        %v1403 = vadd.f32 %v311, %v1387
        %v1404 = vadd.f32 %v312, %v1388
        %v1405 = vadd.f32 %v313, %v1389
        %v1406 = vadd.f32 %v314, %v1390
        %v1407 = vadd.f32 %v315, %v1391
        %v1408 = vadd.f32 %v316, %v1392
        %v1409 = vperm.slane %v447, 1
        %v1410 = vperm.slane %v447, 5
        %v1413 = vperm.slane %v1409, 1
        %v1414 = vperm.slane %v1410, 1
        %1415 = vset.pattern.permute.xlu0 1
        %1416 = vperm.xlu0 %1415, %v448
        %v1417 = vpop.permute.xlu0 %1416
        %1419 = vset.pattern.permute.xlu0 1
        %1420 = vperm.xlu0 %1419, %v449
        %v1421 = vpop.permute.xlu0 %1420
        %1423 = vset.pattern.permute.xlu0 1
        %1424 = vperm.xlu0 %1423, %v450
        %v1425 = vpop.permute.xlu0 %1424
        %1427 = vset.pattern.permute.xlu0 1
        %1428 = vperm.xlu0 %1427, %v451
        %v1429 = vpop.permute.xlu0 %1428
        %1431 = vset.pattern.permute.xlu0 1
        %1432 = vperm.xlu0 %1431, %v452
        %v1433 = vpop.permute.xlu0 %1432
        %1435 = vset.pattern.permute.xlu0 1
        %1436 = vperm.xlu0 %1435, %v453
        %v1437 = vpop.permute.xlu0 %1436
        %1439 = vset.pattern.permute.xlu0 1
        %1440 = vperm.xlu0 %1439, %v454
        %v1441 = vpop.permute.xlu0 %1440
        %1443 = vset.pattern.permute.xlu0 1
        %1444 = vperm.xlu0 %1443, %v455
        %v1445 = vpop.permute.xlu0 %1444
        %1447 = vset.pattern.permute.xlu0 1
        %1448 = vperm.xlu0 %1447, %v456
        %v1449 = vpop.permute.xlu0 %1448
        %1451 = vset.pattern.permute.xlu0 1
        %1452 = vperm.xlu0 %1451, %v457
        %v1453 = vpop.permute.xlu0 %1452
        %1455 = vset.pattern.permute.xlu0 1
        %1456 = vperm.xlu0 %1455, %v458
        %v1457 = vpop.permute.xlu0 %1456
        %1459 = vset.pattern.permute.xlu0 1
        %1460 = vperm.xlu0 %1459, %v459
        %v1461 = vpop.permute.xlu0 %1460
        %1463 = vset.pattern.permute.xlu0 1
        %1464 = vperm.xlu0 %1463, %v460
        %v1465 = vpop.permute.xlu0 %1464
        %1467 = vset.pattern.permute.xlu0 1
        %1468 = vperm.xlu0 %1467, %v461
        %v1469 = vpop.permute.xlu0 %1468
        %1471 = vset.pattern.permute.xlu0 1
        %1472 = vperm.xlu0 %1471, %v462
        %v1473 = vpop.permute.xlu0 %1472
        %1475 = vset.pattern.permute.xlu0 1
        %1476 = vperm.xlu0 %1475, %v463
        %v1477 = vpop.permute.xlu0 %1476
        %v1479 = vadd.f32 %v1413, %v1417
        %v1480 = vadd.f32 %v1414, %v1417
        %v1481 = vadd.f32 %v1413, %v1421
        %v1482 = vadd.f32 %v1414, %v1421
        %v1483 = vadd.f32 %v1413, %v1425
        %v1484 = vadd.f32 %v1414, %v1425
        %v1485 = vadd.f32 %v1413, %v1429
        %v1486 = vadd.f32 %v1414, %v1429
        %v1487 = vadd.f32 %v1413, %v1433
        %v1488 = vadd.f32 %v1414, %v1433
        %v1489 = vadd.f32 %v1413, %v1437
        %v1490 = vadd.f32 %v1414, %v1437
        %v1491 = vadd.f32 %v1413, %v1441
        %v1492 = vadd.f32 %v1414, %v1441
        %v1493 = vadd.f32 %v1413, %v1445
        %v1494 = vadd.f32 %v1414, %v1445
        %v1495 = vadd.f32 %v1413, %v1449
        %v1496 = vadd.f32 %v1414, %v1449
        %v1497 = vadd.f32 %v1413, %v1453
        %v1498 = vadd.f32 %v1414, %v1453
        %v1499 = vadd.f32 %v1413, %v1457
        %v1500 = vadd.f32 %v1414, %v1457
        %v1501 = vadd.f32 %v1413, %v1461
        %v1502 = vadd.f32 %v1414, %v1461
        %v1503 = vadd.f32 %v1413, %v1465
        %v1504 = vadd.f32 %v1414, %v1465
        %v1505 = vadd.f32 %v1413, %v1469
        %v1506 = vadd.f32 %v1414, %v1469
        %v1507 = vadd.f32 %v1413, %v1473
        %v1508 = vadd.f32 %v1414, %v1473
        %v1509 = vadd.f32 %v1413, %v1477
        %v1510 = vadd.f32 %v1414, %v1477
        %v1511 = vmul.f32 %v1479, 0.01
        %v1512 = vmul.f32 %v1480, 0.01
        %v1513 = vmul.f32 %v1481, 0.01
        %v1514 = vmul.f32 %v1482, 0.01
        %v1515 = vmul.f32 %v1483, 0.01
        %v1516 = vmul.f32 %v1484, 0.01
        %v1517 = vmul.f32 %v1485, 0.01
        %v1518 = vmul.f32 %v1486, 0.01
        %v1519 = vmul.f32 %v1487, 0.01
        %v1520 = vmul.f32 %v1488, 0.01
        %v1521 = vmul.f32 %v1489, 0.01
        %v1522 = vmul.f32 %v1490, 0.01
        %v1523 = vmul.f32 %v1491, 0.01
        %v1524 = vmul.f32 %v1492, 0.01
        %v1525 = vmul.f32 %v1493, 0.01
        %v1526 = vmul.f32 %v1494, 0.01
        %v1527 = vmul.f32 %v1495, 0.01
        %v1528 = vmul.f32 %v1496, 0.01
        %v1529 = vmul.f32 %v1497, 0.01
        %v1530 = vmul.f32 %v1498, 0.01
        %v1531 = vmul.f32 %v1499, 0.01
        %v1532 = vmul.f32 %v1500, 0.01
        %v1533 = vmul.f32 %v1501, 0.01
        %v1534 = vmul.f32 %v1502, 0.01
        %v1535 = vmul.f32 %v1503, 0.01
        %v1536 = vmul.f32 %v1504, 0.01
        %v1537 = vmul.f32 %v1505, 0.01
        %v1538 = vmul.f32 %v1506, 0.01
        %v1539 = vmul.f32 %v1507, 0.01
        %v1540 = vmul.f32 %v1508, 0.01
        %v1541 = vmul.f32 %v1509, 0.01
        %v1542 = vmul.f32 %v1510, 0.01
        %v1543 = vmax.f32 %v1479, %v1511
        %v1544 = vmax.f32 %v1480, %v1512
        %v1545 = vmax.f32 %v1481, %v1513
        %v1546 = vmax.f32 %v1482, %v1514
        %v1547 = vmax.f32 %v1483, %v1515
        %v1548 = vmax.f32 %v1484, %v1516
        %v1549 = vmax.f32 %v1485, %v1517
        %v1550 = vmax.f32 %v1486, %v1518
        %v1551 = vmax.f32 %v1487, %v1519
        %v1552 = vmax.f32 %v1488, %v1520
        %v1553 = vmax.f32 %v1489, %v1521
        %v1554 = vmax.f32 %v1490, %v1522
        %v1555 = vmax.f32 %v1491, %v1523
        %v1556 = vmax.f32 %v1492, %v1524
        %v1557 = vmax.f32 %v1493, %v1525
        %v1558 = vmax.f32 %v1494, %v1526
        %v1559 = vmax.f32 %v1495, %v1527
        %v1560 = vmax.f32 %v1496, %v1528
        %v1561 = vmax.f32 %v1497, %v1529
        %v1562 = vmax.f32 %v1498, %v1530
        %v1563 = vmax.f32 %v1499, %v1531
        %v1564 = vmax.f32 %v1500, %v1532
        %v1565 = vmax.f32 %v1501, %v1533
        %v1566 = vmax.f32 %v1502, %v1534
        %v1567 = vmax.f32 %v1503, %v1535
        %v1568 = vmax.f32 %v1504, %v1536
        %v1569 = vmax.f32 %v1505, %v1537
        %v1570 = vmax.f32 %v1506, %v1538
        %v1571 = vmax.f32 %v1507, %v1539
        %v1572 = vmax.f32 %v1508, %v1540
        %v1573 = vmax.f32 %v1509, %v1541
        %v1574 = vmax.f32 %v1510, %v1542
        %v1575 = vadd.f32 %v1543, %v536
        %v1576 = vadd.f32 %v1544, %v537
        %v1577 = vadd.f32 %v1545, %v538
        %v1578 = vadd.f32 %v1546, %v539
        %v1579 = vadd.f32 %v1547, %v540
        %v1580 = vadd.f32 %v1548, %v541
        %v1581 = vadd.f32 %v1549, %v542
        %v1582 = vadd.f32 %v1550, %v543
        %v1583 = vadd.f32 %v1551, %v544
        %v1584 = vadd.f32 %v1552, %v545
        %v1585 = vadd.f32 %v1553, %v546
        %v1586 = vadd.f32 %v1554, %v547
        %v1587 = vadd.f32 %v1555, %v548
        %v1588 = vadd.f32 %v1556, %v549
        %v1589 = vadd.f32 %v1557, %v550
        %v1590 = vadd.f32 %v1558, %v551
        %v1591 = vadd.f32 %v1559, %v552
        %v1592 = vadd.f32 %v1560, %v553
        %v1593 = vadd.f32 %v1561, %v554
        %v1594 = vadd.f32 %v1562, %v555
        %v1595 = vadd.f32 %v1563, %v556
        %v1596 = vadd.f32 %v1564, %v557
        %v1597 = vadd.f32 %v1565, %v558
        %v1598 = vadd.f32 %v1566, %v559
        %v1599 = vadd.f32 %v1567, %v560
        %v1600 = vadd.f32 %v1568, %v561
        %v1601 = vadd.f32 %v1569, %v562
        %v1602 = vadd.f32 %v1570, %v563
        %v1603 = vadd.f32 %v1571, %v564
        %v1604 = vadd.f32 %v1572, %v565
        %v1605 = vadd.f32 %v1573, %v566
        %v1606 = vadd.f32 %v1574, %v567
        %v1607 = vmax.f32 %v1575, %v1576
        %1608 = vmax.xlane.f32.xlu0 %v1607
        %v1609 = vpop.xlane.xlu0 %1608
        %v1610 = vmax.f32 %v1577, %v1578
        %1611 = vmax.xlane.f32.xlu0 %v1610
        %v1612 = vpop.xlane.xlu0 %1611
        %v1613 = vmax.f32 %v1579, %v1580
        %1614 = vmax.xlane.f32.xlu0 %v1613
        %v1615 = vpop.xlane.xlu0 %1614
        %v1616 = vmax.f32 %v1581, %v1582
        %1617 = vmax.xlane.f32.xlu0 %v1616
        %v1618 = vpop.xlane.xlu0 %1617
        %v1619 = vmax.f32 %v1583, %v1584
        %1620 = vmax.xlane.f32.xlu0 %v1619
        %v1621 = vpop.xlane.xlu0 %1620
        %v1622 = vmax.f32 %v1585, %v1586
        %1623 = vmax.xlane.f32.xlu0 %v1622
        %v1624 = vpop.xlane.xlu0 %1623
        %v1625 = vmax.f32 %v1587, %v1588
        %1626 = vmax.xlane.f32.xlu0 %v1625
        %v1627 = vpop.xlane.xlu0 %1626
        %v1628 = vmax.f32 %v1589, %v1590
        %1629 = vmax.xlane.f32.xlu0 %v1628
        %v1630 = vpop.xlane.xlu0 %1629
        %v1631 = vmax.f32 %v1591, %v1592
        %1632 = vmax.xlane.f32.xlu0 %v1631
        %v1633 = vpop.xlane.xlu0 %1632
        %v1634 = vmax.f32 %v1593, %v1594
        %1635 = vmax.xlane.f32.xlu0 %v1634
        %v1636 = vpop.xlane.xlu0 %1635
        %v1637 = vmax.f32 %v1595, %v1596
        %1638 = vmax.xlane.f32.xlu0 %v1637
        %v1639 = vpop.xlane.xlu0 %1638
        %v1640 = vmax.f32 %v1597, %v1598
        %1641 = vmax.xlane.f32.xlu0 %v1640
        %v1642 = vpop.xlane.xlu0 %1641
        %v1643 = vmax.f32 %v1599, %v1600
        %1644 = vmax.xlane.f32.xlu0 %v1643
        %v1645 = vpop.xlane.xlu0 %1644
        %v1646 = vmax.f32 %v1601, %v1602
        %1647 = vmax.xlane.f32.xlu0 %v1646
        %v1648 = vpop.xlane.xlu0 %1647
        %v1649 = vmax.f32 %v1603, %v1604
        %1650 = vmax.xlane.f32.xlu0 %v1649
        %v1651 = vpop.xlane.xlu0 %1650
        %v1652 = vmax.f32 %v1605, %v1606
        %1653 = vmax.xlane.f32.xlu0 %v1652
        %v1654 = vpop.xlane.xlu0 %1653
        %v1655 = vsub.f32 %v1575, %v1609
        %v1656 = vsub.f32 %v1576, %v1609
        %v1657 = vsub.f32 %v1577, %v1612
        %v1658 = vsub.f32 %v1578, %v1612
        %v1659 = vsub.f32 %v1579, %v1615
        %v1660 = vsub.f32 %v1580, %v1615
        %v1661 = vsub.f32 %v1581, %v1618
        %v1662 = vsub.f32 %v1582, %v1618
        %v1663 = vsub.f32 %v1583, %v1621
        %v1664 = vsub.f32 %v1584, %v1621
        %v1665 = vsub.f32 %v1585, %v1624
        %v1666 = vsub.f32 %v1586, %v1624
        %v1667 = vsub.f32 %v1587, %v1627
        %v1668 = vsub.f32 %v1588, %v1627
        %v1669 = vsub.f32 %v1589, %v1630
        %v1670 = vsub.f32 %v1590, %v1630
        %v1671 = vsub.f32 %v1591, %v1633
        %v1672 = vsub.f32 %v1592, %v1633
        %v1673 = vsub.f32 %v1593, %v1636
        %v1674 = vsub.f32 %v1594, %v1636
        %v1675 = vsub.f32 %v1595, %v1639
        %v1676 = vsub.f32 %v1596, %v1639
        %v1677 = vsub.f32 %v1597, %v1642
        %v1678 = vsub.f32 %v1598, %v1642
        %v1679 = vsub.f32 %v1599, %v1645
        %v1680 = vsub.f32 %v1600, %v1645
        %v1681 = vsub.f32 %v1601, %v1648
        %v1682 = vsub.f32 %v1602, %v1648
        %v1683 = vsub.f32 %v1603, %v1651
        %v1684 = vsub.f32 %v1604, %v1651
        %v1685 = vsub.f32 %v1605, %v1654
        %v1686 = vsub.f32 %v1606, %v1654
        %v1687 = vpack.c.bf16 %v1656, %v1655
        %v1688 = vpack.c.bf16 %v1658, %v1657
        %v1689 = vpack.c.bf16 %v1660, %v1659
        %v1690 = vpack.c.bf16 %v1662, %v1661
        %v1691 = vpack.c.bf16 %v1664, %v1663
        %v1692 = vpack.c.bf16 %v1666, %v1665
        %v1693 = vpack.c.bf16 %v1668, %v1667
        %v1694 = vpack.c.bf16 %v1670, %v1669
        %v1695 = vpack.c.bf16 %v1672, %v1671
        %v1696 = vpack.c.bf16 %v1674, %v1673
        %v1697 = vpack.c.bf16 %v1676, %v1675
        %v1698 = vpack.c.bf16 %v1678, %v1677
        %v1699 = vpack.c.bf16 %v1680, %v1679
        %v1700 = vpack.c.bf16 %v1682, %v1681
        %v1701 = vpack.c.bf16 %v1684, %v1683
        %v1702 = vpack.c.bf16 %v1686, %v1685
        %v1703 = vunpack.c.l.bf16 %v1687
        %v1704 = vunpack.c.h.bf16 %v1687
        %v1705 = vunpack.c.l.bf16 %v1688
        %v1706 = vunpack.c.h.bf16 %v1688
        %v1707 = vunpack.c.l.bf16 %v1689
        %v1708 = vunpack.c.h.bf16 %v1689
        %v1709 = vunpack.c.l.bf16 %v1690
        %v1710 = vunpack.c.h.bf16 %v1690
        %v1711 = vunpack.c.l.bf16 %v1691
        %v1712 = vunpack.c.h.bf16 %v1691
        %v1713 = vunpack.c.l.bf16 %v1692
        %v1714 = vunpack.c.h.bf16 %v1692
        %v1715 = vunpack.c.l.bf16 %v1693
        %v1716 = vunpack.c.h.bf16 %v1693
        %v1717 = vunpack.c.l.bf16 %v1694
        %v1718 = vunpack.c.h.bf16 %v1694
        %v1719 = vunpack.c.l.bf16 %v1695
        %v1720 = vunpack.c.h.bf16 %v1695
        %v1721 = vunpack.c.l.bf16 %v1696
        %v1722 = vunpack.c.h.bf16 %v1696
        %v1723 = vunpack.c.l.bf16 %v1697
        %v1724 = vunpack.c.h.bf16 %v1697
        %v1725 = vunpack.c.l.bf16 %v1698
        %v1726 = vunpack.c.h.bf16 %v1698
        %v1727 = vunpack.c.l.bf16 %v1699
        %v1728 = vunpack.c.h.bf16 %v1699
        %v1729 = vunpack.c.l.bf16 %v1700
        %v1730 = vunpack.c.h.bf16 %v1700
        %v1731 = vunpack.c.l.bf16 %v1701
        %v1732 = vunpack.c.h.bf16 %v1701
        %v1733 = vunpack.c.l.bf16 %v1702
        %v1734 = vunpack.c.h.bf16 %v1702
        %v1735 = vmul.f32 %v1703, 1.442695
        %v1736 = vpow.pop %v1735
        %v1737 = vmul.f32 %v1704, 1.442695
        %v1738 = vpow.pop %v1737
        %v1739 = vmul.f32 %v1705, 1.442695
        %v1740 = vpow.pop %v1739
        %v1741 = vmul.f32 %v1706, 1.442695
        %v1742 = vpow.pop %v1741
        %v1743 = vmul.f32 %v1707, 1.442695
        %v1744 = vpow.pop %v1743
        %v1745 = vmul.f32 %v1708, 1.442695
        %v1746 = vpow.pop %v1745
        %v1747 = vmul.f32 %v1709, 1.442695
        %v1748 = vpow.pop %v1747
        %v1749 = vmul.f32 %v1710, 1.442695
        %v1750 = vpow.pop %v1749
        %v1751 = vmul.f32 %v1711, 1.442695
        %v1752 = vpow.pop %v1751
        %v1753 = vmul.f32 %v1712, 1.442695
        %v1754 = vpow.pop %v1753
        %v1755 = vmul.f32 %v1713, 1.442695
        %v1756 = vpow.pop %v1755
        %v1757 = vmul.f32 %v1714, 1.442695
        %v1758 = vpow.pop %v1757
        %v1759 = vmul.f32 %v1715, 1.442695
        %v1760 = vpow.pop %v1759
        %v1761 = vmul.f32 %v1716, 1.442695
        %v1762 = vpow.pop %v1761
        %v1763 = vmul.f32 %v1717, 1.442695
        %v1764 = vpow.pop %v1763
        %v1765 = vmul.f32 %v1718, 1.442695
        %v1766 = vpow.pop %v1765
        %v1767 = vmul.f32 %v1719, 1.442695
        %v1768 = vpow.pop %v1767
        %v1769 = vmul.f32 %v1720, 1.442695
        %v1770 = vpow.pop %v1769
        %v1771 = vmul.f32 %v1721, 1.442695
        %v1772 = vpow.pop %v1771
        %v1773 = vmul.f32 %v1722, 1.442695
        %v1774 = vpow.pop %v1773
        %v1775 = vmul.f32 %v1723, 1.442695
        %v1776 = vpow.pop %v1775
        %v1777 = vmul.f32 %v1724, 1.442695
        %v1778 = vpow.pop %v1777
        %v1779 = vmul.f32 %v1725, 1.442695
        %v1780 = vpow.pop %v1779
        %v1781 = vmul.f32 %v1726, 1.442695
        %v1782 = vpow.pop %v1781
        %v1783 = vmul.f32 %v1727, 1.442695
        %v1784 = vpow.pop %v1783
        %v1785 = vmul.f32 %v1728, 1.442695
        %v1786 = vpow.pop %v1785
        %v1787 = vmul.f32 %v1729, 1.442695
        %v1788 = vpow.pop %v1787
        %v1789 = vmul.f32 %v1730, 1.442695
        %v1790 = vpow.pop %v1789
        %v1791 = vmul.f32 %v1731, 1.442695
        %v1792 = vpow.pop %v1791
        %v1793 = vmul.f32 %v1732, 1.442695
        %v1794 = vpow.pop %v1793
        %v1795 = vmul.f32 %v1733, 1.442695
        %v1796 = vpow.pop %v1795
        %v1797 = vmul.f32 %v1734, 1.442695
        %v1798 = vpow.pop %v1797
        %v1799 = vpack.c.bf16 %v1738, %v1736
        %v1800 = vpack.c.bf16 %v1742, %v1740
        %v1801 = vpack.c.bf16 %v1746, %v1744
        %v1802 = vpack.c.bf16 %v1750, %v1748
        %v1803 = vpack.c.bf16 %v1754, %v1752
        %v1804 = vpack.c.bf16 %v1758, %v1756
        %v1805 = vpack.c.bf16 %v1762, %v1760
        %v1806 = vpack.c.bf16 %v1766, %v1764
        %v1807 = vpack.c.bf16 %v1770, %v1768
        %v1808 = vpack.c.bf16 %v1774, %v1772
        %v1809 = vpack.c.bf16 %v1778, %v1776
        %v1810 = vpack.c.bf16 %v1782, %v1780
        %v1811 = vpack.c.bf16 %v1786, %v1784
        %v1812 = vpack.c.bf16 %v1790, %v1788
        %v1813 = vpack.c.bf16 %v1794, %v1792
        %v1814 = vpack.c.bf16 %v1798, %v1796
        %v1815 = vunpack.c.l.bf16 %v1799
        %v1816 = vunpack.c.h.bf16 %v1799
        %v1817 = vunpack.c.l.bf16 %v1800
        %v1818 = vunpack.c.h.bf16 %v1800
        %v1819 = vunpack.c.l.bf16 %v1801
        %v1820 = vunpack.c.h.bf16 %v1801
        %v1821 = vunpack.c.l.bf16 %v1802
        %v1822 = vunpack.c.h.bf16 %v1802
        %v1823 = vunpack.c.l.bf16 %v1803
        %v1824 = vunpack.c.h.bf16 %v1803
        %v1825 = vunpack.c.l.bf16 %v1804
        %v1826 = vunpack.c.h.bf16 %v1804
        %v1827 = vunpack.c.l.bf16 %v1805
        %v1828 = vunpack.c.h.bf16 %v1805
        %v1829 = vunpack.c.l.bf16 %v1806
        %v1830 = vunpack.c.h.bf16 %v1806
        %v1831 = vunpack.c.l.bf16 %v1807
        %v1832 = vunpack.c.h.bf16 %v1807
        %v1833 = vunpack.c.l.bf16 %v1808
        %v1834 = vunpack.c.h.bf16 %v1808
        %v1835 = vunpack.c.l.bf16 %v1809
        %v1836 = vunpack.c.h.bf16 %v1809
        %v1837 = vunpack.c.l.bf16 %v1810
        %v1838 = vunpack.c.h.bf16 %v1810
        %v1839 = vunpack.c.l.bf16 %v1811
        %v1840 = vunpack.c.h.bf16 %v1811
        %v1841 = vunpack.c.l.bf16 %v1812
        %v1842 = vunpack.c.h.bf16 %v1812
        %v1843 = vunpack.c.l.bf16 %v1813
        %v1844 = vunpack.c.h.bf16 %v1813
        %v1845 = vunpack.c.l.bf16 %v1814
        %v1846 = vunpack.c.h.bf16 %v1814
        %v1847 = vadd.f32 %v1815, %v1816
        %1848 = vadd.xlane.f32.xlu0 %v1847
        %v1849 = vpop.xlane.xlu0 %1848
        %v1850 = vadd.f32 %v1817, %v1818
        %1851 = vadd.xlane.f32.xlu0 %v1850
        %v1852 = vpop.xlane.xlu0 %1851
        %v1853 = vadd.f32 %v1819, %v1820
        %1854 = vadd.xlane.f32.xlu0 %v1853
        %v1855 = vpop.xlane.xlu0 %1854
        %v1856 = vadd.f32 %v1821, %v1822
        %1857 = vadd.xlane.f32.xlu0 %v1856
        %v1858 = vpop.xlane.xlu0 %1857
        %v1859 = vadd.f32 %v1823, %v1824
        %1860 = vadd.xlane.f32.xlu0 %v1859
        %v1861 = vpop.xlane.xlu0 %1860
        %v1862 = vadd.f32 %v1825, %v1826
        %1863 = vadd.xlane.f32.xlu0 %v1862
        %v1864 = vpop.xlane.xlu0 %1863
        %v1865 = vadd.f32 %v1827, %v1828
        %1866 = vadd.xlane.f32.xlu0 %v1865
        %v1867 = vpop.xlane.xlu0 %1866
        %v1868 = vadd.f32 %v1829, %v1830
        %1869 = vadd.xlane.f32.xlu0 %v1868
        %v1870 = vpop.xlane.xlu0 %1869
        %v1871 = vadd.f32 %v1831, %v1832
        %1872 = vadd.xlane.f32.xlu0 %v1871
        %v1873 = vpop.xlane.xlu0 %1872
        %v1874 = vadd.f32 %v1833, %v1834
        %1875 = vadd.xlane.f32.xlu0 %v1874
        %v1876 = vpop.xlane.xlu0 %1875
        %v1877 = vadd.f32 %v1835, %v1836
        %1878 = vadd.xlane.f32.xlu0 %v1877
        %v1879 = vpop.xlane.xlu0 %1878
        %v1880 = vadd.f32 %v1837, %v1838
        %1881 = vadd.xlane.f32.xlu0 %v1880
        %v1882 = vpop.xlane.xlu0 %1881
        %v1883 = vadd.f32 %v1839, %v1840
        %1884 = vadd.xlane.f32.xlu0 %v1883
        %v1885 = vpop.xlane.xlu0 %1884
        %v1886 = vadd.f32 %v1841, %v1842
        %1887 = vadd.xlane.f32.xlu0 %v1886
        %v1888 = vpop.xlane.xlu0 %1887
        %v1889 = vadd.f32 %v1843, %v1844
        %1890 = vadd.xlane.f32.xlu0 %v1889
        %v1891 = vpop.xlane.xlu0 %1890
        %v1892 = vadd.f32 %v1845, %v1846
        %1893 = vadd.xlane.f32.xlu0 %v1892
        %v1894 = vpop.xlane.xlu0 %1893
        %v1895 = vrcp.pop %v1849
        %v1896 = vrcp.pop %v1852
        %v1897 = vrcp.pop %v1855
        %v1898 = vrcp.pop %v1858
        %v1899 = vrcp.pop %v1861
        %v1900 = vrcp.pop %v1864
        %v1901 = vrcp.pop %v1867
        %v1902 = vrcp.pop %v1870
        %v1903 = vrcp.pop %v1873
        %v1904 = vrcp.pop %v1876
        %v1905 = vrcp.pop %v1879
        %v1906 = vrcp.pop %v1882
        %v1907 = vrcp.pop %v1885
        %v1908 = vrcp.pop %v1888
        %v1909 = vrcp.pop %v1891
        %v1910 = vrcp.pop %v1894
        %v1911 = vpack.c.bf16 %v1895, %v1895
        %v1912 = vpack.c.bf16 %v1896, %v1896
        %v1913 = vpack.c.bf16 %v1897, %v1897
        %v1914 = vpack.c.bf16 %v1898, %v1898
        %v1915 = vpack.c.bf16 %v1899, %v1899
        %v1916 = vpack.c.bf16 %v1900, %v1900
        %v1917 = vpack.c.bf16 %v1901, %v1901
        %v1918 = vpack.c.bf16 %v1902, %v1902
        %v1919 = vpack.c.bf16 %v1903, %v1903
        %v1920 = vpack.c.bf16 %v1904, %v1904
        %v1921 = vpack.c.bf16 %v1905, %v1905
        %v1922 = vpack.c.bf16 %v1906, %v1906
        %v1923 = vpack.c.bf16 %v1907, %v1907
        %v1924 = vpack.c.bf16 %v1908, %v1908
        %v1925 = vpack.c.bf16 %v1909, %v1909
        %v1926 = vpack.c.bf16 %v1910, %v1910
        %v1927 = vunpack.c.l.bf16 %v1911
        %v1928 = vunpack.c.l.bf16 %v1912
        %v1929 = vunpack.c.l.bf16 %v1913
        %v1930 = vunpack.c.l.bf16 %v1914
        %v1931 = vunpack.c.l.bf16 %v1915
        %v1932 = vunpack.c.l.bf16 %v1916
        %v1933 = vunpack.c.l.bf16 %v1917
        %v1934 = vunpack.c.l.bf16 %v1918
        %v1935 = vunpack.c.l.bf16 %v1919
        %v1936 = vunpack.c.l.bf16 %v1920
        %v1937 = vunpack.c.l.bf16 %v1921
        %v1938 = vunpack.c.l.bf16 %v1922
        %v1939 = vunpack.c.l.bf16 %v1923
        %v1940 = vunpack.c.l.bf16 %v1924
        %v1941 = vunpack.c.l.bf16 %v1925
        %v1942 = vunpack.c.l.bf16 %v1926
        %v1943 = vmul.f32 %v1815, %v1927
        %v1944 = vmul.f32 %v1816, %v1927
        %v1945 = vmul.f32 %v1817, %v1928
        %v1946 = vmul.f32 %v1818, %v1928
        %v1947 = vmul.f32 %v1819, %v1929
        %v1948 = vmul.f32 %v1820, %v1929
        %v1949 = vmul.f32 %v1821, %v1930
        %v1950 = vmul.f32 %v1822, %v1930
        %v1951 = vmul.f32 %v1823, %v1931
        %v1952 = vmul.f32 %v1824, %v1931
        %v1953 = vmul.f32 %v1825, %v1932
        %v1954 = vmul.f32 %v1826, %v1932
        %v1955 = vmul.f32 %v1827, %v1933
        %v1956 = vmul.f32 %v1828, %v1933
        %v1957 = vmul.f32 %v1829, %v1934
        %v1958 = vmul.f32 %v1830, %v1934
        %v1959 = vmul.f32 %v1831, %v1935
        %v1960 = vmul.f32 %v1832, %v1935
        %v1961 = vmul.f32 %v1833, %v1936
        %v1962 = vmul.f32 %v1834, %v1936
        %v1963 = vmul.f32 %v1835, %v1937
        %v1964 = vmul.f32 %v1836, %v1937
        %v1965 = vmul.f32 %v1837, %v1938
        %v1966 = vmul.f32 %v1838, %v1938
        %v1967 = vmul.f32 %v1839, %v1939
        %v1968 = vmul.f32 %v1840, %v1939
        %v1969 = vmul.f32 %v1841, %v1940
        %v1970 = vmul.f32 %v1842, %v1940
        %v1971 = vmul.f32 %v1843, %v1941
        %v1972 = vmul.f32 %v1844, %v1941
        %v1973 = vmul.f32 %v1845, %v1942
        %v1974 = vmul.f32 %v1846, %v1942
        %v1975 = vpack.c.bf16 %v1945, %v1943
        %v1976 = vpack.c.bf16 %v1946, %v1944
        %v1977 = vpack.c.bf16 %v1949, %v1947
        %v1978 = vpack.c.bf16 %v1950, %v1948
        %v1979 = vpack.c.bf16 %v1953, %v1951
        %v1980 = vpack.c.bf16 %v1954, %v1952
        %v1981 = vpack.c.bf16 %v1957, %v1955
        %v1982 = vpack.c.bf16 %v1958, %v1956
        %v1983 = vpack.c.bf16 %v1961, %v1959
        %v1984 = vpack.c.bf16 %v1962, %v1960
        %v1985 = vpack.c.bf16 %v1965, %v1963
        %v1986 = vpack.c.bf16 %v1966, %v1964
        %v1987 = vpack.c.bf16 %v1969, %v1967
        %v1988 = vpack.c.bf16 %v1970, %v1968
        %v1989 = vpack.c.bf16 %v1973, %v1971
        %v1990 = vpack.c.bf16 %v1974, %v1972
        %1991 = vrot.lane.b32.xlu0 %v1231, 96
        %v1992 = vpop.permute.xlu0 %1991
        %1993 = vrot.lane.b32.xlu0 %v1232, 96
        %v1994 = vpop.permute.xlu0 %1993
        %1995 = vrot.lane.b32.xlu0 %v1233, 96
        %v1996 = vpop.permute.xlu0 %1995
        %1997 = vrot.lane.b32.xlu0 %v1234, 96
        %v1998 = vpop.permute.xlu0 %1997
        %1999 = vrot.lane.b32.xlu0 %v1235, 96
        %v2000 = vpop.permute.xlu0 %1999
        %2001 = vrot.lane.b32.xlu0 %v1236, 96
        %v2002 = vpop.permute.xlu0 %2001
        %2003 = vrot.lane.b32.xlu0 %v1237, 96
        %v2004 = vpop.permute.xlu0 %2003
        %2005 = vrot.lane.b32.xlu0 %v1238, 96
        %v2006 = vpop.permute.xlu0 %2005
        %2007 = vrot.lane.b32.xlu0 %v1239, 96
        %v2008 = vpop.permute.xlu0 %2007
        %2009 = vrot.lane.b32.xlu0 %v1240, 96
        %v2010 = vpop.permute.xlu0 %2009
        %2011 = vrot.lane.b32.xlu0 %v1241, 96
        %v2012 = vpop.permute.xlu0 %2011
        %2013 = vrot.lane.b32.xlu0 %v1242, 96
        %v2014 = vpop.permute.xlu0 %2013
        %2015 = vrot.lane.b32.xlu0 %v1243, 96
        %v2016 = vpop.permute.xlu0 %2015
        %2017 = vrot.lane.b32.xlu0 %v1244, 96
        %v2018 = vpop.permute.xlu0 %2017
        %2019 = vrot.lane.b32.xlu0 %v1245, 96
        %v2020 = vpop.permute.xlu0 %2019
        %2021 = vrot.lane.b32.xlu0 %v1246, 96
        %v2022 = vpop.permute.xlu0 %2021
        %2039 = vmatpush.bf16.msra.mxu0 %v2006
        %2040 = vmatpush.bf16.msra.mxu0 %v2004
        %2041 = vmatpush.bf16.msra.mxu0 %v2002
        %2042 = vmatpush.bf16.msra.mxu0 %v2000
        %2043 = vmatpush.bf16.msra.mxu0 %v1998
        %2044 = vmatpush.bf16.msra.mxu0 %v1996
        %2045 = vmatpush.bf16.msra.mxu0 %v1994
        %2046 = vmatpush.bf16.msra.mxu0 %v1992
        %2047 = vmatmul.bf16.gmra.mxu0 %v1975
        %v2048 = vpop.f32.mrf.mxu0
        %v2049 = vadd.f32 0.0, %v2048
        %v2050 = vpop.f32.mrf.mxu0
        %v2051 = vadd.f32 0.0, %v2050
        %2052 = vmatmul.bf16.gmra.mxu0 %v1977
        %v2053 = vpop.f32.mrf.mxu0
        %v2054 = vadd.f32 0.0, %v2053
        %v2055 = vpop.f32.mrf.mxu0
        %v2056 = vadd.f32 0.0, %v2055
        %2057 = vmatmul.bf16.gmra.mxu0 %v1979
        %v2058 = vpop.f32.mrf.mxu0
        %v2059 = vadd.f32 0.0, %v2058
        %v2060 = vpop.f32.mrf.mxu0
        %v2061 = vadd.f32 0.0, %v2060
        %2062 = vmatmul.bf16.gmra.mxu0 %v1981
        %v2063 = vpop.f32.mrf.mxu0
        %v2064 = vadd.f32 0.0, %v2063
        %v2065 = vpop.f32.mrf.mxu0
        %v2066 = vadd.f32 0.0, %v2065
        %2067 = vmatmul.bf16.gmra.mxu0 %v1983
        %v2068 = vpop.f32.mrf.mxu0
        %v2069 = vadd.f32 0.0, %v2068
        %v2070 = vpop.f32.mrf.mxu0
        %v2071 = vadd.f32 0.0, %v2070
        %2072 = vmatmul.bf16.gmra.mxu0 %v1985
        %v2073 = vpop.f32.mrf.mxu0
        %v2074 = vadd.f32 0.0, %v2073
        %v2075 = vpop.f32.mrf.mxu0
        %v2076 = vadd.f32 0.0, %v2075
        %2077 = vmatmul.bf16.gmra.mxu0 %v1987
        %v2078 = vpop.f32.mrf.mxu0
        %v2079 = vadd.f32 0.0, %v2078
        %v2080 = vpop.f32.mrf.mxu0
        %v2081 = vadd.f32 0.0, %v2080
        %2082 = vmatmul.bf16.gmra.mxu0 %v1989
        %v2083 = vpop.f32.mrf.mxu0
        %v2084 = vadd.f32 0.0, %v2083
        %v2085 = vpop.f32.mrf.mxu0
        %v2086 = vadd.f32 0.0, %v2085
        %2087 = vdwg.mxu0
        %2088 = vmatpush.bf16.msra.mxu0 %v2022
        %2089 = vmatpush.bf16.msra.mxu0 %v2020
        %2090 = vmatpush.bf16.msra.mxu0 %v2018
        %2091 = vmatpush.bf16.msra.mxu0 %v2016
        %2092 = vmatpush.bf16.msra.mxu0 %v2014
        %2093 = vmatpush.bf16.msra.mxu0 %v2012
        %2094 = vmatpush.bf16.msra.mxu0 %v2010
        %2095 = vmatpush.bf16.msra.mxu0 %v2008
        %2096 = vmatmul.bf16.gmra.mxu0 %v1976
        %v2097 = vpop.f32.mrf.mxu0
        %v2098 = vadd.f32 %v2049, %v2097
        %v2099 = vpop.f32.mrf.mxu0
        %v2100 = vadd.f32 %v2051, %v2099
        %2101 = vmatmul.bf16.gmra.mxu0 %v1978
        %v2102 = vpop.f32.mrf.mxu0
        %v2103 = vadd.f32 %v2054, %v2102
        %v2104 = vpop.f32.mrf.mxu0
        %v2105 = vadd.f32 %v2056, %v2104
        %2106 = vmatmul.bf16.gmra.mxu0 %v1980
        %v2107 = vpop.f32.mrf.mxu0
        %v2108 = vadd.f32 %v2059, %v2107
        %v2109 = vpop.f32.mrf.mxu0
        %v2110 = vadd.f32 %v2061, %v2109
        %2111 = vmatmul.bf16.gmra.mxu0 %v1982
        %v2112 = vpop.f32.mrf.mxu0
        %v2113 = vadd.f32 %v2064, %v2112
        %v2114 = vpop.f32.mrf.mxu0
        %v2115 = vadd.f32 %v2066, %v2114
        %2116 = vmatmul.bf16.gmra.mxu0 %v1984
        %v2117 = vpop.f32.mrf.mxu0
        %v2118 = vadd.f32 %v2069, %v2117
        %v2119 = vpop.f32.mrf.mxu0
        %v2120 = vadd.f32 %v2071, %v2119
        %2121 = vmatmul.bf16.gmra.mxu0 %v1986
        %v2122 = vpop.f32.mrf.mxu0
        %v2123 = vadd.f32 %v2074, %v2122
        %v2124 = vpop.f32.mrf.mxu0
        %v2125 = vadd.f32 %v2076, %v2124
        %2126 = vmatmul.bf16.gmra.mxu0 %v1988
        %v2127 = vpop.f32.mrf.mxu0
        %v2128 = vadd.f32 %v2079, %v2127
        %v2129 = vpop.f32.mrf.mxu0
        %v2130 = vadd.f32 %v2081, %v2129
        %2131 = vmatmul.bf16.gmra.mxu0 %v1990
        %v2132 = vpop.f32.mrf.mxu0
        %v2133 = vadd.f32 %v2084, %v2132
        %v2134 = vpop.f32.mrf.mxu0
        %v2135 = vadd.f32 %v2086, %v2134
        %2136 = vdwg.mxu0
        %2153 = vrot.lane.b32.xlu0 %v2098, 32
        %v2154 = vpop.permute.xlu0 %2153
        %2155 = vrot.lane.b32.xlu0 %v2100, 32
        %v2156 = vpop.permute.xlu0 %2155
        %2157 = vrot.lane.b32.xlu0 %v2103, 32
        %v2158 = vpop.permute.xlu0 %2157
        %2159 = vrot.lane.b32.xlu0 %v2105, 32
        %v2160 = vpop.permute.xlu0 %2159
        %2161 = vrot.lane.b32.xlu0 %v2108, 32
        %v2162 = vpop.permute.xlu0 %2161
        %2163 = vrot.lane.b32.xlu0 %v2110, 32
        %v2164 = vpop.permute.xlu0 %2163
        %2165 = vrot.lane.b32.xlu0 %v2113, 32
        %v2166 = vpop.permute.xlu0 %2165
        %2167 = vrot.lane.b32.xlu0 %v2115, 32
        %v2168 = vpop.permute.xlu0 %2167
        %2169 = vrot.lane.b32.xlu0 %v2118, 32
        %v2170 = vpop.permute.xlu0 %2169
        %2171 = vrot.lane.b32.xlu0 %v2120, 32
        %v2172 = vpop.permute.xlu0 %2171
        %2173 = vrot.lane.b32.xlu0 %v2123, 32
        %v2174 = vpop.permute.xlu0 %2173
        %2175 = vrot.lane.b32.xlu0 %v2125, 32
        %v2176 = vpop.permute.xlu0 %2175
        %2177 = vrot.lane.b32.xlu0 %v2128, 32
        %v2178 = vpop.permute.xlu0 %2177
        %2179 = vrot.lane.b32.xlu0 %v2130, 32
        %v2180 = vpop.permute.xlu0 %2179
        %2181 = vrot.lane.b32.xlu0 %v2133, 32
        %v2182 = vpop.permute.xlu0 %2181
        %2183 = vrot.lane.b32.xlu0 %v2135, 32
        %v2184 = vpop.permute.xlu0 %2183
        %v2201 = vadd.f32 %v376, %v2154
        %v2202 = vadd.f32 %v378, %v2156
        %v2203 = vadd.f32 %v381, %v2158
        %v2204 = vadd.f32 %v383, %v2160
        %v2205 = vadd.f32 %v386, %v2162
        %v2206 = vadd.f32 %v388, %v2164
        %v2207 = vadd.f32 %v391, %v2166
        %v2208 = vadd.f32 %v393, %v2168
        %v2209 = vadd.f32 %v396, %v2170
        %v2210 = vadd.f32 %v398, %v2172
        %v2211 = vadd.f32 %v401, %v2174
        %v2212 = vadd.f32 %v403, %v2176
        %v2213 = vadd.f32 %v406, %v2178
        %v2214 = vadd.f32 %v408, %v2180
        %v2215 = vadd.f32 %v411, %v2182
        %v2216 = vadd.f32 %v413, %v2184
        %v2217 = vmax.f32 %v2201, 0.0
        %v2218 = vmax.f32 %v2202, 0.0
        %v2219 = vmax.f32 %v2203, 0.0
        %v2220 = vmax.f32 %v2204, 0.0
        %v2221 = vmax.f32 %v2205, 0.0
        %v2222 = vmax.f32 %v2206, 0.0
        %v2223 = vmax.f32 %v2207, 0.0
        %v2224 = vmax.f32 %v2208, 0.0
        %v2225 = vmax.f32 %v2209, 0.0
        %v2226 = vmax.f32 %v2210, 0.0
        %v2227 = vmax.f32 %v2211, 0.0
        %v2228 = vmax.f32 %v2212, 0.0
        %v2229 = vmax.f32 %v2213, 0.0
        %v2230 = vmax.f32 %v2214, 0.0
        %v2231 = vmax.f32 %v2215, 0.0
        %v2232 = vmax.f32 %v2216, 0.0
        %2249 = vrot.lane.b32.xlu0 %v2217, 96
        %v2250 = vpop.permute.xlu0 %2249
        %2251 = vrot.lane.b32.xlu0 %v2218, 96
        %v2252 = vpop.permute.xlu0 %2251
        %2253 = vrot.lane.b32.xlu0 %v2219, 96
        %v2254 = vpop.permute.xlu0 %2253
        %2255 = vrot.lane.b32.xlu0 %v2220, 96
        %v2256 = vpop.permute.xlu0 %2255
        %2257 = vrot.lane.b32.xlu0 %v2221, 96
        %v2258 = vpop.permute.xlu0 %2257
        %2259 = vrot.lane.b32.xlu0 %v2222, 96
        %v2260 = vpop.permute.xlu0 %2259
        %2261 = vrot.lane.b32.xlu0 %v2223, 96
        %v2262 = vpop.permute.xlu0 %2261
        %2263 = vrot.lane.b32.xlu0 %v2224, 96
        %v2264 = vpop.permute.xlu0 %2263
        %2265 = vrot.lane.b32.xlu0 %v2225, 96
        %v2266 = vpop.permute.xlu0 %2265
        %2267 = vrot.lane.b32.xlu0 %v2226, 96
        %v2268 = vpop.permute.xlu0 %2267
        %2269 = vrot.lane.b32.xlu0 %v2227, 96
        %v2270 = vpop.permute.xlu0 %2269
        %2271 = vrot.lane.b32.xlu0 %v2228, 96
        %v2272 = vpop.permute.xlu0 %2271
        %2273 = vrot.lane.b32.xlu0 %v2229, 96
        %v2274 = vpop.permute.xlu0 %2273
        %2275 = vrot.lane.b32.xlu0 %v2230, 96
        %v2276 = vpop.permute.xlu0 %2275
        %2277 = vrot.lane.b32.xlu0 %v2231, 96
        %v2278 = vpop.permute.xlu0 %2277
        %2279 = vrot.lane.b32.xlu0 %v2232, 96
        %v2280 = vpop.permute.xlu0 %2279
        %v2297 = vadd.f32 %v301, %v2250
        %v2298 = vadd.f32 %v302, %v2252
        %v2299 = vadd.f32 %v303, %v2254
        %v2300 = vadd.f32 %v304, %v2256
        %v2301 = vadd.f32 %v305, %v2258
        %v2302 = vadd.f32 %v306, %v2260
        %v2303 = vadd.f32 %v307, %v2262
        %v2304 = vadd.f32 %v308, %v2264
        %v2305 = vadd.f32 %v309, %v2266
        %v2306 = vadd.f32 %v310, %v2268
        %v2307 = vadd.f32 %v311, %v2270
        %v2308 = vadd.f32 %v312, %v2272
        %v2309 = vadd.f32 %v313, %v2274
        %v2310 = vadd.f32 %v314, %v2276
        %v2311 = vadd.f32 %v315, %v2278
        %v2312 = vadd.f32 %v316, %v2280
        %v2313 = vperm.slane %v447, 2
        %v2314 = vperm.slane %v447, 6
        %v2317 = vperm.slane %v2313, 2
        %v2318 = vperm.slane %v2314, 2
        %2319 = vset.pattern.permute.xlu0 2
        %2320 = vperm.xlu0 %2319, %v448
        %v2321 = vpop.permute.xlu0 %2320
        %2323 = vset.pattern.permute.xlu0 2
        %2324 = vperm.xlu0 %2323, %v449
        %v2325 = vpop.permute.xlu0 %2324
        %2327 = vset.pattern.permute.xlu0 2
        %2328 = vperm.xlu0 %2327, %v450
        %v2329 = vpop.permute.xlu0 %2328
        %2331 = vset.pattern.permute.xlu0 2
        %2332 = vperm.xlu0 %2331, %v451
        %v2333 = vpop.permute.xlu0 %2332
        %2335 = vset.pattern.permute.xlu0 2
        %2336 = vperm.xlu0 %2335, %v452
        %v2337 = vpop.permute.xlu0 %2336
        %2339 = vset.pattern.permute.xlu0 2
        %2340 = vperm.xlu0 %2339, %v453
        %v2341 = vpop.permute.xlu0 %2340
        %2343 = vset.pattern.permute.xlu0 2
        %2344 = vperm.xlu0 %2343, %v454
        %v2345 = vpop.permute.xlu0 %2344
        %2347 = vset.pattern.permute.xlu0 2
        %2348 = vperm.xlu0 %2347, %v455
        %v2349 = vpop.permute.xlu0 %2348
        %2351 = vset.pattern.permute.xlu0 2
        %2352 = vperm.xlu0 %2351, %v456
        %v2353 = vpop.permute.xlu0 %2352
        %2355 = vset.pattern.permute.xlu0 2
        %2356 = vperm.xlu0 %2355, %v457
        %v2357 = vpop.permute.xlu0 %2356
        %2359 = vset.pattern.permute.xlu0 2
        %2360 = vperm.xlu0 %2359, %v458
        %v2361 = vpop.permute.xlu0 %2360
        %2363 = vset.pattern.permute.xlu0 2
        %2364 = vperm.xlu0 %2363, %v459
        %v2365 = vpop.permute.xlu0 %2364
        %2367 = vset.pattern.permute.xlu0 2
        %2368 = vperm.xlu0 %2367, %v460
        %v2369 = vpop.permute.xlu0 %2368
        %2371 = vset.pattern.permute.xlu0 2
        %2372 = vperm.xlu0 %2371, %v461
        %v2373 = vpop.permute.xlu0 %2372
        %2375 = vset.pattern.permute.xlu0 2
        %2376 = vperm.xlu0 %2375, %v462
        %v2377 = vpop.permute.xlu0 %2376
        %2379 = vset.pattern.permute.xlu0 2
        %2380 = vperm.xlu0 %2379, %v463
        %v2381 = vpop.permute.xlu0 %2380
        %v2383 = vadd.f32 %v2317, %v2321
        %v2384 = vadd.f32 %v2318, %v2321
        %v2385 = vadd.f32 %v2317, %v2325
        %v2386 = vadd.f32 %v2318, %v2325
        %v2387 = vadd.f32 %v2317, %v2329
        %v2388 = vadd.f32 %v2318, %v2329
        %v2389 = vadd.f32 %v2317, %v2333
        %v2390 = vadd.f32 %v2318, %v2333
        %v2391 = vadd.f32 %v2317, %v2337
        %v2392 = vadd.f32 %v2318, %v2337
        %v2393 = vadd.f32 %v2317, %v2341
        %v2394 = vadd.f32 %v2318, %v2341
        %v2395 = vadd.f32 %v2317, %v2345
        %v2396 = vadd.f32 %v2318, %v2345
        %v2397 = vadd.f32 %v2317, %v2349
        %v2398 = vadd.f32 %v2318, %v2349
        %v2399 = vadd.f32 %v2317, %v2353
        %v2400 = vadd.f32 %v2318, %v2353
        %v2401 = vadd.f32 %v2317, %v2357
        %v2402 = vadd.f32 %v2318, %v2357
        %v2403 = vadd.f32 %v2317, %v2361
        %v2404 = vadd.f32 %v2318, %v2361
        %v2405 = vadd.f32 %v2317, %v2365
        %v2406 = vadd.f32 %v2318, %v2365
        %v2407 = vadd.f32 %v2317, %v2369
        %v2408 = vadd.f32 %v2318, %v2369
        %v2409 = vadd.f32 %v2317, %v2373
        %v2410 = vadd.f32 %v2318, %v2373
        %v2411 = vadd.f32 %v2317, %v2377
        %v2412 = vadd.f32 %v2318, %v2377
        %v2413 = vadd.f32 %v2317, %v2381
        %v2414 = vadd.f32 %v2318, %v2381
        %v2415 = vmul.f32 %v2383, 0.01
        %v2416 = vmul.f32 %v2384, 0.01
        %v2417 = vmul.f32 %v2385, 0.01
        %v2418 = vmul.f32 %v2386, 0.01
        %v2419 = vmul.f32 %v2387, 0.01
        %v2420 = vmul.f32 %v2388, 0.01
        %v2421 = vmul.f32 %v2389, 0.01
        %v2422 = vmul.f32 %v2390, 0.01
        %v2423 = vmul.f32 %v2391, 0.01
        %v2424 = vmul.f32 %v2392, 0.01
        %v2425 = vmul.f32 %v2393, 0.01
        %v2426 = vmul.f32 %v2394, 0.01
        %v2427 = vmul.f32 %v2395, 0.01
        %v2428 = vmul.f32 %v2396, 0.01
        %v2429 = vmul.f32 %v2397, 0.01
        %v2430 = vmul.f32 %v2398, 0.01
        %v2431 = vmul.f32 %v2399, 0.01
        %v2432 = vmul.f32 %v2400, 0.01
        %v2433 = vmul.f32 %v2401, 0.01
        %v2434 = vmul.f32 %v2402, 0.01
        %v2435 = vmul.f32 %v2403, 0.01
        %v2436 = vmul.f32 %v2404, 0.01
        %v2437 = vmul.f32 %v2405, 0.01
        %v2438 = vmul.f32 %v2406, 0.01
        %v2439 = vmul.f32 %v2407, 0.01
        %v2440 = vmul.f32 %v2408, 0.01
        %v2441 = vmul.f32 %v2409, 0.01
        %v2442 = vmul.f32 %v2410, 0.01
        %v2443 = vmul.f32 %v2411, 0.01
        %v2444 = vmul.f32 %v2412, 0.01
        %v2445 = vmul.f32 %v2413, 0.01
        %v2446 = vmul.f32 %v2414, 0.01
        %v2447 = vmax.f32 %v2383, %v2415
        %v2448 = vmax.f32 %v2384, %v2416
        %v2449 = vmax.f32 %v2385, %v2417
        %v2450 = vmax.f32 %v2386, %v2418
        %v2451 = vmax.f32 %v2387, %v2419
        %v2452 = vmax.f32 %v2388, %v2420
        %v2453 = vmax.f32 %v2389, %v2421
        %v2454 = vmax.f32 %v2390, %v2422
        %v2455 = vmax.f32 %v2391, %v2423
        %v2456 = vmax.f32 %v2392, %v2424
        %v2457 = vmax.f32 %v2393, %v2425
        %v2458 = vmax.f32 %v2394, %v2426
        %v2459 = vmax.f32 %v2395, %v2427
        %v2460 = vmax.f32 %v2396, %v2428
        %v2461 = vmax.f32 %v2397, %v2429
        %v2462 = vmax.f32 %v2398, %v2430
        %v2463 = vmax.f32 %v2399, %v2431
        %v2464 = vmax.f32 %v2400, %v2432
        %v2465 = vmax.f32 %v2401, %v2433
        %v2466 = vmax.f32 %v2402, %v2434
        %v2467 = vmax.f32 %v2403, %v2435
        %v2468 = vmax.f32 %v2404, %v2436
        %v2469 = vmax.f32 %v2405, %v2437
        %v2470 = vmax.f32 %v2406, %v2438
        %v2471 = vmax.f32 %v2407, %v2439
        %v2472 = vmax.f32 %v2408, %v2440
        %v2473 = vmax.f32 %v2409, %v2441
        %v2474 = vmax.f32 %v2410, %v2442
        %v2475 = vmax.f32 %v2411, %v2443
        %v2476 = vmax.f32 %v2412, %v2444
        %v2477 = vmax.f32 %v2413, %v2445
        %v2478 = vmax.f32 %v2414, %v2446
        %v2479 = vadd.f32 %v2447, %v536
        %v2480 = vadd.f32 %v2448, %v537
        %v2481 = vadd.f32 %v2449, %v538
        %v2482 = vadd.f32 %v2450, %v539
        %v2483 = vadd.f32 %v2451, %v540
        %v2484 = vadd.f32 %v2452, %v541
        %v2485 = vadd.f32 %v2453, %v542
        %v2486 = vadd.f32 %v2454, %v543
        %v2487 = vadd.f32 %v2455, %v544
        %v2488 = vadd.f32 %v2456, %v545
        %v2489 = vadd.f32 %v2457, %v546
        %v2490 = vadd.f32 %v2458, %v547
        %v2491 = vadd.f32 %v2459, %v548
        %v2492 = vadd.f32 %v2460, %v549
        %v2493 = vadd.f32 %v2461, %v550
        %v2494 = vadd.f32 %v2462, %v551
        %v2495 = vadd.f32 %v2463, %v552
        %v2496 = vadd.f32 %v2464, %v553
        %v2497 = vadd.f32 %v2465, %v554
        %v2498 = vadd.f32 %v2466, %v555
        %v2499 = vadd.f32 %v2467, %v556
        %v2500 = vadd.f32 %v2468, %v557
        %v2501 = vadd.f32 %v2469, %v558
        %v2502 = vadd.f32 %v2470, %v559
        %v2503 = vadd.f32 %v2471, %v560
        %v2504 = vadd.f32 %v2472, %v561
        %v2505 = vadd.f32 %v2473, %v562
        %v2506 = vadd.f32 %v2474, %v563
        %v2507 = vadd.f32 %v2475, %v564
        %v2508 = vadd.f32 %v2476, %v565
        %v2509 = vadd.f32 %v2477, %v566
        %v2510 = vadd.f32 %v2478, %v567
        %v2511 = vmax.f32 %v2479, %v2480
        %2512 = vmax.xlane.f32.xlu0 %v2511
        %v2513 = vpop.xlane.xlu0 %2512
        %v2514 = vmax.f32 %v2481, %v2482
        %2515 = vmax.xlane.f32.xlu0 %v2514
        %v2516 = vpop.xlane.xlu0 %2515
        %v2517 = vmax.f32 %v2483, %v2484
        %2518 = vmax.xlane.f32.xlu0 %v2517
        %v2519 = vpop.xlane.xlu0 %2518
        %v2520 = vmax.f32 %v2485, %v2486
        %2521 = vmax.xlane.f32.xlu0 %v2520
        %v2522 = vpop.xlane.xlu0 %2521
        %v2523 = vmax.f32 %v2487, %v2488
        %2524 = vmax.xlane.f32.xlu0 %v2523
        %v2525 = vpop.xlane.xlu0 %2524
        %v2526 = vmax.f32 %v2489, %v2490
        %2527 = vmax.xlane.f32.xlu0 %v2526
        %v2528 = vpop.xlane.xlu0 %2527
        %v2529 = vmax.f32 %v2491, %v2492
        %2530 = vmax.xlane.f32.xlu0 %v2529
        %v2531 = vpop.xlane.xlu0 %2530
        %v2532 = vmax.f32 %v2493, %v2494
        %2533 = vmax.xlane.f32.xlu0 %v2532
        %v2534 = vpop.xlane.xlu0 %2533
        %v2535 = vmax.f32 %v2495, %v2496
        %2536 = vmax.xlane.f32.xlu0 %v2535
        %v2537 = vpop.xlane.xlu0 %2536
        %v2538 = vmax.f32 %v2497, %v2498
        %2539 = vmax.xlane.f32.xlu0 %v2538
        %v2540 = vpop.xlane.xlu0 %2539
        %v2541 = vmax.f32 %v2499, %v2500
        %2542 = vmax.xlane.f32.xlu0 %v2541
        %v2543 = vpop.xlane.xlu0 %2542
        %v2544 = vmax.f32 %v2501, %v2502
        %2545 = vmax.xlane.f32.xlu0 %v2544
        %v2546 = vpop.xlane.xlu0 %2545
        %v2547 = vmax.f32 %v2503, %v2504
        %2548 = vmax.xlane.f32.xlu0 %v2547
        %v2549 = vpop.xlane.xlu0 %2548
        %v2550 = vmax.f32 %v2505, %v2506
        %2551 = vmax.xlane.f32.xlu0 %v2550
        %v2552 = vpop.xlane.xlu0 %2551
        %v2553 = vmax.f32 %v2507, %v2508
        %2554 = vmax.xlane.f32.xlu0 %v2553
        %v2555 = vpop.xlane.xlu0 %2554
        %v2556 = vmax.f32 %v2509, %v2510
        %2557 = vmax.xlane.f32.xlu0 %v2556
        %v2558 = vpop.xlane.xlu0 %2557
        %v2559 = vsub.f32 %v2479, %v2513
        %v2560 = vsub.f32 %v2480, %v2513
        %v2561 = vsub.f32 %v2481, %v2516
        %v2562 = vsub.f32 %v2482, %v2516
        %v2563 = vsub.f32 %v2483, %v2519
        %v2564 = vsub.f32 %v2484, %v2519
        %v2565 = vsub.f32 %v2485, %v2522
        %v2566 = vsub.f32 %v2486, %v2522
        %v2567 = vsub.f32 %v2487, %v2525
        %v2568 = vsub.f32 %v2488, %v2525
        %v2569 = vsub.f32 %v2489, %v2528
        %v2570 = vsub.f32 %v2490, %v2528
        %v2571 = vsub.f32 %v2491, %v2531
        %v2572 = vsub.f32 %v2492, %v2531
        %v2573 = vsub.f32 %v2493, %v2534
        %v2574 = vsub.f32 %v2494, %v2534
        %v2575 = vsub.f32 %v2495, %v2537
        %v2576 = vsub.f32 %v2496, %v2537
        %v2577 = vsub.f32 %v2497, %v2540
        %v2578 = vsub.f32 %v2498, %v2540
        %v2579 = vsub.f32 %v2499, %v2543
        %v2580 = vsub.f32 %v2500, %v2543
        %v2581 = vsub.f32 %v2501, %v2546
        %v2582 = vsub.f32 %v2502, %v2546
        %v2583 = vsub.f32 %v2503, %v2549
        %v2584 = vsub.f32 %v2504, %v2549
        %v2585 = vsub.f32 %v2505, %v2552
        %v2586 = vsub.f32 %v2506, %v2552
        %v2587 = vsub.f32 %v2507, %v2555
        %v2588 = vsub.f32 %v2508, %v2555
        %v2589 = vsub.f32 %v2509, %v2558
        %v2590 = vsub.f32 %v2510, %v2558
        %v2591 = vpack.c.bf16 %v2560, %v2559
        %v2592 = vpack.c.bf16 %v2562, %v2561
        %v2593 = vpack.c.bf16 %v2564, %v2563
        %v2594 = vpack.c.bf16 %v2566, %v2565
        %v2595 = vpack.c.bf16 %v2568, %v2567
        %v2596 = vpack.c.bf16 %v2570, %v2569
        %v2597 = vpack.c.bf16 %v2572, %v2571
        %v2598 = vpack.c.bf16 %v2574, %v2573
        %v2599 = vpack.c.bf16 %v2576, %v2575
        %v2600 = vpack.c.bf16 %v2578, %v2577
        %v2601 = vpack.c.bf16 %v2580, %v2579
        %v2602 = vpack.c.bf16 %v2582, %v2581
        %v2603 = vpack.c.bf16 %v2584, %v2583
        %v2604 = vpack.c.bf16 %v2586, %v2585
        %v2605 = vpack.c.bf16 %v2588, %v2587
        %v2606 = vpack.c.bf16 %v2590, %v2589
        %v2607 = vunpack.c.l.bf16 %v2591
        %v2608 = vunpack.c.h.bf16 %v2591
        %v2609 = vunpack.c.l.bf16 %v2592
        %v2610 = vunpack.c.h.bf16 %v2592
        %v2611 = vunpack.c.l.bf16 %v2593
        %v2612 = vunpack.c.h.bf16 %v2593
        %v2613 = vunpack.c.l.bf16 %v2594
        %v2614 = vunpack.c.h.bf16 %v2594
        %v2615 = vunpack.c.l.bf16 %v2595
        %v2616 = vunpack.c.h.bf16 %v2595
        %v2617 = vunpack.c.l.bf16 %v2596
        %v2618 = vunpack.c.h.bf16 %v2596
        %v2619 = vunpack.c.l.bf16 %v2597
        %v2620 = vunpack.c.h.bf16 %v2597
        %v2621 = vunpack.c.l.bf16 %v2598
        %v2622 = vunpack.c.h.bf16 %v2598
        %v2623 = vunpack.c.l.bf16 %v2599
        %v2624 = vunpack.c.h.bf16 %v2599
        %v2625 = vunpack.c.l.bf16 %v2600
        %v2626 = vunpack.c.h.bf16 %v2600
        %v2627 = vunpack.c.l.bf16 %v2601
        %v2628 = vunpack.c.h.bf16 %v2601
        %v2629 = vunpack.c.l.bf16 %v2602
        %v2630 = vunpack.c.h.bf16 %v2602
        %v2631 = vunpack.c.l.bf16 %v2603
        %v2632 = vunpack.c.h.bf16 %v2603
        %v2633 = vunpack.c.l.bf16 %v2604
        %v2634 = vunpack.c.h.bf16 %v2604
        %v2635 = vunpack.c.l.bf16 %v2605
        %v2636 = vunpack.c.h.bf16 %v2605
        %v2637 = vunpack.c.l.bf16 %v2606
        %v2638 = vunpack.c.h.bf16 %v2606
        %v2639 = vmul.f32 %v2607, 1.442695
        %v2640 = vpow.pop %v2639
        %v2641 = vmul.f32 %v2608, 1.442695
        %v2642 = vpow.pop %v2641
        %v2643 = vmul.f32 %v2609, 1.442695
        %v2644 = vpow.pop %v2643
        %v2645 = vmul.f32 %v2610, 1.442695
        %v2646 = vpow.pop %v2645
        %v2647 = vmul.f32 %v2611, 1.442695
        %v2648 = vpow.pop %v2647
        %v2649 = vmul.f32 %v2612, 1.442695
        %v2650 = vpow.pop %v2649
        %v2651 = vmul.f32 %v2613, 1.442695
        %v2652 = vpow.pop %v2651
        %v2653 = vmul.f32 %v2614, 1.442695
        %v2654 = vpow.pop %v2653
        %v2655 = vmul.f32 %v2615, 1.442695
        %v2656 = vpow.pop %v2655
        %v2657 = vmul.f32 %v2616, 1.442695
        %v2658 = vpow.pop %v2657
        %v2659 = vmul.f32 %v2617, 1.442695
        %v2660 = vpow.pop %v2659
        %v2661 = vmul.f32 %v2618, 1.442695
        %v2662 = vpow.pop %v2661
        %v2663 = vmul.f32 %v2619, 1.442695
        %v2664 = vpow.pop %v2663
        %v2665 = vmul.f32 %v2620, 1.442695
        %v2666 = vpow.pop %v2665
        %v2667 = vmul.f32 %v2621, 1.442695
        %v2668 = vpow.pop %v2667
        %v2669 = vmul.f32 %v2622, 1.442695
        %v2670 = vpow.pop %v2669
        %v2671 = vmul.f32 %v2623, 1.442695
        %v2672 = vpow.pop %v2671
        %v2673 = vmul.f32 %v2624, 1.442695
        %v2674 = vpow.pop %v2673
        %v2675 = vmul.f32 %v2625, 1.442695
        %v2676 = vpow.pop %v2675
        %v2677 = vmul.f32 %v2626, 1.442695
        %v2678 = vpow.pop %v2677
        %v2679 = vmul.f32 %v2627, 1.442695
        %v2680 = vpow.pop %v2679
        %v2681 = vmul.f32 %v2628, 1.442695
        %v2682 = vpow.pop %v2681
        %v2683 = vmul.f32 %v2629, 1.442695
        %v2684 = vpow.pop %v2683
        %v2685 = vmul.f32 %v2630, 1.442695
        %v2686 = vpow.pop %v2685
        %v2687 = vmul.f32 %v2631, 1.442695
        %v2688 = vpow.pop %v2687
        %v2689 = vmul.f32 %v2632, 1.442695
        %v2690 = vpow.pop %v2689
        %v2691 = vmul.f32 %v2633, 1.442695
        %v2692 = vpow.pop %v2691
        %v2693 = vmul.f32 %v2634, 1.442695
        %v2694 = vpow.pop %v2693
        %v2695 = vmul.f32 %v2635, 1.442695
        %v2696 = vpow.pop %v2695
        %v2697 = vmul.f32 %v2636, 1.442695
        %v2698 = vpow.pop %v2697
        %v2699 = vmul.f32 %v2637, 1.442695
        %v2700 = vpow.pop %v2699
        %v2701 = vmul.f32 %v2638, 1.442695
        %v2702 = vpow.pop %v2701
        %v2703 = vpack.c.bf16 %v2642, %v2640
        %v2704 = vpack.c.bf16 %v2646, %v2644
        %v2705 = vpack.c.bf16 %v2650, %v2648
        %v2706 = vpack.c.bf16 %v2654, %v2652
        %v2707 = vpack.c.bf16 %v2658, %v2656
        %v2708 = vpack.c.bf16 %v2662, %v2660
        %v2709 = vpack.c.bf16 %v2666, %v2664
        %v2710 = vpack.c.bf16 %v2670, %v2668
        %v2711 = vpack.c.bf16 %v2674, %v2672
        %v2712 = vpack.c.bf16 %v2678, %v2676
        %v2713 = vpack.c.bf16 %v2682, %v2680
        %v2714 = vpack.c.bf16 %v2686, %v2684
        %v2715 = vpack.c.bf16 %v2690, %v2688
        %v2716 = vpack.c.bf16 %v2694, %v2692
        %v2717 = vpack.c.bf16 %v2698, %v2696
        %v2718 = vpack.c.bf16 %v2702, %v2700
        %v2719 = vunpack.c.l.bf16 %v2703
        %v2720 = vunpack.c.h.bf16 %v2703
        %v2721 = vunpack.c.l.bf16 %v2704
        %v2722 = vunpack.c.h.bf16 %v2704
        %v2723 = vunpack.c.l.bf16 %v2705
        %v2724 = vunpack.c.h.bf16 %v2705
        %v2725 = vunpack.c.l.bf16 %v2706
        %v2726 = vunpack.c.h.bf16 %v2706
        %v2727 = vunpack.c.l.bf16 %v2707
        %v2728 = vunpack.c.h.bf16 %v2707
        %v2729 = vunpack.c.l.bf16 %v2708
        %v2730 = vunpack.c.h.bf16 %v2708
        %v2731 = vunpack.c.l.bf16 %v2709
        %v2732 = vunpack.c.h.bf16 %v2709
        %v2733 = vunpack.c.l.bf16 %v2710
        %v2734 = vunpack.c.h.bf16 %v2710
        %v2735 = vunpack.c.l.bf16 %v2711
        %v2736 = vunpack.c.h.bf16 %v2711
        %v2737 = vunpack.c.l.bf16 %v2712
        %v2738 = vunpack.c.h.bf16 %v2712
        %v2739 = vunpack.c.l.bf16 %v2713
        %v2740 = vunpack.c.h.bf16 %v2713
        %v2741 = vunpack.c.l.bf16 %v2714
        %v2742 = vunpack.c.h.bf16 %v2714
        %v2743 = vunpack.c.l.bf16 %v2715
        %v2744 = vunpack.c.h.bf16 %v2715
        %v2745 = vunpack.c.l.bf16 %v2716
        %v2746 = vunpack.c.h.bf16 %v2716
        %v2747 = vunpack.c.l.bf16 %v2717
        %v2748 = vunpack.c.h.bf16 %v2717
        %v2749 = vunpack.c.l.bf16 %v2718
        %v2750 = vunpack.c.h.bf16 %v2718
        %v2751 = vadd.f32 %v2719, %v2720
        %2752 = vadd.xlane.f32.xlu0 %v2751
        %v2753 = vpop.xlane.xlu0 %2752
        %v2754 = vadd.f32 %v2721, %v2722
        %2755 = vadd.xlane.f32.xlu0 %v2754
        %v2756 = vpop.xlane.xlu0 %2755
        %v2757 = vadd.f32 %v2723, %v2724
        %2758 = vadd.xlane.f32.xlu0 %v2757
        %v2759 = vpop.xlane.xlu0 %2758
        %v2760 = vadd.f32 %v2725, %v2726
        %2761 = vadd.xlane.f32.xlu0 %v2760
        %v2762 = vpop.xlane.xlu0 %2761
        %v2763 = vadd.f32 %v2727, %v2728
        %2764 = vadd.xlane.f32.xlu0 %v2763
        %v2765 = vpop.xlane.xlu0 %2764
        %v2766 = vadd.f32 %v2729, %v2730
        %2767 = vadd.xlane.f32.xlu0 %v2766
        %v2768 = vpop.xlane.xlu0 %2767
        %v2769 = vadd.f32 %v2731, %v2732
        %2770 = vadd.xlane.f32.xlu0 %v2769
        %v2771 = vpop.xlane.xlu0 %2770
        %v2772 = vadd.f32 %v2733, %v2734
        %2773 = vadd.xlane.f32.xlu0 %v2772
        %v2774 = vpop.xlane.xlu0 %2773
        %v2775 = vadd.f32 %v2735, %v2736
        %2776 = vadd.xlane.f32.xlu0 %v2775
        %v2777 = vpop.xlane.xlu0 %2776
        %v2778 = vadd.f32 %v2737, %v2738
        %2779 = vadd.xlane.f32.xlu0 %v2778
        %v2780 = vpop.xlane.xlu0 %2779
        %v2781 = vadd.f32 %v2739, %v2740
        %2782 = vadd.xlane.f32.xlu0 %v2781
        %v2783 = vpop.xlane.xlu0 %2782
        %v2784 = vadd.f32 %v2741, %v2742
        %2785 = vadd.xlane.f32.xlu0 %v2784
        %v2786 = vpop.xlane.xlu0 %2785
        %v2787 = vadd.f32 %v2743, %v2744
        %2788 = vadd.xlane.f32.xlu0 %v2787
        %v2789 = vpop.xlane.xlu0 %2788
        %v2790 = vadd.f32 %v2745, %v2746
        %2791 = vadd.xlane.f32.xlu0 %v2790
        %v2792 = vpop.xlane.xlu0 %2791
        %v2793 = vadd.f32 %v2747, %v2748
        %2794 = vadd.xlane.f32.xlu0 %v2793
        %v2795 = vpop.xlane.xlu0 %2794
        %v2796 = vadd.f32 %v2749, %v2750
        %2797 = vadd.xlane.f32.xlu0 %v2796
        %v2798 = vpop.xlane.xlu0 %2797
        %v2799 = vrcp.pop %v2753
        %v2800 = vrcp.pop %v2756
        %v2801 = vrcp.pop %v2759
        %v2802 = vrcp.pop %v2762
        %v2803 = vrcp.pop %v2765
        %v2804 = vrcp.pop %v2768
        %v2805 = vrcp.pop %v2771
        %v2806 = vrcp.pop %v2774
        %v2807 = vrcp.pop %v2777
        %v2808 = vrcp.pop %v2780
        %v2809 = vrcp.pop %v2783
        %v2810 = vrcp.pop %v2786
        %v2811 = vrcp.pop %v2789
        %v2812 = vrcp.pop %v2792
        %v2813 = vrcp.pop %v2795
        %v2814 = vrcp.pop %v2798
        %v2815 = vpack.c.bf16 %v2799, %v2799
        %v2816 = vpack.c.bf16 %v2800, %v2800
        %v2817 = vpack.c.bf16 %v2801, %v2801
        %v2818 = vpack.c.bf16 %v2802, %v2802
        %v2819 = vpack.c.bf16 %v2803, %v2803
        %v2820 = vpack.c.bf16 %v2804, %v2804
        %v2821 = vpack.c.bf16 %v2805, %v2805
        %v2822 = vpack.c.bf16 %v2806, %v2806
        %v2823 = vpack.c.bf16 %v2807, %v2807
        %v2824 = vpack.c.bf16 %v2808, %v2808
        %v2825 = vpack.c.bf16 %v2809, %v2809
        %v2826 = vpack.c.bf16 %v2810, %v2810
        %v2827 = vpack.c.bf16 %v2811, %v2811
        %v2828 = vpack.c.bf16 %v2812, %v2812
        %v2829 = vpack.c.bf16 %v2813, %v2813
        %v2830 = vpack.c.bf16 %v2814, %v2814
        %v2831 = vunpack.c.l.bf16 %v2815
        %v2832 = vunpack.c.l.bf16 %v2816
        %v2833 = vunpack.c.l.bf16 %v2817
        %v2834 = vunpack.c.l.bf16 %v2818
        %v2835 = vunpack.c.l.bf16 %v2819
        %v2836 = vunpack.c.l.bf16 %v2820
        %v2837 = vunpack.c.l.bf16 %v2821
        %v2838 = vunpack.c.l.bf16 %v2822
        %v2839 = vunpack.c.l.bf16 %v2823
        %v2840 = vunpack.c.l.bf16 %v2824
        %v2841 = vunpack.c.l.bf16 %v2825
        %v2842 = vunpack.c.l.bf16 %v2826
        %v2843 = vunpack.c.l.bf16 %v2827
        %v2844 = vunpack.c.l.bf16 %v2828
        %v2845 = vunpack.c.l.bf16 %v2829
        %v2846 = vunpack.c.l.bf16 %v2830
        %v2847 = vmul.f32 %v2719, %v2831
        %v2848 = vmul.f32 %v2720, %v2831
        %v2849 = vmul.f32 %v2721, %v2832
        %v2850 = vmul.f32 %v2722, %v2832
        %v2851 = vmul.f32 %v2723, %v2833
        %v2852 = vmul.f32 %v2724, %v2833
        %v2853 = vmul.f32 %v2725, %v2834
        %v2854 = vmul.f32 %v2726, %v2834
        %v2855 = vmul.f32 %v2727, %v2835
        %v2856 = vmul.f32 %v2728, %v2835
        %v2857 = vmul.f32 %v2729, %v2836
        %v2858 = vmul.f32 %v2730, %v2836
        %v2859 = vmul.f32 %v2731, %v2837
        %v2860 = vmul.f32 %v2732, %v2837
        %v2861 = vmul.f32 %v2733, %v2838
        %v2862 = vmul.f32 %v2734, %v2838
        %v2863 = vmul.f32 %v2735, %v2839
        %v2864 = vmul.f32 %v2736, %v2839
        %v2865 = vmul.f32 %v2737, %v2840
        %v2866 = vmul.f32 %v2738, %v2840
        %v2867 = vmul.f32 %v2739, %v2841
        %v2868 = vmul.f32 %v2740, %v2841
        %v2869 = vmul.f32 %v2741, %v2842
        %v2870 = vmul.f32 %v2742, %v2842
        %v2871 = vmul.f32 %v2743, %v2843
        %v2872 = vmul.f32 %v2744, %v2843
        %v2873 = vmul.f32 %v2745, %v2844
        %v2874 = vmul.f32 %v2746, %v2844
        %v2875 = vmul.f32 %v2747, %v2845
        %v2876 = vmul.f32 %v2748, %v2845
        %v2877 = vmul.f32 %v2749, %v2846
        %v2878 = vmul.f32 %v2750, %v2846
        %v2879 = vpack.c.bf16 %v2849, %v2847
        %v2880 = vpack.c.bf16 %v2850, %v2848
        %v2881 = vpack.c.bf16 %v2853, %v2851
        %v2882 = vpack.c.bf16 %v2854, %v2852
        %v2883 = vpack.c.bf16 %v2857, %v2855
        %v2884 = vpack.c.bf16 %v2858, %v2856
        %v2885 = vpack.c.bf16 %v2861, %v2859
        %v2886 = vpack.c.bf16 %v2862, %v2860
        %v2887 = vpack.c.bf16 %v2865, %v2863
        %v2888 = vpack.c.bf16 %v2866, %v2864
        %v2889 = vpack.c.bf16 %v2869, %v2867
        %v2890 = vpack.c.bf16 %v2870, %v2868
        %v2891 = vpack.c.bf16 %v2873, %v2871
        %v2892 = vpack.c.bf16 %v2874, %v2872
        %v2893 = vpack.c.bf16 %v2877, %v2875
        %v2894 = vpack.c.bf16 %v2878, %v2876
        %2895 = vrot.lane.b32.xlu0 %v1231, 64
        %v2896 = vpop.permute.xlu0 %2895
        %2897 = vrot.lane.b32.xlu0 %v1232, 64
        %v2898 = vpop.permute.xlu0 %2897
        %2899 = vrot.lane.b32.xlu0 %v1233, 64
        %v2900 = vpop.permute.xlu0 %2899
        %2901 = vrot.lane.b32.xlu0 %v1234, 64
        %v2902 = vpop.permute.xlu0 %2901
        %2903 = vrot.lane.b32.xlu0 %v1235, 64
        %v2904 = vpop.permute.xlu0 %2903
        %2905 = vrot.lane.b32.xlu0 %v1236, 64
        %v2906 = vpop.permute.xlu0 %2905
        %2907 = vrot.lane.b32.xlu0 %v1237, 64
        %v2908 = vpop.permute.xlu0 %2907
        %2909 = vrot.lane.b32.xlu0 %v1238, 64
        %v2910 = vpop.permute.xlu0 %2909
        %2911 = vrot.lane.b32.xlu0 %v1239, 64
        %v2912 = vpop.permute.xlu0 %2911
        %2913 = vrot.lane.b32.xlu0 %v1240, 64
        %v2914 = vpop.permute.xlu0 %2913
        %2915 = vrot.lane.b32.xlu0 %v1241, 64
        %v2916 = vpop.permute.xlu0 %2915
        %2917 = vrot.lane.b32.xlu0 %v1242, 64
        %v2918 = vpop.permute.xlu0 %2917
        %2919 = vrot.lane.b32.xlu0 %v1243, 64
        %v2920 = vpop.permute.xlu0 %2919
        %2921 = vrot.lane.b32.xlu0 %v1244, 64
        %v2922 = vpop.permute.xlu0 %2921
        %2923 = vrot.lane.b32.xlu0 %v1245, 64
        %v2924 = vpop.permute.xlu0 %2923
        %2925 = vrot.lane.b32.xlu0 %v1246, 64
        %v2926 = vpop.permute.xlu0 %2925
        %2943 = vmatpush.bf16.msra.mxu0 %v2910
        %2944 = vmatpush.bf16.msra.mxu0 %v2908
        %2945 = vmatpush.bf16.msra.mxu0 %v2906
        %2946 = vmatpush.bf16.msra.mxu0 %v2904
        %2947 = vmatpush.bf16.msra.mxu0 %v2902
        %2948 = vmatpush.bf16.msra.mxu0 %v2900
        %2949 = vmatpush.bf16.msra.mxu0 %v2898
        %2950 = vmatpush.bf16.msra.mxu0 %v2896
        %2951 = vmatmul.bf16.gmra.mxu0 %v2879
        %v2952 = vpop.f32.mrf.mxu0
        %v2953 = vadd.f32 0.0, %v2952
        %v2954 = vpop.f32.mrf.mxu0
        %v2955 = vadd.f32 0.0, %v2954
        %2956 = vmatmul.bf16.gmra.mxu0 %v2881
        %v2957 = vpop.f32.mrf.mxu0
        %v2958 = vadd.f32 0.0, %v2957
        %v2959 = vpop.f32.mrf.mxu0
        %v2960 = vadd.f32 0.0, %v2959
        %2961 = vmatmul.bf16.gmra.mxu0 %v2883
        %v2962 = vpop.f32.mrf.mxu0
        %v2963 = vadd.f32 0.0, %v2962
        %v2964 = vpop.f32.mrf.mxu0
        %v2965 = vadd.f32 0.0, %v2964
        %2966 = vmatmul.bf16.gmra.mxu0 %v2885
        %v2967 = vpop.f32.mrf.mxu0
        %v2968 = vadd.f32 0.0, %v2967
        %v2969 = vpop.f32.mrf.mxu0
        %v2970 = vadd.f32 0.0, %v2969
        %2971 = vmatmul.bf16.gmra.mxu0 %v2887
        %v2972 = vpop.f32.mrf.mxu0
        %v2973 = vadd.f32 0.0, %v2972
        %v2974 = vpop.f32.mrf.mxu0
        %v2975 = vadd.f32 0.0, %v2974
        %2976 = vmatmul.bf16.gmra.mxu0 %v2889
        %v2977 = vpop.f32.mrf.mxu0
        %v2978 = vadd.f32 0.0, %v2977
        %v2979 = vpop.f32.mrf.mxu0
        %v2980 = vadd.f32 0.0, %v2979
        %2981 = vmatmul.bf16.gmra.mxu0 %v2891
        %v2982 = vpop.f32.mrf.mxu0
        %v2983 = vadd.f32 0.0, %v2982
        %v2984 = vpop.f32.mrf.mxu0
        %v2985 = vadd.f32 0.0, %v2984
        %2986 = vmatmul.bf16.gmra.mxu0 %v2893
        %v2987 = vpop.f32.mrf.mxu0
        %v2988 = vadd.f32 0.0, %v2987
        %v2989 = vpop.f32.mrf.mxu0
        %v2990 = vadd.f32 0.0, %v2989
        %2991 = vdwg.mxu0
        %2992 = vmatpush.bf16.msra.mxu0 %v2926
        %2993 = vmatpush.bf16.msra.mxu0 %v2924
        %2994 = vmatpush.bf16.msra.mxu0 %v2922
        %2995 = vmatpush.bf16.msra.mxu0 %v2920
        %2996 = vmatpush.bf16.msra.mxu0 %v2918
        %2997 = vmatpush.bf16.msra.mxu0 %v2916
        %2998 = vmatpush.bf16.msra.mxu0 %v2914
        %2999 = vmatpush.bf16.msra.mxu0 %v2912
        %3000 = vmatmul.bf16.gmra.mxu0 %v2880
        %v3001 = vpop.f32.mrf.mxu0
        %v3002 = vadd.f32 %v2953, %v3001
        %v3003 = vpop.f32.mrf.mxu0
        %v3004 = vadd.f32 %v2955, %v3003
        %3005 = vmatmul.bf16.gmra.mxu0 %v2882
        %v3006 = vpop.f32.mrf.mxu0
        %v3007 = vadd.f32 %v2958, %v3006
        %v3008 = vpop.f32.mrf.mxu0
        %v3009 = vadd.f32 %v2960, %v3008
        %3010 = vmatmul.bf16.gmra.mxu0 %v2884
        %v3011 = vpop.f32.mrf.mxu0
        %v3012 = vadd.f32 %v2963, %v3011
        %v3013 = vpop.f32.mrf.mxu0
        %v3014 = vadd.f32 %v2965, %v3013
        %3015 = vmatmul.bf16.gmra.mxu0 %v2886
        %v3016 = vpop.f32.mrf.mxu0
        %v3017 = vadd.f32 %v2968, %v3016
        %v3018 = vpop.f32.mrf.mxu0
        %v3019 = vadd.f32 %v2970, %v3018
        %3020 = vmatmul.bf16.gmra.mxu0 %v2888
        %v3021 = vpop.f32.mrf.mxu0
        %v3022 = vadd.f32 %v2973, %v3021
        %v3023 = vpop.f32.mrf.mxu0
        %v3024 = vadd.f32 %v2975, %v3023
        %3025 = vmatmul.bf16.gmra.mxu0 %v2890
        %v3026 = vpop.f32.mrf.mxu0
        %v3027 = vadd.f32 %v2978, %v3026
        %v3028 = vpop.f32.mrf.mxu0
        %v3029 = vadd.f32 %v2980, %v3028
        %3030 = vmatmul.bf16.gmra.mxu0 %v2892
        %v3031 = vpop.f32.mrf.mxu0
        %v3032 = vadd.f32 %v2983, %v3031
        %v3033 = vpop.f32.mrf.mxu0
        %v3034 = vadd.f32 %v2985, %v3033
        %3035 = vmatmul.bf16.gmra.mxu0 %v2894
        %v3036 = vpop.f32.mrf.mxu0
        %v3037 = vadd.f32 %v2988, %v3036
        %v3038 = vpop.f32.mrf.mxu0
        %v3039 = vadd.f32 %v2990, %v3038
        %3040 = vdwg.mxu0
        %3057 = vrot.lane.b32.xlu0 %v3002, 64
        %v3058 = vpop.permute.xlu0 %3057
        %3059 = vrot.lane.b32.xlu0 %v3004, 64
        %v3060 = vpop.permute.xlu0 %3059
        %3061 = vrot.lane.b32.xlu0 %v3007, 64
        %v3062 = vpop.permute.xlu0 %3061
        %3063 = vrot.lane.b32.xlu0 %v3009, 64
        %v3064 = vpop.permute.xlu0 %3063
        %3065 = vrot.lane.b32.xlu0 %v3012, 64
        %v3066 = vpop.permute.xlu0 %3065
        %3067 = vrot.lane.b32.xlu0 %v3014, 64
        %v3068 = vpop.permute.xlu0 %3067
        %3069 = vrot.lane.b32.xlu0 %v3017, 64
        %v3070 = vpop.permute.xlu0 %3069
        %3071 = vrot.lane.b32.xlu0 %v3019, 64
        %v3072 = vpop.permute.xlu0 %3071
        %3073 = vrot.lane.b32.xlu0 %v3022, 64
        %v3074 = vpop.permute.xlu0 %3073
        %3075 = vrot.lane.b32.xlu0 %v3024, 64
        %v3076 = vpop.permute.xlu0 %3075
        %3077 = vrot.lane.b32.xlu0 %v3027, 64
        %v3078 = vpop.permute.xlu0 %3077
        %3079 = vrot.lane.b32.xlu0 %v3029, 64
        %v3080 = vpop.permute.xlu0 %3079
        %3081 = vrot.lane.b32.xlu0 %v3032, 64
        %v3082 = vpop.permute.xlu0 %3081
        %3083 = vrot.lane.b32.xlu0 %v3034, 64
        %v3084 = vpop.permute.xlu0 %3083
        %3085 = vrot.lane.b32.xlu0 %v3037, 64
        %v3086 = vpop.permute.xlu0 %3085
        %3087 = vrot.lane.b32.xlu0 %v3039, 64
        %v3088 = vpop.permute.xlu0 %3087
        %v3105 = vadd.f32 %v376, %v3058
        %v3106 = vadd.f32 %v378, %v3060
        %v3107 = vadd.f32 %v381, %v3062
        %v3108 = vadd.f32 %v383, %v3064
        %v3109 = vadd.f32 %v386, %v3066
        %v3110 = vadd.f32 %v388, %v3068
        %v3111 = vadd.f32 %v391, %v3070
        %v3112 = vadd.f32 %v393, %v3072
        %v3113 = vadd.f32 %v396, %v3074
        %v3114 = vadd.f32 %v398, %v3076
        %v3115 = vadd.f32 %v401, %v3078
        %v3116 = vadd.f32 %v403, %v3080
        %v3117 = vadd.f32 %v406, %v3082
        %v3118 = vadd.f32 %v408, %v3084
        %v3119 = vadd.f32 %v411, %v3086
        %v3120 = vadd.f32 %v413, %v3088
        %v3121 = vmax.f32 %v3105, 0.0
        %v3122 = vmax.f32 %v3106, 0.0
        %v3123 = vmax.f32 %v3107, 0.0
        %v3124 = vmax.f32 %v3108, 0.0
        %v3125 = vmax.f32 %v3109, 0.0
        %v3126 = vmax.f32 %v3110, 0.0
        %v3127 = vmax.f32 %v3111, 0.0
        %v3128 = vmax.f32 %v3112, 0.0
        %v3129 = vmax.f32 %v3113, 0.0
        %v3130 = vmax.f32 %v3114, 0.0
        %v3131 = vmax.f32 %v3115, 0.0
        %v3132 = vmax.f32 %v3116, 0.0
        %v3133 = vmax.f32 %v3117, 0.0
        %v3134 = vmax.f32 %v3118, 0.0
        %v3135 = vmax.f32 %v3119, 0.0
        %v3136 = vmax.f32 %v3120, 0.0
        %3153 = vrot.lane.b32.xlu0 %v3121, 64
        %v3154 = vpop.permute.xlu0 %3153
        %3155 = vrot.lane.b32.xlu0 %v3122, 64
        %v3156 = vpop.permute.xlu0 %3155
        %3157 = vrot.lane.b32.xlu0 %v3123, 64
        %v3158 = vpop.permute.xlu0 %3157
        %3159 = vrot.lane.b32.xlu0 %v3124, 64
        %v3160 = vpop.permute.xlu0 %3159
        %3161 = vrot.lane.b32.xlu0 %v3125, 64
        %v3162 = vpop.permute.xlu0 %3161
        %3163 = vrot.lane.b32.xlu0 %v3126, 64
        %v3164 = vpop.permute.xlu0 %3163
        %3165 = vrot.lane.b32.xlu0 %v3127, 64
        %v3166 = vpop.permute.xlu0 %3165
        %3167 = vrot.lane.b32.xlu0 %v3128, 64
        %v3168 = vpop.permute.xlu0 %3167
        %3169 = vrot.lane.b32.xlu0 %v3129, 64
        %v3170 = vpop.permute.xlu0 %3169
        %3171 = vrot.lane.b32.xlu0 %v3130, 64
        %v3172 = vpop.permute.xlu0 %3171
        %3173 = vrot.lane.b32.xlu0 %v3131, 64
        %v3174 = vpop.permute.xlu0 %3173
        %3175 = vrot.lane.b32.xlu0 %v3132, 64
        %v3176 = vpop.permute.xlu0 %3175
        %3177 = vrot.lane.b32.xlu0 %v3133, 64
        %v3178 = vpop.permute.xlu0 %3177
        %3179 = vrot.lane.b32.xlu0 %v3134, 64
        %v3180 = vpop.permute.xlu0 %3179
        %3181 = vrot.lane.b32.xlu0 %v3135, 64
        %v3182 = vpop.permute.xlu0 %3181
        %3183 = vrot.lane.b32.xlu0 %v3136, 64
        %v3184 = vpop.permute.xlu0 %3183
        %v3201 = vadd.f32 %v301, %v3154
        %v3202 = vadd.f32 %v302, %v3156
        %v3203 = vadd.f32 %v303, %v3158
        %v3204 = vadd.f32 %v304, %v3160
        %v3205 = vadd.f32 %v305, %v3162
        %v3206 = vadd.f32 %v306, %v3164
        %v3207 = vadd.f32 %v307, %v3166
        %v3208 = vadd.f32 %v308, %v3168
        %v3209 = vadd.f32 %v309, %v3170
        %v3210 = vadd.f32 %v310, %v3172
        %v3211 = vadd.f32 %v311, %v3174
        %v3212 = vadd.f32 %v312, %v3176
        %v3213 = vadd.f32 %v313, %v3178
        %v3214 = vadd.f32 %v314, %v3180
        %v3215 = vadd.f32 %v315, %v3182
        %v3216 = vadd.f32 %v316, %v3184
        %v3217 = vperm.slane %v447, 3
        %v3218 = vperm.slane %v447, 7
        %v3221 = vperm.slane %v3217, 3
        %v3222 = vperm.slane %v3218, 3
        %3223 = vset.pattern.permute.xlu0 3
        %3224 = vperm.xlu0 %3223, %v448
        %v3225 = vpop.permute.xlu0 %3224
        %3227 = vset.pattern.permute.xlu0 3
        %3228 = vperm.xlu0 %3227, %v449
        %v3229 = vpop.permute.xlu0 %3228
        %3231 = vset.pattern.permute.xlu0 3
        %3232 = vperm.xlu0 %3231, %v450
        %v3233 = vpop.permute.xlu0 %3232
        %3235 = vset.pattern.permute.xlu0 3
        %3236 = vperm.xlu0 %3235, %v451
        %v3237 = vpop.permute.xlu0 %3236
        %3239 = vset.pattern.permute.xlu0 3
        %3240 = vperm.xlu0 %3239, %v452
        %v3241 = vpop.permute.xlu0 %3240
        %3243 = vset.pattern.permute.xlu0 3
        %3244 = vperm.xlu0 %3243, %v453
        %v3245 = vpop.permute.xlu0 %3244
        %3247 = vset.pattern.permute.xlu0 3
        %3248 = vperm.xlu0 %3247, %v454
        %v3249 = vpop.permute.xlu0 %3248
        %3251 = vset.pattern.permute.xlu0 3
        %3252 = vperm.xlu0 %3251, %v455
        %v3253 = vpop.permute.xlu0 %3252
        %3255 = vset.pattern.permute.xlu0 3
        %3256 = vperm.xlu0 %3255, %v456
        %v3257 = vpop.permute.xlu0 %3256
        %3259 = vset.pattern.permute.xlu0 3
        %3260 = vperm.xlu0 %3259, %v457
        %v3261 = vpop.permute.xlu0 %3260
        %3263 = vset.pattern.permute.xlu0 3
        %3264 = vperm.xlu0 %3263, %v458
        %v3265 = vpop.permute.xlu0 %3264
        %3267 = vset.pattern.permute.xlu0 3
        %3268 = vperm.xlu0 %3267, %v459
        %v3269 = vpop.permute.xlu0 %3268
        %3271 = vset.pattern.permute.xlu0 3
        %3272 = vperm.xlu0 %3271, %v460
        %v3273 = vpop.permute.xlu0 %3272
        %3275 = vset.pattern.permute.xlu0 3
        %3276 = vperm.xlu0 %3275, %v461
        %v3277 = vpop.permute.xlu0 %3276
        %3279 = vset.pattern.permute.xlu0 3
        %3280 = vperm.xlu0 %3279, %v462
        %v3281 = vpop.permute.xlu0 %3280
        %3283 = vset.pattern.permute.xlu0 3
        %3284 = vperm.xlu0 %3283, %v463
        %v3285 = vpop.permute.xlu0 %3284
        %v3287 = vadd.f32 %v3221, %v3225
        %v3288 = vadd.f32 %v3222, %v3225
        %v3289 = vadd.f32 %v3221, %v3229
        %v3290 = vadd.f32 %v3222, %v3229
        %v3291 = vadd.f32 %v3221, %v3233
        %v3292 = vadd.f32 %v3222, %v3233
        %v3293 = vadd.f32 %v3221, %v3237
        %v3294 = vadd.f32 %v3222, %v3237
        %v3295 = vadd.f32 %v3221, %v3241
        %v3296 = vadd.f32 %v3222, %v3241
        %v3297 = vadd.f32 %v3221, %v3245
        %v3298 = vadd.f32 %v3222, %v3245
        %v3299 = vadd.f32 %v3221, %v3249
        %v3300 = vadd.f32 %v3222, %v3249
        %v3301 = vadd.f32 %v3221, %v3253
        %v3302 = vadd.f32 %v3222, %v3253
        %v3303 = vadd.f32 %v3221, %v3257
        %v3304 = vadd.f32 %v3222, %v3257
        %v3305 = vadd.f32 %v3221, %v3261
        %v3306 = vadd.f32 %v3222, %v3261
        %v3307 = vadd.f32 %v3221, %v3265
        %v3308 = vadd.f32 %v3222, %v3265
        %v3309 = vadd.f32 %v3221, %v3269
        %v3310 = vadd.f32 %v3222, %v3269
        %v3311 = vadd.f32 %v3221, %v3273
        %v3312 = vadd.f32 %v3222, %v3273
        %v3313 = vadd.f32 %v3221, %v3277
        %v3314 = vadd.f32 %v3222, %v3277
        %v3315 = vadd.f32 %v3221, %v3281
        %v3316 = vadd.f32 %v3222, %v3281
        %v3317 = vadd.f32 %v3221, %v3285
        %v3318 = vadd.f32 %v3222, %v3285
        %v3319 = vmul.f32 %v3287, 0.01
        %v3320 = vmul.f32 %v3288, 0.01
        %v3321 = vmul.f32 %v3289, 0.01
        %v3322 = vmul.f32 %v3290, 0.01
        %v3323 = vmul.f32 %v3291, 0.01
        %v3324 = vmul.f32 %v3292, 0.01
        %v3325 = vmul.f32 %v3293, 0.01
        %v3326 = vmul.f32 %v3294, 0.01
        %v3327 = vmul.f32 %v3295, 0.01
        %v3328 = vmul.f32 %v3296, 0.01
        %v3329 = vmul.f32 %v3297, 0.01
        %v3330 = vmul.f32 %v3298, 0.01
        %v3331 = vmul.f32 %v3299, 0.01
        %v3332 = vmul.f32 %v3300, 0.01
        %v3333 = vmul.f32 %v3301, 0.01
        %v3334 = vmul.f32 %v3302, 0.01
        %v3335 = vmul.f32 %v3303, 0.01
        %v3336 = vmul.f32 %v3304, 0.01
        %v3337 = vmul.f32 %v3305, 0.01
        %v3338 = vmul.f32 %v3306, 0.01
        %v3339 = vmul.f32 %v3307, 0.01
        %v3340 = vmul.f32 %v3308, 0.01
        %v3341 = vmul.f32 %v3309, 0.01
        %v3342 = vmul.f32 %v3310, 0.01
        %v3343 = vmul.f32 %v3311, 0.01
        %v3344 = vmul.f32 %v3312, 0.01
        %v3345 = vmul.f32 %v3313, 0.01
        %v3346 = vmul.f32 %v3314, 0.01
        %v3347 = vmul.f32 %v3315, 0.01
        %v3348 = vmul.f32 %v3316, 0.01
        %v3349 = vmul.f32 %v3317, 0.01
        %v3350 = vmul.f32 %v3318, 0.01
        %v3351 = vmax.f32 %v3287, %v3319
        %v3352 = vmax.f32 %v3288, %v3320
        %v3353 = vmax.f32 %v3289, %v3321
        %v3354 = vmax.f32 %v3290, %v3322
        %v3355 = vmax.f32 %v3291, %v3323
        %v3356 = vmax.f32 %v3292, %v3324
        %v3357 = vmax.f32 %v3293, %v3325
        %v3358 = vmax.f32 %v3294, %v3326
        %v3359 = vmax.f32 %v3295, %v3327
        %v3360 = vmax.f32 %v3296, %v3328
        %v3361 = vmax.f32 %v3297, %v3329
        %v3362 = vmax.f32 %v3298, %v3330
        %v3363 = vmax.f32 %v3299, %v3331
        %v3364 = vmax.f32 %v3300, %v3332
        %v3365 = vmax.f32 %v3301, %v3333
        %v3366 = vmax.f32 %v3302, %v3334
        %v3367 = vmax.f32 %v3303, %v3335
        %v3368 = vmax.f32 %v3304, %v3336
        %v3369 = vmax.f32 %v3305, %v3337
        %v3370 = vmax.f32 %v3306, %v3338
        %v3371 = vmax.f32 %v3307, %v3339
        %v3372 = vmax.f32 %v3308, %v3340
        %v3373 = vmax.f32 %v3309, %v3341
        %v3374 = vmax.f32 %v3310, %v3342
        %v3375 = vmax.f32 %v3311, %v3343
        %v3376 = vmax.f32 %v3312, %v3344
        %v3377 = vmax.f32 %v3313, %v3345
        %v3378 = vmax.f32 %v3314, %v3346
        %v3379 = vmax.f32 %v3315, %v3347
        %v3380 = vmax.f32 %v3316, %v3348
        %v3381 = vmax.f32 %v3317, %v3349
        %v3382 = vmax.f32 %v3318, %v3350
        %v3383 = vadd.f32 %v3351, %v536
        %v3384 = vadd.f32 %v3352, %v537
        %v3385 = vadd.f32 %v3353, %v538
        %v3386 = vadd.f32 %v3354, %v539
        %v3387 = vadd.f32 %v3355, %v540
        %v3388 = vadd.f32 %v3356, %v541
        %v3389 = vadd.f32 %v3357, %v542
        %v3390 = vadd.f32 %v3358, %v543
        %v3391 = vadd.f32 %v3359, %v544
        %v3392 = vadd.f32 %v3360, %v545
        %v3393 = vadd.f32 %v3361, %v546
        %v3394 = vadd.f32 %v3362, %v547
        %v3395 = vadd.f32 %v3363, %v548
        %v3396 = vadd.f32 %v3364, %v549
        %v3397 = vadd.f32 %v3365, %v550
        %v3398 = vadd.f32 %v3366, %v551
        %v3399 = vadd.f32 %v3367, %v552
        %v3400 = vadd.f32 %v3368, %v553
        %v3401 = vadd.f32 %v3369, %v554
        %v3402 = vadd.f32 %v3370, %v555
        %v3403 = vadd.f32 %v3371, %v556
        %v3404 = vadd.f32 %v3372, %v557
        %v3405 = vadd.f32 %v3373, %v558
        %v3406 = vadd.f32 %v3374, %v559
        %v3407 = vadd.f32 %v3375, %v560
        %v3408 = vadd.f32 %v3376, %v561
        %v3409 = vadd.f32 %v3377, %v562
        %v3410 = vadd.f32 %v3378, %v563
        %v3411 = vadd.f32 %v3379, %v564
        %v3412 = vadd.f32 %v3380, %v565
        %v3413 = vadd.f32 %v3381, %v566
        %v3414 = vadd.f32 %v3382, %v567
        %v3415 = vmax.f32 %v3383, %v3384
        %3416 = vmax.xlane.f32.xlu0 %v3415
        %v3417 = vpop.xlane.xlu0 %3416
        %v3418 = vmax.f32 %v3385, %v3386
        %3419 = vmax.xlane.f32.xlu0 %v3418
        %v3420 = vpop.xlane.xlu0 %3419
        %v3421 = vmax.f32 %v3387, %v3388
        %3422 = vmax.xlane.f32.xlu0 %v3421
        %v3423 = vpop.xlane.xlu0 %3422
        %v3424 = vmax.f32 %v3389, %v3390
        %3425 = vmax.xlane.f32.xlu0 %v3424
        %v3426 = vpop.xlane.xlu0 %3425
        %v3427 = vmax.f32 %v3391, %v3392
        %3428 = vmax.xlane.f32.xlu0 %v3427
        %v3429 = vpop.xlane.xlu0 %3428
        %v3430 = vmax.f32 %v3393, %v3394
        %3431 = vmax.xlane.f32.xlu0 %v3430
        %v3432 = vpop.xlane.xlu0 %3431
        %v3433 = vmax.f32 %v3395, %v3396
        %3434 = vmax.xlane.f32.xlu0 %v3433
        %v3435 = vpop.xlane.xlu0 %3434
        %v3436 = vmax.f32 %v3397, %v3398
        %3437 = vmax.xlane.f32.xlu0 %v3436
        %v3438 = vpop.xlane.xlu0 %3437
        %v3439 = vmax.f32 %v3399, %v3400
        %3440 = vmax.xlane.f32.xlu0 %v3439
        %v3441 = vpop.xlane.xlu0 %3440
        %v3442 = vmax.f32 %v3401, %v3402
        %3443 = vmax.xlane.f32.xlu0 %v3442
        %v3444 = vpop.xlane.xlu0 %3443
        %v3445 = vmax.f32 %v3403, %v3404
        %3446 = vmax.xlane.f32.xlu0 %v3445
        %v3447 = vpop.xlane.xlu0 %3446
        %v3448 = vmax.f32 %v3405, %v3406
        %3449 = vmax.xlane.f32.xlu0 %v3448
        %v3450 = vpop.xlane.xlu0 %3449
        %v3451 = vmax.f32 %v3407, %v3408
        %3452 = vmax.xlane.f32.xlu0 %v3451
        %v3453 = vpop.xlane.xlu0 %3452
        %v3454 = vmax.f32 %v3409, %v3410
        %3455 = vmax.xlane.f32.xlu0 %v3454
        %v3456 = vpop.xlane.xlu0 %3455
        %v3457 = vmax.f32 %v3411, %v3412
        %3458 = vmax.xlane.f32.xlu0 %v3457
        %v3459 = vpop.xlane.xlu0 %3458
        %v3460 = vmax.f32 %v3413, %v3414
        %3461 = vmax.xlane.f32.xlu0 %v3460
        %v3462 = vpop.xlane.xlu0 %3461
        %v3463 = vsub.f32 %v3383, %v3417
        %v3464 = vsub.f32 %v3384, %v3417
        %v3465 = vsub.f32 %v3385, %v3420
        %v3466 = vsub.f32 %v3386, %v3420
        %v3467 = vsub.f32 %v3387, %v3423
        %v3468 = vsub.f32 %v3388, %v3423
        %v3469 = vsub.f32 %v3389, %v3426
        %v3470 = vsub.f32 %v3390, %v3426
        %v3471 = vsub.f32 %v3391, %v3429
        %v3472 = vsub.f32 %v3392, %v3429
        %v3473 = vsub.f32 %v3393, %v3432
        %v3474 = vsub.f32 %v3394, %v3432
        %v3475 = vsub.f32 %v3395, %v3435
        %v3476 = vsub.f32 %v3396, %v3435
        %v3477 = vsub.f32 %v3397, %v3438
        %v3478 = vsub.f32 %v3398, %v3438
        %v3479 = vsub.f32 %v3399, %v3441
        %v3480 = vsub.f32 %v3400, %v3441
        %v3481 = vsub.f32 %v3401, %v3444
        %v3482 = vsub.f32 %v3402, %v3444
        %v3483 = vsub.f32 %v3403, %v3447
        %v3484 = vsub.f32 %v3404, %v3447
        %v3485 = vsub.f32 %v3405, %v3450
        %v3486 = vsub.f32 %v3406, %v3450
        %v3487 = vsub.f32 %v3407, %v3453
        %v3488 = vsub.f32 %v3408, %v3453
        %v3489 = vsub.f32 %v3409, %v3456
        %v3490 = vsub.f32 %v3410, %v3456
        %v3491 = vsub.f32 %v3411, %v3459
        %v3492 = vsub.f32 %v3412, %v3459
        %v3493 = vsub.f32 %v3413, %v3462
        %v3494 = vsub.f32 %v3414, %v3462
        %v3495 = vpack.c.bf16 %v3464, %v3463
        %v3496 = vpack.c.bf16 %v3466, %v3465
        %v3497 = vpack.c.bf16 %v3468, %v3467
        %v3498 = vpack.c.bf16 %v3470, %v3469
        %v3499 = vpack.c.bf16 %v3472, %v3471
        %v3500 = vpack.c.bf16 %v3474, %v3473
        %v3501 = vpack.c.bf16 %v3476, %v3475
        %v3502 = vpack.c.bf16 %v3478, %v3477
        %v3503 = vpack.c.bf16 %v3480, %v3479
        %v3504 = vpack.c.bf16 %v3482, %v3481
        %v3505 = vpack.c.bf16 %v3484, %v3483
        %v3506 = vpack.c.bf16 %v3486, %v3485
        %v3507 = vpack.c.bf16 %v3488, %v3487
        %v3508 = vpack.c.bf16 %v3490, %v3489
        %v3509 = vpack.c.bf16 %v3492, %v3491
        %v3510 = vpack.c.bf16 %v3494, %v3493
        %v3511 = vunpack.c.l.bf16 %v3495
        %v3512 = vunpack.c.h.bf16 %v3495
        %v3513 = vunpack.c.l.bf16 %v3496
        %v3514 = vunpack.c.h.bf16 %v3496
        %v3515 = vunpack.c.l.bf16 %v3497
        %v3516 = vunpack.c.h.bf16 %v3497
        %v3517 = vunpack.c.l.bf16 %v3498
        %v3518 = vunpack.c.h.bf16 %v3498
        %v3519 = vunpack.c.l.bf16 %v3499
        %v3520 = vunpack.c.h.bf16 %v3499
        %v3521 = vunpack.c.l.bf16 %v3500
        %v3522 = vunpack.c.h.bf16 %v3500
        %v3523 = vunpack.c.l.bf16 %v3501
        %v3524 = vunpack.c.h.bf16 %v3501
        %v3525 = vunpack.c.l.bf16 %v3502
        %v3526 = vunpack.c.h.bf16 %v3502
        %v3527 = vunpack.c.l.bf16 %v3503
        %v3528 = vunpack.c.h.bf16 %v3503
        %v3529 = vunpack.c.l.bf16 %v3504
        %v3530 = vunpack.c.h.bf16 %v3504
        %v3531 = vunpack.c.l.bf16 %v3505
        %v3532 = vunpack.c.h.bf16 %v3505
        %v3533 = vunpack.c.l.bf16 %v3506
        %v3534 = vunpack.c.h.bf16 %v3506
        %v3535 = vunpack.c.l.bf16 %v3507
        %v3536 = vunpack.c.h.bf16 %v3507
        %v3537 = vunpack.c.l.bf16 %v3508
        %v3538 = vunpack.c.h.bf16 %v3508
        %v3539 = vunpack.c.l.bf16 %v3509
        %v3540 = vunpack.c.h.bf16 %v3509
        %v3541 = vunpack.c.l.bf16 %v3510
        %v3542 = vunpack.c.h.bf16 %v3510
        %v3543 = vmul.f32 %v3511, 1.442695
        %v3544 = vpow.pop %v3543
        %v3545 = vmul.f32 %v3512, 1.442695
        %v3546 = vpow.pop %v3545
        %v3547 = vmul.f32 %v3513, 1.442695
        %v3548 = vpow.pop %v3547
        %v3549 = vmul.f32 %v3514, 1.442695
        %v3550 = vpow.pop %v3549
        %v3551 = vmul.f32 %v3515, 1.442695
        %v3552 = vpow.pop %v3551
        %v3553 = vmul.f32 %v3516, 1.442695
        %v3554 = vpow.pop %v3553
        %v3555 = vmul.f32 %v3517, 1.442695
        %v3556 = vpow.pop %v3555
        %v3557 = vmul.f32 %v3518, 1.442695
        %v3558 = vpow.pop %v3557
        %v3559 = vmul.f32 %v3519, 1.442695
        %v3560 = vpow.pop %v3559
        %v3561 = vmul.f32 %v3520, 1.442695
        %v3562 = vpow.pop %v3561
        %v3563 = vmul.f32 %v3521, 1.442695
        %v3564 = vpow.pop %v3563
        %v3565 = vmul.f32 %v3522, 1.442695
        %v3566 = vpow.pop %v3565
        %v3567 = vmul.f32 %v3523, 1.442695
        %v3568 = vpow.pop %v3567
        %v3569 = vmul.f32 %v3524, 1.442695
        %v3570 = vpow.pop %v3569
        %v3571 = vmul.f32 %v3525, 1.442695
        %v3572 = vpow.pop %v3571
        %v3573 = vmul.f32 %v3526, 1.442695
        %v3574 = vpow.pop %v3573
        %v3575 = vmul.f32 %v3527, 1.442695
        %v3576 = vpow.pop %v3575
        %v3577 = vmul.f32 %v3528, 1.442695
        %v3578 = vpow.pop %v3577
        %v3579 = vmul.f32 %v3529, 1.442695
        %v3580 = vpow.pop %v3579
        %v3581 = vmul.f32 %v3530, 1.442695
        %v3582 = vpow.pop %v3581
        %v3583 = vmul.f32 %v3531, 1.442695
        %v3584 = vpow.pop %v3583
        %v3585 = vmul.f32 %v3532, 1.442695
        %v3586 = vpow.pop %v3585
        %v3587 = vmul.f32 %v3533, 1.442695
        %v3588 = vpow.pop %v3587
        %v3589 = vmul.f32 %v3534, 1.442695
        %v3590 = vpow.pop %v3589
        %v3591 = vmul.f32 %v3535, 1.442695
        %v3592 = vpow.pop %v3591
        %v3593 = vmul.f32 %v3536, 1.442695
        %v3594 = vpow.pop %v3593
        %v3595 = vmul.f32 %v3537, 1.442695
        %v3596 = vpow.pop %v3595
        %v3597 = vmul.f32 %v3538, 1.442695
        %v3598 = vpow.pop %v3597
        %v3599 = vmul.f32 %v3539, 1.442695
        %v3600 = vpow.pop %v3599
        %v3601 = vmul.f32 %v3540, 1.442695
        %v3602 = vpow.pop %v3601
        %v3603 = vmul.f32 %v3541, 1.442695
        %v3604 = vpow.pop %v3603
        %v3605 = vmul.f32 %v3542, 1.442695
        %v3606 = vpow.pop %v3605
        %v3607 = vpack.c.bf16 %v3546, %v3544
        %v3608 = vpack.c.bf16 %v3550, %v3548
        %v3609 = vpack.c.bf16 %v3554, %v3552
        %v3610 = vpack.c.bf16 %v3558, %v3556
        %v3611 = vpack.c.bf16 %v3562, %v3560
        %v3612 = vpack.c.bf16 %v3566, %v3564
        %v3613 = vpack.c.bf16 %v3570, %v3568
        %v3614 = vpack.c.bf16 %v3574, %v3572
        %v3615 = vpack.c.bf16 %v3578, %v3576
        %v3616 = vpack.c.bf16 %v3582, %v3580
        %v3617 = vpack.c.bf16 %v3586, %v3584
        %v3618 = vpack.c.bf16 %v3590, %v3588
        %v3619 = vpack.c.bf16 %v3594, %v3592
        %v3620 = vpack.c.bf16 %v3598, %v3596
        %v3621 = vpack.c.bf16 %v3602, %v3600
        %v3622 = vpack.c.bf16 %v3606, %v3604
        %v3623 = vunpack.c.l.bf16 %v3607
        %v3624 = vunpack.c.h.bf16 %v3607
        %v3625 = vunpack.c.l.bf16 %v3608
        %v3626 = vunpack.c.h.bf16 %v3608
        %v3627 = vunpack.c.l.bf16 %v3609
        %v3628 = vunpack.c.h.bf16 %v3609
        %v3629 = vunpack.c.l.bf16 %v3610
        %v3630 = vunpack.c.h.bf16 %v3610
        %v3631 = vunpack.c.l.bf16 %v3611
        %v3632 = vunpack.c.h.bf16 %v3611
        %v3633 = vunpack.c.l.bf16 %v3612
        %v3634 = vunpack.c.h.bf16 %v3612
        %v3635 = vunpack.c.l.bf16 %v3613
        %v3636 = vunpack.c.h.bf16 %v3613
        %v3637 = vunpack.c.l.bf16 %v3614
        %v3638 = vunpack.c.h.bf16 %v3614
        %v3639 = vunpack.c.l.bf16 %v3615
        %v3640 = vunpack.c.h.bf16 %v3615
        %v3641 = vunpack.c.l.bf16 %v3616
        %v3642 = vunpack.c.h.bf16 %v3616
        %v3643 = vunpack.c.l.bf16 %v3617
        %v3644 = vunpack.c.h.bf16 %v3617
        %v3645 = vunpack.c.l.bf16 %v3618
        %v3646 = vunpack.c.h.bf16 %v3618
        %v3647 = vunpack.c.l.bf16 %v3619
        %v3648 = vunpack.c.h.bf16 %v3619
        %v3649 = vunpack.c.l.bf16 %v3620
        %v3650 = vunpack.c.h.bf16 %v3620
        %v3651 = vunpack.c.l.bf16 %v3621
        %v3652 = vunpack.c.h.bf16 %v3621
        %v3653 = vunpack.c.l.bf16 %v3622
        %v3654 = vunpack.c.h.bf16 %v3622
        %v3655 = vadd.f32 %v3623, %v3624
        %3656 = vadd.xlane.f32.xlu0 %v3655
        %v3657 = vpop.xlane.xlu0 %3656
        %v3658 = vadd.f32 %v3625, %v3626
        %3659 = vadd.xlane.f32.xlu0 %v3658
        %v3660 = vpop.xlane.xlu0 %3659
        %v3661 = vadd.f32 %v3627, %v3628
        %3662 = vadd.xlane.f32.xlu0 %v3661
        %v3663 = vpop.xlane.xlu0 %3662
        %v3664 = vadd.f32 %v3629, %v3630
        %3665 = vadd.xlane.f32.xlu0 %v3664
        %v3666 = vpop.xlane.xlu0 %3665
        %v3667 = vadd.f32 %v3631, %v3632
        %3668 = vadd.xlane.f32.xlu0 %v3667
        %v3669 = vpop.xlane.xlu0 %3668
        %v3670 = vadd.f32 %v3633, %v3634
        %3671 = vadd.xlane.f32.xlu0 %v3670
        %v3672 = vpop.xlane.xlu0 %3671
        %v3673 = vadd.f32 %v3635, %v3636
        %3674 = vadd.xlane.f32.xlu0 %v3673
        %v3675 = vpop.xlane.xlu0 %3674
        %v3676 = vadd.f32 %v3637, %v3638
        %3677 = vadd.xlane.f32.xlu0 %v3676
        %v3678 = vpop.xlane.xlu0 %3677
        %v3679 = vadd.f32 %v3639, %v3640
        %3680 = vadd.xlane.f32.xlu0 %v3679
        %v3681 = vpop.xlane.xlu0 %3680
        %v3682 = vadd.f32 %v3641, %v3642
        %3683 = vadd.xlane.f32.xlu0 %v3682
        %v3684 = vpop.xlane.xlu0 %3683
        %v3685 = vadd.f32 %v3643, %v3644
        %3686 = vadd.xlane.f32.xlu0 %v3685
        %v3687 = vpop.xlane.xlu0 %3686
        %v3688 = vadd.f32 %v3645, %v3646
        %3689 = vadd.xlane.f32.xlu0 %v3688
        %v3690 = vpop.xlane.xlu0 %3689
        %v3691 = vadd.f32 %v3647, %v3648
        %3692 = vadd.xlane.f32.xlu0 %v3691
        %v3693 = vpop.xlane.xlu0 %3692
        %v3694 = vadd.f32 %v3649, %v3650
        %3695 = vadd.xlane.f32.xlu0 %v3694
        %v3696 = vpop.xlane.xlu0 %3695
        %v3697 = vadd.f32 %v3651, %v3652
        %3698 = vadd.xlane.f32.xlu0 %v3697
        %v3699 = vpop.xlane.xlu0 %3698
        %v3700 = vadd.f32 %v3653, %v3654
        %3701 = vadd.xlane.f32.xlu0 %v3700
        %v3702 = vpop.xlane.xlu0 %3701
        %v3703 = vrcp.pop %v3657
        %v3704 = vrcp.pop %v3660
        %v3705 = vrcp.pop %v3663
        %v3706 = vrcp.pop %v3666
        %v3707 = vrcp.pop %v3669
        %v3708 = vrcp.pop %v3672
        %v3709 = vrcp.pop %v3675
        %v3710 = vrcp.pop %v3678
        %v3711 = vrcp.pop %v3681
        %v3712 = vrcp.pop %v3684
        %v3713 = vrcp.pop %v3687
        %v3714 = vrcp.pop %v3690
        %v3715 = vrcp.pop %v3693
        %v3716 = vrcp.pop %v3696
        %v3717 = vrcp.pop %v3699
        %v3718 = vrcp.pop %v3702
        %v3719 = vpack.c.bf16 %v3703, %v3703
        %v3720 = vpack.c.bf16 %v3704, %v3704
        %v3721 = vpack.c.bf16 %v3705, %v3705
        %v3722 = vpack.c.bf16 %v3706, %v3706
        %v3723 = vpack.c.bf16 %v3707, %v3707
        %v3724 = vpack.c.bf16 %v3708, %v3708
        %v3725 = vpack.c.bf16 %v3709, %v3709
        %v3726 = vpack.c.bf16 %v3710, %v3710
        %v3727 = vpack.c.bf16 %v3711, %v3711
        %v3728 = vpack.c.bf16 %v3712, %v3712
        %v3729 = vpack.c.bf16 %v3713, %v3713
        %v3730 = vpack.c.bf16 %v3714, %v3714
        %v3731 = vpack.c.bf16 %v3715, %v3715
        %v3732 = vpack.c.bf16 %v3716, %v3716
        %v3733 = vpack.c.bf16 %v3717, %v3717
        %v3734 = vpack.c.bf16 %v3718, %v3718
        %v3735 = vunpack.c.l.bf16 %v3719
        %v3736 = vunpack.c.l.bf16 %v3720
        %v3737 = vunpack.c.l.bf16 %v3721
        %v3738 = vunpack.c.l.bf16 %v3722
        %v3739 = vunpack.c.l.bf16 %v3723
        %v3740 = vunpack.c.l.bf16 %v3724
        %v3741 = vunpack.c.l.bf16 %v3725
        %v3742 = vunpack.c.l.bf16 %v3726
        %v3743 = vunpack.c.l.bf16 %v3727
        %v3744 = vunpack.c.l.bf16 %v3728
        %v3745 = vunpack.c.l.bf16 %v3729
        %v3746 = vunpack.c.l.bf16 %v3730
        %v3747 = vunpack.c.l.bf16 %v3731
        %v3748 = vunpack.c.l.bf16 %v3732
        %v3749 = vunpack.c.l.bf16 %v3733
        %v3750 = vunpack.c.l.bf16 %v3734
        %v3751 = vmul.f32 %v3623, %v3735
        %v3752 = vmul.f32 %v3624, %v3735
        %v3753 = vmul.f32 %v3625, %v3736
        %v3754 = vmul.f32 %v3626, %v3736
        %v3755 = vmul.f32 %v3627, %v3737
        %v3756 = vmul.f32 %v3628, %v3737
        %v3757 = vmul.f32 %v3629, %v3738
        %v3758 = vmul.f32 %v3630, %v3738
        %v3759 = vmul.f32 %v3631, %v3739
        %v3760 = vmul.f32 %v3632, %v3739
        %v3761 = vmul.f32 %v3633, %v3740
        %v3762 = vmul.f32 %v3634, %v3740
        %v3763 = vmul.f32 %v3635, %v3741
        %v3764 = vmul.f32 %v3636, %v3741
        %v3765 = vmul.f32 %v3637, %v3742
        %v3766 = vmul.f32 %v3638, %v3742
        %v3767 = vmul.f32 %v3639, %v3743
        %v3768 = vmul.f32 %v3640, %v3743
        %v3769 = vmul.f32 %v3641, %v3744
        %v3770 = vmul.f32 %v3642, %v3744
        %v3771 = vmul.f32 %v3643, %v3745
        %v3772 = vmul.f32 %v3644, %v3745
        %v3773 = vmul.f32 %v3645, %v3746
        %v3774 = vmul.f32 %v3646, %v3746
        %v3775 = vmul.f32 %v3647, %v3747
        %v3776 = vmul.f32 %v3648, %v3747
        %v3777 = vmul.f32 %v3649, %v3748
        %v3778 = vmul.f32 %v3650, %v3748
        %v3779 = vmul.f32 %v3651, %v3749
        %v3780 = vmul.f32 %v3652, %v3749
        %v3781 = vmul.f32 %v3653, %v3750
        %v3782 = vmul.f32 %v3654, %v3750
        %v3783 = vpack.c.bf16 %v3753, %v3751
        %v3784 = vpack.c.bf16 %v3754, %v3752
        %v3785 = vpack.c.bf16 %v3757, %v3755
        %v3786 = vpack.c.bf16 %v3758, %v3756
        %v3787 = vpack.c.bf16 %v3761, %v3759
        %v3788 = vpack.c.bf16 %v3762, %v3760
        %v3789 = vpack.c.bf16 %v3765, %v3763
        %v3790 = vpack.c.bf16 %v3766, %v3764
        %v3791 = vpack.c.bf16 %v3769, %v3767
        %v3792 = vpack.c.bf16 %v3770, %v3768
        %v3793 = vpack.c.bf16 %v3773, %v3771
        %v3794 = vpack.c.bf16 %v3774, %v3772
        %v3795 = vpack.c.bf16 %v3777, %v3775
        %v3796 = vpack.c.bf16 %v3778, %v3776
        %v3797 = vpack.c.bf16 %v3781, %v3779
        %v3798 = vpack.c.bf16 %v3782, %v3780
        %3799 = vrot.lane.b32.xlu0 %v1231, 32
        %v3800 = vpop.permute.xlu0 %3799
        %3801 = vrot.lane.b32.xlu0 %v1232, 32
        %v3802 = vpop.permute.xlu0 %3801
        %3803 = vrot.lane.b32.xlu0 %v1233, 32
        %v3804 = vpop.permute.xlu0 %3803
        %3805 = vrot.lane.b32.xlu0 %v1234, 32
        %v3806 = vpop.permute.xlu0 %3805
        %3807 = vrot.lane.b32.xlu0 %v1235, 32
        %v3808 = vpop.permute.xlu0 %3807
        %3809 = vrot.lane.b32.xlu0 %v1236, 32
        %v3810 = vpop.permute.xlu0 %3809
        %3811 = vrot.lane.b32.xlu0 %v1237, 32
        %v3812 = vpop.permute.xlu0 %3811
        %3813 = vrot.lane.b32.xlu0 %v1238, 32
        %v3814 = vpop.permute.xlu0 %3813
        %3815 = vrot.lane.b32.xlu0 %v1239, 32
        %v3816 = vpop.permute.xlu0 %3815
        %3817 = vrot.lane.b32.xlu0 %v1240, 32
        %v3818 = vpop.permute.xlu0 %3817
        %3819 = vrot.lane.b32.xlu0 %v1241, 32
        %v3820 = vpop.permute.xlu0 %3819
        %3821 = vrot.lane.b32.xlu0 %v1242, 32
        %v3822 = vpop.permute.xlu0 %3821
        %3823 = vrot.lane.b32.xlu0 %v1243, 32
        %v3824 = vpop.permute.xlu0 %3823
        %3825 = vrot.lane.b32.xlu0 %v1244, 32
        %v3826 = vpop.permute.xlu0 %3825
        %3827 = vrot.lane.b32.xlu0 %v1245, 32
        %v3828 = vpop.permute.xlu0 %3827
        %3829 = vrot.lane.b32.xlu0 %v1246, 32
        %v3830 = vpop.permute.xlu0 %3829
        %3847 = vmatpush.bf16.msra.mxu0 %v3814
        %3848 = vmatpush.bf16.msra.mxu0 %v3812
        %3849 = vmatpush.bf16.msra.mxu0 %v3810
        %3850 = vmatpush.bf16.msra.mxu0 %v3808
        %3851 = vmatpush.bf16.msra.mxu0 %v3806
        %3852 = vmatpush.bf16.msra.mxu0 %v3804
        %3853 = vmatpush.bf16.msra.mxu0 %v3802
        %3854 = vmatpush.bf16.msra.mxu0 %v3800
        %3855 = vmatmul.bf16.gmra.mxu0 %v3783
        %v3856 = vpop.f32.mrf.mxu0
        %v3857 = vadd.f32 0.0, %v3856
        %v3858 = vpop.f32.mrf.mxu0
        %v3859 = vadd.f32 0.0, %v3858
        %3860 = vmatmul.bf16.gmra.mxu0 %v3785
        %v3861 = vpop.f32.mrf.mxu0
        %v3862 = vadd.f32 0.0, %v3861
        %v3863 = vpop.f32.mrf.mxu0
        %v3864 = vadd.f32 0.0, %v3863
        %3865 = vmatmul.bf16.gmra.mxu0 %v3787
        %v3866 = vpop.f32.mrf.mxu0
        %v3867 = vadd.f32 0.0, %v3866
        %v3868 = vpop.f32.mrf.mxu0
        %v3869 = vadd.f32 0.0, %v3868
        %3870 = vmatmul.bf16.gmra.mxu0 %v3789
        %v3871 = vpop.f32.mrf.mxu0
        %v3872 = vadd.f32 0.0, %v3871
        %v3873 = vpop.f32.mrf.mxu0
        %v3874 = vadd.f32 0.0, %v3873
        %3875 = vmatmul.bf16.gmra.mxu0 %v3791
        %v3876 = vpop.f32.mrf.mxu0
        %v3877 = vadd.f32 0.0, %v3876
        %v3878 = vpop.f32.mrf.mxu0
        %v3879 = vadd.f32 0.0, %v3878
        %3880 = vmatmul.bf16.gmra.mxu0 %v3793
        %v3881 = vpop.f32.mrf.mxu0
        %v3882 = vadd.f32 0.0, %v3881
        %v3883 = vpop.f32.mrf.mxu0
        %v3884 = vadd.f32 0.0, %v3883
        %3885 = vmatmul.bf16.gmra.mxu0 %v3795
        %v3886 = vpop.f32.mrf.mxu0
        %v3887 = vadd.f32 0.0, %v3886
        %v3888 = vpop.f32.mrf.mxu0
        %v3889 = vadd.f32 0.0, %v3888
        %3890 = vmatmul.bf16.gmra.mxu0 %v3797
        %v3891 = vpop.f32.mrf.mxu0
        %v3892 = vadd.f32 0.0, %v3891
        %v3893 = vpop.f32.mrf.mxu0
        %v3894 = vadd.f32 0.0, %v3893
        %3895 = vdwg.mxu0
        %3896 = vmatpush.bf16.msra.mxu0 %v3830
        %3897 = vmatpush.bf16.msra.mxu0 %v3828
        %3898 = vmatpush.bf16.msra.mxu0 %v3826
        %3899 = vmatpush.bf16.msra.mxu0 %v3824
        %3900 = vmatpush.bf16.msra.mxu0 %v3822
        %3901 = vmatpush.bf16.msra.mxu0 %v3820
        %3902 = vmatpush.bf16.msra.mxu0 %v3818
        %3903 = vmatpush.bf16.msra.mxu0 %v3816
        %3904 = vmatmul.bf16.gmra.mxu0 %v3784
        %v3905 = vpop.f32.mrf.mxu0
        %v3906 = vadd.f32 %v3857, %v3905
        %v3907 = vpop.f32.mrf.mxu0
        %v3908 = vadd.f32 %v3859, %v3907
        %3909 = vmatmul.bf16.gmra.mxu0 %v3786
        %v3910 = vpop.f32.mrf.mxu0
        %v3911 = vadd.f32 %v3862, %v3910
        %v3912 = vpop.f32.mrf.mxu0
        %v3913 = vadd.f32 %v3864, %v3912
        %3914 = vmatmul.bf16.gmra.mxu0 %v3788
        %v3915 = vpop.f32.mrf.mxu0
        %v3916 = vadd.f32 %v3867, %v3915
        %v3917 = vpop.f32.mrf.mxu0
        %v3918 = vadd.f32 %v3869, %v3917
        %3919 = vmatmul.bf16.gmra.mxu0 %v3790
        %v3920 = vpop.f32.mrf.mxu0
        %v3921 = vadd.f32 %v3872, %v3920
        %v3922 = vpop.f32.mrf.mxu0
        %v3923 = vadd.f32 %v3874, %v3922
        %3924 = vmatmul.bf16.gmra.mxu0 %v3792
        %v3925 = vpop.f32.mrf.mxu0
        %v3926 = vadd.f32 %v3877, %v3925
        %v3927 = vpop.f32.mrf.mxu0
        %v3928 = vadd.f32 %v3879, %v3927
        %3929 = vmatmul.bf16.gmra.mxu0 %v3794
        %v3930 = vpop.f32.mrf.mxu0
        %v3931 = vadd.f32 %v3882, %v3930
        %v3932 = vpop.f32.mrf.mxu0
        %v3933 = vadd.f32 %v3884, %v3932
        %3934 = vmatmul.bf16.gmra.mxu0 %v3796
        %v3935 = vpop.f32.mrf.mxu0
        %v3936 = vadd.f32 %v3887, %v3935
        %v3937 = vpop.f32.mrf.mxu0
        %v3938 = vadd.f32 %v3889, %v3937
        %3939 = vmatmul.bf16.gmra.mxu0 %v3798
        %v3940 = vpop.f32.mrf.mxu0
        %v3941 = vadd.f32 %v3892, %v3940
        %v3942 = vpop.f32.mrf.mxu0
        %v3943 = vadd.f32 %v3894, %v3942
        %3944 = vdwg.mxu0
        %3961 = vrot.lane.b32.xlu0 %v3906, 96
        %v3962 = vpop.permute.xlu0 %3961
        %3963 = vrot.lane.b32.xlu0 %v3908, 96
        %v3964 = vpop.permute.xlu0 %3963
        %3965 = vrot.lane.b32.xlu0 %v3911, 96
        %v3966 = vpop.permute.xlu0 %3965
        %3967 = vrot.lane.b32.xlu0 %v3913, 96
        %v3968 = vpop.permute.xlu0 %3967
        %3969 = vrot.lane.b32.xlu0 %v3916, 96
        %v3970 = vpop.permute.xlu0 %3969
        %3971 = vrot.lane.b32.xlu0 %v3918, 96
        %v3972 = vpop.permute.xlu0 %3971
        %3973 = vrot.lane.b32.xlu0 %v3921, 96
        %v3974 = vpop.permute.xlu0 %3973
        %3975 = vrot.lane.b32.xlu0 %v3923, 96
        %v3976 = vpop.permute.xlu0 %3975
        %3977 = vrot.lane.b32.xlu0 %v3926, 96
        %v3978 = vpop.permute.xlu0 %3977
        %3979 = vrot.lane.b32.xlu0 %v3928, 96
        %v3980 = vpop.permute.xlu0 %3979
        %3981 = vrot.lane.b32.xlu0 %v3931, 96
        %v3982 = vpop.permute.xlu0 %3981
        %3983 = vrot.lane.b32.xlu0 %v3933, 96
        %v3984 = vpop.permute.xlu0 %3983
        %3985 = vrot.lane.b32.xlu0 %v3936, 96
        %v3986 = vpop.permute.xlu0 %3985
        %3987 = vrot.lane.b32.xlu0 %v3938, 96
        %v3988 = vpop.permute.xlu0 %3987
        %3989 = vrot.lane.b32.xlu0 %v3941, 96
        %v3990 = vpop.permute.xlu0 %3989
        %3991 = vrot.lane.b32.xlu0 %v3943, 96
        %v3992 = vpop.permute.xlu0 %3991
        %v4009 = vadd.f32 %v376, %v3962
        %v4010 = vadd.f32 %v378, %v3964
        %v4011 = vadd.f32 %v381, %v3966
        %v4012 = vadd.f32 %v383, %v3968
        %v4013 = vadd.f32 %v386, %v3970
        %v4014 = vadd.f32 %v388, %v3972
        %v4015 = vadd.f32 %v391, %v3974
        %v4016 = vadd.f32 %v393, %v3976
        %v4017 = vadd.f32 %v396, %v3978
        %v4018 = vadd.f32 %v398, %v3980
        %v4019 = vadd.f32 %v401, %v3982
        %v4020 = vadd.f32 %v403, %v3984
        %v4021 = vadd.f32 %v406, %v3986
        %v4022 = vadd.f32 %v408, %v3988
        %v4023 = vadd.f32 %v411, %v3990
        %v4024 = vadd.f32 %v413, %v3992
        %v4025 = vmax.f32 %v4009, 0.0
        %v4026 = vmax.f32 %v4010, 0.0
        %v4027 = vmax.f32 %v4011, 0.0
        %v4028 = vmax.f32 %v4012, 0.0
        %v4029 = vmax.f32 %v4013, 0.0
        %v4030 = vmax.f32 %v4014, 0.0
        %v4031 = vmax.f32 %v4015, 0.0
        %v4032 = vmax.f32 %v4016, 0.0
        %v4033 = vmax.f32 %v4017, 0.0
        %v4034 = vmax.f32 %v4018, 0.0
        %v4035 = vmax.f32 %v4019, 0.0
        %v4036 = vmax.f32 %v4020, 0.0
        %v4037 = vmax.f32 %v4021, 0.0
        %v4038 = vmax.f32 %v4022, 0.0
        %v4039 = vmax.f32 %v4023, 0.0
        %v4040 = vmax.f32 %v4024, 0.0
        %4057 = vrot.lane.b32.xlu0 %v4025, 32
        %v4058 = vpop.permute.xlu0 %4057
        %4059 = vrot.lane.b32.xlu0 %v4026, 32
        %v4060 = vpop.permute.xlu0 %4059
        %4061 = vrot.lane.b32.xlu0 %v4027, 32
        %v4062 = vpop.permute.xlu0 %4061
        %4063 = vrot.lane.b32.xlu0 %v4028, 32
        %v4064 = vpop.permute.xlu0 %4063
        %4065 = vrot.lane.b32.xlu0 %v4029, 32
        %v4066 = vpop.permute.xlu0 %4065
        %4067 = vrot.lane.b32.xlu0 %v4030, 32
        %v4068 = vpop.permute.xlu0 %4067
        %4069 = vrot.lane.b32.xlu0 %v4031, 32
        %v4070 = vpop.permute.xlu0 %4069
        %4071 = vrot.lane.b32.xlu0 %v4032, 32
        %v4072 = vpop.permute.xlu0 %4071
        %4073 = vrot.lane.b32.xlu0 %v4033, 32
        %v4074 = vpop.permute.xlu0 %4073
        %4075 = vrot.lane.b32.xlu0 %v4034, 32
        %v4076 = vpop.permute.xlu0 %4075
        %4077 = vrot.lane.b32.xlu0 %v4035, 32
        %v4078 = vpop.permute.xlu0 %4077
        %4079 = vrot.lane.b32.xlu0 %v4036, 32
        %v4080 = vpop.permute.xlu0 %4079
        %4081 = vrot.lane.b32.xlu0 %v4037, 32
        %v4082 = vpop.permute.xlu0 %4081
        %4083 = vrot.lane.b32.xlu0 %v4038, 32
        %v4084 = vpop.permute.xlu0 %4083
        %4085 = vrot.lane.b32.xlu0 %v4039, 32
        %v4086 = vpop.permute.xlu0 %4085
        %4087 = vrot.lane.b32.xlu0 %v4040, 32
        %v4088 = vpop.permute.xlu0 %4087
        %v4105 = vadd.f32 %v301, %v4058
        %v4106 = vadd.f32 %v302, %v4060
        %v4107 = vadd.f32 %v303, %v4062
        %v4108 = vadd.f32 %v304, %v4064
        %v4109 = vadd.f32 %v305, %v4066
        %v4110 = vadd.f32 %v306, %v4068
        %v4111 = vadd.f32 %v307, %v4070
        %v4112 = vadd.f32 %v308, %v4072
        %v4113 = vadd.f32 %v309, %v4074
        %v4114 = vadd.f32 %v310, %v4076
        %v4115 = vadd.f32 %v311, %v4078
        %v4116 = vadd.f32 %v312, %v4080
        %v4117 = vadd.f32 %v313, %v4082
        %v4118 = vadd.f32 %v314, %v4084
        %v4119 = vadd.f32 %v315, %v4086
        %v4120 = vadd.f32 %v316, %v4088
        %4137 = vrot.lane.b32.xlu0 %v2297, 32
        %v4138 = vpop.permute.xlu0 %4137
        %4139 = vrot.lane.b32.xlu0 %v2298, 32
        %v4140 = vpop.permute.xlu0 %4139
        %4141 = vrot.lane.b32.xlu0 %v2299, 32
        %v4142 = vpop.permute.xlu0 %4141
        %4143 = vrot.lane.b32.xlu0 %v2300, 32
        %v4144 = vpop.permute.xlu0 %4143
        %4145 = vrot.lane.b32.xlu0 %v2301, 32
        %v4146 = vpop.permute.xlu0 %4145
        %4147 = vrot.lane.b32.xlu0 %v2302, 32
        %v4148 = vpop.permute.xlu0 %4147
        %4149 = vrot.lane.b32.xlu0 %v2303, 32
        %v4150 = vpop.permute.xlu0 %4149
        %4151 = vrot.lane.b32.xlu0 %v2304, 32
        %v4152 = vpop.permute.xlu0 %4151
        %4153 = vrot.lane.b32.xlu0 %v2305, 32
        %v4154 = vpop.permute.xlu0 %4153
        %4155 = vrot.lane.b32.xlu0 %v2306, 32
        %v4156 = vpop.permute.xlu0 %4155
        %4157 = vrot.lane.b32.xlu0 %v2307, 32
        %v4158 = vpop.permute.xlu0 %4157
        %4159 = vrot.lane.b32.xlu0 %v2308, 32
        %v4160 = vpop.permute.xlu0 %4159
        %4161 = vrot.lane.b32.xlu0 %v2309, 32
        %v4162 = vpop.permute.xlu0 %4161
        %4163 = vrot.lane.b32.xlu0 %v2310, 32
        %v4164 = vpop.permute.xlu0 %4163
        %4165 = vrot.lane.b32.xlu0 %v2311, 32
        %v4166 = vpop.permute.xlu0 %4165
        %4167 = vrot.lane.b32.xlu0 %v2312, 32
        %v4168 = vpop.permute.xlu0 %4167
        %4201 = vrot.lane.b32.xlu0 %v3201, 64
        %v4202 = vpop.permute.xlu0 %4201
        %4203 = vrot.lane.b32.xlu0 %v3202, 64
        %v4204 = vpop.permute.xlu0 %4203
        %4205 = vrot.lane.b32.xlu0 %v3203, 64
        %v4206 = vpop.permute.xlu0 %4205
        %4207 = vrot.lane.b32.xlu0 %v3204, 64
        %v4208 = vpop.permute.xlu0 %4207
        %4209 = vrot.lane.b32.xlu0 %v3205, 64
        %v4210 = vpop.permute.xlu0 %4209
        %4211 = vrot.lane.b32.xlu0 %v3206, 64
        %v4212 = vpop.permute.xlu0 %4211
        %4213 = vrot.lane.b32.xlu0 %v3207, 64
        %v4214 = vpop.permute.xlu0 %4213
        %4215 = vrot.lane.b32.xlu0 %v3208, 64
        %v4216 = vpop.permute.xlu0 %4215
        %4217 = vrot.lane.b32.xlu0 %v3209, 64
        %v4218 = vpop.permute.xlu0 %4217
        %4219 = vrot.lane.b32.xlu0 %v3210, 64
        %v4220 = vpop.permute.xlu0 %4219
        %4221 = vrot.lane.b32.xlu0 %v3211, 64
        %v4222 = vpop.permute.xlu0 %4221
        %4223 = vrot.lane.b32.xlu0 %v3212, 64
        %v4224 = vpop.permute.xlu0 %4223
        %4225 = vrot.lane.b32.xlu0 %v3213, 64
        %v4226 = vpop.permute.xlu0 %4225
        %4227 = vrot.lane.b32.xlu0 %v3214, 64
        %v4228 = vpop.permute.xlu0 %4227
        %4229 = vrot.lane.b32.xlu0 %v3215, 64
        %v4230 = vpop.permute.xlu0 %4229
        %4231 = vrot.lane.b32.xlu0 %v3216, 64
        %v4232 = vpop.permute.xlu0 %4231
        %4265 = vrot.lane.b32.xlu0 %v4105, 96
        %v4266 = vpop.permute.xlu0 %4265
        %4267 = vrot.lane.b32.xlu0 %v4106, 96
        %v4268 = vpop.permute.xlu0 %4267
        %4269 = vrot.lane.b32.xlu0 %v4107, 96
        %v4270 = vpop.permute.xlu0 %4269
        %4271 = vrot.lane.b32.xlu0 %v4108, 96
        %v4272 = vpop.permute.xlu0 %4271
        %4273 = vrot.lane.b32.xlu0 %v4109, 96
        %v4274 = vpop.permute.xlu0 %4273
        %4275 = vrot.lane.b32.xlu0 %v4110, 96
        %v4276 = vpop.permute.xlu0 %4275
        %4277 = vrot.lane.b32.xlu0 %v4111, 96
        %v4278 = vpop.permute.xlu0 %4277
        %4279 = vrot.lane.b32.xlu0 %v4112, 96
        %v4280 = vpop.permute.xlu0 %4279
        %4281 = vrot.lane.b32.xlu0 %v4113, 96
        %v4282 = vpop.permute.xlu0 %4281
        %4283 = vrot.lane.b32.xlu0 %v4114, 96
        %v4284 = vpop.permute.xlu0 %4283
        %4285 = vrot.lane.b32.xlu0 %v4115, 96
        %v4286 = vpop.permute.xlu0 %4285
        %4287 = vrot.lane.b32.xlu0 %v4116, 96
        %v4288 = vpop.permute.xlu0 %4287
        %4289 = vrot.lane.b32.xlu0 %v4117, 96
        %v4290 = vpop.permute.xlu0 %4289
        %4291 = vrot.lane.b32.xlu0 %v4118, 96
        %v4292 = vpop.permute.xlu0 %4291
        %4293 = vrot.lane.b32.xlu0 %v4119, 96
        %v4294 = vpop.permute.xlu0 %4293
        %4295 = vrot.lane.b32.xlu0 %v4120, 96
        %v4296 = vpop.permute.xlu0 %4295
        %v4313 = vsel %vm341, %v1393, %v4138
        %v4314 = vsel %vm341, %v1394, %v4140
        %v4315 = vsel %vm341, %v1395, %v4142
        %v4316 = vsel %vm341, %v1396, %v4144
        %v4317 = vsel %vm341, %v1397, %v4146
        %v4318 = vsel %vm341, %v1398, %v4148
        %v4319 = vsel %vm341, %v1399, %v4150
        %v4320 = vsel %vm341, %v1400, %v4152
        %v4321 = vsel %vm341, %v1401, %v4154
        %v4322 = vsel %vm341, %v1402, %v4156
        %v4323 = vsel %vm341, %v1403, %v4158
        %v4324 = vsel %vm341, %v1404, %v4160
        %v4325 = vsel %vm341, %v1405, %v4162
        %v4326 = vsel %vm341, %v1406, %v4164
        %v4327 = vsel %vm341, %v1407, %v4166
        %v4328 = vsel %vm341, %v1408, %v4168
        %vm4329 = vcmask 523264
        %v4330 = vsel %vm4329, %v4313, %v4202
        %v4331 = vsel %vm4329, %v4314, %v4204
        %v4332 = vsel %vm4329, %v4315, %v4206
        %v4333 = vsel %vm4329, %v4316, %v4208
        %v4334 = vsel %vm4329, %v4317, %v4210
        %v4335 = vsel %vm4329, %v4318, %v4212
        %v4336 = vsel %vm4329, %v4319, %v4214
        %v4337 = vsel %vm4329, %v4320, %v4216
        %v4338 = vsel %vm4329, %v4321, %v4218
        %v4339 = vsel %vm4329, %v4322, %v4220
        %v4340 = vsel %vm4329, %v4323, %v4222
        %v4341 = vsel %vm4329, %v4324, %v4224
        %v4342 = vsel %vm4329, %v4325, %v4226
        %v4343 = vsel %vm4329, %v4326, %v4228
        %v4344 = vsel %vm4329, %v4327, %v4230
        %v4345 = vsel %vm4329, %v4328, %v4232
        %vm4346 = vcmask 785408
        %v4347 = vsel %vm4346, %v4330, %v4266
        %v4348 = vsel %vm4346, %v4331, %v4268
        %v4349 = vsel %vm4346, %v4332, %v4270
        %v4350 = vsel %vm4346, %v4333, %v4272
        %v4351 = vsel %vm4346, %v4334, %v4274
        %v4352 = vsel %vm4346, %v4335, %v4276
        %v4353 = vsel %vm4346, %v4336, %v4278
        %v4354 = vsel %vm4346, %v4337, %v4280
        %v4355 = vsel %vm4346, %v4338, %v4282
        %v4356 = vsel %vm4346, %v4339, %v4284
        %v4357 = vsel %vm4346, %v4340, %v4286
        %v4358 = vsel %vm4346, %v4341, %v4288
        %v4359 = vsel %vm4346, %v4342, %v4290
        %v4360 = vsel %vm4346, %v4343, %v4292
        %v4361 = vsel %vm4346, %v4344, %v4294
        %v4362 = vsel %vm4346, %v4345, %v4296
        %4363 = vst [vmem:[%s279] sm:$0xff] %v4347
        %4364 = vst [vmem:[%s279 + $0x8] sm:$0xff] %v4348
        %4365 = vst [vmem:[%s279 + $0x10] sm:$0xff] %v4349
        %4366 = vst [vmem:[%s279 + $0x18] sm:$0xff] %v4350
        %4367 = vst [vmem:[%s279 + $0x20] sm:$0xff] %v4351
        %4368 = vst [vmem:[%s279 + $0x28] sm:$0xff] %v4352
        %4369 = vst [vmem:[%s279 + $0x30] sm:$0xff] %v4353
        %4370 = vst [vmem:[%s279 + $0x38] sm:$0xff] %v4354
        %4371 = vst [vmem:[%s279 + $0x40] sm:$0xff] %v4355
        %4372 = vst [vmem:[%s279 + $0x48] sm:$0xff] %v4356
        %4373 = vst [vmem:[%s279 + $0x50] sm:$0xff] %v4357
        %4374 = vst [vmem:[%s279 + $0x58] sm:$0xff] %v4358
        %4375 = vst [vmem:[%s279 + $0x60] sm:$0xff] %v4359
        %4376 = vst [vmem:[%s279 + $0x68] sm:$0xff] %v4360
        %4377 = vst [vmem:[%s279 + $0x70] sm:$0xff] %v4361
        %4378 = vst [vmem:[%s279 + $0x78] sm:$0xff] %v4362
        %s4379 = sand.u32 %s169, 1
        %s4380 = scalar_lea.sflag [#allocation3], %s4379
        %s4381 = sand.u32 %s169, 1
        %s4382 = smul.addr %s4381, 128
        %s4383 = scalar_lea.vmem [#allocation2], %s4382
        // Predicated region
        $region45: #{multi_head_gat_forward.3} parent=43 // pred_check
          %p4384 = pneg %p179
        $region46: #{multi_head_gat_forward.3} parent=43 // pred_check_branch
          %4386 = sbr.rel (%p4384) target = $region48
        $region47: #{multi_head_gat_forward.3} parent=43 // pred_region
          %s4387 = smul.u32 16, %s20
          %4389 = vsyncadd %s4380, 0
          %s4390 = smul.addr %s4387, 8
          %s4391 = scalar_lea.hbm %s6, %s4390
          %s4392 = sshll.u32 %s4383, 4
          %s4393 = int_to_ptr.vmem [resolvable:$true] %s4392
          %s4394 = sshll.u32 %s4391, 4
          %s4395 = int_to_ptr.hbm [resolvable:$true] %s4394
          %4400 = dma.vmem_to_hbm [thread:$0]  %s4393, 2048, %s4395, %s4380, 128, 128, 8
        $region48: #{multi_head_gat_forward.3} parent=43 // pred_fallthru
          _
      $region44: #{multi_head_gat_forward.3} parent=5 // pred_fallthru
        _
      %p4401 = scmp.le.s32.totalorder 2, %s15
      // Predicated region
      $region49: #{multi_head_gat_forward.3} parent=5 // pred_check
        %p4402 = pneg %p4401
      $region50: #{multi_head_gat_forward.3} parent=5 // pred_check_branch
        %4404 = sbr.rel (%p4402) target = $region52
      $region51: #{multi_head_gat_forward.3} parent=5 // pred_region
        %s4405 = ssub.s32 %s15, 2
        // Predicated region
        $region53: #{multi_head_gat_forward.3} parent=51 // pred_check
          %p4406 = pneg %p185
        $region54: #{multi_head_gat_forward.3} parent=51 // pred_check_branch
          %4408 = sbr.rel (%p4406) target = $region56
        $region55: #{multi_head_gat_forward.3} parent=51 // pred_region
          %s4409 = sand.u32 %s170, 1
          %s4410 = scalar_lea.sflag [#allocation3], %s4409
          %s4411 = sand.u32 %s170, 1
          %s4412 = smul.addr %s4411, 128
          %s4413 = scalar_lea.vmem [#allocation2], %s4412
          %4415 = dma.done %s4410, 2048
        $region56: #{multi_head_gat_forward.3} parent=51 // pred_fallthru
          _
      $region52: #{multi_head_gat_forward.3} parent=5 // pred_fallthru
        _
    $region6: #{multi_head_gat_forward.3} parent=1 // loop_footer
      %s19 = sadd.s32 1, %s15
    $region7: #{multi_head_gat_forward.3} parent=1 // loop_footer_branch
      %14 = sbr.rel target = $region3
    $region8: #{multi_head_gat_forward.3} parent=1 // loop_exit
      _
    %4416 = vsyncpa [#allocation3], 1
    %s4417 = scalar_lea.sflag [#allocation3], 1
    %4418 = vsyncpa %s4417, 1

</llo_original>
